<compile_context>
chip_gen: v5e
topology: v5e:2x2
jax: 0.10.0
libtpu: 0.0.40
codegen_flags: <defaults>
</compile_context>

<pallas_src>
import functools

import jax
import jax.numpy as jnp
from jax.experimental import pallas as pl
from jax.experimental.pallas import tpu as pltpu


def _round_up(a, m):
    return -(-a // m) * m


# ----------------------------- Pallas kernel -----------------------------

def _convlstm_kernel(gx_ref, w_ref, out_ref, h_scr, c_scr, zcol_scr,
                     *, T, Wp, W, Ch, Mp, HPAD):
    """One (batch, time) grid step of the ConvLSTM recurrence.

    gx_ref  : (Mp, 4*Ch)        f32, precomputed conv(x_t, Wx) + bias, gates [i|f|o|c]
    w_ref   : (9*Ch, 4*Ch)      bf16, tap-major recurrent conv weights Wh, gates [i|f|o|c]
    out_ref : (Mp, Ch)          f32, final hidden state (junk columns dropped in wrapper)
    h_scr   : (HPAD + R, Ch)    f32 VMEM, zero-padded recurrent h (flat row = y_pad*Wp + x_pad)
    c_scr   : (Mp, Ch)          f32 VMEM, recurrent cell state
    zcol_scr: (Mp, 9*Ch)        bf16 VMEM, per-step h-im2col buffer
    """
    t = pl.program_id(1)
    hw_off = HPAD + Wp + 1     # multiple of 8: sublane-aligned h write-back offset

    # init_hidden: h = 0, c = 0 at the first time step of each batch element.
    @pl.when(t == 0)
    def _init():
        h_scr[...] = jnp.zeros_like(h_scr)
        c_scr[...] = jnp.zeros_like(c_scr)

    # Build the h-im2col: tap (dy, dx) is a row slice of the padded recurrent state at
    # offset dy*Wp + dx.  The centre taps (dx=1) and the write-back are 8-row aligned;
    # dx=0/2 are +-1 rows off.  The 9 taps are lane-concatenated and written with ONE
    # contiguous full-width store (no masked 32-lane column stores).
    # TODO(synk): derive the dx=0/2 taps from the aligned centre slab with
    # pltpu.roll(axis=0) to share a single aligned load per dy row.
    taps = []
    for dy in range(3):
        for dx in range(3):
            off = HPAD + dy * Wp + dx
            taps.append(h_scr[off:off + Mp, :])
    zcol_scr[...] = jnp.concatenate(taps, axis=-1).astype(jnp.bfloat16)

    # gates = (hoisted conv(x, Wx) + bias) + conv(h, Wh): one K=9*Ch bf16 MXU matmul
    # with f32 accumulation, lane-dense (Mp, 4*Ch = 128) result.
    gates = gx_ref[...] + jnp.dot(zcol_scr[...], w_ref[...],
                                  preferred_element_type=jnp.float32)

    # Gate order is [i | f | o | c]: one sigmoid over a contiguous 3*Ch slab, tanh on
    # the last Ch.  Peephole terms (c*Wci, c*Wcf, cc*Wco) are omitted: init_hidden
    # creates Wci/Wcf/Wco as zeros and they are never trained.
    # TODO(synk): add a static flag + peephole inputs if non-zero peepholes ever need
    # to be supported.
    s = jax.nn.sigmoid(gates[:, :3 * Ch])
    i_g = s[:, 0 * Ch:1 * Ch]
    f_g = s[:, 1 * Ch:2 * Ch]
    o_g = s[:, 2 * Ch:3 * Ch]
    c_hat = jnp.tanh(gates[:, 3 * Ch:4 * Ch])

    c_new = f_g * c_scr[...] + i_g * c_hat
    h_new = o_g * jnp.tanh(c_new)

    @pl.when(t < T - 1)
    def _carry():
        # Carry state to the next step.  Junk columns (flattened x >= W) are zeroed so
        # the zero padding of h_scr stays intact for the next step's conv taps.  The
        # mask is generated in-kernel (iota + compare); the select runs in f32 and h
        # stays f32 in VMEM (it is cast to bf16 once when the im2col is built).
        col = jax.lax.broadcasted_iota(jnp.int32, (Mp, Ch), 0) % Wp
        valid = col < W
        c_scr[...] = c_new
        h_scr[hw_off:hw_off + Mp, :] = jnp.where(valid, h_new, 0.0)

    @pl.when(t == T - 1)
    def _final():
        # Only the final hidden state leaves the kernel (ConvLSTMbase returns h).
        # Junk columns contain garbage; the wrapper slices [:, :, :W, :].
        out_ref[...] = h_new


# ----------------------------- pallas_call wrapper -----------------------------

@jax.jit
def convlstm_forward(xs_nchw, wx, wh, bias):
    """ConvLSTMbase.forward over a chronologically ordered frame stack.

    xs_nchw: (B, T, Cin, H, W) frames, oldest first.
    wx     : (3, 3, Cin, 4*Ch) HWIO conv weights, gates concatenated [i|f|c|o].
    wh     : (3, 3, Ch,  4*Ch) HWIO conv weights (Wh* convs have no bias).
    bias   : (4*Ch,) combined bias of the Wx* convs, [i|f|c|o].
    Returns the final hidden state as NCHW (B, Ch, H, W).
    """
    B, T, Cin, H, W = xs_nchw.shape
    Ch = wh.shape[2]
    G4 = 4 * Ch
    K = 9 * Ch
    # All row-sliced arrays in the kernel are f32, so a multiple-of-8 row stride gives
    # native sublane alignment for the centre taps and the h write-back.
    Wp = _round_up(W + 2, 8)           # padded width -> flattened row stride
    Mp = H * Wp                        # flattened conv-output rows (incl. junk cols x>=W)
    R = (H + 3) * Wp                   # top pad row + H rows + bottom pad rows + slack
    HPAD = (-(Wp + 1)) % 8             # leading rows so hw_off = HPAD + Wp + 1 is 8-aligned

    # Reorder gate blocks [i|f|c|o] -> [i|f|o|c] so sigmoid covers one contiguous slab.
    def _reorder(a):
        gi, gf, gc, go = jnp.split(a, 4, axis=-1)
        return jnp.concatenate([gi, gf, go, gc], axis=-1)

    wx_r = _reorder(wx)
    wh_r = _reorder(wh)
    b_r = _reorder(bias.reshape(1, G4)).reshape(G4).astype(jnp.float32)

    # Hoisted input conv: gates_x[b, t] = conv(x[b, t], Wx) + bias (bf16 operands,
    # f32 accumulation -- same quantization as the kernel matmul), flattened to the
    # kernel's (Mp, 4*Ch) row layout with zero junk columns.
    x_nhwc = jnp.transpose(xs_nchw, (0, 1, 3, 4, 2)).reshape(B * T, H, W, Cin)
    gx = jax.lax.conv_general_dilated(
        x_nhwc.astype(jnp.bfloat16), wx_r.astype(jnp.bfloat16),
        window_strides=(1, 1), padding='SAME',
        dimension_numbers=('NHWC', 'HWIO', 'NHWC'),
        preferred_element_type=jnp.float32)
    gx = gx + b_r.reshape(1, 1, 1, G4)
    gx = jnp.pad(gx, ((0, 0), (0, 0), (0, Wp - W), (0, 0)))
    gx = gx.reshape(B, T, Mp, G4)

    # Recurrent conv weights, tap-major (dy, dx, ci) rows, bf16 for the MXU.
    w_h = wh_r.reshape(K, G4).astype(jnp.bfloat16)

    kernel = functools.partial(_convlstm_kernel, T=T, Wp=Wp, W=W, Ch=Ch,
                               Mp=Mp, HPAD=HPAD)

    cost = pl.CostEstimate(
        flops=B * T * (2 * Mp * K * G4 + 10 * Mp * Ch),
        transcendentals=B * T * Mp * 5 * Ch,
        bytes_accessed=B * T * Mp * G4 * 4 + K * G4 * 2 + B * Mp * Ch * 4)

    # TODO(synk): add H-row tiling (1-row halo) sized from
    # pltpu.get_tpu_info().vmem_capacity_bytes before scaling to production pcdet
    # feature maps (v7x has 64 MiB VMEM, half of v5e/v6e).
    out = pl.pallas_call(
        kernel,
        out_shape=jax.ShapeDtypeStruct((B, Mp, Ch), jnp.float32),
        grid_spec=pltpu.PrefetchScalarGridSpec(
            num_scalar_prefetch=0,
            grid=(B, T),
            in_specs=[
                pl.BlockSpec((None, None, Mp, G4), lambda b, t: (b, t, 0, 0)),
                pl.BlockSpec((K, G4), lambda b, t: (0, 0)),
            ],
            out_specs=pl.BlockSpec((None, Mp, Ch), lambda b, t: (b, 0, 0)),
            scratch_shapes=[
                pltpu.VMEM((HPAD + R, Ch), jnp.float32),   # padded recurrent h
                pltpu.VMEM((Mp, Ch), jnp.float32),         # recurrent c
                pltpu.VMEM((Mp, K), jnp.bfloat16),         # per-step h-im2col buffer
            ],
        ),
        compiler_params=pltpu.CompilerParams(
            dimension_semantics=("parallel", "arbitrary")),
        cost_estimate=cost,
    )(gx, w_h)

    # Drop the junk columns introduced by the Wp padding, back to NCHW.
    h = out.reshape(B, H, Wp, Ch)[:, :, :W, :]
    return jnp.transpose(h, (0, 3, 1, 2))


# ----------------------------- module wrapper -----------------------------

def convlstm_module_forward(batch_dict, num_frames, params):
    """Mirrors ConvLSTM.forward: gathers spatial_features{,-1,-2,...}, runs the
    ConvLSTM over them in sorted (chronological) time order, writes
    'temporal_features' back into batch_dict (NCHW)."""
    feats = {0: batch_dict['spatial_features']}
    for i in range(1, num_frames):
        name = 'spatial_features' + str(-i)
        if name in batch_dict:
            feats[-i] = batch_dict[name]
    keys = sorted(feats.keys())                 # oldest first, current frame (0) last
    xs = jnp.stack([feats[k] for k in keys], axis=1)   # (B, T, Cin, H, W)
    batch_dict['temporal_features'] = convlstm_forward(
        xs, params['wx'], params['wh'], params['bias'])
    return batch_dict


# ----------------------------- pure-JAX reference -----------------------------

def _conv_same(x, w):
    return jax.lax.conv_general_dilated(
        x, w, window_strides=(1, 1), padding='SAME',
        dimension_numbers=('NHWC', 'HWIO', 'NHWC'),
        preferred_element_type=jnp.float32)


def convlstm_ref(xs_nhwc, wx, wh, bias):
    """xs_nhwc: (T, B, H, W, Cin), chronological order.  Uses the same
    bf16-operand / f32-accumulate quantization as the kernel."""
    T, B, H, W, _ = xs_nhwc.shape
    Ch = wh.shape[2]
    h = jnp.zeros((B, H, W, Ch), jnp.float32)
    c = jnp.zeros((B, H, W, Ch), jnp.float32)
    wxb = wx.astype(jnp.bfloat16)
    whb = wh.astype(jnp.bfloat16)
    for t in range(T):
        g = (_conv_same(xs_nhwc[t].astype(jnp.bfloat16), wxb)
             + _conv_same(h.astype(jnp.bfloat16), whb)
             + bias.reshape(1, 1, 1, -1))
        gi, gf, gc, go = jnp.split(g, 4, axis=-1)
        ci = jax.nn.sigmoid(gi)          # peephole terms are zero (Wci/Wcf/Wco = 0)
        cf = jax.nn.sigmoid(gf)
        cc = cf * c + ci * jnp.tanh(gc)
        co = jax.nn.sigmoid(go)
        h = co * jnp.tanh(cc)
        c = cc
    return h


# ----------------------------- main -----------------------------

if __name__ == "__main__":
    # Small shapes consistent with the module: num_features == input_channels
    # == hidden_channels, kernel_size = 3, num_frames frames.
    B, F, H, W = 2, 32, 16, 16
    num_frames = 3
    Cin = Ch = F
    assert Ch % 2 == 0

    key = jax.random.PRNGKey(0)
    ks = jax.random.split(key, 13)

    # Per-gate conv weights in HWIO layout (a real port would transpose the
    # PyTorch OIHW Conv2d weights with w.permute(2, 3, 1, 0)).  Wx* convs have
    # a bias, Wh* convs do not (as in ConvLSTMCell).
    def _w(k, cin):
        return 0.1 * jax.random.normal(k, (3, 3, cin, Ch), jnp.float32)

    Wxi, Wxf, Wxc, Wxo = (_w(ks[i], Cin) for i in range(4))
    Whi, Whf, Whc, Who = (_w(ks[4 + i], Ch) for i in range(4))
    bxi, bxf, bxc, bxo = (0.1 * jax.random.normal(ks[8 + i], (Ch,), jnp.float32)
                          for i in range(4))

    params = {
        'wx': jnp.concatenate([Wxi, Wxf, Wxc, Wxo], axis=3),   # (3,3,Cin,4*Ch)
        'wh': jnp.concatenate([Whi, Whf, Whc, Who], axis=3),   # (3,3,Ch, 4*Ch)
        'bias': jnp.concatenate([bxi, bxf, bxc, bxo]),         # (4*Ch,)
    }
    # Peepholes Wci/Wcf/Wco are created as zeros in init_hidden -> omitted.

    # Build a batch_dict like the PyTorch module expects (NCHW frames).
    frames = jax.random.normal(ks[12], (num_frames, B, Cin, H, W), jnp.float32)
    batch_dict = {'spatial_features': frames[0]}
    for i in range(1, num_frames):
        batch_dict['spatial_features' + str(-i)] = frames[i]

    out = convlstm_module_forward(batch_dict, num_frames, params)
    temporal = jax.block_until_ready(out['temporal_features'])
    assert temporal.shape == (B, Ch, H, W)

    # Pure-JAX reference with the same chronological ordering (-(T-1), ..., -1, 0).
    keys_sorted = sorted([0] + [-i for i in range(1, num_frames)])
    xs_ref = jnp.stack(
        [jnp.transpose(frames[-k], (0, 2, 3, 1)) for k in keys_sorted], axis=0)
    ref = convlstm_ref(xs_ref, params['wx'], params['wh'], params['bias'])
    ref_nchw = jnp.transpose(ref, (0, 3, 1, 2))

    err = float(jnp.max(jnp.abs(temporal - ref_nchw)))
    if not jnp.allclose(temporal, ref_nchw, rtol=5e-3, atol=5e-3):
        raise AssertionError(
            f"Pallas ConvLSTM output mismatch vs reference (max abs err {err:.3e})")
    print("KERNEL_OK")
</pallas_src>

<mosaic_0001>
module attributes {stable_mosaic.version = 11 : i64} {
  func.func @_convlstm_kernel(%arg0: i32, %arg1: i32, %arg2: memref<1x1x384x128xf32, #tpu.memory_space<vmem>>, %arg3: memref<288x128xbf16, #tpu.memory_space<vmem>>, %arg4: memref<1x384x32xf32, #tpu.memory_space<vmem>>, %arg5: memref<463x32xf32, #tpu.memory_space<vmem>>, %arg6: memref<384x32xf32, #tpu.memory_space<vmem>>, %arg7: memref<384x288xbf16, #tpu.memory_space<vmem>>) attributes {dimension_semantics = [#tpu.dimension_semantics<parallel>, #tpu.dimension_semantics<arbitrary>], iteration_bounds = array<i64: 2, 3>, scalar_prefetch = 0 : i64, scratch_operands = 3 : i64, tpu.core_type = #tpu.core_type<tc>, window_params = [{transform_indices = @transform_0, window_bounds = array<i64: 1, 1, 384, 128>}, {pipeline_mode = #tpu.pipeline_mode<synchronous>, transform_indices = @transform_1, window_bounds = array<i64: 288, 128>}, {transform_indices = @transform_2, window_bounds = array<i64: 1, 384, 32>}]} {
    %c0_i32 = arith.constant 0 : i32
    %0 = arith.cmpi eq, %arg1, %c0_i32 : i32
    %1 = arith.extui %0 : i1 to i32
    %c0_i32_0 = arith.constant 0 : i32
    %2 = arith.cmpi ne, %1, %c0_i32_0 : i32
    scf.if %2 {
      %cst_25 = arith.constant 0.000000e+00 : f32
      %44 = vector.broadcast %cst_25 : f32 to vector<463x32xf32>
      %c0_26 = arith.constant 0 : index
      %c0_27 = arith.constant 0 : index
      %45 = vector.load %arg5[%c0_26, %c0_27] : memref<463x32xf32, #tpu.memory_space<vmem>>, vector<463x32xf32>
      tpu.vector_store %arg5[%c0_26, %c0_27], %44 {strides = array<i32>} : memref<463x32xf32, #tpu.memory_space<vmem>>, vector<463x32xf32>,
      %cst_28 = arith.constant 0.000000e+00 : f32
      %46 = vector.broadcast %cst_28 : f32 to vector<384x32xf32>
      %c0_29 = arith.constant 0 : index
      %c0_30 = arith.constant 0 : index
      %47 = vector.load %arg6[%c0_29, %c0_30] : memref<384x32xf32, #tpu.memory_space<vmem>>, vector<384x32xf32>
      tpu.vector_store %arg6[%c0_29, %c0_30], %46 {strides = array<i32>} : memref<384x32xf32, #tpu.memory_space<vmem>>, vector<384x32xf32>,
    } else {
    }
    %c7 = arith.constant 7 : index
    %c0 = arith.constant 0 : index
    %3 = vector.load %arg5[%c7, %c0] : memref<463x32xf32, #tpu.memory_space<vmem>>, vector<384x32xf32>
    %c8 = arith.constant 8 : index
    %c0_1 = arith.constant 0 : index
    %4 = vector.load %arg5[%c8, %c0_1] : memref<463x32xf32, #tpu.memory_space<vmem>>, vector<384x32xf32>
    %c9 = arith.constant 9 : index
    %c0_2 = arith.constant 0 : index
    %5 = vector.load %arg5[%c9, %c0_2] : memref<463x32xf32, #tpu.memory_space<vmem>>, vector<384x32xf32>
    %c31 = arith.constant 31 : index
    %c0_3 = arith.constant 0 : index
    %6 = vector.load %arg5[%c31, %c0_3] : memref<463x32xf32, #tpu.memory_space<vmem>>, vector<384x32xf32>
    %c32 = arith.constant 32 : index
    %c0_4 = arith.constant 0 : index
    %7 = vector.load %arg5[%c32, %c0_4] : memref<463x32xf32, #tpu.memory_space<vmem>>, vector<384x32xf32>
    %c33 = arith.constant 33 : index
    %c0_5 = arith.constant 0 : index
    %8 = vector.load %arg5[%c33, %c0_5] : memref<463x32xf32, #tpu.memory_space<vmem>>, vector<384x32xf32>
    %c55 = arith.constant 55 : index
    %c0_6 = arith.constant 0 : index
    %9 = vector.load %arg5[%c55, %c0_6] : memref<463x32xf32, #tpu.memory_space<vmem>>, vector<384x32xf32>
    %c56 = arith.constant 56 : index
    %c0_7 = arith.constant 0 : index
    %10 = vector.load %arg5[%c56, %c0_7] : memref<463x32xf32, #tpu.memory_space<vmem>>, vector<384x32xf32>
    %c57 = arith.constant 57 : index
    %c0_8 = arith.constant 0 : index
    %11 = vector.load %arg5[%c57, %c0_8] : memref<463x32xf32, #tpu.memory_space<vmem>>, vector<384x32xf32>
    %12 = tpu.concatenate %3, %4, %5, %6, %7, %8, %9, %10, %11 in 1 : vector<384x32xf32>, vector<384x32xf32>, vector<384x32xf32>, vector<384x32xf32>, vector<384x32xf32>, vector<384x32xf32>, vector<384x32xf32>, vector<384x32xf32>, vector<384x32xf32> -> vector<384x288xf32>
    %13 = arith.truncf %12 : vector<384x288xf32> to vector<384x288xbf16>
    %c0_9 = arith.constant 0 : index
    %c0_10 = arith.constant 0 : index
    %14 = vector.load %arg7[%c0_9, %c0_10] : memref<384x288xbf16, #tpu.memory_space<vmem>>, vector<384x288xbf16>
    tpu.vector_store %arg7[%c0_9, %c0_10], %13 {strides = array<i32>} : memref<384x288xbf16, #tpu.memory_space<vmem>>, vector<384x288xbf16>,
    %c0_11 = arith.constant 0 : index
    %c0_12 = arith.constant 0 : index
    %c0_13 = arith.constant 0 : index
    %c0_14 = arith.constant 0 : index
    %15 = vector.load %arg2[%c0_11, %c0_12, %c0_13, %c0_14] : memref<1x1x384x128xf32, #tpu.memory_space<vmem>>, vector<1x1x384x128xf32>
    %16 = vector.shape_cast %15 : vector<1x1x384x128xf32> to vector<384x128xf32>
    %c0_15 = arith.constant 0 : index
    %c0_16 = arith.constant 0 : index
    %17 = vector.load %arg7[%c0_15, %c0_16] : memref<384x288xbf16, #tpu.memory_space<vmem>>, vector<384x288xbf16>
    %c0_17 = arith.constant 0 : index
    %c0_18 = arith.constant 0 : index
    %18 = vector.load %arg3[%c0_17, %c0_18] : memref<288x128xbf16, #tpu.memory_space<vmem>>, vector<288x128xbf16>
    %cst = arith.constant dense<0.000000e+00> : vector<384x128xf32>
    %19 = tpu.matmul %17, %18, %cst {dimension_numbers = #tpu.dot_dimension_numbers<[1], [0], [0], [1], [0, 0, 1, 1], [], []>} : vector<384x288xbf16>, vector<288x128xbf16>, vector<384x128xf32> -> vector<384x128xf32>
    %20 = arith.addf %16, %19 : vector<384x128xf32>
    %21 = vector.extract_strided_slice %20 {offsets = [0, 0], sizes = [384, 96], strides = [1, 1]} : vector<384x128xf32> to vector<384x96xf32>
    %22 = arith.negf %21 : vector<384x96xf32>
    %23 = math.exp %22 : vector<384x96xf32>
    %cst_19 = arith.constant 1.000000e+00 : f32
    %24 = vector.broadcast %cst_19 : f32 to vector<384x96xf32>
    %25 = arith.addf %24, %23 : vector<384x96xf32>
    %26 = arith.divf %24, %25 : vector<384x96xf32>
    %27 = vector.extract_strided_slice %26 {offsets = [0, 0], sizes = [384, 32], strides = [1, 1]} : vector<384x96xf32> to vector<384x32xf32>
    %28 = vector.extract_strided_slice %26 {offsets = [0, 32], sizes = [384, 32], strides = [1, 1]} : vector<384x96xf32> to vector<384x32xf32>
    %29 = vector.extract_strided_slice %26 {offsets = [0, 64], sizes = [384, 32], strides = [1, 1]} : vector<384x96xf32> to vector<384x32xf32>
    %30 = vector.extract_strided_slice %20 {offsets = [0, 96], sizes = [384, 32], strides = [1, 1]} : vector<384x128xf32> to vector<384x32xf32>
    %31 = math.tanh %30 : vector<384x32xf32>
    %c0_20 = arith.constant 0 : index
    %c0_21 = arith.constant 0 : index
    %32 = vector.load %arg6[%c0_20, %c0_21] : memref<384x32xf32, #tpu.memory_space<vmem>>, vector<384x32xf32>
    %33 = arith.mulf %28, %32 : vector<384x32xf32>
    %34 = arith.mulf %27, %31 : vector<384x32xf32>
    %35 = arith.addf %33, %34 : vector<384x32xf32>
    %36 = math.tanh %35 : vector<384x32xf32>
    %37 = arith.mulf %29, %36 : vector<384x32xf32>
    %c2_i32 = arith.constant 2 : i32
    %38 = arith.cmpi slt, %arg1, %c2_i32 : i32
    %39 = arith.extui %38 : i1 to i32
    %c0_i32_22 = arith.constant 0 : i32
    %40 = arith.cmpi ne, %39, %c0_i32_22 : i32
    scf.if %40 {
      %44 = tpu.iota {dimensions = array<i32: 0>} : vector<384x32xi32>
      %c24_i32 = arith.constant 24 : i32
      %c0_i32_25 = arith.constant 0 : i32
      %45 = arith.cmpi eq, %c24_i32, %c0_i32_25 : i32
      %c1_i32 = arith.constant 1 : i32
      %46 = arith.select %45, %c1_i32, %c24_i32 : i32
      %47 = vector.broadcast %46 : i32 to vector<384x32xi32>
      %48 = arith.remsi %44, %47 : vector<384x32xi32>
      %c0_i32_26 = arith.constant 0 : i32
      %49 = vector.broadcast %c0_i32_26 : i32 to vector<384x32xi32>
      %50 = arith.cmpi ne, %48, %49 : vector<384x32xi32>
      %c0_i32_27 = arith.constant 0 : i32
      %51 = vector.broadcast %c0_i32_27 : i32 to vector<384x32xi32>
      %52 = arith.cmpi slt, %48, %51 : vector<384x32xi32>
      %c0_i32_28 = arith.constant 0 : i32
      %53 = arith.cmpi slt, %46, %c0_i32_28 : i32
      %54 = vector.broadcast %53 : i1 to vector<384x32xi1>
      %55 = vector.broadcast %54 : vector<384x32xi1> to vector<384x32xi1>
      %56 = arith.xori %52, %55 : vector<384x32xi1>
      %57 = arith.andi %56, %50 : vector<384x32xi1>
      %58 = vector.broadcast %46 : i32 to vector<384x32xi32>
      %59 = arith.addi %48, %58 : vector<384x32xi32>
      %60 = arith.select %57, %59, %48 : vector<384x32xi1>, vector<384x32xi32>
      %c16_i32 = arith.constant 16 : i32
      %61 = vector.broadcast %c16_i32 : i32 to vector<384x32xi32>
      %62 = arith.cmpi slt, %60, %61 : vector<384x32xi32>
      %c0_29 = arith.constant 0 : index
      %c0_30 = arith.constant 0 : index
      %63 = vector.load %arg6[%c0_29, %c0_30] : memref<384x32xf32, #tpu.memory_space<vmem>>, vector<384x32xf32>
      tpu.vector_store %arg6[%c0_29, %c0_30], %35 {strides = array<i32>} : memref<384x32xf32, #tpu.memory_space<vmem>>, vector<384x32xf32>,
      %cst_31 = arith.constant 0.000000e+00 : f32
      %64 = vector.broadcast %cst_31 : f32 to vector<384x32xf32>
      %65 = arith.select %62, %37, %64 : vector<384x32xi1>, vector<384x32xf32>
      %c32_32 = arith.constant 32 : index
      %c0_33 = arith.constant 0 : index
      %66 = vector.load %arg5[%c32_32, %c0_33] : memref<463x32xf32, #tpu.memory_space<vmem>>, vector<384x32xf32>
      tpu.vector_store %arg5[%c32_32, %c0_33], %65 {strides = array<i32>} : memref<463x32xf32, #tpu.memory_space<vmem>>, vector<384x32xf32>,
    } else {
    }
    %c2_i32_23 = arith.constant 2 : i32
    %41 = arith.cmpi eq, %arg1, %c2_i32_23 : i32
    %42 = arith.extui %41 : i1 to i32
    %c0_i32_24 = arith.constant 0 : i32
    %43 = arith.cmpi ne, %42, %c0_i32_24 : i32
    scf.if %43 {
      %c0_25 = arith.constant 0 : index
      %c0_26 = arith.constant 0 : index
      %c0_27 = arith.constant 0 : index
      %44 = vector.load %arg4[%c0_25, %c0_26, %c0_27] : memref<1x384x32xf32, #tpu.memory_space<vmem>>, vector<1x384x32xf32>
      %45 = vector.shape_cast %44 : vector<1x384x32xf32> to vector<384x32xf32>
      %46 = vector.shape_cast %37 : vector<384x32xf32> to vector<1x384x32xf32>
      tpu.vector_store %arg4[%c0_25, %c0_26, %c0_27], %46 {strides = array<i32>} : memref<1x384x32xf32, #tpu.memory_space<vmem>>, vector<1x384x32xf32>,
    } else {
    }
    return
  }
  func.func @transform_0(%arg0: i32, %arg1: i32) -> (i32, i32, i32, i32) {
    %c0_i32 = arith.constant 0 : i32
    %c0_i32_0 = arith.constant 0 : i32
    %c0_i32_1 = arith.constant 0 : i32
    return %arg0, %arg1, %c0_i32, %c0_i32_0 : i32, i32, i32, i32
  }
  func.func @transform_1(%arg0: i32, %arg1: i32) -> (i32, i32) {
    %c0_i32 = arith.constant 0 : i32
    %c0_i32_0 = arith.constant 0 : i32
    %c0_i32_1 = arith.constant 0 : i32
    return %c0_i32, %c0_i32_0 : i32, i32
  }
  func.func @transform_2(%arg0: i32, %arg1: i32) -> (i32, i32, i32) {
    %c0_i32 = arith.constant 0 : i32
    %c0_i32_0 = arith.constant 0 : i32
    %c0_i32_1 = arith.constant 0 : i32
    return %arg0, %c0_i32, %c0_i32_0 : i32, i32, i32
  }
}

</mosaic_0001>

<llo_original>
// kernel: convlstm_forward.1
$region0: #{convlstm_forward.1}
  #allocation0 [shape = 'u32[]', space=smem, size = 0x4, offset = 0x4, fixed_abs, tag = 'smem constant byte address 0x4 - core index']
  #allocation1 [shape = 'u32[72,128]{1,0:T(1,128)}', space=vmem, size = 0x9000, scoped, tag = 'internal scratch']
  #allocation2 [shape = 'f32[463,32]{1,0:T(8,128)}', space=vmem, size = 0x3a000, scoped, tag = 'scratch operand']
  #allocation3 [shape = 'f32[384,32]{1,0:T(8,128)}', space=vmem, size = 0x30000, scoped, tag = 'scratch operand']
  #allocation4 [shape = 'bf16[384,288]{1,0:T(8,128)(2,1)}', space=vmem, size = 0x48000, scoped, tag = 'scratch operand']
  %s0 = inlined_call_operand.vmem [shape: f32[2,3,384,128], index: 0, kind: input, shape index: {}]
  %s1 = inlined_call_operand.vmem [shape: bf16[288,128], index: 1, kind: input, shape index: {}]
  %s2 = inlined_call_operand.vmem [shape: f32[2,384,32], index: 2, kind: output, shape index: {}]
  %s3 = sld [smem:[#allocation0]]
  $region53: #{convlstm_forward.1} parent=0
    _
  %s5 = ssub.s32 1, %s3
  %s6 = scalar_select 0, %s5, %s3
  loop: start=0, step=1, limit=8
  $region2: #{convlstm_forward.1} parent=0 // loop_pre_header
    _
  $region3: #{convlstm_forward.1} parent=0 // loop_header
    %s8 = sphi 0, %s12
    %p9 = scmp.ge.s32.totalorder %s8, 8
    %s15 = sphi 0, %s27
    %s16 = sphi 0, %s23
    %s17 = sphi 0, %s15
    %s18 = sphi 0, %s16
    %s19 = sphi 0, %s17
    %s20 = sphi 0, %s18
    %s32 = sphi 0, %s34
    %s35 = sphi 0, %s32
    %s36 = sphi 0, %s35
    %s52 = sphi 0, %s36
    %s56 = sphi 0, %s56
    %s58 = sphi 0, %s56
    %s59 = sphi 0, %s58
    %s73 = sphi 0, %s59
    %s79 = sphi 0, %s81
    %s82 = sphi 0, %s79
    %s83 = sphi 0, %s82
    %s99 = sphi 0, %s83
  $region4: #{convlstm_forward.1} parent=0 // loop_header_branch
    %11 = sbr.rel (%p9) target = $region8
  $region5: #{convlstm_forward.1} parent=0 // loop_body
    %s13 = ssub.s32 %s8, 1
    %s14 = ssub.s32 %s8, 2
    %s21 = sadd.s32 1, %s16
    %p22 = scmp.ge.s32.totalorder %s21, 3
    %s23 = scalar_select %p22, 0, %s21
    %s24 = sadd.s32 1, %s15
    %s25 = scalar_select %p22, %s24, %s15
    %p26 = scmp.ge.s32.totalorder %s25, 2
    %s27 = scalar_select %p26, 0, %s25
    %s28 = ssub.s32 %s15, %s27
    %s29 = ssub.s32 %s16, %s23
    %s30 = sor.u32 %s28, %s29
    %p31 = scmp.eq.s32.totalorder %s30, 0
    %s33 = sadd.s32 %s32, 1
    %s34 = scalar_select %p31, %s32, %s33
    %p37 = pneg %p31
    %p38 = scmp.eq.s32.totalorder %s8, 5
    %p39 = por %p37, %p38
    %p40 = scmp.ne.s32.totalorder %s32, %s35
    %p41 = scmp.eq.s32.totalorder %s8, 0
    %p42 = por %p40, %p41
    %p43 = scmp.ne.s32.totalorder %s32, %s35
    %p44 = scmp.eq.s32.totalorder %s13, 5
    %p45 = por %p43, %p44
    %p46 = scmp.ne.s32.totalorder %s35, %s36
    %p47 = scmp.eq.s32.totalorder %s13, 0
    %p48 = por %p46, %p47
    %p49 = scmp.ne.s32.totalorder %s35, %s36
    %p50 = scmp.eq.s32.totalorder %s14, 5
    %p51 = por %p49, %p50
    %p53 = scmp.ne.s32.totalorder %s36, %s52
    %p54 = scmp.eq.s32.totalorder %s14, 0
    %p55 = por %p53, %p54
    %s57 = sadd.s32 %s56, 1
    %p60 = scmp.eq.s32.totalorder %s8, 5
    %p61 = scmp.ne.s32.totalorder %s56, %s58
    %p62 = scmp.eq.s32.totalorder %s8, 0
    %p63 = por %p61, %p62
    %p64 = scmp.ne.s32.totalorder %s56, %s58
    %p65 = scmp.eq.s32.totalorder %s13, 5
    %p66 = por %p64, %p65
    %p67 = scmp.ne.s32.totalorder %s58, %s59
    %p68 = scmp.eq.s32.totalorder %s13, 0
    %p69 = por %p67, %p68
    %p70 = scmp.ne.s32.totalorder %s58, %s59
    %p71 = scmp.eq.s32.totalorder %s14, 5
    %p72 = por %p70, %p71
    %p74 = scmp.ne.s32.totalorder %s59, %s73
    %p75 = scmp.eq.s32.totalorder %s14, 0
    %p76 = por %p74, %p75
    %s77 = ssub.s32 %s15, %s27
    %p78 = scmp.eq.s32.totalorder %s77, 0
    %s80 = sadd.s32 %s79, 1
    %s81 = scalar_select %p78, %s79, %s80
    %p84 = pneg %p78
    %p85 = scmp.eq.s32.totalorder %s8, 5
    %p86 = por %p84, %p85
    %p87 = scmp.ne.s32.totalorder %s79, %s82
    %p88 = scmp.eq.s32.totalorder %s8, 0
    %p89 = por %p87, %p88
    %p90 = scmp.ne.s32.totalorder %s79, %s82
    %p91 = scmp.eq.s32.totalorder %s13, 5
    %p92 = por %p90, %p91
    %p93 = scmp.ne.s32.totalorder %s82, %s83
    %p94 = scmp.eq.s32.totalorder %s13, 0
    %p95 = por %p93, %p94
    %p96 = scmp.ne.s32.totalorder %s82, %s83
    %p97 = scmp.eq.s32.totalorder %s14, 5
    %p98 = por %p96, %p97
    %p100 = scmp.ne.s32.totalorder %s83, %s99
    %p101 = scmp.eq.s32.totalorder %s14, 0
    %p102 = por %p100, %p101
    %p103 = scmp.le.s32.totalorder 1, %s8
    %p104 = scmp.lt.s32.totalorder %s8, 7
    %p105 = pnand %p103, %p104
    %p106 = pneg %p105
    // Predicated region
    $region9: #{convlstm_forward.1} parent=5 // pred_check
      _
    $region10: #{convlstm_forward.1} parent=5 // pred_check_branch
      %108 = sbr.rel (%p105) target = $region12
    $region11: #{convlstm_forward.1} parent=5 // pred_region
      %s109 = ssub.s32 %s8, 1
      // Predicated region
      $region13: #{convlstm_forward.1} parent=11 // pred_check
        %p110 = pneg %p69
      $region14: #{convlstm_forward.1} parent=11 // pred_check_branch
        %112 = sbr.rel (%p110) target = $region16
      $region15: #{convlstm_forward.1} parent=11 // pred_region
        _
      $region16: #{convlstm_forward.1} parent=11 // pred_fallthru
        _
    $region12: #{convlstm_forward.1} parent=5 // pred_fallthru
      _
    %p113 = scmp.lt.s32.totalorder %s8, 6
    // Predicated region
    $region17: #{convlstm_forward.1} parent=5 // pred_check
      %p114 = pneg %p113
    $region18: #{convlstm_forward.1} parent=5 // pred_check_branch
      %116 = sbr.rel (%p114) target = $region20
    $region19: #{convlstm_forward.1} parent=5 // pred_region
      // Predicated region
      $region21: #{convlstm_forward.1} parent=19 // pred_check
        %p117 = pneg %p42
      $region22: #{convlstm_forward.1} parent=19 // pred_check_branch
        %119 = sbr.rel (%p117) target = $region24
      $region23: #{convlstm_forward.1} parent=19 // pred_region
        %p120 = scmp.lt.s32.totalorder %s15, 1
        %s121 = scalar_select %p120, %s15, 1
        %p122 = scmp.lt.s32.totalorder %s16, 2
        %s123 = scalar_select %p122, %s16, 2
        %s124 = smul.addr %s123, 48
        %s125 = smul.addr %s121, 144
        %s126 = sadd.s32 %s124, %s125
        %s127 = smul.addr %s126, 8
        %s128 = scalar_lea.vmem %s0, %s127
      $region24: #{convlstm_forward.1} parent=19 // pred_fallthru
        _
    $region20: #{convlstm_forward.1} parent=5 // pred_fallthru
      _
    %p129 = scmp.le.s32.totalorder 1, %s8
    %p130 = scmp.lt.s32.totalorder %s8, 7
    %p131 = pnand %p129, %p130
    %p132 = pneg %p131
    // Predicated region
    $region25: #{convlstm_forward.1} parent=5 // pred_check
      _
    $region26: #{convlstm_forward.1} parent=5 // pred_check_branch
      %134 = sbr.rel (%p131) target = $region28
    $region27: #{convlstm_forward.1} parent=5 // pred_region
      %s135 = ssub.s32 %s8, 1
      %p136 = scmp.lt.s32.totalorder %s17, 1
      %s137 = scalar_select %p136, %s17, 1
      %p138 = scmp.lt.s32.totalorder %s18, 2
      %s139 = scalar_select %p138, %s18, 2
      %s140 = smul.addr %s139, 48
      %s141 = smul.addr %s137, 144
      %s142 = sadd.s32 %s140, %s141
      %s143 = smul.addr %s142, 8
      %s144 = scalar_lea.vmem %s0, %s143
      %p145 = pneg %p48
      %p146 = pneg %p45
      %p147 = pneg %p69
      %p148 = pneg %p66
      %p149 = pneg %p95
      %p150 = pneg %p92
      %p151 = scmp.lt.s32.totalorder %s17, 1
      %s152 = scalar_select %p151, %s17, 1
      %s153 = smul.addr %s152, 48
      %s154 = smul.addr %s153, 8
      %s155 = scalar_lea.vmem %s2, %s154
      %p156 = scmp.lt.s32.totalorder %s17, 1
      %s157 = scalar_select %p156, %s17, 1
      %p158 = scmp.lt.s32.totalorder %s18, 2
      %s159 = scalar_select %p158, %s18, 2
      %s160 = smul.addr %s159, 48
      %s161 = smul.addr %s157, 144
      %s162 = sadd.s32 %s160, %s161
      %s163 = smul.addr %s162, 8
      %s164 = scalar_lea.vmem %s0, %s163
      %p165 = scmp.lt.s32.totalorder %s17, 1
      %s166 = scalar_select %p165, %s17, 1
      %s167 = smul.addr %s166, 48
      %s168 = smul.addr %s167, 8
      %s169 = scalar_lea.vmem %s2, %s168
      %p171 = scmp.eq.s32.totalorder %s18, 0
      // Predicated region
      $region29: #{convlstm_forward.1} parent=27 // pred_check
        %p172 = pneg %p171
      $region30: #{convlstm_forward.1} parent=27 // pred_check_branch
        %174 = sbr.rel (%p172) target = $region32
      $region31: #{convlstm_forward.1} parent=27 // pred_region
        %vm175 = vcmask 261120
        %176 = vst.msk [vmem:[#allocation2] sm:$0xff] %vm175, 0.0
        %177 = vst.msk [vmem:[#allocation2 + $0x8] sm:$0xff] %vm175, 0.0
        %178 = vst.msk [vmem:[#allocation2 + $0x10] sm:$0xff] %vm175, 0.0
        %179 = vst.msk [vmem:[#allocation2 + $0x18] sm:$0xff] %vm175, 0.0
        %180 = vst.msk [vmem:[#allocation2 + $0x20] sm:$0xff] %vm175, 0.0
        %181 = vst.msk [vmem:[#allocation2 + $0x28] sm:$0xff] %vm175, 0.0
        %182 = vst.msk [vmem:[#allocation2 + $0x30] sm:$0xff] %vm175, 0.0
        %183 = vst.msk [vmem:[#allocation2 + $0x38] sm:$0xff] %vm175, 0.0
        %184 = vst.msk [vmem:[#allocation2 + $0x40] sm:$0xff] %vm175, 0.0
        %185 = vst.msk [vmem:[#allocation2 + $0x48] sm:$0xff] %vm175, 0.0
        %186 = vst.msk [vmem:[#allocation2 + $0x50] sm:$0xff] %vm175, 0.0
        %187 = vst.msk [vmem:[#allocation2 + $0x58] sm:$0xff] %vm175, 0.0
        %188 = vst.msk [vmem:[#allocation2 + $0x60] sm:$0xff] %vm175, 0.0
        %189 = vst.msk [vmem:[#allocation2 + $0x68] sm:$0xff] %vm175, 0.0
        %190 = vst.msk [vmem:[#allocation2 + $0x70] sm:$0xff] %vm175, 0.0
        %191 = vst.msk [vmem:[#allocation2 + $0x78] sm:$0xff] %vm175, 0.0
        %192 = vst.msk [vmem:[#allocation2 + $0x80] sm:$0xff] %vm175, 0.0
        %193 = vst.msk [vmem:[#allocation2 + $0x88] sm:$0xff] %vm175, 0.0
        %194 = vst.msk [vmem:[#allocation2 + $0x90] sm:$0xff] %vm175, 0.0
        %195 = vst.msk [vmem:[#allocation2 + $0x98] sm:$0xff] %vm175, 0.0
        %196 = vst.msk [vmem:[#allocation2 + $0xa0] sm:$0xff] %vm175, 0.0
        %197 = vst.msk [vmem:[#allocation2 + $0xa8] sm:$0xff] %vm175, 0.0
        %198 = vst.msk [vmem:[#allocation2 + $0xb0] sm:$0xff] %vm175, 0.0
        %199 = vst.msk [vmem:[#allocation2 + $0xb8] sm:$0xff] %vm175, 0.0
        %200 = vst.msk [vmem:[#allocation2 + $0xc0] sm:$0xff] %vm175, 0.0
        %201 = vst.msk [vmem:[#allocation2 + $0xc8] sm:$0xff] %vm175, 0.0
        %202 = vst.msk [vmem:[#allocation2 + $0xd0] sm:$0xff] %vm175, 0.0
        %203 = vst.msk [vmem:[#allocation2 + $0xd8] sm:$0xff] %vm175, 0.0
        %204 = vst.msk [vmem:[#allocation2 + $0xe0] sm:$0xff] %vm175, 0.0
        %205 = vst.msk [vmem:[#allocation2 + $0xe8] sm:$0xff] %vm175, 0.0
        %206 = vst.msk [vmem:[#allocation2 + $0xf0] sm:$0xff] %vm175, 0.0
        %207 = vst.msk [vmem:[#allocation2 + $0xf8] sm:$0xff] %vm175, 0.0
        %208 = vst.msk [vmem:[#allocation2 + $0x100] sm:$0xff] %vm175, 0.0
        %209 = vst.msk [vmem:[#allocation2 + $0x108] sm:$0xff] %vm175, 0.0
        %210 = vst.msk [vmem:[#allocation2 + $0x110] sm:$0xff] %vm175, 0.0
        %211 = vst.msk [vmem:[#allocation2 + $0x118] sm:$0xff] %vm175, 0.0
        %212 = vst.msk [vmem:[#allocation2 + $0x120] sm:$0xff] %vm175, 0.0
        %213 = vst.msk [vmem:[#allocation2 + $0x128] sm:$0xff] %vm175, 0.0
        %214 = vst.msk [vmem:[#allocation2 + $0x130] sm:$0xff] %vm175, 0.0
        %215 = vst.msk [vmem:[#allocation2 + $0x138] sm:$0xff] %vm175, 0.0
        %216 = vst.msk [vmem:[#allocation2 + $0x140] sm:$0xff] %vm175, 0.0
        %217 = vst.msk [vmem:[#allocation2 + $0x148] sm:$0xff] %vm175, 0.0
        %218 = vst.msk [vmem:[#allocation2 + $0x150] sm:$0xff] %vm175, 0.0
        %219 = vst.msk [vmem:[#allocation2 + $0x158] sm:$0xff] %vm175, 0.0
        %220 = vst.msk [vmem:[#allocation2 + $0x160] sm:$0xff] %vm175, 0.0
        %221 = vst.msk [vmem:[#allocation2 + $0x168] sm:$0xff] %vm175, 0.0
        %222 = vst.msk [vmem:[#allocation2 + $0x170] sm:$0xff] %vm175, 0.0
        %223 = vst.msk [vmem:[#allocation2 + $0x178] sm:$0xff] %vm175, 0.0
        %224 = vst.msk [vmem:[#allocation2 + $0x180] sm:$0xff] %vm175, 0.0
        %225 = vst.msk [vmem:[#allocation2 + $0x188] sm:$0xff] %vm175, 0.0
        %226 = vst.msk [vmem:[#allocation2 + $0x190] sm:$0xff] %vm175, 0.0
        %227 = vst.msk [vmem:[#allocation2 + $0x198] sm:$0xff] %vm175, 0.0
        %228 = vst.msk [vmem:[#allocation2 + $0x1a0] sm:$0xff] %vm175, 0.0
        %229 = vst.msk [vmem:[#allocation2 + $0x1a8] sm:$0xff] %vm175, 0.0
        %230 = vst.msk [vmem:[#allocation2 + $0x1b0] sm:$0xff] %vm175, 0.0
        %231 = vst.msk [vmem:[#allocation2 + $0x1b8] sm:$0xff] %vm175, 0.0
        %232 = vst.msk [vmem:[#allocation2 + $0x1c0] sm:$0xff] %vm175, 0.0
        %vm233 = vcmask 260096
        %234 = vst.msk [vmem:[#allocation2 + $0x1c8] sm:$0x7f] %vm233, 0.0
        %235 = vst.msk [vmem:[#allocation3] sm:$0xff] %vm175, 0.0
        %236 = vst.msk [vmem:[#allocation3 + $0x8] sm:$0xff] %vm175, 0.0
        %237 = vst.msk [vmem:[#allocation3 + $0x10] sm:$0xff] %vm175, 0.0
        %238 = vst.msk [vmem:[#allocation3 + $0x18] sm:$0xff] %vm175, 0.0
        %239 = vst.msk [vmem:[#allocation3 + $0x20] sm:$0xff] %vm175, 0.0
        %240 = vst.msk [vmem:[#allocation3 + $0x28] sm:$0xff] %vm175, 0.0
        %241 = vst.msk [vmem:[#allocation3 + $0x30] sm:$0xff] %vm175, 0.0
        %242 = vst.msk [vmem:[#allocation3 + $0x38] sm:$0xff] %vm175, 0.0
        %243 = vst.msk [vmem:[#allocation3 + $0x40] sm:$0xff] %vm175, 0.0
        %244 = vst.msk [vmem:[#allocation3 + $0x48] sm:$0xff] %vm175, 0.0
        %245 = vst.msk [vmem:[#allocation3 + $0x50] sm:$0xff] %vm175, 0.0
        %246 = vst.msk [vmem:[#allocation3 + $0x58] sm:$0xff] %vm175, 0.0
        %247 = vst.msk [vmem:[#allocation3 + $0x60] sm:$0xff] %vm175, 0.0
        %248 = vst.msk [vmem:[#allocation3 + $0x68] sm:$0xff] %vm175, 0.0
        %249 = vst.msk [vmem:[#allocation3 + $0x70] sm:$0xff] %vm175, 0.0
        %250 = vst.msk [vmem:[#allocation3 + $0x78] sm:$0xff] %vm175, 0.0
        %251 = vst.msk [vmem:[#allocation3 + $0x80] sm:$0xff] %vm175, 0.0
        %252 = vst.msk [vmem:[#allocation3 + $0x88] sm:$0xff] %vm175, 0.0
        %253 = vst.msk [vmem:[#allocation3 + $0x90] sm:$0xff] %vm175, 0.0
        %254 = vst.msk [vmem:[#allocation3 + $0x98] sm:$0xff] %vm175, 0.0
        %255 = vst.msk [vmem:[#allocation3 + $0xa0] sm:$0xff] %vm175, 0.0
        %256 = vst.msk [vmem:[#allocation3 + $0xa8] sm:$0xff] %vm175, 0.0
        %257 = vst.msk [vmem:[#allocation3 + $0xb0] sm:$0xff] %vm175, 0.0
        %258 = vst.msk [vmem:[#allocation3 + $0xb8] sm:$0xff] %vm175, 0.0
        %259 = vst.msk [vmem:[#allocation3 + $0xc0] sm:$0xff] %vm175, 0.0
        %260 = vst.msk [vmem:[#allocation3 + $0xc8] sm:$0xff] %vm175, 0.0
        %261 = vst.msk [vmem:[#allocation3 + $0xd0] sm:$0xff] %vm175, 0.0
        %262 = vst.msk [vmem:[#allocation3 + $0xd8] sm:$0xff] %vm175, 0.0
        %263 = vst.msk [vmem:[#allocation3 + $0xe0] sm:$0xff] %vm175, 0.0
        %264 = vst.msk [vmem:[#allocation3 + $0xe8] sm:$0xff] %vm175, 0.0
        %265 = vst.msk [vmem:[#allocation3 + $0xf0] sm:$0xff] %vm175, 0.0
        %266 = vst.msk [vmem:[#allocation3 + $0xf8] sm:$0xff] %vm175, 0.0
        %267 = vst.msk [vmem:[#allocation3 + $0x100] sm:$0xff] %vm175, 0.0
        %268 = vst.msk [vmem:[#allocation3 + $0x108] sm:$0xff] %vm175, 0.0
        %269 = vst.msk [vmem:[#allocation3 + $0x110] sm:$0xff] %vm175, 0.0
        %270 = vst.msk [vmem:[#allocation3 + $0x118] sm:$0xff] %vm175, 0.0
        %271 = vst.msk [vmem:[#allocation3 + $0x120] sm:$0xff] %vm175, 0.0
        %272 = vst.msk [vmem:[#allocation3 + $0x128] sm:$0xff] %vm175, 0.0
        %273 = vst.msk [vmem:[#allocation3 + $0x130] sm:$0xff] %vm175, 0.0
        %274 = vst.msk [vmem:[#allocation3 + $0x138] sm:$0xff] %vm175, 0.0
        %275 = vst.msk [vmem:[#allocation3 + $0x140] sm:$0xff] %vm175, 0.0
        %276 = vst.msk [vmem:[#allocation3 + $0x148] sm:$0xff] %vm175, 0.0
        %277 = vst.msk [vmem:[#allocation3 + $0x150] sm:$0xff] %vm175, 0.0
        %278 = vst.msk [vmem:[#allocation3 + $0x158] sm:$0xff] %vm175, 0.0
        %279 = vst.msk [vmem:[#allocation3 + $0x160] sm:$0xff] %vm175, 0.0
        %280 = vst.msk [vmem:[#allocation3 + $0x168] sm:$0xff] %vm175, 0.0
        %281 = vst.msk [vmem:[#allocation3 + $0x170] sm:$0xff] %vm175, 0.0
        %282 = vst.msk [vmem:[#allocation3 + $0x178] sm:$0xff] %vm175, 0.0
      $region32: #{convlstm_forward.1} parent=27 // pred_fallthru
        _
      %v283 = vld [vmem:[#allocation2 + $0x7] sm:$0xff]
      %v284 = vld [vmem:[#allocation2 + $0xf] sm:$0xff]
      %v285 = vld [vmem:[#allocation2 + $0x17] sm:$0xff]
      %v286 = vld [vmem:[#allocation2 + $0x1f] sm:$0xff]
      %v287 = vld [vmem:[#allocation2 + $0x27] sm:$0xff]
      %v288 = vld [vmem:[#allocation2 + $0x2f] sm:$0xff]
      %v289 = vld [vmem:[#allocation2 + $0x37] sm:$0xff]
      %v290 = vld [vmem:[#allocation2 + $0x3f] sm:$0xff]
      %v291 = vld [vmem:[#allocation2 + $0x47] sm:$0xff]
      %v292 = vld [vmem:[#allocation2 + $0x4f] sm:$0xff]
      %v293 = vld [vmem:[#allocation2 + $0x57] sm:$0xff]
      %v294 = vld [vmem:[#allocation2 + $0x5f] sm:$0xff]
      %v295 = vld [vmem:[#allocation2 + $0x67] sm:$0xff]
      %v296 = vld [vmem:[#allocation2 + $0x6f] sm:$0xff]
      %v297 = vld [vmem:[#allocation2 + $0x77] sm:$0xff]
      %v298 = vld [vmem:[#allocation2 + $0x7f] sm:$0xff]
      %v299 = vld [vmem:[#allocation2 + $0x87] sm:$0xff]
      %v300 = vld [vmem:[#allocation2 + $0x8f] sm:$0xff]
      %v301 = vld [vmem:[#allocation2 + $0x97] sm:$0xff]
      %v302 = vld [vmem:[#allocation2 + $0x9f] sm:$0xff]
      %v303 = vld [vmem:[#allocation2 + $0xa7] sm:$0xff]
      %v304 = vld [vmem:[#allocation2 + $0xaf] sm:$0xff]
      %v305 = vld [vmem:[#allocation2 + $0xb7] sm:$0xff]
      %v306 = vld [vmem:[#allocation2 + $0xbf] sm:$0xff]
      %v307 = vld [vmem:[#allocation2 + $0xc7] sm:$0xff]
      %v308 = vld [vmem:[#allocation2 + $0xcf] sm:$0xff]
      %v309 = vld [vmem:[#allocation2 + $0xd7] sm:$0xff]
      %v310 = vld [vmem:[#allocation2 + $0xdf] sm:$0xff]
      %v311 = vld [vmem:[#allocation2 + $0xe7] sm:$0xff]
      %v312 = vld [vmem:[#allocation2 + $0xef] sm:$0xff]
      %v313 = vld [vmem:[#allocation2 + $0xf7] sm:$0xff]
      %v314 = vld [vmem:[#allocation2 + $0xff] sm:$0xff]
      %v315 = vld [vmem:[#allocation2 + $0x107] sm:$0xff]
      %v316 = vld [vmem:[#allocation2 + $0x10f] sm:$0xff]
      %v317 = vld [vmem:[#allocation2 + $0x117] sm:$0xff]
      %v318 = vld [vmem:[#allocation2 + $0x11f] sm:$0xff]
      %v319 = vld [vmem:[#allocation2 + $0x127] sm:$0xff]
      %v320 = vld [vmem:[#allocation2 + $0x12f] sm:$0xff]
      %v321 = vld [vmem:[#allocation2 + $0x137] sm:$0xff]
      %v322 = vld [vmem:[#allocation2 + $0x13f] sm:$0xff]
      %v323 = vld [vmem:[#allocation2 + $0x147] sm:$0xff]
      %v324 = vld [vmem:[#allocation2 + $0x14f] sm:$0xff]
      %v325 = vld [vmem:[#allocation2 + $0x157] sm:$0xff]
      %v326 = vld [vmem:[#allocation2 + $0x15f] sm:$0xff]
      %v327 = vld [vmem:[#allocation2 + $0x167] sm:$0xff]
      %v328 = vld [vmem:[#allocation2 + $0x16f] sm:$0xff]
      %v329 = vld [vmem:[#allocation2 + $0x177] sm:$0xff]
      %v330 = vld [vmem:[#allocation2 + $0x17f] sm:$0xff]
      %v331 = vld [vmem:[#allocation2 + $0x8] sm:$0xff]
      %v332 = vld [vmem:[#allocation2 + $0x10] sm:$0xff]
      %v333 = vld [vmem:[#allocation2 + $0x18] sm:$0xff]
      %v334 = vld [vmem:[#allocation2 + $0x20] sm:$0xff]
      %v335 = vld [vmem:[#allocation2 + $0x28] sm:$0xff]
      %v336 = vld [vmem:[#allocation2 + $0x30] sm:$0xff]
      %v337 = vld [vmem:[#allocation2 + $0x38] sm:$0xff]
      %v338 = vld [vmem:[#allocation2 + $0x40] sm:$0xff]
      %v339 = vld [vmem:[#allocation2 + $0x48] sm:$0xff]
      %v340 = vld [vmem:[#allocation2 + $0x50] sm:$0xff]
      %v341 = vld [vmem:[#allocation2 + $0x58] sm:$0xff]
      %v342 = vld [vmem:[#allocation2 + $0x60] sm:$0xff]
      %v343 = vld [vmem:[#allocation2 + $0x68] sm:$0xff]
      %v344 = vld [vmem:[#allocation2 + $0x70] sm:$0xff]
      %v345 = vld [vmem:[#allocation2 + $0x78] sm:$0xff]
      %v346 = vld [vmem:[#allocation2 + $0x80] sm:$0xff]
      %v347 = vld [vmem:[#allocation2 + $0x88] sm:$0xff]
      %v348 = vld [vmem:[#allocation2 + $0x90] sm:$0xff]
      %v349 = vld [vmem:[#allocation2 + $0x98] sm:$0xff]
      %v350 = vld [vmem:[#allocation2 + $0xa0] sm:$0xff]
      %v351 = vld [vmem:[#allocation2 + $0xa8] sm:$0xff]
      %v352 = vld [vmem:[#allocation2 + $0xb0] sm:$0xff]
      %v353 = vld [vmem:[#allocation2 + $0xb8] sm:$0xff]
      %v354 = vld [vmem:[#allocation2 + $0xc0] sm:$0xff]
      %v355 = vld [vmem:[#allocation2 + $0xc8] sm:$0xff]
      %v356 = vld [vmem:[#allocation2 + $0xd0] sm:$0xff]
      %v357 = vld [vmem:[#allocation2 + $0xd8] sm:$0xff]
      %v358 = vld [vmem:[#allocation2 + $0xe0] sm:$0xff]
      %v359 = vld [vmem:[#allocation2 + $0xe8] sm:$0xff]
      %v360 = vld [vmem:[#allocation2 + $0xf0] sm:$0xff]
      %v361 = vld [vmem:[#allocation2 + $0xf8] sm:$0xff]
      %v362 = vld [vmem:[#allocation2 + $0x100] sm:$0xff]
      %v363 = vld [vmem:[#allocation2 + $0x108] sm:$0xff]
      %v364 = vld [vmem:[#allocation2 + $0x110] sm:$0xff]
      %v365 = vld [vmem:[#allocation2 + $0x118] sm:$0xff]
      %v366 = vld [vmem:[#allocation2 + $0x120] sm:$0xff]
      %v367 = vld [vmem:[#allocation2 + $0x128] sm:$0xff]
      %v368 = vld [vmem:[#allocation2 + $0x130] sm:$0xff]
      %v369 = vld [vmem:[#allocation2 + $0x138] sm:$0xff]
      %v370 = vld [vmem:[#allocation2 + $0x140] sm:$0xff]
      %v371 = vld [vmem:[#allocation2 + $0x148] sm:$0xff]
      %v372 = vld [vmem:[#allocation2 + $0x150] sm:$0xff]
      %v373 = vld [vmem:[#allocation2 + $0x158] sm:$0xff]
      %v374 = vld [vmem:[#allocation2 + $0x160] sm:$0xff]
      %v375 = vld [vmem:[#allocation2 + $0x168] sm:$0xff]
      %v376 = vld [vmem:[#allocation2 + $0x170] sm:$0xff]
      %v377 = vld [vmem:[#allocation2 + $0x178] sm:$0xff]
      %v378 = vld [vmem:[#allocation2 + $0x180] sm:$0xff]
      %v379 = vld [vmem:[#allocation2 + $0x9] sm:$0xff]
      %v380 = vld [vmem:[#allocation2 + $0x11] sm:$0xff]
      %v381 = vld [vmem:[#allocation2 + $0x19] sm:$0xff]
      %v382 = vld [vmem:[#allocation2 + $0x21] sm:$0xff]
      %v383 = vld [vmem:[#allocation2 + $0x29] sm:$0xff]
      %v384 = vld [vmem:[#allocation2 + $0x31] sm:$0xff]
      %v385 = vld [vmem:[#allocation2 + $0x39] sm:$0xff]
      %v386 = vld [vmem:[#allocation2 + $0x41] sm:$0xff]
      %v387 = vld [vmem:[#allocation2 + $0x49] sm:$0xff]
      %v388 = vld [vmem:[#allocation2 + $0x51] sm:$0xff]
      %v389 = vld [vmem:[#allocation2 + $0x59] sm:$0xff]
      %v390 = vld [vmem:[#allocation2 + $0x61] sm:$0xff]
      %v391 = vld [vmem:[#allocation2 + $0x69] sm:$0xff]
      %v392 = vld [vmem:[#allocation2 + $0x71] sm:$0xff]
      %v393 = vld [vmem:[#allocation2 + $0x79] sm:$0xff]
      %v394 = vld [vmem:[#allocation2 + $0x81] sm:$0xff]
      %v395 = vld [vmem:[#allocation2 + $0x89] sm:$0xff]
      %v396 = vld [vmem:[#allocation2 + $0x91] sm:$0xff]
      %v397 = vld [vmem:[#allocation2 + $0x99] sm:$0xff]
      %v398 = vld [vmem:[#allocation2 + $0xa1] sm:$0xff]
      %v399 = vld [vmem:[#allocation2 + $0xa9] sm:$0xff]
      %v400 = vld [vmem:[#allocation2 + $0xb1] sm:$0xff]
      %v401 = vld [vmem:[#allocation2 + $0xb9] sm:$0xff]
      %v402 = vld [vmem:[#allocation2 + $0xc1] sm:$0xff]
      %v403 = vld [vmem:[#allocation2 + $0xc9] sm:$0xff]
      %v404 = vld [vmem:[#allocation2 + $0xd1] sm:$0xff]
      %v405 = vld [vmem:[#allocation2 + $0xd9] sm:$0xff]
      %v406 = vld [vmem:[#allocation2 + $0xe1] sm:$0xff]
      %v407 = vld [vmem:[#allocation2 + $0xe9] sm:$0xff]
      %v408 = vld [vmem:[#allocation2 + $0xf1] sm:$0xff]
      %v409 = vld [vmem:[#allocation2 + $0xf9] sm:$0xff]
      %v410 = vld [vmem:[#allocation2 + $0x101] sm:$0xff]
      %v411 = vld [vmem:[#allocation2 + $0x109] sm:$0xff]
      %v412 = vld [vmem:[#allocation2 + $0x111] sm:$0xff]
      %v413 = vld [vmem:[#allocation2 + $0x119] sm:$0xff]
      %v414 = vld [vmem:[#allocation2 + $0x121] sm:$0xff]
      %v415 = vld [vmem:[#allocation2 + $0x129] sm:$0xff]
      %v416 = vld [vmem:[#allocation2 + $0x131] sm:$0xff]
      %v417 = vld [vmem:[#allocation2 + $0x139] sm:$0xff]
      %v418 = vld [vmem:[#allocation2 + $0x141] sm:$0xff]
      %v419 = vld [vmem:[#allocation2 + $0x149] sm:$0xff]
      %v420 = vld [vmem:[#allocation2 + $0x151] sm:$0xff]
      %v421 = vld [vmem:[#allocation2 + $0x159] sm:$0xff]
      %v422 = vld [vmem:[#allocation2 + $0x161] sm:$0xff]
      %v423 = vld [vmem:[#allocation2 + $0x169] sm:$0xff]
      %v424 = vld [vmem:[#allocation2 + $0x171] sm:$0xff]
      %v425 = vld [vmem:[#allocation2 + $0x179] sm:$0xff]
      %v426 = vld [vmem:[#allocation2 + $0x181] sm:$0xff]
      %v427 = vld [vmem:[#allocation2 + $0x187] sm:$0xff]
      %v428 = vld [vmem:[#allocation2 + $0x18f] sm:$0xff]
      %v429 = vld [vmem:[#allocation2 + $0x197] sm:$0xff]
      %v430 = vld [vmem:[#allocation2 + $0x188] sm:$0xff]
      %v431 = vld [vmem:[#allocation2 + $0x190] sm:$0xff]
      %v432 = vld [vmem:[#allocation2 + $0x198] sm:$0xff]
      %v433 = vld [vmem:[#allocation2 + $0x189] sm:$0xff]
      %v434 = vld [vmem:[#allocation2 + $0x191] sm:$0xff]
      %v435 = vld [vmem:[#allocation2 + $0x199] sm:$0xff]
      %v436 = vld [vmem:[#allocation2 + $0x19f] sm:$0xff]
      %v437 = vld [vmem:[#allocation2 + $0x1a7] sm:$0xff]
      %v438 = vld [vmem:[#allocation2 + $0x1af] sm:$0xff]
      %v439 = vld [vmem:[#allocation2 + $0x1a0] sm:$0xff]
      %v440 = vld [vmem:[#allocation2 + $0x1a8] sm:$0xff]
      %v441 = vld [vmem:[#allocation2 + $0x1b0] sm:$0xff]
      %v442 = vld [vmem:[#allocation2 + $0x1a1] sm:$0xff]
      %v443 = vld [vmem:[#allocation2 + $0x1a9] sm:$0xff]
      %v444 = vld [vmem:[#allocation2 + $0x1b1] sm:$0xff]
      %493 = vrot.lane.b32.xlu0 %v331, 32
      %v494 = vpop.permute.xlu0 %493
      %495 = vrot.lane.b32.xlu0 %v332, 32
      %v496 = vpop.permute.xlu0 %495
      %497 = vrot.lane.b32.xlu0 %v333, 32
      %v498 = vpop.permute.xlu0 %497
      %499 = vrot.lane.b32.xlu0 %v334, 32
      %v500 = vpop.permute.xlu0 %499
      %501 = vrot.lane.b32.xlu0 %v335, 32
      %v502 = vpop.permute.xlu0 %501
      %503 = vrot.lane.b32.xlu0 %v336, 32
      %v504 = vpop.permute.xlu0 %503
      %505 = vrot.lane.b32.xlu0 %v337, 32
      %v506 = vpop.permute.xlu0 %505
      %507 = vrot.lane.b32.xlu0 %v338, 32
      %v508 = vpop.permute.xlu0 %507
      %509 = vrot.lane.b32.xlu0 %v339, 32
      %v510 = vpop.permute.xlu0 %509
      %511 = vrot.lane.b32.xlu0 %v340, 32
      %v512 = vpop.permute.xlu0 %511
      %513 = vrot.lane.b32.xlu0 %v341, 32
      %v514 = vpop.permute.xlu0 %513
      %515 = vrot.lane.b32.xlu0 %v342, 32
      %v516 = vpop.permute.xlu0 %515
      %517 = vrot.lane.b32.xlu0 %v343, 32
      %v518 = vpop.permute.xlu0 %517
      %519 = vrot.lane.b32.xlu0 %v344, 32
      %v520 = vpop.permute.xlu0 %519
      %521 = vrot.lane.b32.xlu0 %v345, 32
      %v522 = vpop.permute.xlu0 %521
      %523 = vrot.lane.b32.xlu0 %v346, 32
      %v524 = vpop.permute.xlu0 %523
      %525 = vrot.lane.b32.xlu0 %v347, 32
      %v526 = vpop.permute.xlu0 %525
      %527 = vrot.lane.b32.xlu0 %v348, 32
      %v528 = vpop.permute.xlu0 %527
      %529 = vrot.lane.b32.xlu0 %v349, 32
      %v530 = vpop.permute.xlu0 %529
      %531 = vrot.lane.b32.xlu0 %v350, 32
      %v532 = vpop.permute.xlu0 %531
      %533 = vrot.lane.b32.xlu0 %v351, 32
      %v534 = vpop.permute.xlu0 %533
      %535 = vrot.lane.b32.xlu0 %v352, 32
      %v536 = vpop.permute.xlu0 %535
      %537 = vrot.lane.b32.xlu0 %v353, 32
      %v538 = vpop.permute.xlu0 %537
      %539 = vrot.lane.b32.xlu0 %v354, 32
      %v540 = vpop.permute.xlu0 %539
      %541 = vrot.lane.b32.xlu0 %v355, 32
      %v542 = vpop.permute.xlu0 %541
      %543 = vrot.lane.b32.xlu0 %v356, 32
      %v544 = vpop.permute.xlu0 %543
      %545 = vrot.lane.b32.xlu0 %v357, 32
      %v546 = vpop.permute.xlu0 %545
      %547 = vrot.lane.b32.xlu0 %v358, 32
      %v548 = vpop.permute.xlu0 %547
      %549 = vrot.lane.b32.xlu0 %v359, 32
      %v550 = vpop.permute.xlu0 %549
      %551 = vrot.lane.b32.xlu0 %v360, 32
      %v552 = vpop.permute.xlu0 %551
      %553 = vrot.lane.b32.xlu0 %v361, 32
      %v554 = vpop.permute.xlu0 %553
      %555 = vrot.lane.b32.xlu0 %v362, 32
      %v556 = vpop.permute.xlu0 %555
      %557 = vrot.lane.b32.xlu0 %v363, 32
      %v558 = vpop.permute.xlu0 %557
      %559 = vrot.lane.b32.xlu0 %v364, 32
      %v560 = vpop.permute.xlu0 %559
      %561 = vrot.lane.b32.xlu0 %v365, 32
      %v562 = vpop.permute.xlu0 %561
      %563 = vrot.lane.b32.xlu0 %v366, 32
      %v564 = vpop.permute.xlu0 %563
      %565 = vrot.lane.b32.xlu0 %v367, 32
      %v566 = vpop.permute.xlu0 %565
      %567 = vrot.lane.b32.xlu0 %v368, 32
      %v568 = vpop.permute.xlu0 %567
      %569 = vrot.lane.b32.xlu0 %v369, 32
      %v570 = vpop.permute.xlu0 %569
      %571 = vrot.lane.b32.xlu0 %v370, 32
      %v572 = vpop.permute.xlu0 %571
      %573 = vrot.lane.b32.xlu0 %v371, 32
      %v574 = vpop.permute.xlu0 %573
      %575 = vrot.lane.b32.xlu0 %v372, 32
      %v576 = vpop.permute.xlu0 %575
      %577 = vrot.lane.b32.xlu0 %v373, 32
      %v578 = vpop.permute.xlu0 %577
      %579 = vrot.lane.b32.xlu0 %v374, 32
      %v580 = vpop.permute.xlu0 %579
      %581 = vrot.lane.b32.xlu0 %v375, 32
      %v582 = vpop.permute.xlu0 %581
      %583 = vrot.lane.b32.xlu0 %v376, 32
      %v584 = vpop.permute.xlu0 %583
      %585 = vrot.lane.b32.xlu0 %v377, 32
      %v586 = vpop.permute.xlu0 %585
      %587 = vrot.lane.b32.xlu0 %v378, 32
      %v588 = vpop.permute.xlu0 %587
      %685 = vrot.lane.b32.xlu0 %v379, 64
      %v686 = vpop.permute.xlu0 %685
      %687 = vrot.lane.b32.xlu0 %v380, 64
      %v688 = vpop.permute.xlu0 %687
      %689 = vrot.lane.b32.xlu0 %v381, 64
      %v690 = vpop.permute.xlu0 %689
      %691 = vrot.lane.b32.xlu0 %v382, 64
      %v692 = vpop.permute.xlu0 %691
      %693 = vrot.lane.b32.xlu0 %v383, 64
      %v694 = vpop.permute.xlu0 %693
      %695 = vrot.lane.b32.xlu0 %v384, 64
      %v696 = vpop.permute.xlu0 %695
      %697 = vrot.lane.b32.xlu0 %v385, 64
      %v698 = vpop.permute.xlu0 %697
      %699 = vrot.lane.b32.xlu0 %v386, 64
      %v700 = vpop.permute.xlu0 %699
      %701 = vrot.lane.b32.xlu0 %v387, 64
      %v702 = vpop.permute.xlu0 %701
      %703 = vrot.lane.b32.xlu0 %v388, 64
      %v704 = vpop.permute.xlu0 %703
      %705 = vrot.lane.b32.xlu0 %v389, 64
      %v706 = vpop.permute.xlu0 %705
      %707 = vrot.lane.b32.xlu0 %v390, 64
      %v708 = vpop.permute.xlu0 %707
      %709 = vrot.lane.b32.xlu0 %v391, 64
      %v710 = vpop.permute.xlu0 %709
      %711 = vrot.lane.b32.xlu0 %v392, 64
      %v712 = vpop.permute.xlu0 %711
      %713 = vrot.lane.b32.xlu0 %v393, 64
      %v714 = vpop.permute.xlu0 %713
      %715 = vrot.lane.b32.xlu0 %v394, 64
      %v716 = vpop.permute.xlu0 %715
      %717 = vrot.lane.b32.xlu0 %v395, 64
      %v718 = vpop.permute.xlu0 %717
      %719 = vrot.lane.b32.xlu0 %v396, 64
      %v720 = vpop.permute.xlu0 %719
      %721 = vrot.lane.b32.xlu0 %v397, 64
      %v722 = vpop.permute.xlu0 %721
      %723 = vrot.lane.b32.xlu0 %v398, 64
      %v724 = vpop.permute.xlu0 %723
      %725 = vrot.lane.b32.xlu0 %v399, 64
      %v726 = vpop.permute.xlu0 %725
      %727 = vrot.lane.b32.xlu0 %v400, 64
      %v728 = vpop.permute.xlu0 %727
      %729 = vrot.lane.b32.xlu0 %v401, 64
      %v730 = vpop.permute.xlu0 %729
      %731 = vrot.lane.b32.xlu0 %v402, 64
      %v732 = vpop.permute.xlu0 %731
      %733 = vrot.lane.b32.xlu0 %v403, 64
      %v734 = vpop.permute.xlu0 %733
      %735 = vrot.lane.b32.xlu0 %v404, 64
      %v736 = vpop.permute.xlu0 %735
      %737 = vrot.lane.b32.xlu0 %v405, 64
      %v738 = vpop.permute.xlu0 %737
      %739 = vrot.lane.b32.xlu0 %v406, 64
      %v740 = vpop.permute.xlu0 %739
      %741 = vrot.lane.b32.xlu0 %v407, 64
      %v742 = vpop.permute.xlu0 %741
      %743 = vrot.lane.b32.xlu0 %v408, 64
      %v744 = vpop.permute.xlu0 %743
      %745 = vrot.lane.b32.xlu0 %v409, 64
      %v746 = vpop.permute.xlu0 %745
      %747 = vrot.lane.b32.xlu0 %v410, 64
      %v748 = vpop.permute.xlu0 %747
      %749 = vrot.lane.b32.xlu0 %v411, 64
      %v750 = vpop.permute.xlu0 %749
      %751 = vrot.lane.b32.xlu0 %v412, 64
      %v752 = vpop.permute.xlu0 %751
      %753 = vrot.lane.b32.xlu0 %v413, 64
      %v754 = vpop.permute.xlu0 %753
      %755 = vrot.lane.b32.xlu0 %v414, 64
      %v756 = vpop.permute.xlu0 %755
      %757 = vrot.lane.b32.xlu0 %v415, 64
      %v758 = vpop.permute.xlu0 %757
      %759 = vrot.lane.b32.xlu0 %v416, 64
      %v760 = vpop.permute.xlu0 %759
      %761 = vrot.lane.b32.xlu0 %v417, 64
      %v762 = vpop.permute.xlu0 %761
      %763 = vrot.lane.b32.xlu0 %v418, 64
      %v764 = vpop.permute.xlu0 %763
      %765 = vrot.lane.b32.xlu0 %v419, 64
      %v766 = vpop.permute.xlu0 %765
      %767 = vrot.lane.b32.xlu0 %v420, 64
      %v768 = vpop.permute.xlu0 %767
      %769 = vrot.lane.b32.xlu0 %v421, 64
      %v770 = vpop.permute.xlu0 %769
      %771 = vrot.lane.b32.xlu0 %v422, 64
      %v772 = vpop.permute.xlu0 %771
      %773 = vrot.lane.b32.xlu0 %v423, 64
      %v774 = vpop.permute.xlu0 %773
      %775 = vrot.lane.b32.xlu0 %v424, 64
      %v776 = vpop.permute.xlu0 %775
      %777 = vrot.lane.b32.xlu0 %v425, 64
      %v778 = vpop.permute.xlu0 %777
      %779 = vrot.lane.b32.xlu0 %v426, 64
      %v780 = vpop.permute.xlu0 %779
      %877 = vrot.lane.b32.xlu0 %v286, 96
      %v878 = vpop.permute.xlu0 %877
      %879 = vrot.lane.b32.xlu0 %v287, 96
      %v880 = vpop.permute.xlu0 %879
      %881 = vrot.lane.b32.xlu0 %v288, 96
      %v882 = vpop.permute.xlu0 %881
      %883 = vrot.lane.b32.xlu0 %v289, 96
      %v884 = vpop.permute.xlu0 %883
      %885 = vrot.lane.b32.xlu0 %v290, 96
      %v886 = vpop.permute.xlu0 %885
      %887 = vrot.lane.b32.xlu0 %v291, 96
      %v888 = vpop.permute.xlu0 %887
      %889 = vrot.lane.b32.xlu0 %v292, 96
      %v890 = vpop.permute.xlu0 %889
      %891 = vrot.lane.b32.xlu0 %v293, 96
      %v892 = vpop.permute.xlu0 %891
      %893 = vrot.lane.b32.xlu0 %v294, 96
      %v894 = vpop.permute.xlu0 %893
      %895 = vrot.lane.b32.xlu0 %v295, 96
      %v896 = vpop.permute.xlu0 %895
      %897 = vrot.lane.b32.xlu0 %v296, 96
      %v898 = vpop.permute.xlu0 %897
      %899 = vrot.lane.b32.xlu0 %v297, 96
      %v900 = vpop.permute.xlu0 %899
      %901 = vrot.lane.b32.xlu0 %v298, 96
      %v902 = vpop.permute.xlu0 %901
      %903 = vrot.lane.b32.xlu0 %v299, 96
      %v904 = vpop.permute.xlu0 %903
      %905 = vrot.lane.b32.xlu0 %v300, 96
      %v906 = vpop.permute.xlu0 %905
      %907 = vrot.lane.b32.xlu0 %v301, 96
      %v908 = vpop.permute.xlu0 %907
      %909 = vrot.lane.b32.xlu0 %v302, 96
      %v910 = vpop.permute.xlu0 %909
      %911 = vrot.lane.b32.xlu0 %v303, 96
      %v912 = vpop.permute.xlu0 %911
      %913 = vrot.lane.b32.xlu0 %v304, 96
      %v914 = vpop.permute.xlu0 %913
      %915 = vrot.lane.b32.xlu0 %v305, 96
      %v916 = vpop.permute.xlu0 %915
      %917 = vrot.lane.b32.xlu0 %v306, 96
      %v918 = vpop.permute.xlu0 %917
      %919 = vrot.lane.b32.xlu0 %v307, 96
      %v920 = vpop.permute.xlu0 %919
      %921 = vrot.lane.b32.xlu0 %v308, 96
      %v922 = vpop.permute.xlu0 %921
      %923 = vrot.lane.b32.xlu0 %v309, 96
      %v924 = vpop.permute.xlu0 %923
      %925 = vrot.lane.b32.xlu0 %v310, 96
      %v926 = vpop.permute.xlu0 %925
      %927 = vrot.lane.b32.xlu0 %v311, 96
      %v928 = vpop.permute.xlu0 %927
      %929 = vrot.lane.b32.xlu0 %v312, 96
      %v930 = vpop.permute.xlu0 %929
      %931 = vrot.lane.b32.xlu0 %v313, 96
      %v932 = vpop.permute.xlu0 %931
      %933 = vrot.lane.b32.xlu0 %v314, 96
      %v934 = vpop.permute.xlu0 %933
      %935 = vrot.lane.b32.xlu0 %v315, 96
      %v936 = vpop.permute.xlu0 %935
      %937 = vrot.lane.b32.xlu0 %v316, 96
      %v938 = vpop.permute.xlu0 %937
      %939 = vrot.lane.b32.xlu0 %v317, 96
      %v940 = vpop.permute.xlu0 %939
      %941 = vrot.lane.b32.xlu0 %v318, 96
      %v942 = vpop.permute.xlu0 %941
      %943 = vrot.lane.b32.xlu0 %v319, 96
      %v944 = vpop.permute.xlu0 %943
      %945 = vrot.lane.b32.xlu0 %v320, 96
      %v946 = vpop.permute.xlu0 %945
      %947 = vrot.lane.b32.xlu0 %v321, 96
      %v948 = vpop.permute.xlu0 %947
      %949 = vrot.lane.b32.xlu0 %v322, 96
      %v950 = vpop.permute.xlu0 %949
      %951 = vrot.lane.b32.xlu0 %v323, 96
      %v952 = vpop.permute.xlu0 %951
      %953 = vrot.lane.b32.xlu0 %v324, 96
      %v954 = vpop.permute.xlu0 %953
      %955 = vrot.lane.b32.xlu0 %v325, 96
      %v956 = vpop.permute.xlu0 %955
      %957 = vrot.lane.b32.xlu0 %v326, 96
      %v958 = vpop.permute.xlu0 %957
      %959 = vrot.lane.b32.xlu0 %v327, 96
      %v960 = vpop.permute.xlu0 %959
      %961 = vrot.lane.b32.xlu0 %v328, 96
      %v962 = vpop.permute.xlu0 %961
      %963 = vrot.lane.b32.xlu0 %v329, 96
      %v964 = vpop.permute.xlu0 %963
      %965 = vrot.lane.b32.xlu0 %v330, 96
      %v966 = vpop.permute.xlu0 %965
      %967 = vrot.lane.b32.xlu0 %v427, 96
      %v968 = vpop.permute.xlu0 %967
      %969 = vrot.lane.b32.xlu0 %v428, 96
      %v970 = vpop.permute.xlu0 %969
      %971 = vrot.lane.b32.xlu0 %v429, 96
      %v972 = vpop.permute.xlu0 %971
      %1024 = vrot.lane.b32.xlu0 %v382, 32
      %v1025 = vpop.permute.xlu0 %1024
      %1026 = vrot.lane.b32.xlu0 %v383, 32
      %v1027 = vpop.permute.xlu0 %1026
      %1028 = vrot.lane.b32.xlu0 %v384, 32
      %v1029 = vpop.permute.xlu0 %1028
      %1030 = vrot.lane.b32.xlu0 %v385, 32
      %v1031 = vpop.permute.xlu0 %1030
      %1032 = vrot.lane.b32.xlu0 %v386, 32
      %v1033 = vpop.permute.xlu0 %1032
      %1034 = vrot.lane.b32.xlu0 %v387, 32
      %v1035 = vpop.permute.xlu0 %1034
      %1036 = vrot.lane.b32.xlu0 %v388, 32
      %v1037 = vpop.permute.xlu0 %1036
      %1038 = vrot.lane.b32.xlu0 %v389, 32
      %v1039 = vpop.permute.xlu0 %1038
      %1040 = vrot.lane.b32.xlu0 %v390, 32
      %v1041 = vpop.permute.xlu0 %1040
      %1042 = vrot.lane.b32.xlu0 %v391, 32
      %v1043 = vpop.permute.xlu0 %1042
      %1044 = vrot.lane.b32.xlu0 %v392, 32
      %v1045 = vpop.permute.xlu0 %1044
      %1046 = vrot.lane.b32.xlu0 %v393, 32
      %v1047 = vpop.permute.xlu0 %1046
      %1048 = vrot.lane.b32.xlu0 %v394, 32
      %v1049 = vpop.permute.xlu0 %1048
      %1050 = vrot.lane.b32.xlu0 %v395, 32
      %v1051 = vpop.permute.xlu0 %1050
      %1052 = vrot.lane.b32.xlu0 %v396, 32
      %v1053 = vpop.permute.xlu0 %1052
      %1054 = vrot.lane.b32.xlu0 %v397, 32
      %v1055 = vpop.permute.xlu0 %1054
      %1056 = vrot.lane.b32.xlu0 %v398, 32
      %v1057 = vpop.permute.xlu0 %1056
      %1058 = vrot.lane.b32.xlu0 %v399, 32
      %v1059 = vpop.permute.xlu0 %1058
      %1060 = vrot.lane.b32.xlu0 %v400, 32
      %v1061 = vpop.permute.xlu0 %1060
      %1062 = vrot.lane.b32.xlu0 %v401, 32
      %v1063 = vpop.permute.xlu0 %1062
      %1064 = vrot.lane.b32.xlu0 %v402, 32
      %v1065 = vpop.permute.xlu0 %1064
      %1066 = vrot.lane.b32.xlu0 %v403, 32
      %v1067 = vpop.permute.xlu0 %1066
      %1068 = vrot.lane.b32.xlu0 %v404, 32
      %v1069 = vpop.permute.xlu0 %1068
      %1070 = vrot.lane.b32.xlu0 %v405, 32
      %v1071 = vpop.permute.xlu0 %1070
      %1072 = vrot.lane.b32.xlu0 %v406, 32
      %v1073 = vpop.permute.xlu0 %1072
      %1074 = vrot.lane.b32.xlu0 %v407, 32
      %v1075 = vpop.permute.xlu0 %1074
      %1076 = vrot.lane.b32.xlu0 %v408, 32
      %v1077 = vpop.permute.xlu0 %1076
      %1078 = vrot.lane.b32.xlu0 %v409, 32
      %v1079 = vpop.permute.xlu0 %1078
      %1080 = vrot.lane.b32.xlu0 %v410, 32
      %v1081 = vpop.permute.xlu0 %1080
      %1082 = vrot.lane.b32.xlu0 %v411, 32
      %v1083 = vpop.permute.xlu0 %1082
      %1084 = vrot.lane.b32.xlu0 %v412, 32
      %v1085 = vpop.permute.xlu0 %1084
      %1086 = vrot.lane.b32.xlu0 %v413, 32
      %v1087 = vpop.permute.xlu0 %1086
      %1088 = vrot.lane.b32.xlu0 %v414, 32
      %v1089 = vpop.permute.xlu0 %1088
      %1090 = vrot.lane.b32.xlu0 %v415, 32
      %v1091 = vpop.permute.xlu0 %1090
      %1092 = vrot.lane.b32.xlu0 %v416, 32
      %v1093 = vpop.permute.xlu0 %1092
      %1094 = vrot.lane.b32.xlu0 %v417, 32
      %v1095 = vpop.permute.xlu0 %1094
      %1096 = vrot.lane.b32.xlu0 %v418, 32
      %v1097 = vpop.permute.xlu0 %1096
      %1098 = vrot.lane.b32.xlu0 %v419, 32
      %v1099 = vpop.permute.xlu0 %1098
      %1100 = vrot.lane.b32.xlu0 %v420, 32
      %v1101 = vpop.permute.xlu0 %1100
      %1102 = vrot.lane.b32.xlu0 %v421, 32
      %v1103 = vpop.permute.xlu0 %1102
      %1104 = vrot.lane.b32.xlu0 %v422, 32
      %v1105 = vpop.permute.xlu0 %1104
      %1106 = vrot.lane.b32.xlu0 %v423, 32
      %v1107 = vpop.permute.xlu0 %1106
      %1108 = vrot.lane.b32.xlu0 %v424, 32
      %v1109 = vpop.permute.xlu0 %1108
      %1110 = vrot.lane.b32.xlu0 %v425, 32
      %v1111 = vpop.permute.xlu0 %1110
      %1112 = vrot.lane.b32.xlu0 %v426, 32
      %v1113 = vpop.permute.xlu0 %1112
      %1114 = vrot.lane.b32.xlu0 %v433, 32
      %v1115 = vpop.permute.xlu0 %1114
      %1116 = vrot.lane.b32.xlu0 %v434, 32
      %v1117 = vpop.permute.xlu0 %1116
      %1118 = vrot.lane.b32.xlu0 %v435, 32
      %v1119 = vpop.permute.xlu0 %1118
      %1171 = vrot.lane.b32.xlu0 %v289, 64
      %v1172 = vpop.permute.xlu0 %1171
      %1173 = vrot.lane.b32.xlu0 %v290, 64
      %v1174 = vpop.permute.xlu0 %1173
      %1175 = vrot.lane.b32.xlu0 %v291, 64
      %v1176 = vpop.permute.xlu0 %1175
      %1177 = vrot.lane.b32.xlu0 %v292, 64
      %v1178 = vpop.permute.xlu0 %1177
      %1179 = vrot.lane.b32.xlu0 %v293, 64
      %v1180 = vpop.permute.xlu0 %1179
      %1181 = vrot.lane.b32.xlu0 %v294, 64
      %v1182 = vpop.permute.xlu0 %1181
      %1183 = vrot.lane.b32.xlu0 %v295, 64
      %v1184 = vpop.permute.xlu0 %1183
      %1185 = vrot.lane.b32.xlu0 %v296, 64
      %v1186 = vpop.permute.xlu0 %1185
      %1187 = vrot.lane.b32.xlu0 %v297, 64
      %v1188 = vpop.permute.xlu0 %1187
      %1189 = vrot.lane.b32.xlu0 %v298, 64
      %v1190 = vpop.permute.xlu0 %1189
      %1191 = vrot.lane.b32.xlu0 %v299, 64
      %v1192 = vpop.permute.xlu0 %1191
      %1193 = vrot.lane.b32.xlu0 %v300, 64
      %v1194 = vpop.permute.xlu0 %1193
      %1195 = vrot.lane.b32.xlu0 %v301, 64
      %v1196 = vpop.permute.xlu0 %1195
      %1197 = vrot.lane.b32.xlu0 %v302, 64
      %v1198 = vpop.permute.xlu0 %1197
      %1199 = vrot.lane.b32.xlu0 %v303, 64
      %v1200 = vpop.permute.xlu0 %1199
      %1201 = vrot.lane.b32.xlu0 %v304, 64
      %v1202 = vpop.permute.xlu0 %1201
      %1203 = vrot.lane.b32.xlu0 %v305, 64
      %v1204 = vpop.permute.xlu0 %1203
      %1205 = vrot.lane.b32.xlu0 %v306, 64
      %v1206 = vpop.permute.xlu0 %1205
      %1207 = vrot.lane.b32.xlu0 %v307, 64
      %v1208 = vpop.permute.xlu0 %1207
      %1209 = vrot.lane.b32.xlu0 %v308, 64
      %v1210 = vpop.permute.xlu0 %1209
      %1211 = vrot.lane.b32.xlu0 %v309, 64
      %v1212 = vpop.permute.xlu0 %1211
      %1213 = vrot.lane.b32.xlu0 %v310, 64
      %v1214 = vpop.permute.xlu0 %1213
      %1215 = vrot.lane.b32.xlu0 %v311, 64
      %v1216 = vpop.permute.xlu0 %1215
      %1217 = vrot.lane.b32.xlu0 %v312, 64
      %v1218 = vpop.permute.xlu0 %1217
      %1219 = vrot.lane.b32.xlu0 %v313, 64
      %v1220 = vpop.permute.xlu0 %1219
      %1221 = vrot.lane.b32.xlu0 %v314, 64
      %v1222 = vpop.permute.xlu0 %1221
      %1223 = vrot.lane.b32.xlu0 %v315, 64
      %v1224 = vpop.permute.xlu0 %1223
      %1225 = vrot.lane.b32.xlu0 %v316, 64
      %v1226 = vpop.permute.xlu0 %1225
      %1227 = vrot.lane.b32.xlu0 %v317, 64
      %v1228 = vpop.permute.xlu0 %1227
      %1229 = vrot.lane.b32.xlu0 %v318, 64
      %v1230 = vpop.permute.xlu0 %1229
      %1231 = vrot.lane.b32.xlu0 %v319, 64
      %v1232 = vpop.permute.xlu0 %1231
      %1233 = vrot.lane.b32.xlu0 %v320, 64
      %v1234 = vpop.permute.xlu0 %1233
      %1235 = vrot.lane.b32.xlu0 %v321, 64
      %v1236 = vpop.permute.xlu0 %1235
      %1237 = vrot.lane.b32.xlu0 %v322, 64
      %v1238 = vpop.permute.xlu0 %1237
      %1239 = vrot.lane.b32.xlu0 %v323, 64
      %v1240 = vpop.permute.xlu0 %1239
      %1241 = vrot.lane.b32.xlu0 %v324, 64
      %v1242 = vpop.permute.xlu0 %1241
      %1243 = vrot.lane.b32.xlu0 %v325, 64
      %v1244 = vpop.permute.xlu0 %1243
      %1245 = vrot.lane.b32.xlu0 %v326, 64
      %v1246 = vpop.permute.xlu0 %1245
      %1247 = vrot.lane.b32.xlu0 %v327, 64
      %v1248 = vpop.permute.xlu0 %1247
      %1249 = vrot.lane.b32.xlu0 %v328, 64
      %v1250 = vpop.permute.xlu0 %1249
      %1251 = vrot.lane.b32.xlu0 %v329, 64
      %v1252 = vpop.permute.xlu0 %1251
      %1253 = vrot.lane.b32.xlu0 %v330, 64
      %v1254 = vpop.permute.xlu0 %1253
      %1255 = vrot.lane.b32.xlu0 %v427, 64
      %v1256 = vpop.permute.xlu0 %1255
      %1257 = vrot.lane.b32.xlu0 %v428, 64
      %v1258 = vpop.permute.xlu0 %1257
      %1259 = vrot.lane.b32.xlu0 %v429, 64
      %v1260 = vpop.permute.xlu0 %1259
      %1261 = vrot.lane.b32.xlu0 %v436, 64
      %v1262 = vpop.permute.xlu0 %1261
      %1263 = vrot.lane.b32.xlu0 %v437, 64
      %v1264 = vpop.permute.xlu0 %1263
      %1265 = vrot.lane.b32.xlu0 %v438, 64
      %v1266 = vpop.permute.xlu0 %1265
      %1321 = vrot.lane.b32.xlu0 %v337, 96
      %v1322 = vpop.permute.xlu0 %1321
      %1323 = vrot.lane.b32.xlu0 %v338, 96
      %v1324 = vpop.permute.xlu0 %1323
      %1325 = vrot.lane.b32.xlu0 %v339, 96
      %v1326 = vpop.permute.xlu0 %1325
      %1327 = vrot.lane.b32.xlu0 %v340, 96
      %v1328 = vpop.permute.xlu0 %1327
      %1329 = vrot.lane.b32.xlu0 %v341, 96
      %v1330 = vpop.permute.xlu0 %1329
      %1331 = vrot.lane.b32.xlu0 %v342, 96
      %v1332 = vpop.permute.xlu0 %1331
      %1333 = vrot.lane.b32.xlu0 %v343, 96
      %v1334 = vpop.permute.xlu0 %1333
      %1335 = vrot.lane.b32.xlu0 %v344, 96
      %v1336 = vpop.permute.xlu0 %1335
      %1337 = vrot.lane.b32.xlu0 %v345, 96
      %v1338 = vpop.permute.xlu0 %1337
      %1339 = vrot.lane.b32.xlu0 %v346, 96
      %v1340 = vpop.permute.xlu0 %1339
      %1341 = vrot.lane.b32.xlu0 %v347, 96
      %v1342 = vpop.permute.xlu0 %1341
      %1343 = vrot.lane.b32.xlu0 %v348, 96
      %v1344 = vpop.permute.xlu0 %1343
      %1345 = vrot.lane.b32.xlu0 %v349, 96
      %v1346 = vpop.permute.xlu0 %1345
      %1347 = vrot.lane.b32.xlu0 %v350, 96
      %v1348 = vpop.permute.xlu0 %1347
      %1349 = vrot.lane.b32.xlu0 %v351, 96
      %v1350 = vpop.permute.xlu0 %1349
      %1351 = vrot.lane.b32.xlu0 %v352, 96
      %v1352 = vpop.permute.xlu0 %1351
      %1353 = vrot.lane.b32.xlu0 %v353, 96
      %v1354 = vpop.permute.xlu0 %1353
      %1355 = vrot.lane.b32.xlu0 %v354, 96
      %v1356 = vpop.permute.xlu0 %1355
      %1357 = vrot.lane.b32.xlu0 %v355, 96
      %v1358 = vpop.permute.xlu0 %1357
      %1359 = vrot.lane.b32.xlu0 %v356, 96
      %v1360 = vpop.permute.xlu0 %1359
      %1361 = vrot.lane.b32.xlu0 %v357, 96
      %v1362 = vpop.permute.xlu0 %1361
      %1363 = vrot.lane.b32.xlu0 %v358, 96
      %v1364 = vpop.permute.xlu0 %1363
      %1365 = vrot.lane.b32.xlu0 %v359, 96
      %v1366 = vpop.permute.xlu0 %1365
      %1367 = vrot.lane.b32.xlu0 %v360, 96
      %v1368 = vpop.permute.xlu0 %1367
      %1369 = vrot.lane.b32.xlu0 %v361, 96
      %v1370 = vpop.permute.xlu0 %1369
      %1371 = vrot.lane.b32.xlu0 %v362, 96
      %v1372 = vpop.permute.xlu0 %1371
      %1373 = vrot.lane.b32.xlu0 %v363, 96
      %v1374 = vpop.permute.xlu0 %1373
      %1375 = vrot.lane.b32.xlu0 %v364, 96
      %v1376 = vpop.permute.xlu0 %1375
      %1377 = vrot.lane.b32.xlu0 %v365, 96
      %v1378 = vpop.permute.xlu0 %1377
      %1379 = vrot.lane.b32.xlu0 %v366, 96
      %v1380 = vpop.permute.xlu0 %1379
      %1381 = vrot.lane.b32.xlu0 %v367, 96
      %v1382 = vpop.permute.xlu0 %1381
      %1383 = vrot.lane.b32.xlu0 %v368, 96
      %v1384 = vpop.permute.xlu0 %1383
      %1385 = vrot.lane.b32.xlu0 %v369, 96
      %v1386 = vpop.permute.xlu0 %1385
      %1387 = vrot.lane.b32.xlu0 %v370, 96
      %v1388 = vpop.permute.xlu0 %1387
      %1389 = vrot.lane.b32.xlu0 %v371, 96
      %v1390 = vpop.permute.xlu0 %1389
      %1391 = vrot.lane.b32.xlu0 %v372, 96
      %v1392 = vpop.permute.xlu0 %1391
      %1393 = vrot.lane.b32.xlu0 %v373, 96
      %v1394 = vpop.permute.xlu0 %1393
      %1395 = vrot.lane.b32.xlu0 %v374, 96
      %v1396 = vpop.permute.xlu0 %1395
      %1397 = vrot.lane.b32.xlu0 %v375, 96
      %v1398 = vpop.permute.xlu0 %1397
      %1399 = vrot.lane.b32.xlu0 %v376, 96
      %v1400 = vpop.permute.xlu0 %1399
      %1401 = vrot.lane.b32.xlu0 %v377, 96
      %v1402 = vpop.permute.xlu0 %1401
      %1403 = vrot.lane.b32.xlu0 %v378, 96
      %v1404 = vpop.permute.xlu0 %1403
      %1405 = vrot.lane.b32.xlu0 %v430, 96
      %v1406 = vpop.permute.xlu0 %1405
      %1407 = vrot.lane.b32.xlu0 %v431, 96
      %v1408 = vpop.permute.xlu0 %1407
      %1409 = vrot.lane.b32.xlu0 %v432, 96
      %v1410 = vpop.permute.xlu0 %1409
      %1411 = vrot.lane.b32.xlu0 %v439, 96
      %v1412 = vpop.permute.xlu0 %1411
      %1413 = vrot.lane.b32.xlu0 %v440, 96
      %v1414 = vpop.permute.xlu0 %1413
      %1415 = vrot.lane.b32.xlu0 %v441, 96
      %v1416 = vpop.permute.xlu0 %1415
      %vm1465 = vcmask 261120
      %v1466 = vsel %vm1465, %v283, %v494
      %v1467 = vsel %vm1465, %v284, %v496
      %v1468 = vsel %vm1465, %v285, %v498
      %v1469 = vsel %vm1465, %v286, %v500
      %v1470 = vsel %vm1465, %v287, %v502
      %v1471 = vsel %vm1465, %v288, %v504
      %v1472 = vsel %vm1465, %v289, %v506
      %v1473 = vsel %vm1465, %v290, %v508
      %v1474 = vsel %vm1465, %v291, %v510
      %v1475 = vsel %vm1465, %v292, %v512
      %v1476 = vsel %vm1465, %v293, %v514
      %v1477 = vsel %vm1465, %v294, %v516
      %v1478 = vsel %vm1465, %v295, %v518
      %v1479 = vsel %vm1465, %v296, %v520
      %v1480 = vsel %vm1465, %v297, %v522
      %v1481 = vsel %vm1465, %v298, %v524
      %v1482 = vsel %vm1465, %v299, %v526
      %v1483 = vsel %vm1465, %v300, %v528
      %v1484 = vsel %vm1465, %v301, %v530
      %v1485 = vsel %vm1465, %v302, %v532
      %v1486 = vsel %vm1465, %v303, %v534
      %v1487 = vsel %vm1465, %v304, %v536
      %v1488 = vsel %vm1465, %v305, %v538
      %v1489 = vsel %vm1465, %v306, %v540
      %v1490 = vsel %vm1465, %v307, %v542
      %v1491 = vsel %vm1465, %v308, %v544
      %v1492 = vsel %vm1465, %v309, %v546
      %v1493 = vsel %vm1465, %v310, %v548
      %v1494 = vsel %vm1465, %v311, %v550
      %v1495 = vsel %vm1465, %v312, %v552
      %v1496 = vsel %vm1465, %v313, %v554
      %v1497 = vsel %vm1465, %v314, %v556
      %v1498 = vsel %vm1465, %v315, %v558
      %v1499 = vsel %vm1465, %v316, %v560
      %v1500 = vsel %vm1465, %v317, %v562
      %v1501 = vsel %vm1465, %v318, %v564
      %v1502 = vsel %vm1465, %v319, %v566
      %v1503 = vsel %vm1465, %v320, %v568
      %v1504 = vsel %vm1465, %v321, %v570
      %v1505 = vsel %vm1465, %v322, %v572
      %v1506 = vsel %vm1465, %v323, %v574
      %v1507 = vsel %vm1465, %v324, %v576
      %v1508 = vsel %vm1465, %v325, %v578
      %v1509 = vsel %vm1465, %v326, %v580
      %v1510 = vsel %vm1465, %v327, %v582
      %v1511 = vsel %vm1465, %v328, %v584
      %v1512 = vsel %vm1465, %v329, %v586
      %v1513 = vsel %vm1465, %v330, %v588
      %vm1514 = vcmask 523264
      %v1515 = vsel %vm1514, %v1466, %v686
      %v1516 = vsel %vm1514, %v1467, %v688
      %v1517 = vsel %vm1514, %v1468, %v690
      %v1518 = vsel %vm1514, %v1469, %v692
      %v1519 = vsel %vm1514, %v1470, %v694
      %v1520 = vsel %vm1514, %v1471, %v696
      %v1521 = vsel %vm1514, %v1472, %v698
      %v1522 = vsel %vm1514, %v1473, %v700
      %v1523 = vsel %vm1514, %v1474, %v702
      %v1524 = vsel %vm1514, %v1475, %v704
      %v1525 = vsel %vm1514, %v1476, %v706
      %v1526 = vsel %vm1514, %v1477, %v708
      %v1527 = vsel %vm1514, %v1478, %v710
      %v1528 = vsel %vm1514, %v1479, %v712
      %v1529 = vsel %vm1514, %v1480, %v714
      %v1530 = vsel %vm1514, %v1481, %v716
      %v1531 = vsel %vm1514, %v1482, %v718
      %v1532 = vsel %vm1514, %v1483, %v720
      %v1533 = vsel %vm1514, %v1484, %v722
      %v1534 = vsel %vm1514, %v1485, %v724
      %v1535 = vsel %vm1514, %v1486, %v726
      %v1536 = vsel %vm1514, %v1487, %v728
      %v1537 = vsel %vm1514, %v1488, %v730
      %v1538 = vsel %vm1514, %v1489, %v732
      %v1539 = vsel %vm1514, %v1490, %v734
      %v1540 = vsel %vm1514, %v1491, %v736
      %v1541 = vsel %vm1514, %v1492, %v738
      %v1542 = vsel %vm1514, %v1493, %v740
      %v1543 = vsel %vm1514, %v1494, %v742
      %v1544 = vsel %vm1514, %v1495, %v744
      %v1545 = vsel %vm1514, %v1496, %v746
      %v1546 = vsel %vm1514, %v1497, %v748
      %v1547 = vsel %vm1514, %v1498, %v750
      %v1548 = vsel %vm1514, %v1499, %v752
      %v1549 = vsel %vm1514, %v1500, %v754
      %v1550 = vsel %vm1514, %v1501, %v756
      %v1551 = vsel %vm1514, %v1502, %v758
      %v1552 = vsel %vm1514, %v1503, %v760
      %v1553 = vsel %vm1514, %v1504, %v762
      %v1554 = vsel %vm1514, %v1505, %v764
      %v1555 = vsel %vm1514, %v1506, %v766
      %v1556 = vsel %vm1514, %v1507, %v768
      %v1557 = vsel %vm1514, %v1508, %v770
      %v1558 = vsel %vm1514, %v1509, %v772
      %v1559 = vsel %vm1514, %v1510, %v774
      %v1560 = vsel %vm1514, %v1511, %v776
      %v1561 = vsel %vm1514, %v1512, %v778
      %v1562 = vsel %vm1514, %v1513, %v780
      %vm1563 = vcmask 785408
      %v1564 = vsel %vm1563, %v1515, %v878
      %v1565 = vsel %vm1563, %v1516, %v880
      %v1566 = vsel %vm1563, %v1517, %v882
      %v1567 = vsel %vm1563, %v1518, %v884
      %v1568 = vsel %vm1563, %v1519, %v886
      %v1569 = vsel %vm1563, %v1520, %v888
      %v1570 = vsel %vm1563, %v1521, %v890
      %v1571 = vsel %vm1563, %v1522, %v892
      %v1572 = vsel %vm1563, %v1523, %v894
      %v1573 = vsel %vm1563, %v1524, %v896
      %v1574 = vsel %vm1563, %v1525, %v898
      %v1575 = vsel %vm1563, %v1526, %v900
      %v1576 = vsel %vm1563, %v1527, %v902
      %v1577 = vsel %vm1563, %v1528, %v904
      %v1578 = vsel %vm1563, %v1529, %v906
      %v1579 = vsel %vm1563, %v1530, %v908
      %v1580 = vsel %vm1563, %v1531, %v910
      %v1581 = vsel %vm1563, %v1532, %v912
      %v1582 = vsel %vm1563, %v1533, %v914
      %v1583 = vsel %vm1563, %v1534, %v916
      %v1584 = vsel %vm1563, %v1535, %v918
      %v1585 = vsel %vm1563, %v1536, %v920
      %v1586 = vsel %vm1563, %v1537, %v922
      %v1587 = vsel %vm1563, %v1538, %v924
      %v1588 = vsel %vm1563, %v1539, %v926
      %v1589 = vsel %vm1563, %v1540, %v928
      %v1590 = vsel %vm1563, %v1541, %v930
      %v1591 = vsel %vm1563, %v1542, %v932
      %v1592 = vsel %vm1563, %v1543, %v934
      %v1593 = vsel %vm1563, %v1544, %v936
      %v1594 = vsel %vm1563, %v1545, %v938
      %v1595 = vsel %vm1563, %v1546, %v940
      %v1596 = vsel %vm1563, %v1547, %v942
      %v1597 = vsel %vm1563, %v1548, %v944
      %v1598 = vsel %vm1563, %v1549, %v946
      %v1599 = vsel %vm1563, %v1550, %v948
      %v1600 = vsel %vm1563, %v1551, %v950
      %v1601 = vsel %vm1563, %v1552, %v952
      %v1602 = vsel %vm1563, %v1553, %v954
      %v1603 = vsel %vm1563, %v1554, %v956
      %v1604 = vsel %vm1563, %v1555, %v958
      %v1605 = vsel %vm1563, %v1556, %v960
      %v1606 = vsel %vm1563, %v1557, %v962
      %v1607 = vsel %vm1563, %v1558, %v964
      %v1608 = vsel %vm1563, %v1559, %v966
      %v1609 = vsel %vm1563, %v1560, %v968
      %v1610 = vsel %vm1563, %v1561, %v970
      %v1611 = vsel %vm1563, %v1562, %v972
      %v1612 = vsel %vm1465, %v334, %v1025
      %v1613 = vsel %vm1465, %v335, %v1027
      %v1614 = vsel %vm1465, %v336, %v1029
      %v1615 = vsel %vm1465, %v337, %v1031
      %v1616 = vsel %vm1465, %v338, %v1033
      %v1617 = vsel %vm1465, %v339, %v1035
      %v1618 = vsel %vm1465, %v340, %v1037
      %v1619 = vsel %vm1465, %v341, %v1039
      %v1620 = vsel %vm1465, %v342, %v1041
      %v1621 = vsel %vm1465, %v343, %v1043
      %v1622 = vsel %vm1465, %v344, %v1045
      %v1623 = vsel %vm1465, %v345, %v1047
      %v1624 = vsel %vm1465, %v346, %v1049
      %v1625 = vsel %vm1465, %v347, %v1051
      %v1626 = vsel %vm1465, %v348, %v1053
      %v1627 = vsel %vm1465, %v349, %v1055
      %v1628 = vsel %vm1465, %v350, %v1057
      %v1629 = vsel %vm1465, %v351, %v1059
      %v1630 = vsel %vm1465, %v352, %v1061
      %v1631 = vsel %vm1465, %v353, %v1063
      %v1632 = vsel %vm1465, %v354, %v1065
      %v1633 = vsel %vm1465, %v355, %v1067
      %v1634 = vsel %vm1465, %v356, %v1069
      %v1635 = vsel %vm1465, %v357, %v1071
      %v1636 = vsel %vm1465, %v358, %v1073
      %v1637 = vsel %vm1465, %v359, %v1075
      %v1638 = vsel %vm1465, %v360, %v1077
      %v1639 = vsel %vm1465, %v361, %v1079
      %v1640 = vsel %vm1465, %v362, %v1081
      %v1641 = vsel %vm1465, %v363, %v1083
      %v1642 = vsel %vm1465, %v364, %v1085
      %v1643 = vsel %vm1465, %v365, %v1087
      %v1644 = vsel %vm1465, %v366, %v1089
      %v1645 = vsel %vm1465, %v367, %v1091
      %v1646 = vsel %vm1465, %v368, %v1093
      %v1647 = vsel %vm1465, %v369, %v1095
      %v1648 = vsel %vm1465, %v370, %v1097
      %v1649 = vsel %vm1465, %v371, %v1099
      %v1650 = vsel %vm1465, %v372, %v1101
      %v1651 = vsel %vm1465, %v373, %v1103
      %v1652 = vsel %vm1465, %v374, %v1105
      %v1653 = vsel %vm1465, %v375, %v1107
      %v1654 = vsel %vm1465, %v376, %v1109
      %v1655 = vsel %vm1465, %v377, %v1111
      %v1656 = vsel %vm1465, %v378, %v1113
      %v1657 = vsel %vm1465, %v430, %v1115
      %v1658 = vsel %vm1465, %v431, %v1117
      %v1659 = vsel %vm1465, %v432, %v1119
      %v1660 = vsel %vm1514, %v1612, %v1172
      %v1661 = vsel %vm1514, %v1613, %v1174
      %v1662 = vsel %vm1514, %v1614, %v1176
      %v1663 = vsel %vm1514, %v1615, %v1178
      %v1664 = vsel %vm1514, %v1616, %v1180
      %v1665 = vsel %vm1514, %v1617, %v1182
      %v1666 = vsel %vm1514, %v1618, %v1184
      %v1667 = vsel %vm1514, %v1619, %v1186
      %v1668 = vsel %vm1514, %v1620, %v1188
      %v1669 = vsel %vm1514, %v1621, %v1190
      %v1670 = vsel %vm1514, %v1622, %v1192
      %v1671 = vsel %vm1514, %v1623, %v1194
      %v1672 = vsel %vm1514, %v1624, %v1196
      %v1673 = vsel %vm1514, %v1625, %v1198
      %v1674 = vsel %vm1514, %v1626, %v1200
      %v1675 = vsel %vm1514, %v1627, %v1202
      %v1676 = vsel %vm1514, %v1628, %v1204
      %v1677 = vsel %vm1514, %v1629, %v1206
      %v1678 = vsel %vm1514, %v1630, %v1208
      %v1679 = vsel %vm1514, %v1631, %v1210
      %v1680 = vsel %vm1514, %v1632, %v1212
      %v1681 = vsel %vm1514, %v1633, %v1214
      %v1682 = vsel %vm1514, %v1634, %v1216
      %v1683 = vsel %vm1514, %v1635, %v1218
      %v1684 = vsel %vm1514, %v1636, %v1220
      %v1685 = vsel %vm1514, %v1637, %v1222
      %v1686 = vsel %vm1514, %v1638, %v1224
      %v1687 = vsel %vm1514, %v1639, %v1226
      %v1688 = vsel %vm1514, %v1640, %v1228
      %v1689 = vsel %vm1514, %v1641, %v1230
      %v1690 = vsel %vm1514, %v1642, %v1232
      %v1691 = vsel %vm1514, %v1643, %v1234
      %v1692 = vsel %vm1514, %v1644, %v1236
      %v1693 = vsel %vm1514, %v1645, %v1238
      %v1694 = vsel %vm1514, %v1646, %v1240
      %v1695 = vsel %vm1514, %v1647, %v1242
      %v1696 = vsel %vm1514, %v1648, %v1244
      %v1697 = vsel %vm1514, %v1649, %v1246
      %v1698 = vsel %vm1514, %v1650, %v1248
      %v1699 = vsel %vm1514, %v1651, %v1250
      %v1700 = vsel %vm1514, %v1652, %v1252
      %v1701 = vsel %vm1514, %v1653, %v1254
      %v1702 = vsel %vm1514, %v1654, %v1256
      %v1703 = vsel %vm1514, %v1655, %v1258
      %v1704 = vsel %vm1514, %v1656, %v1260
      %v1705 = vsel %vm1514, %v1657, %v1262
      %v1706 = vsel %vm1514, %v1658, %v1264
      %v1707 = vsel %vm1514, %v1659, %v1266
      %v1708 = vsel %vm1563, %v1660, %v1322
      %v1709 = vsel %vm1563, %v1661, %v1324
      %v1710 = vsel %vm1563, %v1662, %v1326
      %v1711 = vsel %vm1563, %v1663, %v1328
      %v1712 = vsel %vm1563, %v1664, %v1330
      %v1713 = vsel %vm1563, %v1665, %v1332
      %v1714 = vsel %vm1563, %v1666, %v1334
      %v1715 = vsel %vm1563, %v1667, %v1336
      %v1716 = vsel %vm1563, %v1668, %v1338
      %v1717 = vsel %vm1563, %v1669, %v1340
      %v1718 = vsel %vm1563, %v1670, %v1342
      %v1719 = vsel %vm1563, %v1671, %v1344
      %v1720 = vsel %vm1563, %v1672, %v1346
      %v1721 = vsel %vm1563, %v1673, %v1348
      %v1722 = vsel %vm1563, %v1674, %v1350
      %v1723 = vsel %vm1563, %v1675, %v1352
      %v1724 = vsel %vm1563, %v1676, %v1354
      %v1725 = vsel %vm1563, %v1677, %v1356
      %v1726 = vsel %vm1563, %v1678, %v1358
      %v1727 = vsel %vm1563, %v1679, %v1360
      %v1728 = vsel %vm1563, %v1680, %v1362
      %v1729 = vsel %vm1563, %v1681, %v1364
      %v1730 = vsel %vm1563, %v1682, %v1366
      %v1731 = vsel %vm1563, %v1683, %v1368
      %v1732 = vsel %vm1563, %v1684, %v1370
      %v1733 = vsel %vm1563, %v1685, %v1372
      %v1734 = vsel %vm1563, %v1686, %v1374
      %v1735 = vsel %vm1563, %v1687, %v1376
      %v1736 = vsel %vm1563, %v1688, %v1378
      %v1737 = vsel %vm1563, %v1689, %v1380
      %v1738 = vsel %vm1563, %v1690, %v1382
      %v1739 = vsel %vm1563, %v1691, %v1384
      %v1740 = vsel %vm1563, %v1692, %v1386
      %v1741 = vsel %vm1563, %v1693, %v1388
      %v1742 = vsel %vm1563, %v1694, %v1390
      %v1743 = vsel %vm1563, %v1695, %v1392
      %v1744 = vsel %vm1563, %v1696, %v1394
      %v1745 = vsel %vm1563, %v1697, %v1396
      %v1746 = vsel %vm1563, %v1698, %v1398
      %v1747 = vsel %vm1563, %v1699, %v1400
      %v1748 = vsel %vm1563, %v1700, %v1402
      %v1749 = vsel %vm1563, %v1701, %v1404
      %v1750 = vsel %vm1563, %v1702, %v1406
      %v1751 = vsel %vm1563, %v1703, %v1408
      %v1752 = vsel %vm1563, %v1704, %v1410
      %v1753 = vsel %vm1563, %v1705, %v1412
      %v1754 = vsel %vm1563, %v1706, %v1414
      %v1755 = vsel %vm1563, %v1707, %v1416
      %v1756 = vpack.c.bf16 %v1708, %v1564
      %v1757 = vpack.c.bf16 %v385, %v385
      %v1758 = vpack.c.bf16 %v1709, %v1565
      %v1759 = vpack.c.bf16 %v386, %v386
      %v1760 = vpack.c.bf16 %v1710, %v1566
      %v1761 = vpack.c.bf16 %v387, %v387
      %v1762 = vpack.c.bf16 %v1711, %v1567
      %v1763 = vpack.c.bf16 %v388, %v388
      %v1764 = vpack.c.bf16 %v1712, %v1568
      %v1765 = vpack.c.bf16 %v389, %v389
      %v1766 = vpack.c.bf16 %v1713, %v1569
      %v1767 = vpack.c.bf16 %v390, %v390
      %v1768 = vpack.c.bf16 %v1714, %v1570
      %v1769 = vpack.c.bf16 %v391, %v391
      %v1770 = vpack.c.bf16 %v1715, %v1571
      %v1771 = vpack.c.bf16 %v392, %v392
      %v1772 = vpack.c.bf16 %v1716, %v1572
      %v1773 = vpack.c.bf16 %v393, %v393
      %v1774 = vpack.c.bf16 %v1717, %v1573
      %v1775 = vpack.c.bf16 %v394, %v394
      %v1776 = vpack.c.bf16 %v1718, %v1574
      %v1777 = vpack.c.bf16 %v395, %v395
      %v1778 = vpack.c.bf16 %v1719, %v1575
      %v1779 = vpack.c.bf16 %v396, %v396
      %v1780 = vpack.c.bf16 %v1720, %v1576
      %v1781 = vpack.c.bf16 %v397, %v397
      %v1782 = vpack.c.bf16 %v1721, %v1577
      %v1783 = vpack.c.bf16 %v398, %v398
      %v1784 = vpack.c.bf16 %v1722, %v1578
      %v1785 = vpack.c.bf16 %v399, %v399
      %v1786 = vpack.c.bf16 %v1723, %v1579
      %v1787 = vpack.c.bf16 %v400, %v400
      %v1788 = vpack.c.bf16 %v1724, %v1580
      %v1789 = vpack.c.bf16 %v401, %v401
      %v1790 = vpack.c.bf16 %v1725, %v1581
      %v1791 = vpack.c.bf16 %v402, %v402
      %v1792 = vpack.c.bf16 %v1726, %v1582
      %v1793 = vpack.c.bf16 %v403, %v403
      %v1794 = vpack.c.bf16 %v1727, %v1583
      %v1795 = vpack.c.bf16 %v404, %v404
      %v1796 = vpack.c.bf16 %v1728, %v1584
      %v1797 = vpack.c.bf16 %v405, %v405
      %v1798 = vpack.c.bf16 %v1729, %v1585
      %v1799 = vpack.c.bf16 %v406, %v406
      %v1800 = vpack.c.bf16 %v1730, %v1586
      %v1801 = vpack.c.bf16 %v407, %v407
      %v1802 = vpack.c.bf16 %v1731, %v1587
      %v1803 = vpack.c.bf16 %v408, %v408
      %v1804 = vpack.c.bf16 %v1732, %v1588
      %v1805 = vpack.c.bf16 %v409, %v409
      %v1806 = vpack.c.bf16 %v1733, %v1589
      %v1807 = vpack.c.bf16 %v410, %v410
      %v1808 = vpack.c.bf16 %v1734, %v1590
      %v1809 = vpack.c.bf16 %v411, %v411
      %v1810 = vpack.c.bf16 %v1735, %v1591
      %v1811 = vpack.c.bf16 %v412, %v412
      %v1812 = vpack.c.bf16 %v1736, %v1592
      %v1813 = vpack.c.bf16 %v413, %v413
      %v1814 = vpack.c.bf16 %v1737, %v1593
      %v1815 = vpack.c.bf16 %v414, %v414
      %v1816 = vpack.c.bf16 %v1738, %v1594
      %v1817 = vpack.c.bf16 %v415, %v415
      %v1818 = vpack.c.bf16 %v1739, %v1595
      %v1819 = vpack.c.bf16 %v416, %v416
      %v1820 = vpack.c.bf16 %v1740, %v1596
      %v1821 = vpack.c.bf16 %v417, %v417
      %v1822 = vpack.c.bf16 %v1741, %v1597
      %v1823 = vpack.c.bf16 %v418, %v418
      %v1824 = vpack.c.bf16 %v1742, %v1598
      %v1825 = vpack.c.bf16 %v419, %v419
      %v1826 = vpack.c.bf16 %v1743, %v1599
      %v1827 = vpack.c.bf16 %v420, %v420
      %v1828 = vpack.c.bf16 %v1744, %v1600
      %v1829 = vpack.c.bf16 %v421, %v421
      %v1830 = vpack.c.bf16 %v1745, %v1601
      %v1831 = vpack.c.bf16 %v422, %v422
      %v1832 = vpack.c.bf16 %v1746, %v1602
      %v1833 = vpack.c.bf16 %v423, %v423
      %v1834 = vpack.c.bf16 %v1747, %v1603
      %v1835 = vpack.c.bf16 %v424, %v424
      %v1836 = vpack.c.bf16 %v1748, %v1604
      %v1837 = vpack.c.bf16 %v425, %v425
      %v1838 = vpack.c.bf16 %v1749, %v1605
      %v1839 = vpack.c.bf16 %v426, %v426
      %v1840 = vpack.c.bf16 %v1750, %v1606
      %v1841 = vpack.c.bf16 %v433, %v433
      %v1842 = vpack.c.bf16 %v1751, %v1607
      %v1843 = vpack.c.bf16 %v434, %v434
      %v1844 = vpack.c.bf16 %v1752, %v1608
      %v1845 = vpack.c.bf16 %v435, %v435
      %v1846 = vpack.c.bf16 %v1753, %v1609
      %v1847 = vpack.c.bf16 %v442, %v442
      %v1848 = vpack.c.bf16 %v1754, %v1610
      %v1849 = vpack.c.bf16 %v443, %v443
      %v1850 = vpack.c.bf16 %v1755, %v1611
      %v1851 = vpack.c.bf16 %v444, %v444
      %1852 = vst [vmem:[#allocation4] sm:$0xff] %v1756
      %vm1853 = vcmask 257024
      %1854 = vst.msk [vmem:[#allocation4 + $0x8] sm:$0xf] %vm1853, %v1757
      %1855 = vst [vmem:[#allocation4 + $0xc] sm:$0xff] %v1758
      %1856 = vst.msk [vmem:[#allocation4 + $0x14] sm:$0xf] %vm1853, %v1759
      %1857 = vst [vmem:[#allocation4 + $0x18] sm:$0xff] %v1760
      %1858 = vst.msk [vmem:[#allocation4 + $0x20] sm:$0xf] %vm1853, %v1761
      %1859 = vst [vmem:[#allocation4 + $0x24] sm:$0xff] %v1762
      %1860 = vst.msk [vmem:[#allocation4 + $0x2c] sm:$0xf] %vm1853, %v1763
      %1861 = vst [vmem:[#allocation4 + $0x30] sm:$0xff] %v1764
      %1862 = vst.msk [vmem:[#allocation4 + $0x38] sm:$0xf] %vm1853, %v1765
      %1863 = vst [vmem:[#allocation4 + $0x3c] sm:$0xff] %v1766
      %1864 = vst.msk [vmem:[#allocation4 + $0x44] sm:$0xf] %vm1853, %v1767
      %1865 = vst [vmem:[#allocation4 + $0x48] sm:$0xff] %v1768
      %1866 = vst.msk [vmem:[#allocation4 + $0x50] sm:$0xf] %vm1853, %v1769
      %1867 = vst [vmem:[#allocation4 + $0x54] sm:$0xff] %v1770
      %1868 = vst.msk [vmem:[#allocation4 + $0x5c] sm:$0xf] %vm1853, %v1771
      %1869 = vst [vmem:[#allocation4 + $0x60] sm:$0xff] %v1772
      %1870 = vst.msk [vmem:[#allocation4 + $0x68] sm:$0xf] %vm1853, %v1773
      %1871 = vst [vmem:[#allocation4 + $0x6c] sm:$0xff] %v1774
      %1872 = vst.msk [vmem:[#allocation4 + $0x74] sm:$0xf] %vm1853, %v1775
      %1873 = vst [vmem:[#allocation4 + $0x78] sm:$0xff] %v1776
      %1874 = vst.msk [vmem:[#allocation4 + $0x80] sm:$0xf] %vm1853, %v1777
      %1875 = vst [vmem:[#allocation4 + $0x84] sm:$0xff] %v1778
      %1876 = vst.msk [vmem:[#allocation4 + $0x8c] sm:$0xf] %vm1853, %v1779
      %1877 = vst [vmem:[#allocation4 + $0x90] sm:$0xff] %v1780
      %1878 = vst.msk [vmem:[#allocation4 + $0x98] sm:$0xf] %vm1853, %v1781
      %1879 = vst [vmem:[#allocation4 + $0x9c] sm:$0xff] %v1782
      %1880 = vst.msk [vmem:[#allocation4 + $0xa4] sm:$0xf] %vm1853, %v1783
      %1881 = vst [vmem:[#allocation4 + $0xa8] sm:$0xff] %v1784
      %1882 = vst.msk [vmem:[#allocation4 + $0xb0] sm:$0xf] %vm1853, %v1785
      %1883 = vst [vmem:[#allocation4 + $0xb4] sm:$0xff] %v1786
      %1884 = vst.msk [vmem:[#allocation4 + $0xbc] sm:$0xf] %vm1853, %v1787
      %1885 = vst [vmem:[#allocation4 + $0xc0] sm:$0xff] %v1788
      %1886 = vst.msk [vmem:[#allocation4 + $0xc8] sm:$0xf] %vm1853, %v1789
      %1887 = vst [vmem:[#allocation4 + $0xcc] sm:$0xff] %v1790
      %1888 = vst.msk [vmem:[#allocation4 + $0xd4] sm:$0xf] %vm1853, %v1791
      %1889 = vst [vmem:[#allocation4 + $0xd8] sm:$0xff] %v1792
      %1890 = vst.msk [vmem:[#allocation4 + $0xe0] sm:$0xf] %vm1853, %v1793
      %1891 = vst [vmem:[#allocation4 + $0xe4] sm:$0xff] %v1794
      %1892 = vst.msk [vmem:[#allocation4 + $0xec] sm:$0xf] %vm1853, %v1795
      %1893 = vst [vmem:[#allocation4 + $0xf0] sm:$0xff] %v1796
      %1894 = vst.msk [vmem:[#allocation4 + $0xf8] sm:$0xf] %vm1853, %v1797
      %1895 = vst [vmem:[#allocation4 + $0xfc] sm:$0xff] %v1798
      %1896 = vst.msk [vmem:[#allocation4 + $0x104] sm:$0xf] %vm1853, %v1799
      %1897 = vst [vmem:[#allocation4 + $0x108] sm:$0xff] %v1800
      %1898 = vst.msk [vmem:[#allocation4 + $0x110] sm:$0xf] %vm1853, %v1801
      %1899 = vst [vmem:[#allocation4 + $0x114] sm:$0xff] %v1802
      %1900 = vst.msk [vmem:[#allocation4 + $0x11c] sm:$0xf] %vm1853, %v1803
      %1901 = vst [vmem:[#allocation4 + $0x120] sm:$0xff] %v1804
      %1902 = vst.msk [vmem:[#allocation4 + $0x128] sm:$0xf] %vm1853, %v1805
      %1903 = vst [vmem:[#allocation4 + $0x12c] sm:$0xff] %v1806
      %1904 = vst.msk [vmem:[#allocation4 + $0x134] sm:$0xf] %vm1853, %v1807
      %1905 = vst [vmem:[#allocation4 + $0x138] sm:$0xff] %v1808
      %1906 = vst.msk [vmem:[#allocation4 + $0x140] sm:$0xf] %vm1853, %v1809
      %1907 = vst [vmem:[#allocation4 + $0x144] sm:$0xff] %v1810
      %1908 = vst.msk [vmem:[#allocation4 + $0x14c] sm:$0xf] %vm1853, %v1811
      %1909 = vst [vmem:[#allocation4 + $0x150] sm:$0xff] %v1812
      %1910 = vst.msk [vmem:[#allocation4 + $0x158] sm:$0xf] %vm1853, %v1813
      %1911 = vst [vmem:[#allocation4 + $0x15c] sm:$0xff] %v1814
      %1912 = vst.msk [vmem:[#allocation4 + $0x164] sm:$0xf] %vm1853, %v1815
      %1913 = vst [vmem:[#allocation4 + $0x168] sm:$0xff] %v1816
      %1914 = vst.msk [vmem:[#allocation4 + $0x170] sm:$0xf] %vm1853, %v1817
      %1915 = vst [vmem:[#allocation4 + $0x174] sm:$0xff] %v1818
      %1916 = vst.msk [vmem:[#allocation4 + $0x17c] sm:$0xf] %vm1853, %v1819
      %1917 = vst [vmem:[#allocation4 + $0x180] sm:$0xff] %v1820
      %1918 = vst.msk [vmem:[#allocation4 + $0x188] sm:$0xf] %vm1853, %v1821
      %1919 = vst [vmem:[#allocation4 + $0x18c] sm:$0xff] %v1822
      %1920 = vst.msk [vmem:[#allocation4 + $0x194] sm:$0xf] %vm1853, %v1823
      %1921 = vst [vmem:[#allocation4 + $0x198] sm:$0xff] %v1824
      %1922 = vst.msk [vmem:[#allocation4 + $0x1a0] sm:$0xf] %vm1853, %v1825
      %1923 = vst [vmem:[#allocation4 + $0x1a4] sm:$0xff] %v1826
      %1924 = vst.msk [vmem:[#allocation4 + $0x1ac] sm:$0xf] %vm1853, %v1827
      %1925 = vst [vmem:[#allocation4 + $0x1b0] sm:$0xff] %v1828
      %1926 = vst.msk [vmem:[#allocation4 + $0x1b8] sm:$0xf] %vm1853, %v1829
      %1927 = vst [vmem:[#allocation4 + $0x1bc] sm:$0xff] %v1830
      %1928 = vst.msk [vmem:[#allocation4 + $0x1c4] sm:$0xf] %vm1853, %v1831
      %1929 = vst [vmem:[#allocation4 + $0x1c8] sm:$0xff] %v1832
      %1930 = vst.msk [vmem:[#allocation4 + $0x1d0] sm:$0xf] %vm1853, %v1833
      %1931 = vst [vmem:[#allocation4 + $0x1d4] sm:$0xff] %v1834
      %1932 = vst.msk [vmem:[#allocation4 + $0x1dc] sm:$0xf] %vm1853, %v1835
      %1933 = vst [vmem:[#allocation4 + $0x1e0] sm:$0xff] %v1836
      %1934 = vst.msk [vmem:[#allocation4 + $0x1e8] sm:$0xf] %vm1853, %v1837
      %1935 = vst [vmem:[#allocation4 + $0x1ec] sm:$0xff] %v1838
      %1936 = vst.msk [vmem:[#allocation4 + $0x1f4] sm:$0xf] %vm1853, %v1839
      %1937 = vst [vmem:[#allocation4 + $0x1f8] sm:$0xff] %v1840
      %1938 = vst.msk [vmem:[#allocation4 + $0x200] sm:$0xf] %vm1853, %v1841
      %1939 = vst [vmem:[#allocation4 + $0x204] sm:$0xff] %v1842
      %1940 = vst.msk [vmem:[#allocation4 + $0x20c] sm:$0xf] %vm1853, %v1843
      %1941 = vst [vmem:[#allocation4 + $0x210] sm:$0xff] %v1844
      %1942 = vst.msk [vmem:[#allocation4 + $0x218] sm:$0xf] %vm1853, %v1845
      %1943 = vst [vmem:[#allocation4 + $0x21c] sm:$0xff] %v1846
      %1944 = vst.msk [vmem:[#allocation4 + $0x224] sm:$0xf] %vm1853, %v1847
      %1945 = vst [vmem:[#allocation4 + $0x228] sm:$0xff] %v1848
      %1946 = vst.msk [vmem:[#allocation4 + $0x230] sm:$0xf] %vm1853, %v1849
      %1947 = vst [vmem:[#allocation4 + $0x234] sm:$0xff] %v1850
      %1948 = vst.msk [vmem:[#allocation4 + $0x23c] sm:$0xf] %vm1853, %v1851
      %v1949 = vld [vmem:[%s164] sm:$0xff]
      %v1950 = vld [vmem:[%s164 + $0x8] sm:$0xff]
      %v1951 = vld [vmem:[%s164 + $0x10] sm:$0xff]
      %v1952 = vld [vmem:[%s164 + $0x18] sm:$0xff]
      %v1953 = vld [vmem:[%s164 + $0x20] sm:$0xff]
      %v1954 = vld [vmem:[%s164 + $0x28] sm:$0xff]
      %v1955 = vld [vmem:[%s164 + $0x30] sm:$0xff]
      %v1956 = vld [vmem:[%s164 + $0x38] sm:$0xff]
      %v1957 = vld [vmem:[%s164 + $0x40] sm:$0xff]
      %v1958 = vld [vmem:[%s164 + $0x48] sm:$0xff]
      %v1959 = vld [vmem:[%s164 + $0x50] sm:$0xff]
      %v1960 = vld [vmem:[%s164 + $0x58] sm:$0xff]
      %v1961 = vld [vmem:[%s164 + $0x60] sm:$0xff]
      %v1962 = vld [vmem:[%s164 + $0x68] sm:$0xff]
      %v1963 = vld [vmem:[%s164 + $0x70] sm:$0xff]
      %v1964 = vld [vmem:[%s164 + $0x78] sm:$0xff]
      %v1965 = vld [vmem:[%s164 + $0x80] sm:$0xff]
      %v1966 = vld [vmem:[%s164 + $0x88] sm:$0xff]
      %v1967 = vld [vmem:[%s164 + $0x90] sm:$0xff]
      %v1968 = vld [vmem:[%s164 + $0x98] sm:$0xff]
      %v1969 = vld [vmem:[%s164 + $0xa0] sm:$0xff]
      %v1970 = vld [vmem:[%s164 + $0xa8] sm:$0xff]
      %v1971 = vld [vmem:[%s164 + $0xb0] sm:$0xff]
      %v1972 = vld [vmem:[%s164 + $0xb8] sm:$0xff]
      %v1973 = vld [vmem:[%s164 + $0xc0] sm:$0xff]
      %v1974 = vld [vmem:[%s164 + $0xc8] sm:$0xff]
      %v1975 = vld [vmem:[%s164 + $0xd0] sm:$0xff]
      %v1976 = vld [vmem:[%s164 + $0xd8] sm:$0xff]
      %v1977 = vld [vmem:[%s164 + $0xe0] sm:$0xff]
      %v1978 = vld [vmem:[%s164 + $0xe8] sm:$0xff]
      %v1979 = vld [vmem:[%s164 + $0xf0] sm:$0xff]
      %v1980 = vld [vmem:[%s164 + $0xf8] sm:$0xff]
      %v1981 = vld [vmem:[%s164 + $0x100] sm:$0xff]
      %v1982 = vld [vmem:[%s164 + $0x108] sm:$0xff]
      %v1983 = vld [vmem:[%s164 + $0x110] sm:$0xff]
      %v1984 = vld [vmem:[%s164 + $0x118] sm:$0xff]
      %v1985 = vld [vmem:[%s164 + $0x120] sm:$0xff]
      %v1986 = vld [vmem:[%s164 + $0x128] sm:$0xff]
      %v1987 = vld [vmem:[%s164 + $0x130] sm:$0xff]
      %v1988 = vld [vmem:[%s164 + $0x138] sm:$0xff]
      %v1989 = vld [vmem:[%s164 + $0x140] sm:$0xff]
      %v1990 = vld [vmem:[%s164 + $0x148] sm:$0xff]
      %v1991 = vld [vmem:[%s164 + $0x150] sm:$0xff]
      %v1992 = vld [vmem:[%s164 + $0x158] sm:$0xff]
      %v1993 = vld [vmem:[%s164 + $0x160] sm:$0xff]
      %v1994 = vld [vmem:[%s164 + $0x168] sm:$0xff]
      %v1995 = vld [vmem:[%s164 + $0x170] sm:$0xff]
      %v1996 = vld [vmem:[%s164 + $0x178] sm:$0xff]
      %v1997 = vld [vmem:[#allocation4] sm:$0xff]
      %v1998 = vld [vmem:[#allocation4 + $0x8] sm:$0xf]
      %v1999 = vld [vmem:[#allocation4 + $0xc] sm:$0xff]
      %v2000 = vld [vmem:[#allocation4 + $0x14] sm:$0xf]
      %v2001 = vld [vmem:[#allocation4 + $0x18] sm:$0xff]
      %v2002 = vld [vmem:[#allocation4 + $0x20] sm:$0xf]
      %v2003 = vld [vmem:[#allocation4 + $0x24] sm:$0xff]
      %v2004 = vld [vmem:[#allocation4 + $0x2c] sm:$0xf]
      %v2005 = vld [vmem:[#allocation4 + $0x30] sm:$0xff]
      %v2006 = vld [vmem:[#allocation4 + $0x38] sm:$0xf]
      %v2007 = vld [vmem:[#allocation4 + $0x3c] sm:$0xff]
      %v2008 = vld [vmem:[#allocation4 + $0x44] sm:$0xf]
      %v2009 = vld [vmem:[#allocation4 + $0x48] sm:$0xff]
      %v2010 = vld [vmem:[#allocation4 + $0x50] sm:$0xf]
      %v2011 = vld [vmem:[#allocation4 + $0x54] sm:$0xff]
      %v2012 = vld [vmem:[#allocation4 + $0x5c] sm:$0xf]
      %v2013 = vld [vmem:[#allocation4 + $0x60] sm:$0xff]
      %v2014 = vld [vmem:[#allocation4 + $0x68] sm:$0xf]
      %v2015 = vld [vmem:[#allocation4 + $0x6c] sm:$0xff]
      %v2016 = vld [vmem:[#allocation4 + $0x74] sm:$0xf]
      %v2017 = vld [vmem:[#allocation4 + $0x78] sm:$0xff]
      %v2018 = vld [vmem:[#allocation4 + $0x80] sm:$0xf]
      %v2019 = vld [vmem:[#allocation4 + $0x84] sm:$0xff]
      %v2020 = vld [vmem:[#allocation4 + $0x8c] sm:$0xf]
      %v2021 = vld [vmem:[#allocation4 + $0x90] sm:$0xff]
      %v2022 = vld [vmem:[#allocation4 + $0x98] sm:$0xf]
      %v2023 = vld [vmem:[#allocation4 + $0x9c] sm:$0xff]
      %v2024 = vld [vmem:[#allocation4 + $0xa4] sm:$0xf]
      %v2025 = vld [vmem:[#allocation4 + $0xa8] sm:$0xff]
      %v2026 = vld [vmem:[#allocation4 + $0xb0] sm:$0xf]
      %v2027 = vld [vmem:[#allocation4 + $0xb4] sm:$0xff]
      %v2028 = vld [vmem:[#allocation4 + $0xbc] sm:$0xf]
      %v2029 = vld [vmem:[#allocation4 + $0xc0] sm:$0xff]
      %v2030 = vld [vmem:[#allocation4 + $0xc8] sm:$0xf]
      %v2031 = vld [vmem:[#allocation4 + $0xcc] sm:$0xff]
      %v2032 = vld [vmem:[#allocation4 + $0xd4] sm:$0xf]
      %v2033 = vld [vmem:[#allocation4 + $0xd8] sm:$0xff]
      %v2034 = vld [vmem:[#allocation4 + $0xe0] sm:$0xf]
      %v2035 = vld [vmem:[#allocation4 + $0xe4] sm:$0xff]
      %v2036 = vld [vmem:[#allocation4 + $0xec] sm:$0xf]
      %v2037 = vld [vmem:[#allocation4 + $0xf0] sm:$0xff]
      %v2038 = vld [vmem:[#allocation4 + $0xf8] sm:$0xf]
      %v2039 = vld [vmem:[#allocation4 + $0xfc] sm:$0xff]
      %v2040 = vld [vmem:[#allocation4 + $0x104] sm:$0xf]
      %v2041 = vld [vmem:[#allocation4 + $0x108] sm:$0xff]
      %v2042 = vld [vmem:[#allocation4 + $0x110] sm:$0xf]
      %v2043 = vld [vmem:[#allocation4 + $0x114] sm:$0xff]
      %v2044 = vld [vmem:[#allocation4 + $0x11c] sm:$0xf]
      %v2045 = vld [vmem:[#allocation4 + $0x120] sm:$0xff]
      %v2046 = vld [vmem:[#allocation4 + $0x128] sm:$0xf]
      %v2047 = vld [vmem:[#allocation4 + $0x12c] sm:$0xff]
      %v2048 = vld [vmem:[#allocation4 + $0x134] sm:$0xf]
      %v2049 = vld [vmem:[#allocation4 + $0x138] sm:$0xff]
      %v2050 = vld [vmem:[#allocation4 + $0x140] sm:$0xf]
      %v2051 = vld [vmem:[#allocation4 + $0x144] sm:$0xff]
      %v2052 = vld [vmem:[#allocation4 + $0x14c] sm:$0xf]
      %v2053 = vld [vmem:[#allocation4 + $0x150] sm:$0xff]
      %v2054 = vld [vmem:[#allocation4 + $0x158] sm:$0xf]
      %v2055 = vld [vmem:[#allocation4 + $0x15c] sm:$0xff]
      %v2056 = vld [vmem:[#allocation4 + $0x164] sm:$0xf]
      %v2057 = vld [vmem:[#allocation4 + $0x168] sm:$0xff]
      %v2058 = vld [vmem:[#allocation4 + $0x170] sm:$0xf]
      %v2059 = vld [vmem:[#allocation4 + $0x174] sm:$0xff]
      %v2060 = vld [vmem:[#allocation4 + $0x17c] sm:$0xf]
      %v2061 = vld [vmem:[#allocation4 + $0x180] sm:$0xff]
      %v2062 = vld [vmem:[#allocation4 + $0x188] sm:$0xf]
      %v2063 = vld [vmem:[#allocation4 + $0x18c] sm:$0xff]
      %v2064 = vld [vmem:[#allocation4 + $0x194] sm:$0xf]
      %v2065 = vld [vmem:[#allocation4 + $0x198] sm:$0xff]
      %v2066 = vld [vmem:[#allocation4 + $0x1a0] sm:$0xf]
      %v2067 = vld [vmem:[#allocation4 + $0x1a4] sm:$0xff]
      %v2068 = vld [vmem:[#allocation4 + $0x1ac] sm:$0xf]
      %v2069 = vld [vmem:[#allocation4 + $0x1b0] sm:$0xff]
      %v2070 = vld [vmem:[#allocation4 + $0x1b8] sm:$0xf]
      %v2071 = vld [vmem:[#allocation4 + $0x1bc] sm:$0xff]
      %v2072 = vld [vmem:[#allocation4 + $0x1c4] sm:$0xf]
      %v2073 = vld [vmem:[#allocation4 + $0x1c8] sm:$0xff]
      %v2074 = vld [vmem:[#allocation4 + $0x1d0] sm:$0xf]
      %v2075 = vld [vmem:[#allocation4 + $0x1d4] sm:$0xff]
      %v2076 = vld [vmem:[#allocation4 + $0x1dc] sm:$0xf]
      %v2077 = vld [vmem:[#allocation4 + $0x1e0] sm:$0xff]
      %v2078 = vld [vmem:[#allocation4 + $0x1e8] sm:$0xf]
      %v2079 = vld [vmem:[#allocation4 + $0x1ec] sm:$0xff]
      %v2080 = vld [vmem:[#allocation4 + $0x1f4] sm:$0xf]
      %v2081 = vld [vmem:[#allocation4 + $0x1f8] sm:$0xff]
      %v2082 = vld [vmem:[#allocation4 + $0x200] sm:$0xf]
      %v2083 = vld [vmem:[#allocation4 + $0x204] sm:$0xff]
      %v2084 = vld [vmem:[#allocation4 + $0x20c] sm:$0xf]
      %v2085 = vld [vmem:[#allocation4 + $0x210] sm:$0xff]
      %v2086 = vld [vmem:[#allocation4 + $0x218] sm:$0xf]
      %v2087 = vld [vmem:[#allocation4 + $0x21c] sm:$0xff]
      %v2088 = vld [vmem:[#allocation4 + $0x224] sm:$0xf]
      %v2089 = vld [vmem:[#allocation4 + $0x228] sm:$0xff]
      %v2090 = vld [vmem:[#allocation4 + $0x230] sm:$0xf]
      %v2091 = vld [vmem:[#allocation4 + $0x234] sm:$0xff]
      %v2092 = vld [vmem:[#allocation4 + $0x23c] sm:$0xf]
      %v2093 = vld [vmem:[%s1] sm:$0xf]
      %v2094 = vld [vmem:[%s1 + $0x4] sm:$0xf]
      %v2095 = vld [vmem:[%s1 + $0x8] sm:$0xf]
      %v2096 = vld [vmem:[%s1 + $0xc] sm:$0xf]
      %v2097 = vld [vmem:[%s1 + $0x10] sm:$0xf]
      %v2098 = vld [vmem:[%s1 + $0x14] sm:$0xf]
      %v2099 = vld [vmem:[%s1 + $0x18] sm:$0xf]
      %v2100 = vld [vmem:[%s1 + $0x1c] sm:$0xf]
      %v2101 = vld [vmem:[%s1 + $0x20] sm:$0xf]
      %v2102 = vld [vmem:[%s1 + $0x24] sm:$0xf]
      %v2103 = vld [vmem:[%s1 + $0x28] sm:$0xf]
      %v2104 = vld [vmem:[%s1 + $0x2c] sm:$0xf]
      %v2105 = vld [vmem:[%s1 + $0x30] sm:$0xf]
      %v2106 = vld [vmem:[%s1 + $0x34] sm:$0xf]
      %v2107 = vld [vmem:[%s1 + $0x38] sm:$0xf]
      %v2108 = vld [vmem:[%s1 + $0x3c] sm:$0xf]
      %v2109 = vld [vmem:[%s1 + $0x40] sm:$0xf]
      %v2110 = vld [vmem:[%s1 + $0x44] sm:$0xf]
      %v2111 = vld [vmem:[%s1 + $0x48] sm:$0xf]
      %v2112 = vld [vmem:[%s1 + $0x4c] sm:$0xf]
      %v2113 = vld [vmem:[%s1 + $0x50] sm:$0xf]
      %v2114 = vld [vmem:[%s1 + $0x54] sm:$0xf]
      %v2115 = vld [vmem:[%s1 + $0x58] sm:$0xf]
      %v2116 = vld [vmem:[%s1 + $0x5c] sm:$0xf]
      %v2117 = vld [vmem:[%s1 + $0x60] sm:$0xf]
      %v2118 = vld [vmem:[%s1 + $0x64] sm:$0xf]
      %v2119 = vld [vmem:[%s1 + $0x68] sm:$0xf]
      %v2120 = vld [vmem:[%s1 + $0x6c] sm:$0xf]
      %v2121 = vld [vmem:[%s1 + $0x70] sm:$0xf]
      %v2122 = vld [vmem:[%s1 + $0x74] sm:$0xf]
      %v2123 = vld [vmem:[%s1 + $0x78] sm:$0xf]
      %v2124 = vld [vmem:[%s1 + $0x7c] sm:$0xf]
      %v2125 = vld [vmem:[%s1 + $0x80] sm:$0xf]
      %v2126 = vld [vmem:[%s1 + $0x84] sm:$0xf]
      %v2127 = vld [vmem:[%s1 + $0x88] sm:$0xf]
      %v2128 = vld [vmem:[%s1 + $0x8c] sm:$0xf]
      %v2225 = vunpack.c.l.b16 %v1997
      %v2226 = vunpack.c.h.b16 %v1997
      %v2227 = vunpack.c.l.b16 %v1998
      %v2228 = vunpack.c.l.b16 %v1999
      %v2229 = vunpack.c.h.b16 %v1999
      %v2230 = vunpack.c.l.b16 %v2000
      %v2231 = vunpack.c.l.b16 %v2001
      %v2232 = vunpack.c.h.b16 %v2001
      %v2233 = vunpack.c.l.b16 %v2002
      %v2234 = vunpack.c.l.b16 %v2003
      %v2235 = vunpack.c.h.b16 %v2003
      %v2236 = vunpack.c.l.b16 %v2004
      %v2237 = vunpack.c.l.b16 %v2005
      %v2238 = vunpack.c.h.b16 %v2005
      %v2239 = vunpack.c.l.b16 %v2006
      %v2240 = vunpack.c.l.b16 %v2007
      %v2241 = vunpack.c.h.b16 %v2007
      %v2242 = vunpack.c.l.b16 %v2008
      %v2243 = vunpack.c.l.b16 %v2009
      %v2244 = vunpack.c.h.b16 %v2009
      %v2245 = vunpack.c.l.b16 %v2010
      %v2246 = vunpack.c.l.b16 %v2011
      %v2247 = vunpack.c.h.b16 %v2011
      %v2248 = vunpack.c.l.b16 %v2012
      %v2249 = vunpack.c.l.b16 %v2013
      %v2250 = vunpack.c.h.b16 %v2013
      %v2251 = vunpack.c.l.b16 %v2014
      %v2252 = vunpack.c.l.b16 %v2015
      %v2253 = vunpack.c.h.b16 %v2015
      %v2254 = vunpack.c.l.b16 %v2016
      %v2255 = vunpack.c.l.b16 %v2017
      %v2256 = vunpack.c.h.b16 %v2017
      %v2257 = vunpack.c.l.b16 %v2018
      %v2258 = vunpack.c.l.b16 %v2019
      %v2259 = vunpack.c.h.b16 %v2019
      %v2260 = vunpack.c.l.b16 %v2020
      %v2261 = vunpack.c.l.b16 %v2021
      %v2262 = vunpack.c.h.b16 %v2021
      %v2263 = vunpack.c.l.b16 %v2022
      %v2264 = vunpack.c.l.b16 %v2023
      %v2265 = vunpack.c.h.b16 %v2023
      %v2266 = vunpack.c.l.b16 %v2024
      %v2267 = vunpack.c.l.b16 %v2025
      %v2268 = vunpack.c.h.b16 %v2025
      %v2269 = vunpack.c.l.b16 %v2026
      %v2270 = vunpack.c.l.b16 %v2027
      %v2271 = vunpack.c.h.b16 %v2027
      %v2272 = vunpack.c.l.b16 %v2028
      %v2273 = vunpack.c.l.b16 %v2029
      %v2274 = vunpack.c.h.b16 %v2029
      %v2275 = vunpack.c.l.b16 %v2030
      %v2276 = vunpack.c.l.b16 %v2031
      %v2277 = vunpack.c.h.b16 %v2031
      %v2278 = vunpack.c.l.b16 %v2032
      %v2279 = vunpack.c.l.b16 %v2033
      %v2280 = vunpack.c.h.b16 %v2033
      %v2281 = vunpack.c.l.b16 %v2034
      %v2282 = vunpack.c.l.b16 %v2035
      %v2283 = vunpack.c.h.b16 %v2035
      %v2284 = vunpack.c.l.b16 %v2036
      %v2285 = vunpack.c.l.b16 %v2037
      %v2286 = vunpack.c.h.b16 %v2037
      %v2287 = vunpack.c.l.b16 %v2038
      %v2288 = vunpack.c.l.b16 %v2039
      %v2289 = vunpack.c.h.b16 %v2039
      %v2290 = vunpack.c.l.b16 %v2040
      %v2291 = vunpack.c.l.b16 %v2041
      %v2292 = vunpack.c.h.b16 %v2041
      %v2293 = vunpack.c.l.b16 %v2042
      %v2294 = vunpack.c.l.b16 %v2043
      %v2295 = vunpack.c.h.b16 %v2043
      %v2296 = vunpack.c.l.b16 %v2044
      %v2297 = vunpack.c.l.b16 %v2045
      %v2298 = vunpack.c.h.b16 %v2045
      %v2299 = vunpack.c.l.b16 %v2046
      %v2300 = vunpack.c.l.b16 %v2047
      %v2301 = vunpack.c.h.b16 %v2047
      %v2302 = vunpack.c.l.b16 %v2048
      %v2303 = vunpack.c.l.b16 %v2049
      %v2304 = vunpack.c.h.b16 %v2049
      %v2305 = vunpack.c.l.b16 %v2050
      %v2306 = vunpack.c.l.b16 %v2051
      %v2307 = vunpack.c.h.b16 %v2051
      %v2308 = vunpack.c.l.b16 %v2052
      %v2309 = vunpack.c.l.b16 %v2053
      %v2310 = vunpack.c.h.b16 %v2053
      %v2311 = vunpack.c.l.b16 %v2054
      %v2312 = vunpack.c.l.b16 %v2055
      %v2313 = vunpack.c.h.b16 %v2055
      %v2314 = vunpack.c.l.b16 %v2056
      %v2315 = vunpack.c.l.b16 %v2057
      %v2316 = vunpack.c.h.b16 %v2057
      %v2317 = vunpack.c.l.b16 %v2058
      %v2318 = vunpack.c.l.b16 %v2059
      %v2319 = vunpack.c.h.b16 %v2059
      %v2320 = vunpack.c.l.b16 %v2060
      %v2321 = vunpack.c.l.b16 %v2061
      %v2322 = vunpack.c.h.b16 %v2061
      %v2323 = vunpack.c.l.b16 %v2062
      %v2324 = vunpack.c.l.b16 %v2063
      %v2325 = vunpack.c.h.b16 %v2063
      %v2326 = vunpack.c.l.b16 %v2064
      %v2327 = vunpack.c.l.b16 %v2065
      %v2328 = vunpack.c.h.b16 %v2065
      %v2329 = vunpack.c.l.b16 %v2066
      %v2330 = vunpack.c.l.b16 %v2067
      %v2331 = vunpack.c.h.b16 %v2067
      %v2332 = vunpack.c.l.b16 %v2068
      %v2333 = vunpack.c.l.b16 %v2069
      %v2334 = vunpack.c.h.b16 %v2069
      %v2335 = vunpack.c.l.b16 %v2070
      %v2336 = vunpack.c.l.b16 %v2071
      %v2337 = vunpack.c.h.b16 %v2071
      %v2338 = vunpack.c.l.b16 %v2072
      %v2339 = vunpack.c.l.b16 %v2073
      %v2340 = vunpack.c.h.b16 %v2073
      %v2341 = vunpack.c.l.b16 %v2074
      %v2342 = vunpack.c.l.b16 %v2075
      %v2343 = vunpack.c.h.b16 %v2075
      %v2344 = vunpack.c.l.b16 %v2076
      %v2345 = vunpack.c.l.b16 %v2077
      %v2346 = vunpack.c.h.b16 %v2077
      %v2347 = vunpack.c.l.b16 %v2078
      %v2348 = vunpack.c.l.b16 %v2079
      %v2349 = vunpack.c.h.b16 %v2079
      %v2350 = vunpack.c.l.b16 %v2080
      %v2351 = vunpack.c.l.b16 %v2081
      %v2352 = vunpack.c.h.b16 %v2081
      %v2353 = vunpack.c.l.b16 %v2082
      %v2354 = vunpack.c.l.b16 %v2083
      %v2355 = vunpack.c.h.b16 %v2083
      %v2356 = vunpack.c.l.b16 %v2084
      %v2357 = vunpack.c.l.b16 %v2085
      %v2358 = vunpack.c.h.b16 %v2085
      %v2359 = vunpack.c.l.b16 %v2086
      %v2360 = vunpack.c.l.b16 %v2087
      %v2361 = vunpack.c.h.b16 %v2087
      %v2362 = vunpack.c.l.b16 %v2088
      %v2363 = vunpack.c.l.b16 %v2089
      %v2364 = vunpack.c.h.b16 %v2089
      %v2365 = vunpack.c.l.b16 %v2090
      %v2366 = vunpack.c.l.b16 %v2091
      %v2367 = vunpack.c.h.b16 %v2091
      %v2368 = vunpack.c.l.b16 %v2092
      %v2369 = vpack.c.b16 %v2228, %v2225
      %v2370 = vpack.c.b16 %v2229, %v2226
      %v2371 = vpack.c.b16 %v2230, %v2227
      %v2372 = vpack.c.b16 %v2234, %v2231
      %v2373 = vpack.c.b16 %v2235, %v2232
      %v2374 = vpack.c.b16 %v2236, %v2233
      %v2375 = vpack.c.b16 %v2240, %v2237
      %v2376 = vpack.c.b16 %v2241, %v2238
      %v2377 = vpack.c.b16 %v2242, %v2239
      %v2378 = vpack.c.b16 %v2246, %v2243
      %v2379 = vpack.c.b16 %v2247, %v2244
      %v2380 = vpack.c.b16 %v2248, %v2245
      %v2381 = vpack.c.b16 %v2252, %v2249
      %v2382 = vpack.c.b16 %v2253, %v2250
      %v2383 = vpack.c.b16 %v2254, %v2251
      %v2384 = vpack.c.b16 %v2258, %v2255
      %v2385 = vpack.c.b16 %v2259, %v2256
      %v2386 = vpack.c.b16 %v2260, %v2257
      %v2387 = vpack.c.b16 %v2264, %v2261
      %v2388 = vpack.c.b16 %v2265, %v2262
      %v2389 = vpack.c.b16 %v2266, %v2263
      %v2390 = vpack.c.b16 %v2270, %v2267
      %v2391 = vpack.c.b16 %v2271, %v2268
      %v2392 = vpack.c.b16 %v2272, %v2269
      %v2393 = vpack.c.b16 %v2276, %v2273
      %v2394 = vpack.c.b16 %v2277, %v2274
      %v2395 = vpack.c.b16 %v2278, %v2275
      %v2396 = vpack.c.b16 %v2282, %v2279
      %v2397 = vpack.c.b16 %v2283, %v2280
      %v2398 = vpack.c.b16 %v2284, %v2281
      %v2399 = vpack.c.b16 %v2288, %v2285
      %v2400 = vpack.c.b16 %v2289, %v2286
      %v2401 = vpack.c.b16 %v2290, %v2287
      %v2402 = vpack.c.b16 %v2294, %v2291
      %v2403 = vpack.c.b16 %v2295, %v2292
      %v2404 = vpack.c.b16 %v2296, %v2293
      %v2405 = vpack.c.b16 %v2300, %v2297
      %v2406 = vpack.c.b16 %v2301, %v2298
      %v2407 = vpack.c.b16 %v2302, %v2299
      %v2408 = vpack.c.b16 %v2306, %v2303
      %v2409 = vpack.c.b16 %v2307, %v2304
      %v2410 = vpack.c.b16 %v2308, %v2305
      %v2411 = vpack.c.b16 %v2312, %v2309
      %v2412 = vpack.c.b16 %v2313, %v2310
      %v2413 = vpack.c.b16 %v2314, %v2311
      %v2414 = vpack.c.b16 %v2318, %v2315
      %v2415 = vpack.c.b16 %v2319, %v2316
      %v2416 = vpack.c.b16 %v2320, %v2317
      %v2417 = vpack.c.b16 %v2324, %v2321
      %v2418 = vpack.c.b16 %v2325, %v2322
      %v2419 = vpack.c.b16 %v2326, %v2323
      %v2420 = vpack.c.b16 %v2330, %v2327
      %v2421 = vpack.c.b16 %v2331, %v2328
      %v2422 = vpack.c.b16 %v2332, %v2329
      %v2423 = vpack.c.b16 %v2336, %v2333
      %v2424 = vpack.c.b16 %v2337, %v2334
      %v2425 = vpack.c.b16 %v2338, %v2335
      %v2426 = vpack.c.b16 %v2342, %v2339
      %v2427 = vpack.c.b16 %v2343, %v2340
      %v2428 = vpack.c.b16 %v2344, %v2341
      %v2429 = vpack.c.b16 %v2348, %v2345
      %v2430 = vpack.c.b16 %v2349, %v2346
      %v2431 = vpack.c.b16 %v2350, %v2347
      %v2432 = vpack.c.b16 %v2354, %v2351
      %v2433 = vpack.c.b16 %v2355, %v2352
      %v2434 = vpack.c.b16 %v2356, %v2353
      %v2435 = vpack.c.b16 %v2360, %v2357
      %v2436 = vpack.c.b16 %v2361, %v2358
      %v2437 = vpack.c.b16 %v2362, %v2359
      %v2438 = vpack.c.b16 %v2366, %v2363
      %v2439 = vpack.c.b16 %v2367, %v2364
      %v2440 = vpack.c.b16 %v2368, %v2365
      %v2525 = vunpack.c.l.b16 %v2093
      %v2526 = vunpack.c.l.b16 %v2094
      %v2527 = vunpack.c.l.b16 %v2095
      %v2528 = vunpack.c.l.b16 %v2096
      %v2529 = vunpack.c.l.b16 %v2097
      %v2530 = vunpack.c.l.b16 %v2098
      %v2531 = vunpack.c.l.b16 %v2099
      %v2532 = vunpack.c.l.b16 %v2100
      %v2533 = vunpack.c.l.b16 %v2101
      %v2534 = vunpack.c.l.b16 %v2102
      %v2535 = vunpack.c.l.b16 %v2103
      %v2536 = vunpack.c.l.b16 %v2104
      %v2537 = vunpack.c.l.b16 %v2105
      %v2538 = vunpack.c.l.b16 %v2106
      %v2539 = vunpack.c.l.b16 %v2107
      %v2540 = vunpack.c.l.b16 %v2108
      %v2541 = vunpack.c.l.b16 %v2109
      %v2542 = vunpack.c.l.b16 %v2110
      %v2543 = vunpack.c.l.b16 %v2111
      %v2544 = vunpack.c.l.b16 %v2112
      %v2545 = vunpack.c.l.b16 %v2113
      %v2546 = vunpack.c.l.b16 %v2114
      %v2547 = vunpack.c.l.b16 %v2115
      %v2548 = vunpack.c.l.b16 %v2116
      %v2549 = vunpack.c.l.b16 %v2117
      %v2550 = vunpack.c.l.b16 %v2118
      %v2551 = vunpack.c.l.b16 %v2119
      %v2552 = vunpack.c.l.b16 %v2120
      %v2553 = vunpack.c.l.b16 %v2121
      %v2554 = vunpack.c.l.b16 %v2122
      %v2555 = vunpack.c.l.b16 %v2123
      %v2556 = vunpack.c.l.b16 %v2124
      %v2557 = vunpack.c.l.b16 %v2125
      %v2558 = vunpack.c.l.b16 %v2126
      %v2559 = vunpack.c.l.b16 %v2127
      %v2560 = vunpack.c.l.b16 %v2128
      %v2561 = vpack.c.b16 %v2526, %v2525
      %v2562 = vpack.c.b16 %v2528, %v2527
      %v2563 = vpack.c.b16 %v2530, %v2529
      %v2564 = vpack.c.b16 %v2532, %v2531
      %v2565 = vpack.c.b16 %v2534, %v2533
      %v2566 = vpack.c.b16 %v2536, %v2535
      %v2567 = vpack.c.b16 %v2538, %v2537
      %v2568 = vpack.c.b16 %v2540, %v2539
      %v2569 = vpack.c.b16 %v2542, %v2541
      %v2570 = vpack.c.b16 %v2544, %v2543
      %v2571 = vpack.c.b16 %v2546, %v2545
      %v2572 = vpack.c.b16 %v2548, %v2547
      %v2573 = vpack.c.b16 %v2550, %v2549
      %v2574 = vpack.c.b16 %v2552, %v2551
      %v2575 = vpack.c.b16 %v2554, %v2553
      %v2576 = vpack.c.b16 %v2556, %v2555
      %v2577 = vpack.c.b16 %v2558, %v2557
      %v2578 = vpack.c.b16 %v2560, %v2559
      %v2598 = vsel %vm1465, %v2371, 0
      %v2601 = vsel %vm1465, %v2374, 0
      %v2604 = vsel %vm1465, %v2377, 0
      %v2607 = vsel %vm1465, %v2380, 0
      %v2610 = vsel %vm1465, %v2383, 0
      %v2613 = vsel %vm1465, %v2386, 0
      %v2616 = vsel %vm1465, %v2389, 0
      %v2619 = vsel %vm1465, %v2392, 0
      %v2622 = vsel %vm1465, %v2395, 0
      %v2625 = vsel %vm1465, %v2398, 0
      %v2628 = vsel %vm1465, %v2401, 0
      %v2631 = vsel %vm1465, %v2404, 0
      %v2634 = vsel %vm1465, %v2407, 0
      %v2637 = vsel %vm1465, %v2410, 0
      %v2640 = vsel %vm1465, %v2413, 0
      %v2643 = vsel %vm1465, %v2416, 0
      %v2646 = vsel %vm1465, %v2419, 0
      %v2649 = vsel %vm1465, %v2422, 0
      %v2652 = vsel %vm1465, %v2425, 0
      %v2655 = vsel %vm1465, %v2428, 0
      %v2658 = vsel %vm1465, %v2431, 0
      %v2661 = vsel %vm1465, %v2434, 0
      %v2664 = vsel %vm1465, %v2437, 0
      %v2667 = vsel %vm1465, %v2440, 0
      %2669 = vmatpush.bf16.msra.mxu0 %v2568
      %2670 = vmatpush.bf16.msra.mxu0 %v2567
      %2671 = vmatpush.bf16.msra.mxu0 %v2566
      %2672 = vmatpush.bf16.msra.mxu0 %v2565
      %2673 = vmatpush.bf16.msra.mxu0 %v2564
      %2674 = vmatpush.bf16.msra.mxu0 %v2563
      %2675 = vmatpush.bf16.msra.mxu0 %v2562
      %2676 = vmatpush.bf16.msra.mxu0 %v2561
      %2677 = vmatmul.bf16.gmra.mxu0 %v2369
      %v2678 = vpop.f32.mrf.mxu0
      %v2679 = vadd.f32 0.0, %v2678
      %v2680 = vpop.f32.mrf.mxu0
      %v2681 = vadd.f32 0.0, %v2680
      %2682 = vmatmul.bf16.gmra.mxu0 %v2372
      %v2683 = vpop.f32.mrf.mxu0
      %v2684 = vadd.f32 0.0, %v2683
      %v2685 = vpop.f32.mrf.mxu0
      %v2686 = vadd.f32 0.0, %v2685
      %2687 = vmatmul.bf16.gmra.mxu0 %v2375
      %v2688 = vpop.f32.mrf.mxu0
      %v2689 = vadd.f32 0.0, %v2688
      %v2690 = vpop.f32.mrf.mxu0
      %v2691 = vadd.f32 0.0, %v2690
      %2692 = vmatmul.bf16.gmra.mxu0 %v2378
      %v2693 = vpop.f32.mrf.mxu0
      %v2694 = vadd.f32 0.0, %v2693
      %v2695 = vpop.f32.mrf.mxu0
      %v2696 = vadd.f32 0.0, %v2695
      %2697 = vmatmul.bf16.gmra.mxu0 %v2381
      %v2698 = vpop.f32.mrf.mxu0
      %v2699 = vadd.f32 0.0, %v2698
      %v2700 = vpop.f32.mrf.mxu0
      %v2701 = vadd.f32 0.0, %v2700
      %2702 = vmatmul.bf16.gmra.mxu0 %v2384
      %v2703 = vpop.f32.mrf.mxu0
      %v2704 = vadd.f32 0.0, %v2703
      %v2705 = vpop.f32.mrf.mxu0
      %v2706 = vadd.f32 0.0, %v2705
      %2707 = vmatmul.bf16.gmra.mxu0 %v2387
      %v2708 = vpop.f32.mrf.mxu0
      %v2709 = vadd.f32 0.0, %v2708
      %v2710 = vpop.f32.mrf.mxu0
      %v2711 = vadd.f32 0.0, %v2710
      %2712 = vmatmul.bf16.gmra.mxu0 %v2390
      %v2713 = vpop.f32.mrf.mxu0
      %v2714 = vadd.f32 0.0, %v2713
      %v2715 = vpop.f32.mrf.mxu0
      %v2716 = vadd.f32 0.0, %v2715
      %2717 = vmatmul.bf16.gmra.mxu0 %v2393
      %v2718 = vpop.f32.mrf.mxu0
      %v2719 = vadd.f32 0.0, %v2718
      %v2720 = vpop.f32.mrf.mxu0
      %v2721 = vadd.f32 0.0, %v2720
      %2722 = vmatmul.bf16.gmra.mxu0 %v2396
      %v2723 = vpop.f32.mrf.mxu0
      %v2724 = vadd.f32 0.0, %v2723
      %v2725 = vpop.f32.mrf.mxu0
      %v2726 = vadd.f32 0.0, %v2725
      %2727 = vmatmul.bf16.gmra.mxu0 %v2399
      %v2728 = vpop.f32.mrf.mxu0
      %v2729 = vadd.f32 0.0, %v2728
      %v2730 = vpop.f32.mrf.mxu0
      %v2731 = vadd.f32 0.0, %v2730
      %2732 = vmatmul.bf16.gmra.mxu0 %v2402
      %v2733 = vpop.f32.mrf.mxu0
      %v2734 = vadd.f32 0.0, %v2733
      %v2735 = vpop.f32.mrf.mxu0
      %v2736 = vadd.f32 0.0, %v2735
      %2737 = vmatmul.bf16.gmra.mxu0 %v2405
      %v2738 = vpop.f32.mrf.mxu0
      %v2739 = vadd.f32 0.0, %v2738
      %v2740 = vpop.f32.mrf.mxu0
      %v2741 = vadd.f32 0.0, %v2740
      %2742 = vmatmul.bf16.gmra.mxu0 %v2408
      %v2743 = vpop.f32.mrf.mxu0
      %v2744 = vadd.f32 0.0, %v2743
      %v2745 = vpop.f32.mrf.mxu0
      %v2746 = vadd.f32 0.0, %v2745
      %2747 = vmatmul.bf16.gmra.mxu0 %v2411
      %v2748 = vpop.f32.mrf.mxu0
      %v2749 = vadd.f32 0.0, %v2748
      %v2750 = vpop.f32.mrf.mxu0
      %v2751 = vadd.f32 0.0, %v2750
      %2752 = vmatmul.bf16.gmra.mxu0 %v2414
      %v2753 = vpop.f32.mrf.mxu0
      %v2754 = vadd.f32 0.0, %v2753
      %v2755 = vpop.f32.mrf.mxu0
      %v2756 = vadd.f32 0.0, %v2755
      %2757 = vmatmul.bf16.gmra.mxu0 %v2417
      %v2758 = vpop.f32.mrf.mxu0
      %v2759 = vadd.f32 0.0, %v2758
      %v2760 = vpop.f32.mrf.mxu0
      %v2761 = vadd.f32 0.0, %v2760
      %2762 = vmatmul.bf16.gmra.mxu0 %v2420
      %v2763 = vpop.f32.mrf.mxu0
      %v2764 = vadd.f32 0.0, %v2763
      %v2765 = vpop.f32.mrf.mxu0
      %v2766 = vadd.f32 0.0, %v2765
      %2767 = vmatmul.bf16.gmra.mxu0 %v2423
      %v2768 = vpop.f32.mrf.mxu0
      %v2769 = vadd.f32 0.0, %v2768
      %v2770 = vpop.f32.mrf.mxu0
      %v2771 = vadd.f32 0.0, %v2770
      %2772 = vmatmul.bf16.gmra.mxu0 %v2426
      %v2773 = vpop.f32.mrf.mxu0
      %v2774 = vadd.f32 0.0, %v2773
      %v2775 = vpop.f32.mrf.mxu0
      %v2776 = vadd.f32 0.0, %v2775
      %2777 = vmatmul.bf16.gmra.mxu0 %v2429
      %v2778 = vpop.f32.mrf.mxu0
      %v2779 = vadd.f32 0.0, %v2778
      %v2780 = vpop.f32.mrf.mxu0
      %v2781 = vadd.f32 0.0, %v2780
      %2782 = vmatmul.bf16.gmra.mxu0 %v2432
      %v2783 = vpop.f32.mrf.mxu0
      %v2784 = vadd.f32 0.0, %v2783
      %v2785 = vpop.f32.mrf.mxu0
      %v2786 = vadd.f32 0.0, %v2785
      %2787 = vmatmul.bf16.gmra.mxu0 %v2435
      %v2788 = vpop.f32.mrf.mxu0
      %v2789 = vadd.f32 0.0, %v2788
      %v2790 = vpop.f32.mrf.mxu0
      %v2791 = vadd.f32 0.0, %v2790
      %2792 = vmatmul.bf16.gmra.mxu0 %v2438
      %v2793 = vpop.f32.mrf.mxu0
      %v2794 = vadd.f32 0.0, %v2793
      %v2795 = vpop.f32.mrf.mxu0
      %v2796 = vadd.f32 0.0, %v2795
      %2797 = vdwg.mxu0
      %2798 = vmatpush.bf16.msra.mxu0 %v2576
      %2799 = vmatpush.bf16.msra.mxu0 %v2575
      %2800 = vmatpush.bf16.msra.mxu0 %v2574
      %2801 = vmatpush.bf16.msra.mxu0 %v2573
      %2802 = vmatpush.bf16.msra.mxu0 %v2572
      %2803 = vmatpush.bf16.msra.mxu0 %v2571
      %2804 = vmatpush.bf16.msra.mxu0 %v2570
      %2805 = vmatpush.bf16.msra.mxu0 %v2569
      %2806 = vmatmul.bf16.gmra.mxu0 %v2370
      %v2807 = vpop.f32.mrf.mxu0
      %v2808 = vadd.f32 %v2679, %v2807
      %v2809 = vpop.f32.mrf.mxu0
      %v2810 = vadd.f32 %v2681, %v2809
      %2811 = vmatmul.bf16.gmra.mxu0 %v2373
      %v2812 = vpop.f32.mrf.mxu0
      %v2813 = vadd.f32 %v2684, %v2812
      %v2814 = vpop.f32.mrf.mxu0
      %v2815 = vadd.f32 %v2686, %v2814
      %2816 = vmatmul.bf16.gmra.mxu0 %v2376
      %v2817 = vpop.f32.mrf.mxu0
      %v2818 = vadd.f32 %v2689, %v2817
      %v2819 = vpop.f32.mrf.mxu0
      %v2820 = vadd.f32 %v2691, %v2819
      %2821 = vmatmul.bf16.gmra.mxu0 %v2379
      %v2822 = vpop.f32.mrf.mxu0
      %v2823 = vadd.f32 %v2694, %v2822
      %v2824 = vpop.f32.mrf.mxu0
      %v2825 = vadd.f32 %v2696, %v2824
      %2826 = vmatmul.bf16.gmra.mxu0 %v2382
      %v2827 = vpop.f32.mrf.mxu0
      %v2828 = vadd.f32 %v2699, %v2827
      %v2829 = vpop.f32.mrf.mxu0
      %v2830 = vadd.f32 %v2701, %v2829
      %2831 = vmatmul.bf16.gmra.mxu0 %v2385
      %v2832 = vpop.f32.mrf.mxu0
      %v2833 = vadd.f32 %v2704, %v2832
      %v2834 = vpop.f32.mrf.mxu0
      %v2835 = vadd.f32 %v2706, %v2834
      %2836 = vmatmul.bf16.gmra.mxu0 %v2388
      %v2837 = vpop.f32.mrf.mxu0
      %v2838 = vadd.f32 %v2709, %v2837
      %v2839 = vpop.f32.mrf.mxu0
      %v2840 = vadd.f32 %v2711, %v2839
      %2841 = vmatmul.bf16.gmra.mxu0 %v2391
      %v2842 = vpop.f32.mrf.mxu0
      %v2843 = vadd.f32 %v2714, %v2842
      %v2844 = vpop.f32.mrf.mxu0
      %v2845 = vadd.f32 %v2716, %v2844
      %2846 = vmatmul.bf16.gmra.mxu0 %v2394
      %v2847 = vpop.f32.mrf.mxu0
      %v2848 = vadd.f32 %v2719, %v2847
      %v2849 = vpop.f32.mrf.mxu0
      %v2850 = vadd.f32 %v2721, %v2849
      %2851 = vmatmul.bf16.gmra.mxu0 %v2397
      %v2852 = vpop.f32.mrf.mxu0
      %v2853 = vadd.f32 %v2724, %v2852
      %v2854 = vpop.f32.mrf.mxu0
      %v2855 = vadd.f32 %v2726, %v2854
      %2856 = vmatmul.bf16.gmra.mxu0 %v2400
      %v2857 = vpop.f32.mrf.mxu0
      %v2858 = vadd.f32 %v2729, %v2857
      %v2859 = vpop.f32.mrf.mxu0
      %v2860 = vadd.f32 %v2731, %v2859
      %2861 = vmatmul.bf16.gmra.mxu0 %v2403
      %v2862 = vpop.f32.mrf.mxu0
      %v2863 = vadd.f32 %v2734, %v2862
      %v2864 = vpop.f32.mrf.mxu0
      %v2865 = vadd.f32 %v2736, %v2864
      %2866 = vmatmul.bf16.gmra.mxu0 %v2406
      %v2867 = vpop.f32.mrf.mxu0
      %v2868 = vadd.f32 %v2739, %v2867
      %v2869 = vpop.f32.mrf.mxu0
      %v2870 = vadd.f32 %v2741, %v2869
      %2871 = vmatmul.bf16.gmra.mxu0 %v2409
      %v2872 = vpop.f32.mrf.mxu0
      %v2873 = vadd.f32 %v2744, %v2872
      %v2874 = vpop.f32.mrf.mxu0
      %v2875 = vadd.f32 %v2746, %v2874
      %2876 = vmatmul.bf16.gmra.mxu0 %v2412
      %v2877 = vpop.f32.mrf.mxu0
      %v2878 = vadd.f32 %v2749, %v2877
      %v2879 = vpop.f32.mrf.mxu0
      %v2880 = vadd.f32 %v2751, %v2879
      %2881 = vmatmul.bf16.gmra.mxu0 %v2415
      %v2882 = vpop.f32.mrf.mxu0
      %v2883 = vadd.f32 %v2754, %v2882
      %v2884 = vpop.f32.mrf.mxu0
      %v2885 = vadd.f32 %v2756, %v2884
      %2886 = vmatmul.bf16.gmra.mxu0 %v2418
      %v2887 = vpop.f32.mrf.mxu0
      %v2888 = vadd.f32 %v2759, %v2887
      %v2889 = vpop.f32.mrf.mxu0
      %v2890 = vadd.f32 %v2761, %v2889
      %2891 = vmatmul.bf16.gmra.mxu0 %v2421
      %v2892 = vpop.f32.mrf.mxu0
      %v2893 = vadd.f32 %v2764, %v2892
      %v2894 = vpop.f32.mrf.mxu0
      %v2895 = vadd.f32 %v2766, %v2894
      %2896 = vmatmul.bf16.gmra.mxu0 %v2424
      %v2897 = vpop.f32.mrf.mxu0
      %v2898 = vadd.f32 %v2769, %v2897
      %v2899 = vpop.f32.mrf.mxu0
      %v2900 = vadd.f32 %v2771, %v2899
      %2901 = vmatmul.bf16.gmra.mxu0 %v2427
      %v2902 = vpop.f32.mrf.mxu0
      %v2903 = vadd.f32 %v2774, %v2902
      %v2904 = vpop.f32.mrf.mxu0
      %v2905 = vadd.f32 %v2776, %v2904
      %2906 = vmatmul.bf16.gmra.mxu0 %v2430
      %v2907 = vpop.f32.mrf.mxu0
      %v2908 = vadd.f32 %v2779, %v2907
      %v2909 = vpop.f32.mrf.mxu0
      %v2910 = vadd.f32 %v2781, %v2909
      %2911 = vmatmul.bf16.gmra.mxu0 %v2433
      %v2912 = vpop.f32.mrf.mxu0
      %v2913 = vadd.f32 %v2784, %v2912
      %v2914 = vpop.f32.mrf.mxu0
      %v2915 = vadd.f32 %v2786, %v2914
      %2916 = vmatmul.bf16.gmra.mxu0 %v2436
      %v2917 = vpop.f32.mrf.mxu0
      %v2918 = vadd.f32 %v2789, %v2917
      %v2919 = vpop.f32.mrf.mxu0
      %v2920 = vadd.f32 %v2791, %v2919
      %2921 = vmatmul.bf16.gmra.mxu0 %v2439
      %v2922 = vpop.f32.mrf.mxu0
      %v2923 = vadd.f32 %v2794, %v2922
      %v2924 = vpop.f32.mrf.mxu0
      %v2925 = vadd.f32 %v2796, %v2924
      %2926 = vdwg.mxu0
      %2927 = vmatpush.bf16.msra.mxu0 0
      %2928 = vmatpush.bf16.msra.mxu0 0
      %2929 = vmatpush.bf16.msra.mxu0 0
      %2930 = vmatpush.bf16.msra.mxu0 0
      %2931 = vmatpush.bf16.msra.mxu0 0
      %2932 = vmatpush.bf16.msra.mxu0 0
      %2933 = vmatpush.bf16.msra.mxu0 %v2578
      %2934 = vmatpush.bf16.msra.mxu0 %v2577
      %2935 = vmatmul.bf16.gmra.mxu0 %v2598
      %v2936 = vpop.f32.mrf.mxu0
      %v2937 = vadd.f32 %v2808, %v2936
      %v2938 = vpop.f32.mrf.mxu0
      %v2939 = vadd.f32 %v2810, %v2938
      %2940 = vmatmul.bf16.gmra.mxu0 %v2601
      %v2941 = vpop.f32.mrf.mxu0
      %v2942 = vadd.f32 %v2813, %v2941
      %v2943 = vpop.f32.mrf.mxu0
      %v2944 = vadd.f32 %v2815, %v2943
      %2945 = vmatmul.bf16.gmra.mxu0 %v2604
      %v2946 = vpop.f32.mrf.mxu0
      %v2947 = vadd.f32 %v2818, %v2946
      %v2948 = vpop.f32.mrf.mxu0
      %v2949 = vadd.f32 %v2820, %v2948
      %2950 = vmatmul.bf16.gmra.mxu0 %v2607
      %v2951 = vpop.f32.mrf.mxu0
      %v2952 = vadd.f32 %v2823, %v2951
      %v2953 = vpop.f32.mrf.mxu0
      %v2954 = vadd.f32 %v2825, %v2953
      %2955 = vmatmul.bf16.gmra.mxu0 %v2610
      %v2956 = vpop.f32.mrf.mxu0
      %v2957 = vadd.f32 %v2828, %v2956
      %v2958 = vpop.f32.mrf.mxu0
      %v2959 = vadd.f32 %v2830, %v2958
      %2960 = vmatmul.bf16.gmra.mxu0 %v2613
      %v2961 = vpop.f32.mrf.mxu0
      %v2962 = vadd.f32 %v2833, %v2961
      %v2963 = vpop.f32.mrf.mxu0
      %v2964 = vadd.f32 %v2835, %v2963
      %2965 = vmatmul.bf16.gmra.mxu0 %v2616
      %v2966 = vpop.f32.mrf.mxu0
      %v2967 = vadd.f32 %v2838, %v2966
      %v2968 = vpop.f32.mrf.mxu0
      %v2969 = vadd.f32 %v2840, %v2968
      %2970 = vmatmul.bf16.gmra.mxu0 %v2619
      %v2971 = vpop.f32.mrf.mxu0
      %v2972 = vadd.f32 %v2843, %v2971
      %v2973 = vpop.f32.mrf.mxu0
      %v2974 = vadd.f32 %v2845, %v2973
      %2975 = vmatmul.bf16.gmra.mxu0 %v2622
      %v2976 = vpop.f32.mrf.mxu0
      %v2977 = vadd.f32 %v2848, %v2976
      %v2978 = vpop.f32.mrf.mxu0
      %v2979 = vadd.f32 %v2850, %v2978
      %2980 = vmatmul.bf16.gmra.mxu0 %v2625
      %v2981 = vpop.f32.mrf.mxu0
      %v2982 = vadd.f32 %v2853, %v2981
      %v2983 = vpop.f32.mrf.mxu0
      %v2984 = vadd.f32 %v2855, %v2983
      %2985 = vmatmul.bf16.gmra.mxu0 %v2628
      %v2986 = vpop.f32.mrf.mxu0
      %v2987 = vadd.f32 %v2858, %v2986
      %v2988 = vpop.f32.mrf.mxu0
      %v2989 = vadd.f32 %v2860, %v2988
      %2990 = vmatmul.bf16.gmra.mxu0 %v2631
      %v2991 = vpop.f32.mrf.mxu0
      %v2992 = vadd.f32 %v2863, %v2991
      %v2993 = vpop.f32.mrf.mxu0
      %v2994 = vadd.f32 %v2865, %v2993
      %2995 = vmatmul.bf16.gmra.mxu0 %v2634
      %v2996 = vpop.f32.mrf.mxu0
      %v2997 = vadd.f32 %v2868, %v2996
      %v2998 = vpop.f32.mrf.mxu0
      %v2999 = vadd.f32 %v2870, %v2998
      %3000 = vmatmul.bf16.gmra.mxu0 %v2637
      %v3001 = vpop.f32.mrf.mxu0
      %v3002 = vadd.f32 %v2873, %v3001
      %v3003 = vpop.f32.mrf.mxu0
      %v3004 = vadd.f32 %v2875, %v3003
      %3005 = vmatmul.bf16.gmra.mxu0 %v2640
      %v3006 = vpop.f32.mrf.mxu0
      %v3007 = vadd.f32 %v2878, %v3006
      %v3008 = vpop.f32.mrf.mxu0
      %v3009 = vadd.f32 %v2880, %v3008
      %3010 = vmatmul.bf16.gmra.mxu0 %v2643
      %v3011 = vpop.f32.mrf.mxu0
      %v3012 = vadd.f32 %v2883, %v3011
      %v3013 = vpop.f32.mrf.mxu0
      %v3014 = vadd.f32 %v2885, %v3013
      %3015 = vmatmul.bf16.gmra.mxu0 %v2646
      %v3016 = vpop.f32.mrf.mxu0
      %v3017 = vadd.f32 %v2888, %v3016
      %v3018 = vpop.f32.mrf.mxu0
      %v3019 = vadd.f32 %v2890, %v3018
      %3020 = vmatmul.bf16.gmra.mxu0 %v2649
      %v3021 = vpop.f32.mrf.mxu0
      %v3022 = vadd.f32 %v2893, %v3021
      %v3023 = vpop.f32.mrf.mxu0
      %v3024 = vadd.f32 %v2895, %v3023
      %3025 = vmatmul.bf16.gmra.mxu0 %v2652
      %v3026 = vpop.f32.mrf.mxu0
      %v3027 = vadd.f32 %v2898, %v3026
      %v3028 = vpop.f32.mrf.mxu0
      %v3029 = vadd.f32 %v2900, %v3028
      %3030 = vmatmul.bf16.gmra.mxu0 %v2655
      %v3031 = vpop.f32.mrf.mxu0
      %v3032 = vadd.f32 %v2903, %v3031
      %v3033 = vpop.f32.mrf.mxu0
      %v3034 = vadd.f32 %v2905, %v3033
      %3035 = vmatmul.bf16.gmra.mxu0 %v2658
      %v3036 = vpop.f32.mrf.mxu0
      %v3037 = vadd.f32 %v2908, %v3036
      %v3038 = vpop.f32.mrf.mxu0
      %v3039 = vadd.f32 %v2910, %v3038
      %3040 = vmatmul.bf16.gmra.mxu0 %v2661
      %v3041 = vpop.f32.mrf.mxu0
      %v3042 = vadd.f32 %v2913, %v3041
      %v3043 = vpop.f32.mrf.mxu0
      %v3044 = vadd.f32 %v2915, %v3043
      %3045 = vmatmul.bf16.gmra.mxu0 %v2664
      %v3046 = vpop.f32.mrf.mxu0
      %v3047 = vadd.f32 %v2918, %v3046
      %v3048 = vpop.f32.mrf.mxu0
      %v3049 = vadd.f32 %v2920, %v3048
      %3050 = vmatmul.bf16.gmra.mxu0 %v2667
      %v3051 = vpop.f32.mrf.mxu0
      %v3052 = vadd.f32 %v2923, %v3051
      %v3053 = vpop.f32.mrf.mxu0
      %v3054 = vadd.f32 %v2925, %v3053
      %3055 = vdwg.mxu0
      %v3056 = vadd.f32 %v1949, %v2937
      %v3057 = vadd.f32 %v1950, %v2939
      %v3058 = vadd.f32 %v1951, %v2942
      %v3059 = vadd.f32 %v1952, %v2944
      %v3060 = vadd.f32 %v1953, %v2947
      %v3061 = vadd.f32 %v1954, %v2949
      %v3062 = vadd.f32 %v1955, %v2952
      %v3063 = vadd.f32 %v1956, %v2954
      %v3064 = vadd.f32 %v1957, %v2957
      %v3065 = vadd.f32 %v1958, %v2959
      %v3066 = vadd.f32 %v1959, %v2962
      %v3067 = vadd.f32 %v1960, %v2964
      %v3068 = vadd.f32 %v1961, %v2967
      %v3069 = vadd.f32 %v1962, %v2969
      %v3070 = vadd.f32 %v1963, %v2972
      %v3071 = vadd.f32 %v1964, %v2974
      %v3072 = vadd.f32 %v1965, %v2977
      %v3073 = vadd.f32 %v1966, %v2979
      %v3074 = vadd.f32 %v1967, %v2982
      %v3075 = vadd.f32 %v1968, %v2984
      %v3076 = vadd.f32 %v1969, %v2987
      %v3077 = vadd.f32 %v1970, %v2989
      %v3078 = vadd.f32 %v1971, %v2992
      %v3079 = vadd.f32 %v1972, %v2994
      %v3080 = vadd.f32 %v1973, %v2997
      %v3081 = vadd.f32 %v1974, %v2999
      %v3082 = vadd.f32 %v1975, %v3002
      %v3083 = vadd.f32 %v1976, %v3004
      %v3084 = vadd.f32 %v1977, %v3007
      %v3085 = vadd.f32 %v1978, %v3009
      %v3086 = vadd.f32 %v1979, %v3012
      %v3087 = vadd.f32 %v1980, %v3014
      %v3088 = vadd.f32 %v1981, %v3017
      %v3089 = vadd.f32 %v1982, %v3019
      %v3090 = vadd.f32 %v1983, %v3022
      %v3091 = vadd.f32 %v1984, %v3024
      %v3092 = vadd.f32 %v1985, %v3027
      %v3093 = vadd.f32 %v1986, %v3029
      %v3094 = vadd.f32 %v1987, %v3032
      %v3095 = vadd.f32 %v1988, %v3034
      %v3096 = vadd.f32 %v1989, %v3037
      %v3097 = vadd.f32 %v1990, %v3039
      %v3098 = vadd.f32 %v1991, %v3042
      %v3099 = vadd.f32 %v1992, %v3044
      %v3100 = vadd.f32 %v1993, %v3047
      %v3101 = vadd.f32 %v1994, %v3049
      %v3102 = vadd.f32 %v1995, %v3052
      %v3103 = vadd.f32 %v1996, %v3054
      %v3104 = vxor.u32 %v3056, 2147483648
      %v3105 = vxor.u32 %v3057, 2147483648
      %v3106 = vxor.u32 %v3058, 2147483648
      %v3107 = vxor.u32 %v3059, 2147483648
      %v3108 = vxor.u32 %v3060, 2147483648
      %v3109 = vxor.u32 %v3061, 2147483648
      %v3110 = vxor.u32 %v3062, 2147483648
      %v3111 = vxor.u32 %v3063, 2147483648
      %v3112 = vxor.u32 %v3064, 2147483648
      %v3113 = vxor.u32 %v3065, 2147483648
      %v3114 = vxor.u32 %v3066, 2147483648
      %v3115 = vxor.u32 %v3067, 2147483648
      %v3116 = vxor.u32 %v3068, 2147483648
      %v3117 = vxor.u32 %v3069, 2147483648
      %v3118 = vxor.u32 %v3070, 2147483648
      %v3119 = vxor.u32 %v3071, 2147483648
      %v3120 = vxor.u32 %v3072, 2147483648
      %v3121 = vxor.u32 %v3073, 2147483648
      %v3122 = vxor.u32 %v3074, 2147483648
      %v3123 = vxor.u32 %v3075, 2147483648
      %v3124 = vxor.u32 %v3076, 2147483648
      %v3125 = vxor.u32 %v3077, 2147483648
      %v3126 = vxor.u32 %v3078, 2147483648
      %v3127 = vxor.u32 %v3079, 2147483648
      %v3128 = vxor.u32 %v3080, 2147483648
      %v3129 = vxor.u32 %v3081, 2147483648
      %v3130 = vxor.u32 %v3082, 2147483648
      %v3131 = vxor.u32 %v3083, 2147483648
      %v3132 = vxor.u32 %v3084, 2147483648
      %v3133 = vxor.u32 %v3085, 2147483648
      %v3134 = vxor.u32 %v3086, 2147483648
      %v3135 = vxor.u32 %v3087, 2147483648
      %v3136 = vxor.u32 %v3088, 2147483648
      %v3137 = vxor.u32 %v3089, 2147483648
      %v3138 = vxor.u32 %v3090, 2147483648
      %v3139 = vxor.u32 %v3091, 2147483648
      %v3140 = vxor.u32 %v3092, 2147483648
      %v3141 = vxor.u32 %v3093, 2147483648
      %v3142 = vxor.u32 %v3094, 2147483648
      %v3143 = vxor.u32 %v3095, 2147483648
      %v3144 = vxor.u32 %v3096, 2147483648
      %v3145 = vxor.u32 %v3097, 2147483648
      %v3146 = vxor.u32 %v3098, 2147483648
      %v3147 = vxor.u32 %v3099, 2147483648
      %v3148 = vxor.u32 %v3100, 2147483648
      %v3149 = vxor.u32 %v3101, 2147483648
      %v3150 = vxor.u32 %v3102, 2147483648
      %v3151 = vxor.u32 %v3103, 2147483648
      %v3152 = vmul.f32 %v3104, 1.442695
      %v3153 = vpow.pop %v3152
      %v3154 = vmul.f32 %v3105, 1.442695
      %v3155 = vpow.pop %v3154
      %v3156 = vmul.f32 %v3106, 1.442695
      %v3157 = vpow.pop %v3156
      %v3158 = vmul.f32 %v3107, 1.442695
      %v3159 = vpow.pop %v3158
      %v3160 = vmul.f32 %v3108, 1.442695
      %v3161 = vpow.pop %v3160
      %v3162 = vmul.f32 %v3109, 1.442695
      %v3163 = vpow.pop %v3162
      %v3164 = vmul.f32 %v3110, 1.442695
      %v3165 = vpow.pop %v3164
      %v3166 = vmul.f32 %v3111, 1.442695
      %v3167 = vpow.pop %v3166
      %v3168 = vmul.f32 %v3112, 1.442695
      %v3169 = vpow.pop %v3168
      %v3170 = vmul.f32 %v3113, 1.442695
      %v3171 = vpow.pop %v3170
      %v3172 = vmul.f32 %v3114, 1.442695
      %v3173 = vpow.pop %v3172
      %v3174 = vmul.f32 %v3115, 1.442695
      %v3175 = vpow.pop %v3174
      %v3176 = vmul.f32 %v3116, 1.442695
      %v3177 = vpow.pop %v3176
      %v3178 = vmul.f32 %v3117, 1.442695
      %v3179 = vpow.pop %v3178
      %v3180 = vmul.f32 %v3118, 1.442695
      %v3181 = vpow.pop %v3180
      %v3182 = vmul.f32 %v3119, 1.442695
      %v3183 = vpow.pop %v3182
      %v3184 = vmul.f32 %v3120, 1.442695
      %v3185 = vpow.pop %v3184
      %v3186 = vmul.f32 %v3121, 1.442695
      %v3187 = vpow.pop %v3186
      %v3188 = vmul.f32 %v3122, 1.442695
      %v3189 = vpow.pop %v3188
      %v3190 = vmul.f32 %v3123, 1.442695
      %v3191 = vpow.pop %v3190
      %v3192 = vmul.f32 %v3124, 1.442695
      %v3193 = vpow.pop %v3192
      %v3194 = vmul.f32 %v3125, 1.442695
      %v3195 = vpow.pop %v3194
      %v3196 = vmul.f32 %v3126, 1.442695
      %v3197 = vpow.pop %v3196
      %v3198 = vmul.f32 %v3127, 1.442695
      %v3199 = vpow.pop %v3198
      %v3200 = vmul.f32 %v3128, 1.442695
      %v3201 = vpow.pop %v3200
      %v3202 = vmul.f32 %v3129, 1.442695
      %v3203 = vpow.pop %v3202
      %v3204 = vmul.f32 %v3130, 1.442695
      %v3205 = vpow.pop %v3204
      %v3206 = vmul.f32 %v3131, 1.442695
      %v3207 = vpow.pop %v3206
      %v3208 = vmul.f32 %v3132, 1.442695
      %v3209 = vpow.pop %v3208
      %v3210 = vmul.f32 %v3133, 1.442695
      %v3211 = vpow.pop %v3210
      %v3212 = vmul.f32 %v3134, 1.442695
      %v3213 = vpow.pop %v3212
      %v3214 = vmul.f32 %v3135, 1.442695
      %v3215 = vpow.pop %v3214
      %v3216 = vmul.f32 %v3136, 1.442695
      %v3217 = vpow.pop %v3216
      %v3218 = vmul.f32 %v3137, 1.442695
      %v3219 = vpow.pop %v3218
      %v3220 = vmul.f32 %v3138, 1.442695
      %v3221 = vpow.pop %v3220
      %v3222 = vmul.f32 %v3139, 1.442695
      %v3223 = vpow.pop %v3222
      %v3224 = vmul.f32 %v3140, 1.442695
      %v3225 = vpow.pop %v3224
      %v3226 = vmul.f32 %v3141, 1.442695
      %v3227 = vpow.pop %v3226
      %v3228 = vmul.f32 %v3142, 1.442695
      %v3229 = vpow.pop %v3228
      %v3230 = vmul.f32 %v3143, 1.442695
      %v3231 = vpow.pop %v3230
      %v3232 = vmul.f32 %v3144, 1.442695
      %v3233 = vpow.pop %v3232
      %v3234 = vmul.f32 %v3145, 1.442695
      %v3235 = vpow.pop %v3234
      %v3236 = vmul.f32 %v3146, 1.442695
      %v3237 = vpow.pop %v3236
      %v3238 = vmul.f32 %v3147, 1.442695
      %v3239 = vpow.pop %v3238
      %v3240 = vmul.f32 %v3148, 1.442695
      %v3241 = vpow.pop %v3240
      %v3242 = vmul.f32 %v3149, 1.442695
      %v3243 = vpow.pop %v3242
      %v3244 = vmul.f32 %v3150, 1.442695
      %v3245 = vpow.pop %v3244
      %v3246 = vmul.f32 %v3151, 1.442695
      %v3247 = vpow.pop %v3246
      %v3248 = vadd.f32 %v3153, 1.0
      %v3249 = vadd.f32 %v3155, 1.0
      %v3250 = vadd.f32 %v3157, 1.0
      %v3251 = vadd.f32 %v3159, 1.0
      %v3252 = vadd.f32 %v3161, 1.0
      %v3253 = vadd.f32 %v3163, 1.0
      %v3254 = vadd.f32 %v3165, 1.0
      %v3255 = vadd.f32 %v3167, 1.0
      %v3256 = vadd.f32 %v3169, 1.0
      %v3257 = vadd.f32 %v3171, 1.0
      %v3258 = vadd.f32 %v3173, 1.0
      %v3259 = vadd.f32 %v3175, 1.0
      %v3260 = vadd.f32 %v3177, 1.0
      %v3261 = vadd.f32 %v3179, 1.0
      %v3262 = vadd.f32 %v3181, 1.0
      %v3263 = vadd.f32 %v3183, 1.0
      %v3264 = vadd.f32 %v3185, 1.0
      %v3265 = vadd.f32 %v3187, 1.0
      %v3266 = vadd.f32 %v3189, 1.0
      %v3267 = vadd.f32 %v3191, 1.0
      %v3268 = vadd.f32 %v3193, 1.0
      %v3269 = vadd.f32 %v3195, 1.0
      %v3270 = vadd.f32 %v3197, 1.0
      %v3271 = vadd.f32 %v3199, 1.0
      %v3272 = vadd.f32 %v3201, 1.0
      %v3273 = vadd.f32 %v3203, 1.0
      %v3274 = vadd.f32 %v3205, 1.0
      %v3275 = vadd.f32 %v3207, 1.0
      %v3276 = vadd.f32 %v3209, 1.0
      %v3277 = vadd.f32 %v3211, 1.0
      %v3278 = vadd.f32 %v3213, 1.0
      %v3279 = vadd.f32 %v3215, 1.0
      %v3280 = vadd.f32 %v3217, 1.0
      %v3281 = vadd.f32 %v3219, 1.0
      %v3282 = vadd.f32 %v3221, 1.0
      %v3283 = vadd.f32 %v3223, 1.0
      %v3284 = vadd.f32 %v3225, 1.0
      %v3285 = vadd.f32 %v3227, 1.0
      %v3286 = vadd.f32 %v3229, 1.0
      %v3287 = vadd.f32 %v3231, 1.0
      %v3288 = vadd.f32 %v3233, 1.0
      %v3289 = vadd.f32 %v3235, 1.0
      %v3290 = vadd.f32 %v3237, 1.0
      %v3291 = vadd.f32 %v3239, 1.0
      %v3292 = vadd.f32 %v3241, 1.0
      %v3293 = vadd.f32 %v3243, 1.0
      %v3294 = vadd.f32 %v3245, 1.0
      %v3295 = vadd.f32 %v3247, 1.0
      %v3296 = vrcp.pop %v3248
      %v3297 = vmul.f32 %v3248, %v3296
      %v3298 = vsub.f32 1.0, %v3297
      %v3299 = vmul.f32 %v3296, %v3298
      %v3300 = vadd.f32 %v3296, %v3299
      %vm3301 = vweird.f32 %v3248
      %vm3302 = vweird.f32 %v3296
      %vm3303 = vmor %vm3301, %vm3302
      %v3304 = vsel %vm3303, %v3296, %v3300
      %v3305 = vand.u32 2147483647, %v3248
      %vm3306 = vcmp.eq.f32.partialorder %v3305, 8.507059e+37
      %v3307 = vand.u32 %v3248, 2147483648
      %v3308 = vor.u32 1.1754944e-38, %v3307
      %v3309 = vsel %vm3306, %v3308, %v3304
      %v3310 = vmul.f32 1.0, %v3309
      %v3311 = vrcp.pop %v3249
      %v3312 = vmul.f32 %v3249, %v3311
      %v3313 = vsub.f32 1.0, %v3312
      %v3314 = vmul.f32 %v3311, %v3313
      %v3315 = vadd.f32 %v3311, %v3314
      %vm3316 = vweird.f32 %v3249
      %vm3317 = vweird.f32 %v3311
      %vm3318 = vmor %vm3316, %vm3317
      %v3319 = vsel %vm3318, %v3311, %v3315
      %v3320 = vand.u32 2147483647, %v3249
      %vm3321 = vcmp.eq.f32.partialorder %v3320, 8.507059e+37
      %v3322 = vand.u32 %v3249, 2147483648
      %v3323 = vor.u32 1.1754944e-38, %v3322
      %v3324 = vsel %vm3321, %v3323, %v3319
      %v3325 = vmul.f32 1.0, %v3324
      %v3326 = vrcp.pop %v3250
      %v3327 = vmul.f32 %v3250, %v3326
      %v3328 = vsub.f32 1.0, %v3327
      %v3329 = vmul.f32 %v3326, %v3328
      %v3330 = vadd.f32 %v3326, %v3329
      %vm3331 = vweird.f32 %v3250
      %vm3332 = vweird.f32 %v3326
      %vm3333 = vmor %vm3331, %vm3332
      %v3334 = vsel %vm3333, %v3326, %v3330
      %v3335 = vand.u32 2147483647, %v3250
      %vm3336 = vcmp.eq.f32.partialorder %v3335, 8.507059e+37
      %v3337 = vand.u32 %v3250, 2147483648
      %v3338 = vor.u32 1.1754944e-38, %v3337
      %v3339 = vsel %vm3336, %v3338, %v3334
      %v3340 = vmul.f32 1.0, %v3339
      %v3341 = vrcp.pop %v3251
      %v3342 = vmul.f32 %v3251, %v3341
      %v3343 = vsub.f32 1.0, %v3342
      %v3344 = vmul.f32 %v3341, %v3343
      %v3345 = vadd.f32 %v3341, %v3344
      %vm3346 = vweird.f32 %v3251
      %vm3347 = vweird.f32 %v3341
      %vm3348 = vmor %vm3346, %vm3347
      %v3349 = vsel %vm3348, %v3341, %v3345
      %v3350 = vand.u32 2147483647, %v3251
      %vm3351 = vcmp.eq.f32.partialorder %v3350, 8.507059e+37
      %v3352 = vand.u32 %v3251, 2147483648
      %v3353 = vor.u32 1.1754944e-38, %v3352
      %v3354 = vsel %vm3351, %v3353, %v3349
      %v3355 = vmul.f32 1.0, %v3354
      %v3356 = vrcp.pop %v3252
      %v3357 = vmul.f32 %v3252, %v3356
      %v3358 = vsub.f32 1.0, %v3357
      %v3359 = vmul.f32 %v3356, %v3358
      %v3360 = vadd.f32 %v3356, %v3359
      %vm3361 = vweird.f32 %v3252
      %vm3362 = vweird.f32 %v3356
      %vm3363 = vmor %vm3361, %vm3362
      %v3364 = vsel %vm3363, %v3356, %v3360
      %v3365 = vand.u32 2147483647, %v3252
      %vm3366 = vcmp.eq.f32.partialorder %v3365, 8.507059e+37
      %v3367 = vand.u32 %v3252, 2147483648
      %v3368 = vor.u32 1.1754944e-38, %v3367
      %v3369 = vsel %vm3366, %v3368, %v3364
      %v3370 = vmul.f32 1.0, %v3369
      %v3371 = vrcp.pop %v3253
      %v3372 = vmul.f32 %v3253, %v3371
      %v3373 = vsub.f32 1.0, %v3372
      %v3374 = vmul.f32 %v3371, %v3373
      %v3375 = vadd.f32 %v3371, %v3374
      %vm3376 = vweird.f32 %v3253
      %vm3377 = vweird.f32 %v3371
      %vm3378 = vmor %vm3376, %vm3377
      %v3379 = vsel %vm3378, %v3371, %v3375
      %v3380 = vand.u32 2147483647, %v3253
      %vm3381 = vcmp.eq.f32.partialorder %v3380, 8.507059e+37
      %v3382 = vand.u32 %v3253, 2147483648
      %v3383 = vor.u32 1.1754944e-38, %v3382
      %v3384 = vsel %vm3381, %v3383, %v3379
      %v3385 = vmul.f32 1.0, %v3384
      %v3386 = vrcp.pop %v3254
      %v3387 = vmul.f32 %v3254, %v3386
      %v3388 = vsub.f32 1.0, %v3387
      %v3389 = vmul.f32 %v3386, %v3388
      %v3390 = vadd.f32 %v3386, %v3389
      %vm3391 = vweird.f32 %v3254
      %vm3392 = vweird.f32 %v3386
      %vm3393 = vmor %vm3391, %vm3392
      %v3394 = vsel %vm3393, %v3386, %v3390
      %v3395 = vand.u32 2147483647, %v3254
      %vm3396 = vcmp.eq.f32.partialorder %v3395, 8.507059e+37
      %v3397 = vand.u32 %v3254, 2147483648
      %v3398 = vor.u32 1.1754944e-38, %v3397
      %v3399 = vsel %vm3396, %v3398, %v3394
      %v3400 = vmul.f32 1.0, %v3399
      %v3401 = vrcp.pop %v3255
      %v3402 = vmul.f32 %v3255, %v3401
      %v3403 = vsub.f32 1.0, %v3402
      %v3404 = vmul.f32 %v3401, %v3403
      %v3405 = vadd.f32 %v3401, %v3404
      %vm3406 = vweird.f32 %v3255
      %vm3407 = vweird.f32 %v3401
      %vm3408 = vmor %vm3406, %vm3407
      %v3409 = vsel %vm3408, %v3401, %v3405
      %v3410 = vand.u32 2147483647, %v3255
      %vm3411 = vcmp.eq.f32.partialorder %v3410, 8.507059e+37
      %v3412 = vand.u32 %v3255, 2147483648
      %v3413 = vor.u32 1.1754944e-38, %v3412
      %v3414 = vsel %vm3411, %v3413, %v3409
      %v3415 = vmul.f32 1.0, %v3414
      %v3416 = vrcp.pop %v3256
      %v3417 = vmul.f32 %v3256, %v3416
      %v3418 = vsub.f32 1.0, %v3417
      %v3419 = vmul.f32 %v3416, %v3418
      %v3420 = vadd.f32 %v3416, %v3419
      %vm3421 = vweird.f32 %v3256
      %vm3422 = vweird.f32 %v3416
      %vm3423 = vmor %vm3421, %vm3422
      %v3424 = vsel %vm3423, %v3416, %v3420
      %v3425 = vand.u32 2147483647, %v3256
      %vm3426 = vcmp.eq.f32.partialorder %v3425, 8.507059e+37
      %v3427 = vand.u32 %v3256, 2147483648
      %v3428 = vor.u32 1.1754944e-38, %v3427
      %v3429 = vsel %vm3426, %v3428, %v3424
      %v3430 = vmul.f32 1.0, %v3429
      %v3431 = vrcp.pop %v3257
      %v3432 = vmul.f32 %v3257, %v3431
      %v3433 = vsub.f32 1.0, %v3432
      %v3434 = vmul.f32 %v3431, %v3433
      %v3435 = vadd.f32 %v3431, %v3434
      %vm3436 = vweird.f32 %v3257
      %vm3437 = vweird.f32 %v3431
      %vm3438 = vmor %vm3436, %vm3437
      %v3439 = vsel %vm3438, %v3431, %v3435
      %v3440 = vand.u32 2147483647, %v3257
      %vm3441 = vcmp.eq.f32.partialorder %v3440, 8.507059e+37
      %v3442 = vand.u32 %v3257, 2147483648
      %v3443 = vor.u32 1.1754944e-38, %v3442
      %v3444 = vsel %vm3441, %v3443, %v3439
      %v3445 = vmul.f32 1.0, %v3444
      %v3446 = vrcp.pop %v3258
      %v3447 = vmul.f32 %v3258, %v3446
      %v3448 = vsub.f32 1.0, %v3447
      %v3449 = vmul.f32 %v3446, %v3448
      %v3450 = vadd.f32 %v3446, %v3449
      %vm3451 = vweird.f32 %v3258
      %vm3452 = vweird.f32 %v3446
      %vm3453 = vmor %vm3451, %vm3452
      %v3454 = vsel %vm3453, %v3446, %v3450
      %v3455 = vand.u32 2147483647, %v3258
      %vm3456 = vcmp.eq.f32.partialorder %v3455, 8.507059e+37
      %v3457 = vand.u32 %v3258, 2147483648
      %v3458 = vor.u32 1.1754944e-38, %v3457
      %v3459 = vsel %vm3456, %v3458, %v3454
      %v3460 = vmul.f32 1.0, %v3459
      %v3461 = vrcp.pop %v3259
      %v3462 = vmul.f32 %v3259, %v3461
      %v3463 = vsub.f32 1.0, %v3462
      %v3464 = vmul.f32 %v3461, %v3463
      %v3465 = vadd.f32 %v3461, %v3464
      %vm3466 = vweird.f32 %v3259
      %vm3467 = vweird.f32 %v3461
      %vm3468 = vmor %vm3466, %vm3467
      %v3469 = vsel %vm3468, %v3461, %v3465
      %v3470 = vand.u32 2147483647, %v3259
      %vm3471 = vcmp.eq.f32.partialorder %v3470, 8.507059e+37
      %v3472 = vand.u32 %v3259, 2147483648
      %v3473 = vor.u32 1.1754944e-38, %v3472
      %v3474 = vsel %vm3471, %v3473, %v3469
      %v3475 = vmul.f32 1.0, %v3474
      %v3476 = vrcp.pop %v3260
      %v3477 = vmul.f32 %v3260, %v3476
      %v3478 = vsub.f32 1.0, %v3477
      %v3479 = vmul.f32 %v3476, %v3478
      %v3480 = vadd.f32 %v3476, %v3479
      %vm3481 = vweird.f32 %v3260
      %vm3482 = vweird.f32 %v3476
      %vm3483 = vmor %vm3481, %vm3482
      %v3484 = vsel %vm3483, %v3476, %v3480
      %v3485 = vand.u32 2147483647, %v3260
      %vm3486 = vcmp.eq.f32.partialorder %v3485, 8.507059e+37
      %v3487 = vand.u32 %v3260, 2147483648
      %v3488 = vor.u32 1.1754944e-38, %v3487
      %v3489 = vsel %vm3486, %v3488, %v3484
      %v3490 = vmul.f32 1.0, %v3489
      %v3491 = vrcp.pop %v3261
      %v3492 = vmul.f32 %v3261, %v3491
      %v3493 = vsub.f32 1.0, %v3492
      %v3494 = vmul.f32 %v3491, %v3493
      %v3495 = vadd.f32 %v3491, %v3494
      %vm3496 = vweird.f32 %v3261
      %vm3497 = vweird.f32 %v3491
      %vm3498 = vmor %vm3496, %vm3497
      %v3499 = vsel %vm3498, %v3491, %v3495
      %v3500 = vand.u32 2147483647, %v3261
      %vm3501 = vcmp.eq.f32.partialorder %v3500, 8.507059e+37
      %v3502 = vand.u32 %v3261, 2147483648
      %v3503 = vor.u32 1.1754944e-38, %v3502
      %v3504 = vsel %vm3501, %v3503, %v3499
      %v3505 = vmul.f32 1.0, %v3504
      %v3506 = vrcp.pop %v3262
      %v3507 = vmul.f32 %v3262, %v3506
      %v3508 = vsub.f32 1.0, %v3507
      %v3509 = vmul.f32 %v3506, %v3508
      %v3510 = vadd.f32 %v3506, %v3509
      %vm3511 = vweird.f32 %v3262
      %vm3512 = vweird.f32 %v3506
      %vm3513 = vmor %vm3511, %vm3512
      %v3514 = vsel %vm3513, %v3506, %v3510
      %v3515 = vand.u32 2147483647, %v3262
      %vm3516 = vcmp.eq.f32.partialorder %v3515, 8.507059e+37
      %v3517 = vand.u32 %v3262, 2147483648
      %v3518 = vor.u32 1.1754944e-38, %v3517
      %v3519 = vsel %vm3516, %v3518, %v3514
      %v3520 = vmul.f32 1.0, %v3519
      %v3521 = vrcp.pop %v3263
      %v3522 = vmul.f32 %v3263, %v3521
      %v3523 = vsub.f32 1.0, %v3522
      %v3524 = vmul.f32 %v3521, %v3523
      %v3525 = vadd.f32 %v3521, %v3524
      %vm3526 = vweird.f32 %v3263
      %vm3527 = vweird.f32 %v3521
      %vm3528 = vmor %vm3526, %vm3527
      %v3529 = vsel %vm3528, %v3521, %v3525
      %v3530 = vand.u32 2147483647, %v3263
      %vm3531 = vcmp.eq.f32.partialorder %v3530, 8.507059e+37
      %v3532 = vand.u32 %v3263, 2147483648
      %v3533 = vor.u32 1.1754944e-38, %v3532
      %v3534 = vsel %vm3531, %v3533, %v3529
      %v3535 = vmul.f32 1.0, %v3534
      %v3536 = vrcp.pop %v3264
      %v3537 = vmul.f32 %v3264, %v3536
      %v3538 = vsub.f32 1.0, %v3537
      %v3539 = vmul.f32 %v3536, %v3538
      %v3540 = vadd.f32 %v3536, %v3539
      %vm3541 = vweird.f32 %v3264
      %vm3542 = vweird.f32 %v3536
      %vm3543 = vmor %vm3541, %vm3542
      %v3544 = vsel %vm3543, %v3536, %v3540
      %v3545 = vand.u32 2147483647, %v3264
      %vm3546 = vcmp.eq.f32.partialorder %v3545, 8.507059e+37
      %v3547 = vand.u32 %v3264, 2147483648
      %v3548 = vor.u32 1.1754944e-38, %v3547
      %v3549 = vsel %vm3546, %v3548, %v3544
      %v3550 = vmul.f32 1.0, %v3549
      %v3551 = vrcp.pop %v3265
      %v3552 = vmul.f32 %v3265, %v3551
      %v3553 = vsub.f32 1.0, %v3552
      %v3554 = vmul.f32 %v3551, %v3553
      %v3555 = vadd.f32 %v3551, %v3554
      %vm3556 = vweird.f32 %v3265
      %vm3557 = vweird.f32 %v3551
      %vm3558 = vmor %vm3556, %vm3557
      %v3559 = vsel %vm3558, %v3551, %v3555
      %v3560 = vand.u32 2147483647, %v3265
      %vm3561 = vcmp.eq.f32.partialorder %v3560, 8.507059e+37
      %v3562 = vand.u32 %v3265, 2147483648
      %v3563 = vor.u32 1.1754944e-38, %v3562
      %v3564 = vsel %vm3561, %v3563, %v3559
      %v3565 = vmul.f32 1.0, %v3564
      %v3566 = vrcp.pop %v3266
      %v3567 = vmul.f32 %v3266, %v3566
      %v3568 = vsub.f32 1.0, %v3567
      %v3569 = vmul.f32 %v3566, %v3568
      %v3570 = vadd.f32 %v3566, %v3569
      %vm3571 = vweird.f32 %v3266
      %vm3572 = vweird.f32 %v3566
      %vm3573 = vmor %vm3571, %vm3572
      %v3574 = vsel %vm3573, %v3566, %v3570
      %v3575 = vand.u32 2147483647, %v3266
      %vm3576 = vcmp.eq.f32.partialorder %v3575, 8.507059e+37
      %v3577 = vand.u32 %v3266, 2147483648
      %v3578 = vor.u32 1.1754944e-38, %v3577
      %v3579 = vsel %vm3576, %v3578, %v3574
      %v3580 = vmul.f32 1.0, %v3579
      %v3581 = vrcp.pop %v3267
      %v3582 = vmul.f32 %v3267, %v3581
      %v3583 = vsub.f32 1.0, %v3582
      %v3584 = vmul.f32 %v3581, %v3583
      %v3585 = vadd.f32 %v3581, %v3584
      %vm3586 = vweird.f32 %v3267
      %vm3587 = vweird.f32 %v3581
      %vm3588 = vmor %vm3586, %vm3587
      %v3589 = vsel %vm3588, %v3581, %v3585
      %v3590 = vand.u32 2147483647, %v3267
      %vm3591 = vcmp.eq.f32.partialorder %v3590, 8.507059e+37
      %v3592 = vand.u32 %v3267, 2147483648
      %v3593 = vor.u32 1.1754944e-38, %v3592
      %v3594 = vsel %vm3591, %v3593, %v3589
      %v3595 = vmul.f32 1.0, %v3594
      %v3596 = vrcp.pop %v3268
      %v3597 = vmul.f32 %v3268, %v3596
      %v3598 = vsub.f32 1.0, %v3597
      %v3599 = vmul.f32 %v3596, %v3598
      %v3600 = vadd.f32 %v3596, %v3599
      %vm3601 = vweird.f32 %v3268
      %vm3602 = vweird.f32 %v3596
      %vm3603 = vmor %vm3601, %vm3602
      %v3604 = vsel %vm3603, %v3596, %v3600
      %v3605 = vand.u32 2147483647, %v3268
      %vm3606 = vcmp.eq.f32.partialorder %v3605, 8.507059e+37
      %v3607 = vand.u32 %v3268, 2147483648
      %v3608 = vor.u32 1.1754944e-38, %v3607
      %v3609 = vsel %vm3606, %v3608, %v3604
      %v3610 = vmul.f32 1.0, %v3609
      %v3611 = vrcp.pop %v3269
      %v3612 = vmul.f32 %v3269, %v3611
      %v3613 = vsub.f32 1.0, %v3612
      %v3614 = vmul.f32 %v3611, %v3613
      %v3615 = vadd.f32 %v3611, %v3614
      %vm3616 = vweird.f32 %v3269
      %vm3617 = vweird.f32 %v3611
      %vm3618 = vmor %vm3616, %vm3617
      %v3619 = vsel %vm3618, %v3611, %v3615
      %v3620 = vand.u32 2147483647, %v3269
      %vm3621 = vcmp.eq.f32.partialorder %v3620, 8.507059e+37
      %v3622 = vand.u32 %v3269, 2147483648
      %v3623 = vor.u32 1.1754944e-38, %v3622
      %v3624 = vsel %vm3621, %v3623, %v3619
      %v3625 = vmul.f32 1.0, %v3624
      %v3626 = vrcp.pop %v3270
      %v3627 = vmul.f32 %v3270, %v3626
      %v3628 = vsub.f32 1.0, %v3627
      %v3629 = vmul.f32 %v3626, %v3628
      %v3630 = vadd.f32 %v3626, %v3629
      %vm3631 = vweird.f32 %v3270
      %vm3632 = vweird.f32 %v3626
      %vm3633 = vmor %vm3631, %vm3632
      %v3634 = vsel %vm3633, %v3626, %v3630
      %v3635 = vand.u32 2147483647, %v3270
      %vm3636 = vcmp.eq.f32.partialorder %v3635, 8.507059e+37
      %v3637 = vand.u32 %v3270, 2147483648
      %v3638 = vor.u32 1.1754944e-38, %v3637
      %v3639 = vsel %vm3636, %v3638, %v3634
      %v3640 = vmul.f32 1.0, %v3639
      %v3641 = vrcp.pop %v3271
      %v3642 = vmul.f32 %v3271, %v3641
      %v3643 = vsub.f32 1.0, %v3642
      %v3644 = vmul.f32 %v3641, %v3643
      %v3645 = vadd.f32 %v3641, %v3644
      %vm3646 = vweird.f32 %v3271
      %vm3647 = vweird.f32 %v3641
      %vm3648 = vmor %vm3646, %vm3647
      %v3649 = vsel %vm3648, %v3641, %v3645
      %v3650 = vand.u32 2147483647, %v3271
      %vm3651 = vcmp.eq.f32.partialorder %v3650, 8.507059e+37
      %v3652 = vand.u32 %v3271, 2147483648
      %v3653 = vor.u32 1.1754944e-38, %v3652
      %v3654 = vsel %vm3651, %v3653, %v3649
      %v3655 = vmul.f32 1.0, %v3654
      %v3656 = vrcp.pop %v3272
      %v3657 = vmul.f32 %v3272, %v3656
      %v3658 = vsub.f32 1.0, %v3657
      %v3659 = vmul.f32 %v3656, %v3658
      %v3660 = vadd.f32 %v3656, %v3659
      %vm3661 = vweird.f32 %v3272
      %vm3662 = vweird.f32 %v3656
      %vm3663 = vmor %vm3661, %vm3662
      %v3664 = vsel %vm3663, %v3656, %v3660
      %v3665 = vand.u32 2147483647, %v3272
      %vm3666 = vcmp.eq.f32.partialorder %v3665, 8.507059e+37
      %v3667 = vand.u32 %v3272, 2147483648
      %v3668 = vor.u32 1.1754944e-38, %v3667
      %v3669 = vsel %vm3666, %v3668, %v3664
      %v3670 = vmul.f32 1.0, %v3669
      %v3671 = vrcp.pop %v3273
      %v3672 = vmul.f32 %v3273, %v3671
      %v3673 = vsub.f32 1.0, %v3672
      %v3674 = vmul.f32 %v3671, %v3673
      %v3675 = vadd.f32 %v3671, %v3674
      %vm3676 = vweird.f32 %v3273
      %vm3677 = vweird.f32 %v3671
      %vm3678 = vmor %vm3676, %vm3677
      %v3679 = vsel %vm3678, %v3671, %v3675
      %v3680 = vand.u32 2147483647, %v3273
      %vm3681 = vcmp.eq.f32.partialorder %v3680, 8.507059e+37
      %v3682 = vand.u32 %v3273, 2147483648
      %v3683 = vor.u32 1.1754944e-38, %v3682
      %v3684 = vsel %vm3681, %v3683, %v3679
      %v3685 = vmul.f32 1.0, %v3684
      %v3686 = vrcp.pop %v3274
      %v3687 = vmul.f32 %v3274, %v3686
      %v3688 = vsub.f32 1.0, %v3687
      %v3689 = vmul.f32 %v3686, %v3688
      %v3690 = vadd.f32 %v3686, %v3689
      %vm3691 = vweird.f32 %v3274
      %vm3692 = vweird.f32 %v3686
      %vm3693 = vmor %vm3691, %vm3692
      %v3694 = vsel %vm3693, %v3686, %v3690
      %v3695 = vand.u32 2147483647, %v3274
      %vm3696 = vcmp.eq.f32.partialorder %v3695, 8.507059e+37
      %v3697 = vand.u32 %v3274, 2147483648
      %v3698 = vor.u32 1.1754944e-38, %v3697
      %v3699 = vsel %vm3696, %v3698, %v3694
      %v3700 = vmul.f32 1.0, %v3699
      %v3701 = vrcp.pop %v3275
      %v3702 = vmul.f32 %v3275, %v3701
      %v3703 = vsub.f32 1.0, %v3702
      %v3704 = vmul.f32 %v3701, %v3703
      %v3705 = vadd.f32 %v3701, %v3704
      %vm3706 = vweird.f32 %v3275
      %vm3707 = vweird.f32 %v3701
      %vm3708 = vmor %vm3706, %vm3707
      %v3709 = vsel %vm3708, %v3701, %v3705
      %v3710 = vand.u32 2147483647, %v3275
      %vm3711 = vcmp.eq.f32.partialorder %v3710, 8.507059e+37
      %v3712 = vand.u32 %v3275, 2147483648
      %v3713 = vor.u32 1.1754944e-38, %v3712
      %v3714 = vsel %vm3711, %v3713, %v3709
      %v3715 = vmul.f32 1.0, %v3714
      %v3716 = vrcp.pop %v3276
      %v3717 = vmul.f32 %v3276, %v3716
      %v3718 = vsub.f32 1.0, %v3717
      %v3719 = vmul.f32 %v3716, %v3718
      %v3720 = vadd.f32 %v3716, %v3719
      %vm3721 = vweird.f32 %v3276
      %vm3722 = vweird.f32 %v3716
      %vm3723 = vmor %vm3721, %vm3722
      %v3724 = vsel %vm3723, %v3716, %v3720
      %v3725 = vand.u32 2147483647, %v3276
      %vm3726 = vcmp.eq.f32.partialorder %v3725, 8.507059e+37
      %v3727 = vand.u32 %v3276, 2147483648
      %v3728 = vor.u32 1.1754944e-38, %v3727
      %v3729 = vsel %vm3726, %v3728, %v3724
      %v3730 = vmul.f32 1.0, %v3729
      %v3731 = vrcp.pop %v3277
      %v3732 = vmul.f32 %v3277, %v3731
      %v3733 = vsub.f32 1.0, %v3732
      %v3734 = vmul.f32 %v3731, %v3733
      %v3735 = vadd.f32 %v3731, %v3734
      %vm3736 = vweird.f32 %v3277
      %vm3737 = vweird.f32 %v3731
      %vm3738 = vmor %vm3736, %vm3737
      %v3739 = vsel %vm3738, %v3731, %v3735
      %v3740 = vand.u32 2147483647, %v3277
      %vm3741 = vcmp.eq.f32.partialorder %v3740, 8.507059e+37
      %v3742 = vand.u32 %v3277, 2147483648
      %v3743 = vor.u32 1.1754944e-38, %v3742
      %v3744 = vsel %vm3741, %v3743, %v3739
      %v3745 = vmul.f32 1.0, %v3744
      %v3746 = vrcp.pop %v3278
      %v3747 = vmul.f32 %v3278, %v3746
      %v3748 = vsub.f32 1.0, %v3747
      %v3749 = vmul.f32 %v3746, %v3748
      %v3750 = vadd.f32 %v3746, %v3749
      %vm3751 = vweird.f32 %v3278
      %vm3752 = vweird.f32 %v3746
      %vm3753 = vmor %vm3751, %vm3752
      %v3754 = vsel %vm3753, %v3746, %v3750
      %v3755 = vand.u32 2147483647, %v3278
      %vm3756 = vcmp.eq.f32.partialorder %v3755, 8.507059e+37
      %v3757 = vand.u32 %v3278, 2147483648
      %v3758 = vor.u32 1.1754944e-38, %v3757
      %v3759 = vsel %vm3756, %v3758, %v3754
      %v3760 = vmul.f32 1.0, %v3759
      %v3761 = vrcp.pop %v3279
      %v3762 = vmul.f32 %v3279, %v3761
      %v3763 = vsub.f32 1.0, %v3762
      %v3764 = vmul.f32 %v3761, %v3763
      %v3765 = vadd.f32 %v3761, %v3764
      %vm3766 = vweird.f32 %v3279
      %vm3767 = vweird.f32 %v3761
      %vm3768 = vmor %vm3766, %vm3767
      %v3769 = vsel %vm3768, %v3761, %v3765
      %v3770 = vand.u32 2147483647, %v3279
      %vm3771 = vcmp.eq.f32.partialorder %v3770, 8.507059e+37
      %v3772 = vand.u32 %v3279, 2147483648
      %v3773 = vor.u32 1.1754944e-38, %v3772
      %v3774 = vsel %vm3771, %v3773, %v3769
      %v3775 = vmul.f32 1.0, %v3774
      %v3776 = vrcp.pop %v3280
      %v3777 = vmul.f32 %v3280, %v3776
      %v3778 = vsub.f32 1.0, %v3777
      %v3779 = vmul.f32 %v3776, %v3778
      %v3780 = vadd.f32 %v3776, %v3779
      %vm3781 = vweird.f32 %v3280
      %vm3782 = vweird.f32 %v3776
      %vm3783 = vmor %vm3781, %vm3782
      %v3784 = vsel %vm3783, %v3776, %v3780
      %v3785 = vand.u32 2147483647, %v3280
      %vm3786 = vcmp.eq.f32.partialorder %v3785, 8.507059e+37
      %v3787 = vand.u32 %v3280, 2147483648
      %v3788 = vor.u32 1.1754944e-38, %v3787
      %v3789 = vsel %vm3786, %v3788, %v3784
      %v3790 = vmul.f32 1.0, %v3789
      %v3791 = vrcp.pop %v3281
      %v3792 = vmul.f32 %v3281, %v3791
      %v3793 = vsub.f32 1.0, %v3792
      %v3794 = vmul.f32 %v3791, %v3793
      %v3795 = vadd.f32 %v3791, %v3794
      %vm3796 = vweird.f32 %v3281
      %vm3797 = vweird.f32 %v3791
      %vm3798 = vmor %vm3796, %vm3797
      %v3799 = vsel %vm3798, %v3791, %v3795
      %v3800 = vand.u32 2147483647, %v3281
      %vm3801 = vcmp.eq.f32.partialorder %v3800, 8.507059e+37
      %v3802 = vand.u32 %v3281, 2147483648
      %v3803 = vor.u32 1.1754944e-38, %v3802
      %v3804 = vsel %vm3801, %v3803, %v3799
      %v3805 = vmul.f32 1.0, %v3804
      %v3806 = vrcp.pop %v3282
      %v3807 = vmul.f32 %v3282, %v3806
      %v3808 = vsub.f32 1.0, %v3807
      %v3809 = vmul.f32 %v3806, %v3808
      %v3810 = vadd.f32 %v3806, %v3809
      %vm3811 = vweird.f32 %v3282
      %vm3812 = vweird.f32 %v3806
      %vm3813 = vmor %vm3811, %vm3812
      %v3814 = vsel %vm3813, %v3806, %v3810
      %v3815 = vand.u32 2147483647, %v3282
      %vm3816 = vcmp.eq.f32.partialorder %v3815, 8.507059e+37
      %v3817 = vand.u32 %v3282, 2147483648
      %v3818 = vor.u32 1.1754944e-38, %v3817
      %v3819 = vsel %vm3816, %v3818, %v3814
      %v3820 = vmul.f32 1.0, %v3819
      %v3821 = vrcp.pop %v3283
      %v3822 = vmul.f32 %v3283, %v3821
      %v3823 = vsub.f32 1.0, %v3822
      %v3824 = vmul.f32 %v3821, %v3823
      %v3825 = vadd.f32 %v3821, %v3824
      %vm3826 = vweird.f32 %v3283
      %vm3827 = vweird.f32 %v3821
      %vm3828 = vmor %vm3826, %vm3827
      %v3829 = vsel %vm3828, %v3821, %v3825
      %v3830 = vand.u32 2147483647, %v3283
      %vm3831 = vcmp.eq.f32.partialorder %v3830, 8.507059e+37
      %v3832 = vand.u32 %v3283, 2147483648
      %v3833 = vor.u32 1.1754944e-38, %v3832
      %v3834 = vsel %vm3831, %v3833, %v3829
      %v3835 = vmul.f32 1.0, %v3834
      %v3836 = vrcp.pop %v3284
      %v3837 = vmul.f32 %v3284, %v3836
      %v3838 = vsub.f32 1.0, %v3837
      %v3839 = vmul.f32 %v3836, %v3838
      %v3840 = vadd.f32 %v3836, %v3839
      %vm3841 = vweird.f32 %v3284
      %vm3842 = vweird.f32 %v3836
      %vm3843 = vmor %vm3841, %vm3842
      %v3844 = vsel %vm3843, %v3836, %v3840
      %v3845 = vand.u32 2147483647, %v3284
      %vm3846 = vcmp.eq.f32.partialorder %v3845, 8.507059e+37
      %v3847 = vand.u32 %v3284, 2147483648
      %v3848 = vor.u32 1.1754944e-38, %v3847
      %v3849 = vsel %vm3846, %v3848, %v3844
      %v3850 = vmul.f32 1.0, %v3849
      %v3851 = vrcp.pop %v3285
      %v3852 = vmul.f32 %v3285, %v3851
      %v3853 = vsub.f32 1.0, %v3852
      %v3854 = vmul.f32 %v3851, %v3853
      %v3855 = vadd.f32 %v3851, %v3854
      %vm3856 = vweird.f32 %v3285
      %vm3857 = vweird.f32 %v3851
      %vm3858 = vmor %vm3856, %vm3857
      %v3859 = vsel %vm3858, %v3851, %v3855
      %v3860 = vand.u32 2147483647, %v3285
      %vm3861 = vcmp.eq.f32.partialorder %v3860, 8.507059e+37
      %v3862 = vand.u32 %v3285, 2147483648
      %v3863 = vor.u32 1.1754944e-38, %v3862
      %v3864 = vsel %vm3861, %v3863, %v3859
      %v3865 = vmul.f32 1.0, %v3864
      %v3866 = vrcp.pop %v3286
      %v3867 = vmul.f32 %v3286, %v3866
      %v3868 = vsub.f32 1.0, %v3867
      %v3869 = vmul.f32 %v3866, %v3868
      %v3870 = vadd.f32 %v3866, %v3869
      %vm3871 = vweird.f32 %v3286
      %vm3872 = vweird.f32 %v3866
      %vm3873 = vmor %vm3871, %vm3872
      %v3874 = vsel %vm3873, %v3866, %v3870
      %v3875 = vand.u32 2147483647, %v3286
      %vm3876 = vcmp.eq.f32.partialorder %v3875, 8.507059e+37
      %v3877 = vand.u32 %v3286, 2147483648
      %v3878 = vor.u32 1.1754944e-38, %v3877
      %v3879 = vsel %vm3876, %v3878, %v3874
      %v3880 = vmul.f32 1.0, %v3879
      %v3881 = vrcp.pop %v3287
      %v3882 = vmul.f32 %v3287, %v3881
      %v3883 = vsub.f32 1.0, %v3882
      %v3884 = vmul.f32 %v3881, %v3883
      %v3885 = vadd.f32 %v3881, %v3884
      %vm3886 = vweird.f32 %v3287
      %vm3887 = vweird.f32 %v3881
      %vm3888 = vmor %vm3886, %vm3887
      %v3889 = vsel %vm3888, %v3881, %v3885
      %v3890 = vand.u32 2147483647, %v3287
      %vm3891 = vcmp.eq.f32.partialorder %v3890, 8.507059e+37
      %v3892 = vand.u32 %v3287, 2147483648
      %v3893 = vor.u32 1.1754944e-38, %v3892
      %v3894 = vsel %vm3891, %v3893, %v3889
      %v3895 = vmul.f32 1.0, %v3894
      %v3896 = vrcp.pop %v3288
      %v3897 = vmul.f32 %v3288, %v3896
      %v3898 = vsub.f32 1.0, %v3897
      %v3899 = vmul.f32 %v3896, %v3898
      %v3900 = vadd.f32 %v3896, %v3899
      %vm3901 = vweird.f32 %v3288
      %vm3902 = vweird.f32 %v3896
      %vm3903 = vmor %vm3901, %vm3902
      %v3904 = vsel %vm3903, %v3896, %v3900
      %v3905 = vand.u32 2147483647, %v3288
      %vm3906 = vcmp.eq.f32.partialorder %v3905, 8.507059e+37
      %v3907 = vand.u32 %v3288, 2147483648
      %v3908 = vor.u32 1.1754944e-38, %v3907
      %v3909 = vsel %vm3906, %v3908, %v3904
      %v3910 = vmul.f32 1.0, %v3909
      %v3911 = vrcp.pop %v3289
      %v3912 = vmul.f32 %v3289, %v3911
      %v3913 = vsub.f32 1.0, %v3912
      %v3914 = vmul.f32 %v3911, %v3913
      %v3915 = vadd.f32 %v3911, %v3914
      %vm3916 = vweird.f32 %v3289
      %vm3917 = vweird.f32 %v3911
      %vm3918 = vmor %vm3916, %vm3917
      %v3919 = vsel %vm3918, %v3911, %v3915
      %v3920 = vand.u32 2147483647, %v3289
      %vm3921 = vcmp.eq.f32.partialorder %v3920, 8.507059e+37
      %v3922 = vand.u32 %v3289, 2147483648
      %v3923 = vor.u32 1.1754944e-38, %v3922
      %v3924 = vsel %vm3921, %v3923, %v3919
      %v3925 = vmul.f32 1.0, %v3924
      %v3926 = vrcp.pop %v3290
      %v3927 = vmul.f32 %v3290, %v3926
      %v3928 = vsub.f32 1.0, %v3927
      %v3929 = vmul.f32 %v3926, %v3928
      %v3930 = vadd.f32 %v3926, %v3929
      %vm3931 = vweird.f32 %v3290
      %vm3932 = vweird.f32 %v3926
      %vm3933 = vmor %vm3931, %vm3932
      %v3934 = vsel %vm3933, %v3926, %v3930
      %v3935 = vand.u32 2147483647, %v3290
      %vm3936 = vcmp.eq.f32.partialorder %v3935, 8.507059e+37
      %v3937 = vand.u32 %v3290, 2147483648
      %v3938 = vor.u32 1.1754944e-38, %v3937
      %v3939 = vsel %vm3936, %v3938, %v3934
      %v3940 = vmul.f32 1.0, %v3939
      %v3941 = vrcp.pop %v3291
      %v3942 = vmul.f32 %v3291, %v3941
      %v3943 = vsub.f32 1.0, %v3942
      %v3944 = vmul.f32 %v3941, %v3943
      %v3945 = vadd.f32 %v3941, %v3944
      %vm3946 = vweird.f32 %v3291
      %vm3947 = vweird.f32 %v3941
      %vm3948 = vmor %vm3946, %vm3947
      %v3949 = vsel %vm3948, %v3941, %v3945
      %v3950 = vand.u32 2147483647, %v3291
      %vm3951 = vcmp.eq.f32.partialorder %v3950, 8.507059e+37
      %v3952 = vand.u32 %v3291, 2147483648
      %v3953 = vor.u32 1.1754944e-38, %v3952
      %v3954 = vsel %vm3951, %v3953, %v3949
      %v3955 = vmul.f32 1.0, %v3954
      %v3956 = vrcp.pop %v3292
      %v3957 = vmul.f32 %v3292, %v3956
      %v3958 = vsub.f32 1.0, %v3957
      %v3959 = vmul.f32 %v3956, %v3958
      %v3960 = vadd.f32 %v3956, %v3959
      %vm3961 = vweird.f32 %v3292
      %vm3962 = vweird.f32 %v3956
      %vm3963 = vmor %vm3961, %vm3962
      %v3964 = vsel %vm3963, %v3956, %v3960
      %v3965 = vand.u32 2147483647, %v3292
      %vm3966 = vcmp.eq.f32.partialorder %v3965, 8.507059e+37
      %v3967 = vand.u32 %v3292, 2147483648
      %v3968 = vor.u32 1.1754944e-38, %v3967
      %v3969 = vsel %vm3966, %v3968, %v3964
      %v3970 = vmul.f32 1.0, %v3969
      %v3971 = vrcp.pop %v3293
      %v3972 = vmul.f32 %v3293, %v3971
      %v3973 = vsub.f32 1.0, %v3972
      %v3974 = vmul.f32 %v3971, %v3973
      %v3975 = vadd.f32 %v3971, %v3974
      %vm3976 = vweird.f32 %v3293
      %vm3977 = vweird.f32 %v3971
      %vm3978 = vmor %vm3976, %vm3977
      %v3979 = vsel %vm3978, %v3971, %v3975
      %v3980 = vand.u32 2147483647, %v3293
      %vm3981 = vcmp.eq.f32.partialorder %v3980, 8.507059e+37
      %v3982 = vand.u32 %v3293, 2147483648
      %v3983 = vor.u32 1.1754944e-38, %v3982
      %v3984 = vsel %vm3981, %v3983, %v3979
      %v3985 = vmul.f32 1.0, %v3984
      %v3986 = vrcp.pop %v3294
      %v3987 = vmul.f32 %v3294, %v3986
      %v3988 = vsub.f32 1.0, %v3987
      %v3989 = vmul.f32 %v3986, %v3988
      %v3990 = vadd.f32 %v3986, %v3989
      %vm3991 = vweird.f32 %v3294
      %vm3992 = vweird.f32 %v3986
      %vm3993 = vmor %vm3991, %vm3992
      %v3994 = vsel %vm3993, %v3986, %v3990
      %v3995 = vand.u32 2147483647, %v3294
      %vm3996 = vcmp.eq.f32.partialorder %v3995, 8.507059e+37
      %v3997 = vand.u32 %v3294, 2147483648
      %v3998 = vor.u32 1.1754944e-38, %v3997
      %v3999 = vsel %vm3996, %v3998, %v3994
      %v4000 = vmul.f32 1.0, %v3999
      %v4001 = vrcp.pop %v3295
      %v4002 = vmul.f32 %v3295, %v4001
      %v4003 = vsub.f32 1.0, %v4002
      %v4004 = vmul.f32 %v4001, %v4003
      %v4005 = vadd.f32 %v4001, %v4004
      %vm4006 = vweird.f32 %v3295
      %vm4007 = vweird.f32 %v4001
      %vm4008 = vmor %vm4006, %vm4007
      %v4009 = vsel %vm4008, %v4001, %v4005
      %v4010 = vand.u32 2147483647, %v3295
      %vm4011 = vcmp.eq.f32.partialorder %v4010, 8.507059e+37
      %v4012 = vand.u32 %v3295, 2147483648
      %v4013 = vor.u32 1.1754944e-38, %v4012
      %v4014 = vsel %vm4011, %v4013, %v4009
      %v4015 = vmul.f32 1.0, %v4014
      %v4016 = vtanh.pop %v3056
      %v4017 = vtanh.pop %v3057
      %v4018 = vtanh.pop %v3058
      %v4019 = vtanh.pop %v3059
      %v4020 = vtanh.pop %v3060
      %v4021 = vtanh.pop %v3061
      %v4022 = vtanh.pop %v3062
      %v4023 = vtanh.pop %v3063
      %v4024 = vtanh.pop %v3064
      %v4025 = vtanh.pop %v3065
      %v4026 = vtanh.pop %v3066
      %v4027 = vtanh.pop %v3067
      %v4028 = vtanh.pop %v3068
      %v4029 = vtanh.pop %v3069
      %v4030 = vtanh.pop %v3070
      %v4031 = vtanh.pop %v3071
      %v4032 = vtanh.pop %v3072
      %v4033 = vtanh.pop %v3073
      %v4034 = vtanh.pop %v3074
      %v4035 = vtanh.pop %v3075
      %v4036 = vtanh.pop %v3076
      %v4037 = vtanh.pop %v3077
      %v4038 = vtanh.pop %v3078
      %v4039 = vtanh.pop %v3079
      %v4040 = vtanh.pop %v3080
      %v4041 = vtanh.pop %v3081
      %v4042 = vtanh.pop %v3082
      %v4043 = vtanh.pop %v3083
      %v4044 = vtanh.pop %v3084
      %v4045 = vtanh.pop %v3085
      %v4046 = vtanh.pop %v3086
      %v4047 = vtanh.pop %v3087
      %v4048 = vtanh.pop %v3088
      %v4049 = vtanh.pop %v3089
      %v4050 = vtanh.pop %v3090
      %v4051 = vtanh.pop %v3091
      %v4052 = vtanh.pop %v3092
      %v4053 = vtanh.pop %v3093
      %v4054 = vtanh.pop %v3094
      %v4055 = vtanh.pop %v3095
      %v4056 = vtanh.pop %v3096
      %v4057 = vtanh.pop %v3097
      %v4058 = vtanh.pop %v3098
      %v4059 = vtanh.pop %v3099
      %v4060 = vtanh.pop %v3100
      %v4061 = vtanh.pop %v3101
      %v4062 = vtanh.pop %v3102
      %v4063 = vtanh.pop %v3103
      %v4064 = vld [vmem:[#allocation3] sm:$0xff]
      %v4065 = vld [vmem:[#allocation3 + $0x8] sm:$0xff]
      %v4066 = vld [vmem:[#allocation3 + $0x10] sm:$0xff]
      %v4067 = vld [vmem:[#allocation3 + $0x18] sm:$0xff]
      %v4068 = vld [vmem:[#allocation3 + $0x20] sm:$0xff]
      %v4069 = vld [vmem:[#allocation3 + $0x28] sm:$0xff]
      %v4070 = vld [vmem:[#allocation3 + $0x30] sm:$0xff]
      %v4071 = vld [vmem:[#allocation3 + $0x38] sm:$0xff]
      %v4072 = vld [vmem:[#allocation3 + $0x40] sm:$0xff]
      %v4073 = vld [vmem:[#allocation3 + $0x48] sm:$0xff]
      %v4074 = vld [vmem:[#allocation3 + $0x50] sm:$0xff]
      %v4075 = vld [vmem:[#allocation3 + $0x58] sm:$0xff]
      %v4076 = vld [vmem:[#allocation3 + $0x60] sm:$0xff]
      %v4077 = vld [vmem:[#allocation3 + $0x68] sm:$0xff]
      %v4078 = vld [vmem:[#allocation3 + $0x70] sm:$0xff]
      %v4079 = vld [vmem:[#allocation3 + $0x78] sm:$0xff]
      %v4080 = vld [vmem:[#allocation3 + $0x80] sm:$0xff]
      %v4081 = vld [vmem:[#allocation3 + $0x88] sm:$0xff]
      %v4082 = vld [vmem:[#allocation3 + $0x90] sm:$0xff]
      %v4083 = vld [vmem:[#allocation3 + $0x98] sm:$0xff]
      %v4084 = vld [vmem:[#allocation3 + $0xa0] sm:$0xff]
      %v4085 = vld [vmem:[#allocation3 + $0xa8] sm:$0xff]
      %v4086 = vld [vmem:[#allocation3 + $0xb0] sm:$0xff]
      %v4087 = vld [vmem:[#allocation3 + $0xb8] sm:$0xff]
      %v4088 = vld [vmem:[#allocation3 + $0xc0] sm:$0xff]
      %v4089 = vld [vmem:[#allocation3 + $0xc8] sm:$0xff]
      %v4090 = vld [vmem:[#allocation3 + $0xd0] sm:$0xff]
      %v4091 = vld [vmem:[#allocation3 + $0xd8] sm:$0xff]
      %v4092 = vld [vmem:[#allocation3 + $0xe0] sm:$0xff]
      %v4093 = vld [vmem:[#allocation3 + $0xe8] sm:$0xff]
      %v4094 = vld [vmem:[#allocation3 + $0xf0] sm:$0xff]
      %v4095 = vld [vmem:[#allocation3 + $0xf8] sm:$0xff]
      %v4096 = vld [vmem:[#allocation3 + $0x100] sm:$0xff]
      %v4097 = vld [vmem:[#allocation3 + $0x108] sm:$0xff]
      %v4098 = vld [vmem:[#allocation3 + $0x110] sm:$0xff]
      %v4099 = vld [vmem:[#allocation3 + $0x118] sm:$0xff]
      %v4100 = vld [vmem:[#allocation3 + $0x120] sm:$0xff]
      %v4101 = vld [vmem:[#allocation3 + $0x128] sm:$0xff]
      %v4102 = vld [vmem:[#allocation3 + $0x130] sm:$0xff]
      %v4103 = vld [vmem:[#allocation3 + $0x138] sm:$0xff]
      %v4104 = vld [vmem:[#allocation3 + $0x140] sm:$0xff]
      %v4105 = vld [vmem:[#allocation3 + $0x148] sm:$0xff]
      %v4106 = vld [vmem:[#allocation3 + $0x150] sm:$0xff]
      %v4107 = vld [vmem:[#allocation3 + $0x158] sm:$0xff]
      %v4108 = vld [vmem:[#allocation3 + $0x160] sm:$0xff]
      %v4109 = vld [vmem:[#allocation3 + $0x168] sm:$0xff]
      %v4110 = vld [vmem:[#allocation3 + $0x170] sm:$0xff]
      %v4111 = vld [vmem:[#allocation3 + $0x178] sm:$0xff]
      %4160 = vrot.lane.b32.xlu0 %v4064, 32
      %v4161 = vpop.permute.xlu0 %4160
      %4162 = vrot.lane.b32.xlu0 %v4065, 32
      %v4163 = vpop.permute.xlu0 %4162
      %4164 = vrot.lane.b32.xlu0 %v4066, 32
      %v4165 = vpop.permute.xlu0 %4164
      %4166 = vrot.lane.b32.xlu0 %v4067, 32
      %v4167 = vpop.permute.xlu0 %4166
      %4168 = vrot.lane.b32.xlu0 %v4068, 32
      %v4169 = vpop.permute.xlu0 %4168
      %4170 = vrot.lane.b32.xlu0 %v4069, 32
      %v4171 = vpop.permute.xlu0 %4170
      %4172 = vrot.lane.b32.xlu0 %v4070, 32
      %v4173 = vpop.permute.xlu0 %4172
      %4174 = vrot.lane.b32.xlu0 %v4071, 32
      %v4175 = vpop.permute.xlu0 %4174
      %4176 = vrot.lane.b32.xlu0 %v4072, 32
      %v4177 = vpop.permute.xlu0 %4176
      %4178 = vrot.lane.b32.xlu0 %v4073, 32
      %v4179 = vpop.permute.xlu0 %4178
      %4180 = vrot.lane.b32.xlu0 %v4074, 32
      %v4181 = vpop.permute.xlu0 %4180
      %4182 = vrot.lane.b32.xlu0 %v4075, 32
      %v4183 = vpop.permute.xlu0 %4182
      %4184 = vrot.lane.b32.xlu0 %v4076, 32
      %v4185 = vpop.permute.xlu0 %4184
      %4186 = vrot.lane.b32.xlu0 %v4077, 32
      %v4187 = vpop.permute.xlu0 %4186
      %4188 = vrot.lane.b32.xlu0 %v4078, 32
      %v4189 = vpop.permute.xlu0 %4188
      %4190 = vrot.lane.b32.xlu0 %v4079, 32
      %v4191 = vpop.permute.xlu0 %4190
      %4192 = vrot.lane.b32.xlu0 %v4080, 32
      %v4193 = vpop.permute.xlu0 %4192
      %4194 = vrot.lane.b32.xlu0 %v4081, 32
      %v4195 = vpop.permute.xlu0 %4194
      %4196 = vrot.lane.b32.xlu0 %v4082, 32
      %v4197 = vpop.permute.xlu0 %4196
      %4198 = vrot.lane.b32.xlu0 %v4083, 32
      %v4199 = vpop.permute.xlu0 %4198
      %4200 = vrot.lane.b32.xlu0 %v4084, 32
      %v4201 = vpop.permute.xlu0 %4200
      %4202 = vrot.lane.b32.xlu0 %v4085, 32
      %v4203 = vpop.permute.xlu0 %4202
      %4204 = vrot.lane.b32.xlu0 %v4086, 32
      %v4205 = vpop.permute.xlu0 %4204
      %4206 = vrot.lane.b32.xlu0 %v4087, 32
      %v4207 = vpop.permute.xlu0 %4206
      %4208 = vrot.lane.b32.xlu0 %v4088, 32
      %v4209 = vpop.permute.xlu0 %4208
      %4210 = vrot.lane.b32.xlu0 %v4089, 32
      %v4211 = vpop.permute.xlu0 %4210
      %4212 = vrot.lane.b32.xlu0 %v4090, 32
      %v4213 = vpop.permute.xlu0 %4212
      %4214 = vrot.lane.b32.xlu0 %v4091, 32
      %v4215 = vpop.permute.xlu0 %4214
      %4216 = vrot.lane.b32.xlu0 %v4092, 32
      %v4217 = vpop.permute.xlu0 %4216
      %4218 = vrot.lane.b32.xlu0 %v4093, 32
      %v4219 = vpop.permute.xlu0 %4218
      %4220 = vrot.lane.b32.xlu0 %v4094, 32
      %v4221 = vpop.permute.xlu0 %4220
      %4222 = vrot.lane.b32.xlu0 %v4095, 32
      %v4223 = vpop.permute.xlu0 %4222
      %4224 = vrot.lane.b32.xlu0 %v4096, 32
      %v4225 = vpop.permute.xlu0 %4224
      %4226 = vrot.lane.b32.xlu0 %v4097, 32
      %v4227 = vpop.permute.xlu0 %4226
      %4228 = vrot.lane.b32.xlu0 %v4098, 32
      %v4229 = vpop.permute.xlu0 %4228
      %4230 = vrot.lane.b32.xlu0 %v4099, 32
      %v4231 = vpop.permute.xlu0 %4230
      %4232 = vrot.lane.b32.xlu0 %v4100, 32
      %v4233 = vpop.permute.xlu0 %4232
      %4234 = vrot.lane.b32.xlu0 %v4101, 32
      %v4235 = vpop.permute.xlu0 %4234
      %4236 = vrot.lane.b32.xlu0 %v4102, 32
      %v4237 = vpop.permute.xlu0 %4236
      %4238 = vrot.lane.b32.xlu0 %v4103, 32
      %v4239 = vpop.permute.xlu0 %4238
      %4240 = vrot.lane.b32.xlu0 %v4104, 32
      %v4241 = vpop.permute.xlu0 %4240
      %4242 = vrot.lane.b32.xlu0 %v4105, 32
      %v4243 = vpop.permute.xlu0 %4242
      %4244 = vrot.lane.b32.xlu0 %v4106, 32
      %v4245 = vpop.permute.xlu0 %4244
      %4246 = vrot.lane.b32.xlu0 %v4107, 32
      %v4247 = vpop.permute.xlu0 %4246
      %4248 = vrot.lane.b32.xlu0 %v4108, 32
      %v4249 = vpop.permute.xlu0 %4248
      %4250 = vrot.lane.b32.xlu0 %v4109, 32
      %v4251 = vpop.permute.xlu0 %4250
      %4252 = vrot.lane.b32.xlu0 %v4110, 32
      %v4253 = vpop.permute.xlu0 %4252
      %4254 = vrot.lane.b32.xlu0 %v4111, 32
      %v4255 = vpop.permute.xlu0 %4254
      %v4304 = vmul.f32 %v3310, %v4161
      %v4305 = vmul.f32 %v3325, %v4163
      %v4306 = vmul.f32 %v3340, %v4165
      %v4307 = vmul.f32 %v3355, %v4167
      %v4308 = vmul.f32 %v3370, %v4169
      %v4309 = vmul.f32 %v3385, %v4171
      %v4310 = vmul.f32 %v3400, %v4173
      %v4311 = vmul.f32 %v3415, %v4175
      %v4312 = vmul.f32 %v3430, %v4177
      %v4313 = vmul.f32 %v3445, %v4179
      %v4314 = vmul.f32 %v3460, %v4181
      %v4315 = vmul.f32 %v3475, %v4183
      %v4316 = vmul.f32 %v3490, %v4185
      %v4317 = vmul.f32 %v3505, %v4187
      %v4318 = vmul.f32 %v3520, %v4189
      %v4319 = vmul.f32 %v3535, %v4191
      %v4320 = vmul.f32 %v3550, %v4193
      %v4321 = vmul.f32 %v3565, %v4195
      %v4322 = vmul.f32 %v3580, %v4197
      %v4323 = vmul.f32 %v3595, %v4199
      %v4324 = vmul.f32 %v3610, %v4201
      %v4325 = vmul.f32 %v3625, %v4203
      %v4326 = vmul.f32 %v3640, %v4205
      %v4327 = vmul.f32 %v3655, %v4207
      %v4328 = vmul.f32 %v3670, %v4209
      %v4329 = vmul.f32 %v3685, %v4211
      %v4330 = vmul.f32 %v3700, %v4213
      %v4331 = vmul.f32 %v3715, %v4215
      %v4332 = vmul.f32 %v3730, %v4217
      %v4333 = vmul.f32 %v3745, %v4219
      %v4334 = vmul.f32 %v3760, %v4221
      %v4335 = vmul.f32 %v3775, %v4223
      %v4336 = vmul.f32 %v3790, %v4225
      %v4337 = vmul.f32 %v3805, %v4227
      %v4338 = vmul.f32 %v3820, %v4229
      %v4339 = vmul.f32 %v3835, %v4231
      %v4340 = vmul.f32 %v3850, %v4233
      %v4341 = vmul.f32 %v3865, %v4235
      %v4342 = vmul.f32 %v3880, %v4237
      %v4343 = vmul.f32 %v3895, %v4239
      %v4344 = vmul.f32 %v3910, %v4241
      %v4345 = vmul.f32 %v3925, %v4243
      %v4346 = vmul.f32 %v3940, %v4245
      %v4347 = vmul.f32 %v3955, %v4247
      %v4348 = vmul.f32 %v3970, %v4249
      %v4349 = vmul.f32 %v3985, %v4251
      %v4350 = vmul.f32 %v4000, %v4253
      %v4351 = vmul.f32 %v4015, %v4255
      %4400 = vrot.lane.b32.xlu0 %v4016, 32
      %v4401 = vpop.permute.xlu0 %4400
      %4402 = vrot.lane.b32.xlu0 %v4017, 32
      %v4403 = vpop.permute.xlu0 %4402
      %4404 = vrot.lane.b32.xlu0 %v4018, 32
      %v4405 = vpop.permute.xlu0 %4404
      %4406 = vrot.lane.b32.xlu0 %v4019, 32
      %v4407 = vpop.permute.xlu0 %4406
      %4408 = vrot.lane.b32.xlu0 %v4020, 32
      %v4409 = vpop.permute.xlu0 %4408
      %4410 = vrot.lane.b32.xlu0 %v4021, 32
      %v4411 = vpop.permute.xlu0 %4410
      %4412 = vrot.lane.b32.xlu0 %v4022, 32
      %v4413 = vpop.permute.xlu0 %4412
      %4414 = vrot.lane.b32.xlu0 %v4023, 32
      %v4415 = vpop.permute.xlu0 %4414
      %4416 = vrot.lane.b32.xlu0 %v4024, 32
      %v4417 = vpop.permute.xlu0 %4416
      %4418 = vrot.lane.b32.xlu0 %v4025, 32
      %v4419 = vpop.permute.xlu0 %4418
      %4420 = vrot.lane.b32.xlu0 %v4026, 32
      %v4421 = vpop.permute.xlu0 %4420
      %4422 = vrot.lane.b32.xlu0 %v4027, 32
      %v4423 = vpop.permute.xlu0 %4422
      %4424 = vrot.lane.b32.xlu0 %v4028, 32
      %v4425 = vpop.permute.xlu0 %4424
      %4426 = vrot.lane.b32.xlu0 %v4029, 32
      %v4427 = vpop.permute.xlu0 %4426
      %4428 = vrot.lane.b32.xlu0 %v4030, 32
      %v4429 = vpop.permute.xlu0 %4428
      %4430 = vrot.lane.b32.xlu0 %v4031, 32
      %v4431 = vpop.permute.xlu0 %4430
      %4432 = vrot.lane.b32.xlu0 %v4032, 32
      %v4433 = vpop.permute.xlu0 %4432
      %4434 = vrot.lane.b32.xlu0 %v4033, 32
      %v4435 = vpop.permute.xlu0 %4434
      %4436 = vrot.lane.b32.xlu0 %v4034, 32
      %v4437 = vpop.permute.xlu0 %4436
      %4438 = vrot.lane.b32.xlu0 %v4035, 32
      %v4439 = vpop.permute.xlu0 %4438
      %4440 = vrot.lane.b32.xlu0 %v4036, 32
      %v4441 = vpop.permute.xlu0 %4440
      %4442 = vrot.lane.b32.xlu0 %v4037, 32
      %v4443 = vpop.permute.xlu0 %4442
      %4444 = vrot.lane.b32.xlu0 %v4038, 32
      %v4445 = vpop.permute.xlu0 %4444
      %4446 = vrot.lane.b32.xlu0 %v4039, 32
      %v4447 = vpop.permute.xlu0 %4446
      %4448 = vrot.lane.b32.xlu0 %v4040, 32
      %v4449 = vpop.permute.xlu0 %4448
      %4450 = vrot.lane.b32.xlu0 %v4041, 32
      %v4451 = vpop.permute.xlu0 %4450
      %4452 = vrot.lane.b32.xlu0 %v4042, 32
      %v4453 = vpop.permute.xlu0 %4452
      %4454 = vrot.lane.b32.xlu0 %v4043, 32
      %v4455 = vpop.permute.xlu0 %4454
      %4456 = vrot.lane.b32.xlu0 %v4044, 32
      %v4457 = vpop.permute.xlu0 %4456
      %4458 = vrot.lane.b32.xlu0 %v4045, 32
      %v4459 = vpop.permute.xlu0 %4458
      %4460 = vrot.lane.b32.xlu0 %v4046, 32
      %v4461 = vpop.permute.xlu0 %4460
      %4462 = vrot.lane.b32.xlu0 %v4047, 32
      %v4463 = vpop.permute.xlu0 %4462
      %4464 = vrot.lane.b32.xlu0 %v4048, 32
      %v4465 = vpop.permute.xlu0 %4464
      %4466 = vrot.lane.b32.xlu0 %v4049, 32
      %v4467 = vpop.permute.xlu0 %4466
      %4468 = vrot.lane.b32.xlu0 %v4050, 32
      %v4469 = vpop.permute.xlu0 %4468
      %4470 = vrot.lane.b32.xlu0 %v4051, 32
      %v4471 = vpop.permute.xlu0 %4470
      %4472 = vrot.lane.b32.xlu0 %v4052, 32
      %v4473 = vpop.permute.xlu0 %4472
      %4474 = vrot.lane.b32.xlu0 %v4053, 32
      %v4475 = vpop.permute.xlu0 %4474
      %4476 = vrot.lane.b32.xlu0 %v4054, 32
      %v4477 = vpop.permute.xlu0 %4476
      %4478 = vrot.lane.b32.xlu0 %v4055, 32
      %v4479 = vpop.permute.xlu0 %4478
      %4480 = vrot.lane.b32.xlu0 %v4056, 32
      %v4481 = vpop.permute.xlu0 %4480
      %4482 = vrot.lane.b32.xlu0 %v4057, 32
      %v4483 = vpop.permute.xlu0 %4482
      %4484 = vrot.lane.b32.xlu0 %v4058, 32
      %v4485 = vpop.permute.xlu0 %4484
      %4486 = vrot.lane.b32.xlu0 %v4059, 32
      %v4487 = vpop.permute.xlu0 %4486
      %4488 = vrot.lane.b32.xlu0 %v4060, 32
      %v4489 = vpop.permute.xlu0 %4488
      %4490 = vrot.lane.b32.xlu0 %v4061, 32
      %v4491 = vpop.permute.xlu0 %4490
      %4492 = vrot.lane.b32.xlu0 %v4062, 32
      %v4493 = vpop.permute.xlu0 %4492
      %4494 = vrot.lane.b32.xlu0 %v4063, 32
      %v4495 = vpop.permute.xlu0 %4494
      %v4544 = vmul.f32 %v3310, %v4401
      %v4545 = vmul.f32 %v3325, %v4403
      %v4546 = vmul.f32 %v3340, %v4405
      %v4547 = vmul.f32 %v3355, %v4407
      %v4548 = vmul.f32 %v3370, %v4409
      %v4549 = vmul.f32 %v3385, %v4411
      %v4550 = vmul.f32 %v3400, %v4413
      %v4551 = vmul.f32 %v3415, %v4415
      %v4552 = vmul.f32 %v3430, %v4417
      %v4553 = vmul.f32 %v3445, %v4419
      %v4554 = vmul.f32 %v3460, %v4421
      %v4555 = vmul.f32 %v3475, %v4423
      %v4556 = vmul.f32 %v3490, %v4425
      %v4557 = vmul.f32 %v3505, %v4427
      %v4558 = vmul.f32 %v3520, %v4429
      %v4559 = vmul.f32 %v3535, %v4431
      %v4560 = vmul.f32 %v3550, %v4433
      %v4561 = vmul.f32 %v3565, %v4435
      %v4562 = vmul.f32 %v3580, %v4437
      %v4563 = vmul.f32 %v3595, %v4439
      %v4564 = vmul.f32 %v3610, %v4441
      %v4565 = vmul.f32 %v3625, %v4443
      %v4566 = vmul.f32 %v3640, %v4445
      %v4567 = vmul.f32 %v3655, %v4447
      %v4568 = vmul.f32 %v3670, %v4449
      %v4569 = vmul.f32 %v3685, %v4451
      %v4570 = vmul.f32 %v3700, %v4453
      %v4571 = vmul.f32 %v3715, %v4455
      %v4572 = vmul.f32 %v3730, %v4457
      %v4573 = vmul.f32 %v3745, %v4459
      %v4574 = vmul.f32 %v3760, %v4461
      %v4575 = vmul.f32 %v3775, %v4463
      %v4576 = vmul.f32 %v3790, %v4465
      %v4577 = vmul.f32 %v3805, %v4467
      %v4578 = vmul.f32 %v3820, %v4469
      %v4579 = vmul.f32 %v3835, %v4471
      %v4580 = vmul.f32 %v3850, %v4473
      %v4581 = vmul.f32 %v3865, %v4475
      %v4582 = vmul.f32 %v3880, %v4477
      %v4583 = vmul.f32 %v3895, %v4479
      %v4584 = vmul.f32 %v3910, %v4481
      %v4585 = vmul.f32 %v3925, %v4483
      %v4586 = vmul.f32 %v3940, %v4485
      %v4587 = vmul.f32 %v3955, %v4487
      %v4588 = vmul.f32 %v3970, %v4489
      %v4589 = vmul.f32 %v3985, %v4491
      %v4590 = vmul.f32 %v4000, %v4493
      %v4591 = vmul.f32 %v4015, %v4495
      %4640 = vrot.lane.b32.xlu0 %v4544, 32
      %v4641 = vpop.permute.xlu0 %4640
      %4642 = vrot.lane.b32.xlu0 %v4545, 32
      %v4643 = vpop.permute.xlu0 %4642
      %4644 = vrot.lane.b32.xlu0 %v4546, 32
      %v4645 = vpop.permute.xlu0 %4644
      %4646 = vrot.lane.b32.xlu0 %v4547, 32
      %v4647 = vpop.permute.xlu0 %4646
      %4648 = vrot.lane.b32.xlu0 %v4548, 32
      %v4649 = vpop.permute.xlu0 %4648
      %4650 = vrot.lane.b32.xlu0 %v4549, 32
      %v4651 = vpop.permute.xlu0 %4650
      %4652 = vrot.lane.b32.xlu0 %v4550, 32
      %v4653 = vpop.permute.xlu0 %4652
      %4654 = vrot.lane.b32.xlu0 %v4551, 32
      %v4655 = vpop.permute.xlu0 %4654
      %4656 = vrot.lane.b32.xlu0 %v4552, 32
      %v4657 = vpop.permute.xlu0 %4656
      %4658 = vrot.lane.b32.xlu0 %v4553, 32
      %v4659 = vpop.permute.xlu0 %4658
      %4660 = vrot.lane.b32.xlu0 %v4554, 32
      %v4661 = vpop.permute.xlu0 %4660
      %4662 = vrot.lane.b32.xlu0 %v4555, 32
      %v4663 = vpop.permute.xlu0 %4662
      %4664 = vrot.lane.b32.xlu0 %v4556, 32
      %v4665 = vpop.permute.xlu0 %4664
      %4666 = vrot.lane.b32.xlu0 %v4557, 32
      %v4667 = vpop.permute.xlu0 %4666
      %4668 = vrot.lane.b32.xlu0 %v4558, 32
      %v4669 = vpop.permute.xlu0 %4668
      %4670 = vrot.lane.b32.xlu0 %v4559, 32
      %v4671 = vpop.permute.xlu0 %4670
      %4672 = vrot.lane.b32.xlu0 %v4560, 32
      %v4673 = vpop.permute.xlu0 %4672
      %4674 = vrot.lane.b32.xlu0 %v4561, 32
      %v4675 = vpop.permute.xlu0 %4674
      %4676 = vrot.lane.b32.xlu0 %v4562, 32
      %v4677 = vpop.permute.xlu0 %4676
      %4678 = vrot.lane.b32.xlu0 %v4563, 32
      %v4679 = vpop.permute.xlu0 %4678
      %4680 = vrot.lane.b32.xlu0 %v4564, 32
      %v4681 = vpop.permute.xlu0 %4680
      %4682 = vrot.lane.b32.xlu0 %v4565, 32
      %v4683 = vpop.permute.xlu0 %4682
      %4684 = vrot.lane.b32.xlu0 %v4566, 32
      %v4685 = vpop.permute.xlu0 %4684
      %4686 = vrot.lane.b32.xlu0 %v4567, 32
      %v4687 = vpop.permute.xlu0 %4686
      %4688 = vrot.lane.b32.xlu0 %v4568, 32
      %v4689 = vpop.permute.xlu0 %4688
      %4690 = vrot.lane.b32.xlu0 %v4569, 32
      %v4691 = vpop.permute.xlu0 %4690
      %4692 = vrot.lane.b32.xlu0 %v4570, 32
      %v4693 = vpop.permute.xlu0 %4692
      %4694 = vrot.lane.b32.xlu0 %v4571, 32
      %v4695 = vpop.permute.xlu0 %4694
      %4696 = vrot.lane.b32.xlu0 %v4572, 32
      %v4697 = vpop.permute.xlu0 %4696
      %4698 = vrot.lane.b32.xlu0 %v4573, 32
      %v4699 = vpop.permute.xlu0 %4698
      %4700 = vrot.lane.b32.xlu0 %v4574, 32
      %v4701 = vpop.permute.xlu0 %4700
      %4702 = vrot.lane.b32.xlu0 %v4575, 32
      %v4703 = vpop.permute.xlu0 %4702
      %4704 = vrot.lane.b32.xlu0 %v4576, 32
      %v4705 = vpop.permute.xlu0 %4704
      %4706 = vrot.lane.b32.xlu0 %v4577, 32
      %v4707 = vpop.permute.xlu0 %4706
      %4708 = vrot.lane.b32.xlu0 %v4578, 32
      %v4709 = vpop.permute.xlu0 %4708
      %4710 = vrot.lane.b32.xlu0 %v4579, 32
      %v4711 = vpop.permute.xlu0 %4710
      %4712 = vrot.lane.b32.xlu0 %v4580, 32
      %v4713 = vpop.permute.xlu0 %4712
      %4714 = vrot.lane.b32.xlu0 %v4581, 32
      %v4715 = vpop.permute.xlu0 %4714
      %4716 = vrot.lane.b32.xlu0 %v4582, 32
      %v4717 = vpop.permute.xlu0 %4716
      %4718 = vrot.lane.b32.xlu0 %v4583, 32
      %v4719 = vpop.permute.xlu0 %4718
      %4720 = vrot.lane.b32.xlu0 %v4584, 32
      %v4721 = vpop.permute.xlu0 %4720
      %4722 = vrot.lane.b32.xlu0 %v4585, 32
      %v4723 = vpop.permute.xlu0 %4722
      %4724 = vrot.lane.b32.xlu0 %v4586, 32
      %v4725 = vpop.permute.xlu0 %4724
      %4726 = vrot.lane.b32.xlu0 %v4587, 32
      %v4727 = vpop.permute.xlu0 %4726
      %4728 = vrot.lane.b32.xlu0 %v4588, 32
      %v4729 = vpop.permute.xlu0 %4728
      %4730 = vrot.lane.b32.xlu0 %v4589, 32
      %v4731 = vpop.permute.xlu0 %4730
      %4732 = vrot.lane.b32.xlu0 %v4590, 32
      %v4733 = vpop.permute.xlu0 %4732
      %4734 = vrot.lane.b32.xlu0 %v4591, 32
      %v4735 = vpop.permute.xlu0 %4734
      %v4784 = vadd.f32 %v4304, %v4641
      %v4785 = vadd.f32 %v4305, %v4643
      %v4786 = vadd.f32 %v4306, %v4645
      %v4787 = vadd.f32 %v4307, %v4647
      %v4788 = vadd.f32 %v4308, %v4649
      %v4789 = vadd.f32 %v4309, %v4651
      %v4790 = vadd.f32 %v4310, %v4653
      %v4791 = vadd.f32 %v4311, %v4655
      %v4792 = vadd.f32 %v4312, %v4657
      %v4793 = vadd.f32 %v4313, %v4659
      %v4794 = vadd.f32 %v4314, %v4661
      %v4795 = vadd.f32 %v4315, %v4663
      %v4796 = vadd.f32 %v4316, %v4665
      %v4797 = vadd.f32 %v4317, %v4667
      %v4798 = vadd.f32 %v4318, %v4669
      %v4799 = vadd.f32 %v4319, %v4671
      %v4800 = vadd.f32 %v4320, %v4673
      %v4801 = vadd.f32 %v4321, %v4675
      %v4802 = vadd.f32 %v4322, %v4677
      %v4803 = vadd.f32 %v4323, %v4679
      %v4804 = vadd.f32 %v4324, %v4681
      %v4805 = vadd.f32 %v4325, %v4683
      %v4806 = vadd.f32 %v4326, %v4685
      %v4807 = vadd.f32 %v4327, %v4687
      %v4808 = vadd.f32 %v4328, %v4689
      %v4809 = vadd.f32 %v4329, %v4691
      %v4810 = vadd.f32 %v4330, %v4693
      %v4811 = vadd.f32 %v4331, %v4695
      %v4812 = vadd.f32 %v4332, %v4697
      %v4813 = vadd.f32 %v4333, %v4699
      %v4814 = vadd.f32 %v4334, %v4701
      %v4815 = vadd.f32 %v4335, %v4703
      %v4816 = vadd.f32 %v4336, %v4705
      %v4817 = vadd.f32 %v4337, %v4707
      %v4818 = vadd.f32 %v4338, %v4709
      %v4819 = vadd.f32 %v4339, %v4711
      %v4820 = vadd.f32 %v4340, %v4713
      %v4821 = vadd.f32 %v4341, %v4715
      %v4822 = vadd.f32 %v4342, %v4717
      %v4823 = vadd.f32 %v4343, %v4719
      %v4824 = vadd.f32 %v4344, %v4721
      %v4825 = vadd.f32 %v4345, %v4723
      %v4826 = vadd.f32 %v4346, %v4725
      %v4827 = vadd.f32 %v4347, %v4727
      %v4828 = vadd.f32 %v4348, %v4729
      %v4829 = vadd.f32 %v4349, %v4731
      %v4830 = vadd.f32 %v4350, %v4733
      %v4831 = vadd.f32 %v4351, %v4735
      %v4832 = vtanh.pop %v4784
      %v4833 = vtanh.pop %v4785
      %v4834 = vtanh.pop %v4786
      %v4835 = vtanh.pop %v4787
      %v4836 = vtanh.pop %v4788
      %v4837 = vtanh.pop %v4789
      %v4838 = vtanh.pop %v4790
      %v4839 = vtanh.pop %v4791
      %v4840 = vtanh.pop %v4792
      %v4841 = vtanh.pop %v4793
      %v4842 = vtanh.pop %v4794
      %v4843 = vtanh.pop %v4795
      %v4844 = vtanh.pop %v4796
      %v4845 = vtanh.pop %v4797
      %v4846 = vtanh.pop %v4798
      %v4847 = vtanh.pop %v4799
      %v4848 = vtanh.pop %v4800
      %v4849 = vtanh.pop %v4801
      %v4850 = vtanh.pop %v4802
      %v4851 = vtanh.pop %v4803
      %v4852 = vtanh.pop %v4804
      %v4853 = vtanh.pop %v4805
      %v4854 = vtanh.pop %v4806
      %v4855 = vtanh.pop %v4807
      %v4856 = vtanh.pop %v4808
      %v4857 = vtanh.pop %v4809
      %v4858 = vtanh.pop %v4810
      %v4859 = vtanh.pop %v4811
      %v4860 = vtanh.pop %v4812
      %v4861 = vtanh.pop %v4813
      %v4862 = vtanh.pop %v4814
      %v4863 = vtanh.pop %v4815
      %v4864 = vtanh.pop %v4816
      %v4865 = vtanh.pop %v4817
      %v4866 = vtanh.pop %v4818
      %v4867 = vtanh.pop %v4819
      %v4868 = vtanh.pop %v4820
      %v4869 = vtanh.pop %v4821
      %v4870 = vtanh.pop %v4822
      %v4871 = vtanh.pop %v4823
      %v4872 = vtanh.pop %v4824
      %v4873 = vtanh.pop %v4825
      %v4874 = vtanh.pop %v4826
      %v4875 = vtanh.pop %v4827
      %v4876 = vtanh.pop %v4828
      %v4877 = vtanh.pop %v4829
      %v4878 = vtanh.pop %v4830
      %v4879 = vtanh.pop %v4831
      %4928 = vrot.lane.b32.xlu0 %v4832, 32
      %v4929 = vpop.permute.xlu0 %4928
      %4930 = vrot.lane.b32.xlu0 %v4833, 32
      %v4931 = vpop.permute.xlu0 %4930
      %4932 = vrot.lane.b32.xlu0 %v4834, 32
      %v4933 = vpop.permute.xlu0 %4932
      %4934 = vrot.lane.b32.xlu0 %v4835, 32
      %v4935 = vpop.permute.xlu0 %4934
      %4936 = vrot.lane.b32.xlu0 %v4836, 32
      %v4937 = vpop.permute.xlu0 %4936
      %4938 = vrot.lane.b32.xlu0 %v4837, 32
      %v4939 = vpop.permute.xlu0 %4938
      %4940 = vrot.lane.b32.xlu0 %v4838, 32
      %v4941 = vpop.permute.xlu0 %4940
      %4942 = vrot.lane.b32.xlu0 %v4839, 32
      %v4943 = vpop.permute.xlu0 %4942
      %4944 = vrot.lane.b32.xlu0 %v4840, 32
      %v4945 = vpop.permute.xlu0 %4944
      %4946 = vrot.lane.b32.xlu0 %v4841, 32
      %v4947 = vpop.permute.xlu0 %4946
      %4948 = vrot.lane.b32.xlu0 %v4842, 32
      %v4949 = vpop.permute.xlu0 %4948
      %4950 = vrot.lane.b32.xlu0 %v4843, 32
      %v4951 = vpop.permute.xlu0 %4950
      %4952 = vrot.lane.b32.xlu0 %v4844, 32
      %v4953 = vpop.permute.xlu0 %4952
      %4954 = vrot.lane.b32.xlu0 %v4845, 32
      %v4955 = vpop.permute.xlu0 %4954
      %4956 = vrot.lane.b32.xlu0 %v4846, 32
      %v4957 = vpop.permute.xlu0 %4956
      %4958 = vrot.lane.b32.xlu0 %v4847, 32
      %v4959 = vpop.permute.xlu0 %4958
      %4960 = vrot.lane.b32.xlu0 %v4848, 32
      %v4961 = vpop.permute.xlu0 %4960
      %4962 = vrot.lane.b32.xlu0 %v4849, 32
      %v4963 = vpop.permute.xlu0 %4962
      %4964 = vrot.lane.b32.xlu0 %v4850, 32
      %v4965 = vpop.permute.xlu0 %4964
      %4966 = vrot.lane.b32.xlu0 %v4851, 32
      %v4967 = vpop.permute.xlu0 %4966
      %4968 = vrot.lane.b32.xlu0 %v4852, 32
      %v4969 = vpop.permute.xlu0 %4968
      %4970 = vrot.lane.b32.xlu0 %v4853, 32
      %v4971 = vpop.permute.xlu0 %4970
      %4972 = vrot.lane.b32.xlu0 %v4854, 32
      %v4973 = vpop.permute.xlu0 %4972
      %4974 = vrot.lane.b32.xlu0 %v4855, 32
      %v4975 = vpop.permute.xlu0 %4974
      %4976 = vrot.lane.b32.xlu0 %v4856, 32
      %v4977 = vpop.permute.xlu0 %4976
      %4978 = vrot.lane.b32.xlu0 %v4857, 32
      %v4979 = vpop.permute.xlu0 %4978
      %4980 = vrot.lane.b32.xlu0 %v4858, 32
      %v4981 = vpop.permute.xlu0 %4980
      %4982 = vrot.lane.b32.xlu0 %v4859, 32
      %v4983 = vpop.permute.xlu0 %4982
      %4984 = vrot.lane.b32.xlu0 %v4860, 32
      %v4985 = vpop.permute.xlu0 %4984
      %4986 = vrot.lane.b32.xlu0 %v4861, 32
      %v4987 = vpop.permute.xlu0 %4986
      %4988 = vrot.lane.b32.xlu0 %v4862, 32
      %v4989 = vpop.permute.xlu0 %4988
      %4990 = vrot.lane.b32.xlu0 %v4863, 32
      %v4991 = vpop.permute.xlu0 %4990
      %4992 = vrot.lane.b32.xlu0 %v4864, 32
      %v4993 = vpop.permute.xlu0 %4992
      %4994 = vrot.lane.b32.xlu0 %v4865, 32
      %v4995 = vpop.permute.xlu0 %4994
      %4996 = vrot.lane.b32.xlu0 %v4866, 32
      %v4997 = vpop.permute.xlu0 %4996
      %4998 = vrot.lane.b32.xlu0 %v4867, 32
      %v4999 = vpop.permute.xlu0 %4998
      %5000 = vrot.lane.b32.xlu0 %v4868, 32
      %v5001 = vpop.permute.xlu0 %5000
      %5002 = vrot.lane.b32.xlu0 %v4869, 32
      %v5003 = vpop.permute.xlu0 %5002
      %5004 = vrot.lane.b32.xlu0 %v4870, 32
      %v5005 = vpop.permute.xlu0 %5004
      %5006 = vrot.lane.b32.xlu0 %v4871, 32
      %v5007 = vpop.permute.xlu0 %5006
      %5008 = vrot.lane.b32.xlu0 %v4872, 32
      %v5009 = vpop.permute.xlu0 %5008
      %5010 = vrot.lane.b32.xlu0 %v4873, 32
      %v5011 = vpop.permute.xlu0 %5010
      %5012 = vrot.lane.b32.xlu0 %v4874, 32
      %v5013 = vpop.permute.xlu0 %5012
      %5014 = vrot.lane.b32.xlu0 %v4875, 32
      %v5015 = vpop.permute.xlu0 %5014
      %5016 = vrot.lane.b32.xlu0 %v4876, 32
      %v5017 = vpop.permute.xlu0 %5016
      %5018 = vrot.lane.b32.xlu0 %v4877, 32
      %v5019 = vpop.permute.xlu0 %5018
      %5020 = vrot.lane.b32.xlu0 %v4878, 32
      %v5021 = vpop.permute.xlu0 %5020
      %5022 = vrot.lane.b32.xlu0 %v4879, 32
      %v5023 = vpop.permute.xlu0 %5022
      %v5072 = vmul.f32 %v3310, %v4929
      %v5073 = vmul.f32 %v3325, %v4931
      %v5074 = vmul.f32 %v3340, %v4933
      %v5075 = vmul.f32 %v3355, %v4935
      %v5076 = vmul.f32 %v3370, %v4937
      %v5077 = vmul.f32 %v3385, %v4939
      %v5078 = vmul.f32 %v3400, %v4941
      %v5079 = vmul.f32 %v3415, %v4943
      %v5080 = vmul.f32 %v3430, %v4945
      %v5081 = vmul.f32 %v3445, %v4947
      %v5082 = vmul.f32 %v3460, %v4949
      %v5083 = vmul.f32 %v3475, %v4951
      %v5084 = vmul.f32 %v3490, %v4953
      %v5085 = vmul.f32 %v3505, %v4955
      %v5086 = vmul.f32 %v3520, %v4957
      %v5087 = vmul.f32 %v3535, %v4959
      %v5088 = vmul.f32 %v3550, %v4961
      %v5089 = vmul.f32 %v3565, %v4963
      %v5090 = vmul.f32 %v3580, %v4965
      %v5091 = vmul.f32 %v3595, %v4967
      %v5092 = vmul.f32 %v3610, %v4969
      %v5093 = vmul.f32 %v3625, %v4971
      %v5094 = vmul.f32 %v3640, %v4973
      %v5095 = vmul.f32 %v3655, %v4975
      %v5096 = vmul.f32 %v3670, %v4977
      %v5097 = vmul.f32 %v3685, %v4979
      %v5098 = vmul.f32 %v3700, %v4981
      %v5099 = vmul.f32 %v3715, %v4983
      %v5100 = vmul.f32 %v3730, %v4985
      %v5101 = vmul.f32 %v3745, %v4987
      %v5102 = vmul.f32 %v3760, %v4989
      %v5103 = vmul.f32 %v3775, %v4991
      %v5104 = vmul.f32 %v3790, %v4993
      %v5105 = vmul.f32 %v3805, %v4995
      %v5106 = vmul.f32 %v3820, %v4997
      %v5107 = vmul.f32 %v3835, %v4999
      %v5108 = vmul.f32 %v3850, %v5001
      %v5109 = vmul.f32 %v3865, %v5003
      %v5110 = vmul.f32 %v3880, %v5005
      %v5111 = vmul.f32 %v3895, %v5007
      %v5112 = vmul.f32 %v3910, %v5009
      %v5113 = vmul.f32 %v3925, %v5011
      %v5114 = vmul.f32 %v3940, %v5013
      %v5115 = vmul.f32 %v3955, %v5015
      %v5116 = vmul.f32 %v3970, %v5017
      %v5117 = vmul.f32 %v3985, %v5019
      %v5118 = vmul.f32 %v4000, %v5021
      %v5119 = vmul.f32 %v4015, %v5023
      %p5120 = scmp.lt.s32.totalorder %s18, 2
      // Predicated region
      $region33: #{convlstm_forward.1} parent=27 // pred_check
        %p5121 = pneg %p5120
      $region34: #{convlstm_forward.1} parent=27 // pred_check_branch
        %5123 = sbr.rel (%p5121) target = $region36
      $region35: #{convlstm_forward.1} parent=27 // pred_region
        %v5124 = vlaneseq
        %v5125 = vshrl.u32 %v5124, 7
        %v5126 = vadd.s32 %v5125, 8
        %v5127 = vadd.s32 %v5125, 16
        %v5128 = vadd.s32 %v5125, 24
        %v5129 = vadd.s32 %v5125, 32
        %v5130 = vadd.s32 %v5125, 40
        %v5131 = vadd.s32 %v5125, 48
        %v5132 = vadd.s32 %v5125, 56
        %v5133 = vadd.s32 %v5125, 64
        %v5134 = vadd.s32 %v5125, 72
        %v5135 = vadd.s32 %v5125, 80
        %v5136 = vadd.s32 %v5125, 88
        %v5137 = vadd.s32 %v5125, 96
        %v5138 = vadd.s32 %v5125, 104
        %v5139 = vadd.s32 %v5125, 112
        %v5140 = vadd.s32 %v5125, 120
        %v5141 = vadd.s32 %v5125, 128
        %v5142 = vadd.s32 %v5125, 136
        %v5143 = vadd.s32 %v5125, 144
        %v5144 = vadd.s32 %v5125, 152
        %v5145 = vadd.s32 %v5125, 160
        %v5146 = vadd.s32 %v5125, 168
        %v5147 = vadd.s32 %v5125, 176
        %v5148 = vadd.s32 %v5125, 184
        %v5149 = vadd.s32 %v5125, 192
        %v5150 = vadd.s32 %v5125, 200
        %v5151 = vadd.s32 %v5125, 208
        %v5152 = vadd.s32 %v5125, 216
        %v5153 = vadd.s32 %v5125, 224
        %v5154 = vadd.s32 %v5125, 232
        %v5155 = vadd.s32 %v5125, 240
        %v5156 = vadd.s32 %v5125, 248
        %v5157 = vadd.s32 %v5125, 256
        %v5158 = vadd.s32 %v5125, 264
        %v5159 = vadd.s32 %v5125, 272
        %v5160 = vadd.s32 %v5125, 280
        %v5161 = vadd.s32 %v5125, 288
        %v5162 = vadd.s32 %v5125, 296
        %v5163 = vadd.s32 %v5125, 304
        %v5164 = vadd.s32 %v5125, 312
        %v5165 = vadd.s32 %v5125, 320
        %v5166 = vadd.s32 %v5125, 328
        %v5167 = vadd.s32 %v5125, 336
        %v5168 = vadd.s32 %v5125, 344
        %v5169 = vadd.s32 %v5125, 352
        %v5170 = vadd.s32 %v5125, 360
        %v5171 = vadd.s32 %v5125, 368
        %v5172 = vadd.s32 %v5125, 376
        %vm5173 = vcmp.lt.s32.totalorder %v5125, 0
        %v5174 = vsub.s32 0, %v5125
        %v5175 = vsel %vm5173, %v5174, %v5125
        %v5176 = vand.u32 %v5175, 65535
        %v5177 = vshrl.u32 %v5175, 16
        %v5179 = vmul.u32 %v5176, 43691
        %v5180 = vmul.u32 %v5176, 43690
        %v5181 = vmul.u32 %v5177, 43691
        %v5182 = vmul.u32 %v5177, 43690
        %v5183 = vshll.u32 %v5180, 16
        %v5184 = vshrl.u32 %v5180, 16
        %v5185 = vshll.u32 %v5181, 16
        %v5186 = vshrl.u32 %v5181, 16
        %vm5187 = vc.u32 %v5179, %v5183
        %v5188 = vsel %vm5187, 1, 0
        %v5189 = vadd.s32 %v5179, %v5183
        %v5190 = vadd.s32 %v5182, %v5188
        %vm5191 = vc.u32 %v5189, %v5185
        %v5192 = vsel %vm5191, 1, 0
        %v5193 = vadd.s32 %v5189, %v5185
        %v5194 = vadd.s32 %v5190, %v5192
        %v5195 = vadd.s32 %v5194, %v5184
        %v5196 = vadd.s32 %v5195, %v5186
        %v5197 = vshrl.u32 %v5196, 4
        %v5198 = vmul.u32 %v5197, 24
        %v5199 = vsub.s32 %v5175, %v5198
        %v5200 = vsub.s32 0, %v5199
        %v5201 = vsel %vm5173, %v5200, %v5199
        %vm5202 = vcmp.lt.s32.totalorder %v5126, 0
        %v5203 = vsub.s32 0, %v5126
        %v5204 = vsel %vm5202, %v5203, %v5126
        %v5205 = vand.u32 %v5204, 65535
        %v5206 = vshrl.u32 %v5204, 16
        %v5208 = vmul.u32 %v5205, 43691
        %v5209 = vmul.u32 %v5205, 43690
        %v5210 = vmul.u32 %v5206, 43691
        %v5211 = vmul.u32 %v5206, 43690
        %v5212 = vshll.u32 %v5209, 16
        %v5213 = vshrl.u32 %v5209, 16
        %v5214 = vshll.u32 %v5210, 16
        %v5215 = vshrl.u32 %v5210, 16
        %vm5216 = vc.u32 %v5208, %v5212
        %v5217 = vsel %vm5216, 1, 0
        %v5218 = vadd.s32 %v5208, %v5212
        %v5219 = vadd.s32 %v5211, %v5217
        %vm5220 = vc.u32 %v5218, %v5214
        %v5221 = vsel %vm5220, 1, 0
        %v5222 = vadd.s32 %v5218, %v5214
        %v5223 = vadd.s32 %v5219, %v5221
        %v5224 = vadd.s32 %v5223, %v5213
        %v5225 = vadd.s32 %v5224, %v5215
        %v5226 = vshrl.u32 %v5225, 4
        %v5227 = vmul.u32 %v5226, 24
        %v5228 = vsub.s32 %v5204, %v5227
        %v5229 = vsub.s32 0, %v5228
        %v5230 = vsel %vm5202, %v5229, %v5228
        %vm5231 = vcmp.lt.s32.totalorder %v5127, 0
        %v5232 = vsub.s32 0, %v5127
        %v5233 = vsel %vm5231, %v5232, %v5127
        %v5234 = vand.u32 %v5233, 65535
        %v5235 = vshrl.u32 %v5233, 16
        %v5237 = vmul.u32 %v5234, 43691
        %v5238 = vmul.u32 %v5234, 43690
        %v5239 = vmul.u32 %v5235, 43691
        %v5240 = vmul.u32 %v5235, 43690
        %v5241 = vshll.u32 %v5238, 16
        %v5242 = vshrl.u32 %v5238, 16
        %v5243 = vshll.u32 %v5239, 16
        %v5244 = vshrl.u32 %v5239, 16
        %vm5245 = vc.u32 %v5237, %v5241
        %v5246 = vsel %vm5245, 1, 0
        %v5247 = vadd.s32 %v5237, %v5241
        %v5248 = vadd.s32 %v5240, %v5246
        %vm5249 = vc.u32 %v5247, %v5243
        %v5250 = vsel %vm5249, 1, 0
        %v5251 = vadd.s32 %v5247, %v5243
        %v5252 = vadd.s32 %v5248, %v5250
        %v5253 = vadd.s32 %v5252, %v5242
        %v5254 = vadd.s32 %v5253, %v5244
        %v5255 = vshrl.u32 %v5254, 4
        %v5256 = vmul.u32 %v5255, 24
        %v5257 = vsub.s32 %v5233, %v5256
        %v5258 = vsub.s32 0, %v5257
        %v5259 = vsel %vm5231, %v5258, %v5257
        %vm5260 = vcmp.lt.s32.totalorder %v5128, 0
        %v5261 = vsub.s32 0, %v5128
        %v5262 = vsel %vm5260, %v5261, %v5128
        %v5263 = vand.u32 %v5262, 65535
        %v5264 = vshrl.u32 %v5262, 16
        %v5266 = vmul.u32 %v5263, 43691
        %v5267 = vmul.u32 %v5263, 43690
        %v5268 = vmul.u32 %v5264, 43691
        %v5269 = vmul.u32 %v5264, 43690
        %v5270 = vshll.u32 %v5267, 16
        %v5271 = vshrl.u32 %v5267, 16
        %v5272 = vshll.u32 %v5268, 16
        %v5273 = vshrl.u32 %v5268, 16
        %vm5274 = vc.u32 %v5266, %v5270
        %v5275 = vsel %vm5274, 1, 0
        %v5276 = vadd.s32 %v5266, %v5270
        %v5277 = vadd.s32 %v5269, %v5275
        %vm5278 = vc.u32 %v5276, %v5272
        %v5279 = vsel %vm5278, 1, 0
        %v5280 = vadd.s32 %v5276, %v5272
        %v5281 = vadd.s32 %v5277, %v5279
        %v5282 = vadd.s32 %v5281, %v5271
        %v5283 = vadd.s32 %v5282, %v5273
        %v5284 = vshrl.u32 %v5283, 4
        %v5285 = vmul.u32 %v5284, 24
        %v5286 = vsub.s32 %v5262, %v5285
        %v5287 = vsub.s32 0, %v5286
        %v5288 = vsel %vm5260, %v5287, %v5286
        %vm5289 = vcmp.lt.s32.totalorder %v5129, 0
        %v5290 = vsub.s32 0, %v5129
        %v5291 = vsel %vm5289, %v5290, %v5129
        %v5292 = vand.u32 %v5291, 65535
        %v5293 = vshrl.u32 %v5291, 16
        %v5295 = vmul.u32 %v5292, 43691
        %v5296 = vmul.u32 %v5292, 43690
        %v5297 = vmul.u32 %v5293, 43691
        %v5298 = vmul.u32 %v5293, 43690
        %v5299 = vshll.u32 %v5296, 16
        %v5300 = vshrl.u32 %v5296, 16
        %v5301 = vshll.u32 %v5297, 16
        %v5302 = vshrl.u32 %v5297, 16
        %vm5303 = vc.u32 %v5295, %v5299
        %v5304 = vsel %vm5303, 1, 0
        %v5305 = vadd.s32 %v5295, %v5299
        %v5306 = vadd.s32 %v5298, %v5304
        %vm5307 = vc.u32 %v5305, %v5301
        %v5308 = vsel %vm5307, 1, 0
        %v5309 = vadd.s32 %v5305, %v5301
        %v5310 = vadd.s32 %v5306, %v5308
        %v5311 = vadd.s32 %v5310, %v5300
        %v5312 = vadd.s32 %v5311, %v5302
        %v5313 = vshrl.u32 %v5312, 4
        %v5314 = vmul.u32 %v5313, 24
        %v5315 = vsub.s32 %v5291, %v5314
        %v5316 = vsub.s32 0, %v5315
        %v5317 = vsel %vm5289, %v5316, %v5315
        %vm5318 = vcmp.lt.s32.totalorder %v5130, 0
        %v5319 = vsub.s32 0, %v5130
        %v5320 = vsel %vm5318, %v5319, %v5130
        %v5321 = vand.u32 %v5320, 65535
        %v5322 = vshrl.u32 %v5320, 16
        %v5324 = vmul.u32 %v5321, 43691
        %v5325 = vmul.u32 %v5321, 43690
        %v5326 = vmul.u32 %v5322, 43691
        %v5327 = vmul.u32 %v5322, 43690
        %v5328 = vshll.u32 %v5325, 16
        %v5329 = vshrl.u32 %v5325, 16
        %v5330 = vshll.u32 %v5326, 16
        %v5331 = vshrl.u32 %v5326, 16
        %vm5332 = vc.u32 %v5324, %v5328
        %v5333 = vsel %vm5332, 1, 0
        %v5334 = vadd.s32 %v5324, %v5328
        %v5335 = vadd.s32 %v5327, %v5333
        %vm5336 = vc.u32 %v5334, %v5330
        %v5337 = vsel %vm5336, 1, 0
        %v5338 = vadd.s32 %v5334, %v5330
        %v5339 = vadd.s32 %v5335, %v5337
        %v5340 = vadd.s32 %v5339, %v5329
        %v5341 = vadd.s32 %v5340, %v5331
        %v5342 = vshrl.u32 %v5341, 4
        %v5343 = vmul.u32 %v5342, 24
        %v5344 = vsub.s32 %v5320, %v5343
        %v5345 = vsub.s32 0, %v5344
        %v5346 = vsel %vm5318, %v5345, %v5344
        %vm5347 = vcmp.lt.s32.totalorder %v5131, 0
        %v5348 = vsub.s32 0, %v5131
        %v5349 = vsel %vm5347, %v5348, %v5131
        %v5350 = vand.u32 %v5349, 65535
        %v5351 = vshrl.u32 %v5349, 16
        %v5353 = vmul.u32 %v5350, 43691
        %v5354 = vmul.u32 %v5350, 43690
        %v5355 = vmul.u32 %v5351, 43691
        %v5356 = vmul.u32 %v5351, 43690
        %v5357 = vshll.u32 %v5354, 16
        %v5358 = vshrl.u32 %v5354, 16
        %v5359 = vshll.u32 %v5355, 16
        %v5360 = vshrl.u32 %v5355, 16
        %vm5361 = vc.u32 %v5353, %v5357
        %v5362 = vsel %vm5361, 1, 0
        %v5363 = vadd.s32 %v5353, %v5357
        %v5364 = vadd.s32 %v5356, %v5362
        %vm5365 = vc.u32 %v5363, %v5359
        %v5366 = vsel %vm5365, 1, 0
        %v5367 = vadd.s32 %v5363, %v5359
        %v5368 = vadd.s32 %v5364, %v5366
        %v5369 = vadd.s32 %v5368, %v5358
        %v5370 = vadd.s32 %v5369, %v5360
        %v5371 = vshrl.u32 %v5370, 4
        %v5372 = vmul.u32 %v5371, 24
        %v5373 = vsub.s32 %v5349, %v5372
        %v5374 = vsub.s32 0, %v5373
        %v5375 = vsel %vm5347, %v5374, %v5373
        %vm5376 = vcmp.lt.s32.totalorder %v5132, 0
        %v5377 = vsub.s32 0, %v5132
        %v5378 = vsel %vm5376, %v5377, %v5132
        %v5379 = vand.u32 %v5378, 65535
        %v5380 = vshrl.u32 %v5378, 16
        %v5382 = vmul.u32 %v5379, 43691
        %v5383 = vmul.u32 %v5379, 43690
        %v5384 = vmul.u32 %v5380, 43691
        %v5385 = vmul.u32 %v5380, 43690
        %v5386 = vshll.u32 %v5383, 16
        %v5387 = vshrl.u32 %v5383, 16
        %v5388 = vshll.u32 %v5384, 16
        %v5389 = vshrl.u32 %v5384, 16
        %vm5390 = vc.u32 %v5382, %v5386
        %v5391 = vsel %vm5390, 1, 0
        %v5392 = vadd.s32 %v5382, %v5386
        %v5393 = vadd.s32 %v5385, %v5391
        %vm5394 = vc.u32 %v5392, %v5388
        %v5395 = vsel %vm5394, 1, 0
        %v5396 = vadd.s32 %v5392, %v5388
        %v5397 = vadd.s32 %v5393, %v5395
        %v5398 = vadd.s32 %v5397, %v5387
        %v5399 = vadd.s32 %v5398, %v5389
        %v5400 = vshrl.u32 %v5399, 4
        %v5401 = vmul.u32 %v5400, 24
        %v5402 = vsub.s32 %v5378, %v5401
        %v5403 = vsub.s32 0, %v5402
        %v5404 = vsel %vm5376, %v5403, %v5402
        %vm5405 = vcmp.lt.s32.totalorder %v5133, 0
        %v5406 = vsub.s32 0, %v5133
        %v5407 = vsel %vm5405, %v5406, %v5133
        %v5408 = vand.u32 %v5407, 65535
        %v5409 = vshrl.u32 %v5407, 16
        %v5411 = vmul.u32 %v5408, 43691
        %v5412 = vmul.u32 %v5408, 43690
        %v5413 = vmul.u32 %v5409, 43691
        %v5414 = vmul.u32 %v5409, 43690
        %v5415 = vshll.u32 %v5412, 16
        %v5416 = vshrl.u32 %v5412, 16
        %v5417 = vshll.u32 %v5413, 16
        %v5418 = vshrl.u32 %v5413, 16
        %vm5419 = vc.u32 %v5411, %v5415
        %v5420 = vsel %vm5419, 1, 0
        %v5421 = vadd.s32 %v5411, %v5415
        %v5422 = vadd.s32 %v5414, %v5420
        %vm5423 = vc.u32 %v5421, %v5417
        %v5424 = vsel %vm5423, 1, 0
        %v5425 = vadd.s32 %v5421, %v5417
        %v5426 = vadd.s32 %v5422, %v5424
        %v5427 = vadd.s32 %v5426, %v5416
        %v5428 = vadd.s32 %v5427, %v5418
        %v5429 = vshrl.u32 %v5428, 4
        %v5430 = vmul.u32 %v5429, 24
        %v5431 = vsub.s32 %v5407, %v5430
        %v5432 = vsub.s32 0, %v5431
        %v5433 = vsel %vm5405, %v5432, %v5431
        %vm5434 = vcmp.lt.s32.totalorder %v5134, 0
        %v5435 = vsub.s32 0, %v5134
        %v5436 = vsel %vm5434, %v5435, %v5134
        %v5437 = vand.u32 %v5436, 65535
        %v5438 = vshrl.u32 %v5436, 16
        %v5440 = vmul.u32 %v5437, 43691
        %v5441 = vmul.u32 %v5437, 43690
        %v5442 = vmul.u32 %v5438, 43691
        %v5443 = vmul.u32 %v5438, 43690
        %v5444 = vshll.u32 %v5441, 16
        %v5445 = vshrl.u32 %v5441, 16
        %v5446 = vshll.u32 %v5442, 16
        %v5447 = vshrl.u32 %v5442, 16
        %vm5448 = vc.u32 %v5440, %v5444
        %v5449 = vsel %vm5448, 1, 0
        %v5450 = vadd.s32 %v5440, %v5444
        %v5451 = vadd.s32 %v5443, %v5449
        %vm5452 = vc.u32 %v5450, %v5446
        %v5453 = vsel %vm5452, 1, 0
        %v5454 = vadd.s32 %v5450, %v5446
        %v5455 = vadd.s32 %v5451, %v5453
        %v5456 = vadd.s32 %v5455, %v5445
        %v5457 = vadd.s32 %v5456, %v5447
        %v5458 = vshrl.u32 %v5457, 4
        %v5459 = vmul.u32 %v5458, 24
        %v5460 = vsub.s32 %v5436, %v5459
        %v5461 = vsub.s32 0, %v5460
        %v5462 = vsel %vm5434, %v5461, %v5460
        %vm5463 = vcmp.lt.s32.totalorder %v5135, 0
        %v5464 = vsub.s32 0, %v5135
        %v5465 = vsel %vm5463, %v5464, %v5135
        %v5466 = vand.u32 %v5465, 65535
        %v5467 = vshrl.u32 %v5465, 16
        %v5469 = vmul.u32 %v5466, 43691
        %v5470 = vmul.u32 %v5466, 43690
        %v5471 = vmul.u32 %v5467, 43691
        %v5472 = vmul.u32 %v5467, 43690
        %v5473 = vshll.u32 %v5470, 16
        %v5474 = vshrl.u32 %v5470, 16
        %v5475 = vshll.u32 %v5471, 16
        %v5476 = vshrl.u32 %v5471, 16
        %vm5477 = vc.u32 %v5469, %v5473
        %v5478 = vsel %vm5477, 1, 0
        %v5479 = vadd.s32 %v5469, %v5473
        %v5480 = vadd.s32 %v5472, %v5478
        %vm5481 = vc.u32 %v5479, %v5475
        %v5482 = vsel %vm5481, 1, 0
        %v5483 = vadd.s32 %v5479, %v5475
        %v5484 = vadd.s32 %v5480, %v5482
        %v5485 = vadd.s32 %v5484, %v5474
        %v5486 = vadd.s32 %v5485, %v5476
        %v5487 = vshrl.u32 %v5486, 4
        %v5488 = vmul.u32 %v5487, 24
        %v5489 = vsub.s32 %v5465, %v5488
        %v5490 = vsub.s32 0, %v5489
        %v5491 = vsel %vm5463, %v5490, %v5489
        %vm5492 = vcmp.lt.s32.totalorder %v5136, 0
        %v5493 = vsub.s32 0, %v5136
        %v5494 = vsel %vm5492, %v5493, %v5136
        %v5495 = vand.u32 %v5494, 65535
        %v5496 = vshrl.u32 %v5494, 16
        %v5498 = vmul.u32 %v5495, 43691
        %v5499 = vmul.u32 %v5495, 43690
        %v5500 = vmul.u32 %v5496, 43691
        %v5501 = vmul.u32 %v5496, 43690
        %v5502 = vshll.u32 %v5499, 16
        %v5503 = vshrl.u32 %v5499, 16
        %v5504 = vshll.u32 %v5500, 16
        %v5505 = vshrl.u32 %v5500, 16
        %vm5506 = vc.u32 %v5498, %v5502
        %v5507 = vsel %vm5506, 1, 0
        %v5508 = vadd.s32 %v5498, %v5502
        %v5509 = vadd.s32 %v5501, %v5507
        %vm5510 = vc.u32 %v5508, %v5504
        %v5511 = vsel %vm5510, 1, 0
        %v5512 = vadd.s32 %v5508, %v5504
        %v5513 = vadd.s32 %v5509, %v5511
        %v5514 = vadd.s32 %v5513, %v5503
        %v5515 = vadd.s32 %v5514, %v5505
        %v5516 = vshrl.u32 %v5515, 4
        %v5517 = vmul.u32 %v5516, 24
        %v5518 = vsub.s32 %v5494, %v5517
        %v5519 = vsub.s32 0, %v5518
        %v5520 = vsel %vm5492, %v5519, %v5518
        %vm5521 = vcmp.lt.s32.totalorder %v5137, 0
        %v5522 = vsub.s32 0, %v5137
        %v5523 = vsel %vm5521, %v5522, %v5137
        %v5524 = vand.u32 %v5523, 65535
        %v5525 = vshrl.u32 %v5523, 16
        %v5527 = vmul.u32 %v5524, 43691
        %v5528 = vmul.u32 %v5524, 43690
        %v5529 = vmul.u32 %v5525, 43691
        %v5530 = vmul.u32 %v5525, 43690
        %v5531 = vshll.u32 %v5528, 16
        %v5532 = vshrl.u32 %v5528, 16
        %v5533 = vshll.u32 %v5529, 16
        %v5534 = vshrl.u32 %v5529, 16
        %vm5535 = vc.u32 %v5527, %v5531
        %v5536 = vsel %vm5535, 1, 0
        %v5537 = vadd.s32 %v5527, %v5531
        %v5538 = vadd.s32 %v5530, %v5536
        %vm5539 = vc.u32 %v5537, %v5533
        %v5540 = vsel %vm5539, 1, 0
        %v5541 = vadd.s32 %v5537, %v5533
        %v5542 = vadd.s32 %v5538, %v5540
        %v5543 = vadd.s32 %v5542, %v5532
        %v5544 = vadd.s32 %v5543, %v5534
        %v5545 = vshrl.u32 %v5544, 4
        %v5546 = vmul.u32 %v5545, 24
        %v5547 = vsub.s32 %v5523, %v5546
        %v5548 = vsub.s32 0, %v5547
        %v5549 = vsel %vm5521, %v5548, %v5547
        %vm5550 = vcmp.lt.s32.totalorder %v5138, 0
        %v5551 = vsub.s32 0, %v5138
        %v5552 = vsel %vm5550, %v5551, %v5138
        %v5553 = vand.u32 %v5552, 65535
        %v5554 = vshrl.u32 %v5552, 16
        %v5556 = vmul.u32 %v5553, 43691
        %v5557 = vmul.u32 %v5553, 43690
        %v5558 = vmul.u32 %v5554, 43691
        %v5559 = vmul.u32 %v5554, 43690
        %v5560 = vshll.u32 %v5557, 16
        %v5561 = vshrl.u32 %v5557, 16
        %v5562 = vshll.u32 %v5558, 16
        %v5563 = vshrl.u32 %v5558, 16
        %vm5564 = vc.u32 %v5556, %v5560
        %v5565 = vsel %vm5564, 1, 0
        %v5566 = vadd.s32 %v5556, %v5560
        %v5567 = vadd.s32 %v5559, %v5565
        %vm5568 = vc.u32 %v5566, %v5562
        %v5569 = vsel %vm5568, 1, 0
        %v5570 = vadd.s32 %v5566, %v5562
        %v5571 = vadd.s32 %v5567, %v5569
        %v5572 = vadd.s32 %v5571, %v5561
        %v5573 = vadd.s32 %v5572, %v5563
        %v5574 = vshrl.u32 %v5573, 4
        %v5575 = vmul.u32 %v5574, 24
        %v5576 = vsub.s32 %v5552, %v5575
        %v5577 = vsub.s32 0, %v5576
        %v5578 = vsel %vm5550, %v5577, %v5576
        %vm5579 = vcmp.lt.s32.totalorder %v5139, 0
        %v5580 = vsub.s32 0, %v5139
        %v5581 = vsel %vm5579, %v5580, %v5139
        %v5582 = vand.u32 %v5581, 65535
        %v5583 = vshrl.u32 %v5581, 16
        %v5585 = vmul.u32 %v5582, 43691
        %v5586 = vmul.u32 %v5582, 43690
        %v5587 = vmul.u32 %v5583, 43691
        %v5588 = vmul.u32 %v5583, 43690
        %v5589 = vshll.u32 %v5586, 16
        %v5590 = vshrl.u32 %v5586, 16
        %v5591 = vshll.u32 %v5587, 16
        %v5592 = vshrl.u32 %v5587, 16
        %vm5593 = vc.u32 %v5585, %v5589
        %v5594 = vsel %vm5593, 1, 0
        %v5595 = vadd.s32 %v5585, %v5589
        %v5596 = vadd.s32 %v5588, %v5594
        %vm5597 = vc.u32 %v5595, %v5591
        %v5598 = vsel %vm5597, 1, 0
        %v5599 = vadd.s32 %v5595, %v5591
        %v5600 = vadd.s32 %v5596, %v5598
        %v5601 = vadd.s32 %v5600, %v5590
        %v5602 = vadd.s32 %v5601, %v5592
        %v5603 = vshrl.u32 %v5602, 4
        %v5604 = vmul.u32 %v5603, 24
        %v5605 = vsub.s32 %v5581, %v5604
        %v5606 = vsub.s32 0, %v5605
        %v5607 = vsel %vm5579, %v5606, %v5605
        %vm5608 = vcmp.lt.s32.totalorder %v5140, 0
        %v5609 = vsub.s32 0, %v5140
        %v5610 = vsel %vm5608, %v5609, %v5140
        %v5611 = vand.u32 %v5610, 65535
        %v5612 = vshrl.u32 %v5610, 16
        %v5614 = vmul.u32 %v5611, 43691
        %v5615 = vmul.u32 %v5611, 43690
        %v5616 = vmul.u32 %v5612, 43691
        %v5617 = vmul.u32 %v5612, 43690
        %v5618 = vshll.u32 %v5615, 16
        %v5619 = vshrl.u32 %v5615, 16
        %v5620 = vshll.u32 %v5616, 16
        %v5621 = vshrl.u32 %v5616, 16
        %vm5622 = vc.u32 %v5614, %v5618
        %v5623 = vsel %vm5622, 1, 0
        %v5624 = vadd.s32 %v5614, %v5618
        %v5625 = vadd.s32 %v5617, %v5623
        %vm5626 = vc.u32 %v5624, %v5620
        %v5627 = vsel %vm5626, 1, 0
        %v5628 = vadd.s32 %v5624, %v5620
        %v5629 = vadd.s32 %v5625, %v5627
        %v5630 = vadd.s32 %v5629, %v5619
        %v5631 = vadd.s32 %v5630, %v5621
        %v5632 = vshrl.u32 %v5631, 4
        %v5633 = vmul.u32 %v5632, 24
        %v5634 = vsub.s32 %v5610, %v5633
        %v5635 = vsub.s32 0, %v5634
        %v5636 = vsel %vm5608, %v5635, %v5634
        %vm5637 = vcmp.lt.s32.totalorder %v5141, 0
        %v5638 = vsub.s32 0, %v5141
        %v5639 = vsel %vm5637, %v5638, %v5141
        %v5640 = vand.u32 %v5639, 65535
        %v5641 = vshrl.u32 %v5639, 16
        %v5643 = vmul.u32 %v5640, 43691
        %v5644 = vmul.u32 %v5640, 43690
        %v5645 = vmul.u32 %v5641, 43691
        %v5646 = vmul.u32 %v5641, 43690
        %v5647 = vshll.u32 %v5644, 16
        %v5648 = vshrl.u32 %v5644, 16
        %v5649 = vshll.u32 %v5645, 16
        %v5650 = vshrl.u32 %v5645, 16
        %vm5651 = vc.u32 %v5643, %v5647
        %v5652 = vsel %vm5651, 1, 0
        %v5653 = vadd.s32 %v5643, %v5647
        %v5654 = vadd.s32 %v5646, %v5652
        %vm5655 = vc.u32 %v5653, %v5649
        %v5656 = vsel %vm5655, 1, 0
        %v5657 = vadd.s32 %v5653, %v5649
        %v5658 = vadd.s32 %v5654, %v5656
        %v5659 = vadd.s32 %v5658, %v5648
        %v5660 = vadd.s32 %v5659, %v5650
        %v5661 = vshrl.u32 %v5660, 4
        %v5662 = vmul.u32 %v5661, 24
        %v5663 = vsub.s32 %v5639, %v5662
        %v5664 = vsub.s32 0, %v5663
        %v5665 = vsel %vm5637, %v5664, %v5663
        %vm5666 = vcmp.lt.s32.totalorder %v5142, 0
        %v5667 = vsub.s32 0, %v5142
        %v5668 = vsel %vm5666, %v5667, %v5142
        %v5669 = vand.u32 %v5668, 65535
        %v5670 = vshrl.u32 %v5668, 16
        %v5672 = vmul.u32 %v5669, 43691
        %v5673 = vmul.u32 %v5669, 43690
        %v5674 = vmul.u32 %v5670, 43691
        %v5675 = vmul.u32 %v5670, 43690
        %v5676 = vshll.u32 %v5673, 16
        %v5677 = vshrl.u32 %v5673, 16
        %v5678 = vshll.u32 %v5674, 16
        %v5679 = vshrl.u32 %v5674, 16
        %vm5680 = vc.u32 %v5672, %v5676
        %v5681 = vsel %vm5680, 1, 0
        %v5682 = vadd.s32 %v5672, %v5676
        %v5683 = vadd.s32 %v5675, %v5681
        %vm5684 = vc.u32 %v5682, %v5678
        %v5685 = vsel %vm5684, 1, 0
        %v5686 = vadd.s32 %v5682, %v5678
        %v5687 = vadd.s32 %v5683, %v5685
        %v5688 = vadd.s32 %v5687, %v5677
        %v5689 = vadd.s32 %v5688, %v5679
        %v5690 = vshrl.u32 %v5689, 4
        %v5691 = vmul.u32 %v5690, 24
        %v5692 = vsub.s32 %v5668, %v5691
        %v5693 = vsub.s32 0, %v5692
        %v5694 = vsel %vm5666, %v5693, %v5692
        %vm5695 = vcmp.lt.s32.totalorder %v5143, 0
        %v5696 = vsub.s32 0, %v5143
        %v5697 = vsel %vm5695, %v5696, %v5143
        %v5698 = vand.u32 %v5697, 65535
        %v5699 = vshrl.u32 %v5697, 16
        %v5701 = vmul.u32 %v5698, 43691
        %v5702 = vmul.u32 %v5698, 43690
        %v5703 = vmul.u32 %v5699, 43691
        %v5704 = vmul.u32 %v5699, 43690
        %v5705 = vshll.u32 %v5702, 16
        %v5706 = vshrl.u32 %v5702, 16
        %v5707 = vshll.u32 %v5703, 16
        %v5708 = vshrl.u32 %v5703, 16
        %vm5709 = vc.u32 %v5701, %v5705
        %v5710 = vsel %vm5709, 1, 0
        %v5711 = vadd.s32 %v5701, %v5705
        %v5712 = vadd.s32 %v5704, %v5710
        %vm5713 = vc.u32 %v5711, %v5707
        %v5714 = vsel %vm5713, 1, 0
        %v5715 = vadd.s32 %v5711, %v5707
        %v5716 = vadd.s32 %v5712, %v5714
        %v5717 = vadd.s32 %v5716, %v5706
        %v5718 = vadd.s32 %v5717, %v5708
        %v5719 = vshrl.u32 %v5718, 4
        %v5720 = vmul.u32 %v5719, 24
        %v5721 = vsub.s32 %v5697, %v5720
        %v5722 = vsub.s32 0, %v5721
        %v5723 = vsel %vm5695, %v5722, %v5721
        %vm5724 = vcmp.lt.s32.totalorder %v5144, 0
        %v5725 = vsub.s32 0, %v5144
        %v5726 = vsel %vm5724, %v5725, %v5144
        %v5727 = vand.u32 %v5726, 65535
        %v5728 = vshrl.u32 %v5726, 16
        %v5730 = vmul.u32 %v5727, 43691
        %v5731 = vmul.u32 %v5727, 43690
        %v5732 = vmul.u32 %v5728, 43691
        %v5733 = vmul.u32 %v5728, 43690
        %v5734 = vshll.u32 %v5731, 16
        %v5735 = vshrl.u32 %v5731, 16
        %v5736 = vshll.u32 %v5732, 16
        %v5737 = vshrl.u32 %v5732, 16
        %vm5738 = vc.u32 %v5730, %v5734
        %v5739 = vsel %vm5738, 1, 0
        %v5740 = vadd.s32 %v5730, %v5734
        %v5741 = vadd.s32 %v5733, %v5739
        %vm5742 = vc.u32 %v5740, %v5736
        %v5743 = vsel %vm5742, 1, 0
        %v5744 = vadd.s32 %v5740, %v5736
        %v5745 = vadd.s32 %v5741, %v5743
        %v5746 = vadd.s32 %v5745, %v5735
        %v5747 = vadd.s32 %v5746, %v5737
        %v5748 = vshrl.u32 %v5747, 4
        %v5749 = vmul.u32 %v5748, 24
        %v5750 = vsub.s32 %v5726, %v5749
        %v5751 = vsub.s32 0, %v5750
        %v5752 = vsel %vm5724, %v5751, %v5750
        %vm5753 = vcmp.lt.s32.totalorder %v5145, 0
        %v5754 = vsub.s32 0, %v5145
        %v5755 = vsel %vm5753, %v5754, %v5145
        %v5756 = vand.u32 %v5755, 65535
        %v5757 = vshrl.u32 %v5755, 16
        %v5759 = vmul.u32 %v5756, 43691
        %v5760 = vmul.u32 %v5756, 43690
        %v5761 = vmul.u32 %v5757, 43691
        %v5762 = vmul.u32 %v5757, 43690
        %v5763 = vshll.u32 %v5760, 16
        %v5764 = vshrl.u32 %v5760, 16
        %v5765 = vshll.u32 %v5761, 16
        %v5766 = vshrl.u32 %v5761, 16
        %vm5767 = vc.u32 %v5759, %v5763
        %v5768 = vsel %vm5767, 1, 0
        %v5769 = vadd.s32 %v5759, %v5763
        %v5770 = vadd.s32 %v5762, %v5768
        %vm5771 = vc.u32 %v5769, %v5765
        %v5772 = vsel %vm5771, 1, 0
        %v5773 = vadd.s32 %v5769, %v5765
        %v5774 = vadd.s32 %v5770, %v5772
        %v5775 = vadd.s32 %v5774, %v5764
        %v5776 = vadd.s32 %v5775, %v5766
        %v5777 = vshrl.u32 %v5776, 4
        %v5778 = vmul.u32 %v5777, 24
        %v5779 = vsub.s32 %v5755, %v5778
        %v5780 = vsub.s32 0, %v5779
        %v5781 = vsel %vm5753, %v5780, %v5779
        %vm5782 = vcmp.lt.s32.totalorder %v5146, 0
        %v5783 = vsub.s32 0, %v5146
        %v5784 = vsel %vm5782, %v5783, %v5146
        %v5785 = vand.u32 %v5784, 65535
        %v5786 = vshrl.u32 %v5784, 16
        %v5788 = vmul.u32 %v5785, 43691
        %v5789 = vmul.u32 %v5785, 43690
        %v5790 = vmul.u32 %v5786, 43691
        %v5791 = vmul.u32 %v5786, 43690
        %v5792 = vshll.u32 %v5789, 16
        %v5793 = vshrl.u32 %v5789, 16
        %v5794 = vshll.u32 %v5790, 16
        %v5795 = vshrl.u32 %v5790, 16
        %vm5796 = vc.u32 %v5788, %v5792
        %v5797 = vsel %vm5796, 1, 0
        %v5798 = vadd.s32 %v5788, %v5792
        %v5799 = vadd.s32 %v5791, %v5797
        %vm5800 = vc.u32 %v5798, %v5794
        %v5801 = vsel %vm5800, 1, 0
        %v5802 = vadd.s32 %v5798, %v5794
        %v5803 = vadd.s32 %v5799, %v5801
        %v5804 = vadd.s32 %v5803, %v5793
        %v5805 = vadd.s32 %v5804, %v5795
        %v5806 = vshrl.u32 %v5805, 4
        %v5807 = vmul.u32 %v5806, 24
        %v5808 = vsub.s32 %v5784, %v5807
        %v5809 = vsub.s32 0, %v5808
        %v5810 = vsel %vm5782, %v5809, %v5808
        %vm5811 = vcmp.lt.s32.totalorder %v5147, 0
        %v5812 = vsub.s32 0, %v5147
        %v5813 = vsel %vm5811, %v5812, %v5147
        %v5814 = vand.u32 %v5813, 65535
        %v5815 = vshrl.u32 %v5813, 16
        %v5817 = vmul.u32 %v5814, 43691
        %v5818 = vmul.u32 %v5814, 43690
        %v5819 = vmul.u32 %v5815, 43691
        %v5820 = vmul.u32 %v5815, 43690
        %v5821 = vshll.u32 %v5818, 16
        %v5822 = vshrl.u32 %v5818, 16
        %v5823 = vshll.u32 %v5819, 16
        %v5824 = vshrl.u32 %v5819, 16
        %vm5825 = vc.u32 %v5817, %v5821
        %v5826 = vsel %vm5825, 1, 0
        %v5827 = vadd.s32 %v5817, %v5821
        %v5828 = vadd.s32 %v5820, %v5826
        %vm5829 = vc.u32 %v5827, %v5823
        %v5830 = vsel %vm5829, 1, 0
        %v5831 = vadd.s32 %v5827, %v5823
        %v5832 = vadd.s32 %v5828, %v5830
        %v5833 = vadd.s32 %v5832, %v5822
        %v5834 = vadd.s32 %v5833, %v5824
        %v5835 = vshrl.u32 %v5834, 4
        %v5836 = vmul.u32 %v5835, 24
        %v5837 = vsub.s32 %v5813, %v5836
        %v5838 = vsub.s32 0, %v5837
        %v5839 = vsel %vm5811, %v5838, %v5837
        %vm5840 = vcmp.lt.s32.totalorder %v5148, 0
        %v5841 = vsub.s32 0, %v5148
        %v5842 = vsel %vm5840, %v5841, %v5148
        %v5843 = vand.u32 %v5842, 65535
        %v5844 = vshrl.u32 %v5842, 16
        %v5846 = vmul.u32 %v5843, 43691
        %v5847 = vmul.u32 %v5843, 43690
        %v5848 = vmul.u32 %v5844, 43691
        %v5849 = vmul.u32 %v5844, 43690
        %v5850 = vshll.u32 %v5847, 16
        %v5851 = vshrl.u32 %v5847, 16
        %v5852 = vshll.u32 %v5848, 16
        %v5853 = vshrl.u32 %v5848, 16
        %vm5854 = vc.u32 %v5846, %v5850
        %v5855 = vsel %vm5854, 1, 0
        %v5856 = vadd.s32 %v5846, %v5850
        %v5857 = vadd.s32 %v5849, %v5855
        %vm5858 = vc.u32 %v5856, %v5852
        %v5859 = vsel %vm5858, 1, 0
        %v5860 = vadd.s32 %v5856, %v5852
        %v5861 = vadd.s32 %v5857, %v5859
        %v5862 = vadd.s32 %v5861, %v5851
        %v5863 = vadd.s32 %v5862, %v5853
        %v5864 = vshrl.u32 %v5863, 4
        %v5865 = vmul.u32 %v5864, 24
        %v5866 = vsub.s32 %v5842, %v5865
        %v5867 = vsub.s32 0, %v5866
        %v5868 = vsel %vm5840, %v5867, %v5866
        %vm5869 = vcmp.lt.s32.totalorder %v5149, 0
        %v5870 = vsub.s32 0, %v5149
        %v5871 = vsel %vm5869, %v5870, %v5149
        %v5872 = vand.u32 %v5871, 65535
        %v5873 = vshrl.u32 %v5871, 16
        %v5875 = vmul.u32 %v5872, 43691
        %v5876 = vmul.u32 %v5872, 43690
        %v5877 = vmul.u32 %v5873, 43691
        %v5878 = vmul.u32 %v5873, 43690
        %v5879 = vshll.u32 %v5876, 16
        %v5880 = vshrl.u32 %v5876, 16
        %v5881 = vshll.u32 %v5877, 16
        %v5882 = vshrl.u32 %v5877, 16
        %vm5883 = vc.u32 %v5875, %v5879
        %v5884 = vsel %vm5883, 1, 0
        %v5885 = vadd.s32 %v5875, %v5879
        %v5886 = vadd.s32 %v5878, %v5884
        %vm5887 = vc.u32 %v5885, %v5881
        %v5888 = vsel %vm5887, 1, 0
        %v5889 = vadd.s32 %v5885, %v5881
        %v5890 = vadd.s32 %v5886, %v5888
        %v5891 = vadd.s32 %v5890, %v5880
        %v5892 = vadd.s32 %v5891, %v5882
        %v5893 = vshrl.u32 %v5892, 4
        %v5894 = vmul.u32 %v5893, 24
        %v5895 = vsub.s32 %v5871, %v5894
        %v5896 = vsub.s32 0, %v5895
        %v5897 = vsel %vm5869, %v5896, %v5895
        %vm5898 = vcmp.lt.s32.totalorder %v5150, 0
        %v5899 = vsub.s32 0, %v5150
        %v5900 = vsel %vm5898, %v5899, %v5150
        %v5901 = vand.u32 %v5900, 65535
        %v5902 = vshrl.u32 %v5900, 16
        %v5904 = vmul.u32 %v5901, 43691
        %v5905 = vmul.u32 %v5901, 43690
        %v5906 = vmul.u32 %v5902, 43691
        %v5907 = vmul.u32 %v5902, 43690
        %v5908 = vshll.u32 %v5905, 16
        %v5909 = vshrl.u32 %v5905, 16
        %v5910 = vshll.u32 %v5906, 16
        %v5911 = vshrl.u32 %v5906, 16
        %vm5912 = vc.u32 %v5904, %v5908
        %v5913 = vsel %vm5912, 1, 0
        %v5914 = vadd.s32 %v5904, %v5908
        %v5915 = vadd.s32 %v5907, %v5913
        %vm5916 = vc.u32 %v5914, %v5910
        %v5917 = vsel %vm5916, 1, 0
        %v5918 = vadd.s32 %v5914, %v5910
        %v5919 = vadd.s32 %v5915, %v5917
        %v5920 = vadd.s32 %v5919, %v5909
        %v5921 = vadd.s32 %v5920, %v5911
        %v5922 = vshrl.u32 %v5921, 4
        %v5923 = vmul.u32 %v5922, 24
        %v5924 = vsub.s32 %v5900, %v5923
        %v5925 = vsub.s32 0, %v5924
        %v5926 = vsel %vm5898, %v5925, %v5924
        %vm5927 = vcmp.lt.s32.totalorder %v5151, 0
        %v5928 = vsub.s32 0, %v5151
        %v5929 = vsel %vm5927, %v5928, %v5151
        %v5930 = vand.u32 %v5929, 65535
        %v5931 = vshrl.u32 %v5929, 16
        %v5933 = vmul.u32 %v5930, 43691
        %v5934 = vmul.u32 %v5930, 43690
        %v5935 = vmul.u32 %v5931, 43691
        %v5936 = vmul.u32 %v5931, 43690
        %v5937 = vshll.u32 %v5934, 16
        %v5938 = vshrl.u32 %v5934, 16
        %v5939 = vshll.u32 %v5935, 16
        %v5940 = vshrl.u32 %v5935, 16
        %vm5941 = vc.u32 %v5933, %v5937
        %v5942 = vsel %vm5941, 1, 0
        %v5943 = vadd.s32 %v5933, %v5937
        %v5944 = vadd.s32 %v5936, %v5942
        %vm5945 = vc.u32 %v5943, %v5939
        %v5946 = vsel %vm5945, 1, 0
        %v5947 = vadd.s32 %v5943, %v5939
        %v5948 = vadd.s32 %v5944, %v5946
        %v5949 = vadd.s32 %v5948, %v5938
        %v5950 = vadd.s32 %v5949, %v5940
        %v5951 = vshrl.u32 %v5950, 4
        %v5952 = vmul.u32 %v5951, 24
        %v5953 = vsub.s32 %v5929, %v5952
        %v5954 = vsub.s32 0, %v5953
        %v5955 = vsel %vm5927, %v5954, %v5953
        %vm5956 = vcmp.lt.s32.totalorder %v5152, 0
        %v5957 = vsub.s32 0, %v5152
        %v5958 = vsel %vm5956, %v5957, %v5152
        %v5959 = vand.u32 %v5958, 65535
        %v5960 = vshrl.u32 %v5958, 16
        %v5962 = vmul.u32 %v5959, 43691
        %v5963 = vmul.u32 %v5959, 43690
        %v5964 = vmul.u32 %v5960, 43691
        %v5965 = vmul.u32 %v5960, 43690
        %v5966 = vshll.u32 %v5963, 16
        %v5967 = vshrl.u32 %v5963, 16
        %v5968 = vshll.u32 %v5964, 16
        %v5969 = vshrl.u32 %v5964, 16
        %vm5970 = vc.u32 %v5962, %v5966
        %v5971 = vsel %vm5970, 1, 0
        %v5972 = vadd.s32 %v5962, %v5966
        %v5973 = vadd.s32 %v5965, %v5971
        %vm5974 = vc.u32 %v5972, %v5968
        %v5975 = vsel %vm5974, 1, 0
        %v5976 = vadd.s32 %v5972, %v5968
        %v5977 = vadd.s32 %v5973, %v5975
        %v5978 = vadd.s32 %v5977, %v5967
        %v5979 = vadd.s32 %v5978, %v5969
        %v5980 = vshrl.u32 %v5979, 4
        %v5981 = vmul.u32 %v5980, 24
        %v5982 = vsub.s32 %v5958, %v5981
        %v5983 = vsub.s32 0, %v5982
        %v5984 = vsel %vm5956, %v5983, %v5982
        %vm5985 = vcmp.lt.s32.totalorder %v5153, 0
        %v5986 = vsub.s32 0, %v5153
        %v5987 = vsel %vm5985, %v5986, %v5153
        %v5988 = vand.u32 %v5987, 65535
        %v5989 = vshrl.u32 %v5987, 16
        %v5991 = vmul.u32 %v5988, 43691
        %v5992 = vmul.u32 %v5988, 43690
        %v5993 = vmul.u32 %v5989, 43691
        %v5994 = vmul.u32 %v5989, 43690
        %v5995 = vshll.u32 %v5992, 16
        %v5996 = vshrl.u32 %v5992, 16
        %v5997 = vshll.u32 %v5993, 16
        %v5998 = vshrl.u32 %v5993, 16
        %vm5999 = vc.u32 %v5991, %v5995
        %v6000 = vsel %vm5999, 1, 0
        %v6001 = vadd.s32 %v5991, %v5995
        %v6002 = vadd.s32 %v5994, %v6000
        %vm6003 = vc.u32 %v6001, %v5997
        %v6004 = vsel %vm6003, 1, 0
        %v6005 = vadd.s32 %v6001, %v5997
        %v6006 = vadd.s32 %v6002, %v6004
        %v6007 = vadd.s32 %v6006, %v5996
        %v6008 = vadd.s32 %v6007, %v5998
        %v6009 = vshrl.u32 %v6008, 4
        %v6010 = vmul.u32 %v6009, 24
        %v6011 = vsub.s32 %v5987, %v6010
        %v6012 = vsub.s32 0, %v6011
        %v6013 = vsel %vm5985, %v6012, %v6011
        %vm6014 = vcmp.lt.s32.totalorder %v5154, 0
        %v6015 = vsub.s32 0, %v5154
        %v6016 = vsel %vm6014, %v6015, %v5154
        %v6017 = vand.u32 %v6016, 65535
        %v6018 = vshrl.u32 %v6016, 16
        %v6020 = vmul.u32 %v6017, 43691
        %v6021 = vmul.u32 %v6017, 43690
        %v6022 = vmul.u32 %v6018, 43691
        %v6023 = vmul.u32 %v6018, 43690
        %v6024 = vshll.u32 %v6021, 16
        %v6025 = vshrl.u32 %v6021, 16
        %v6026 = vshll.u32 %v6022, 16
        %v6027 = vshrl.u32 %v6022, 16
        %vm6028 = vc.u32 %v6020, %v6024
        %v6029 = vsel %vm6028, 1, 0
        %v6030 = vadd.s32 %v6020, %v6024
        %v6031 = vadd.s32 %v6023, %v6029
        %vm6032 = vc.u32 %v6030, %v6026
        %v6033 = vsel %vm6032, 1, 0
        %v6034 = vadd.s32 %v6030, %v6026
        %v6035 = vadd.s32 %v6031, %v6033
        %v6036 = vadd.s32 %v6035, %v6025
        %v6037 = vadd.s32 %v6036, %v6027
        %v6038 = vshrl.u32 %v6037, 4
        %v6039 = vmul.u32 %v6038, 24
        %v6040 = vsub.s32 %v6016, %v6039
        %v6041 = vsub.s32 0, %v6040
        %v6042 = vsel %vm6014, %v6041, %v6040
        %vm6043 = vcmp.lt.s32.totalorder %v5155, 0
        %v6044 = vsub.s32 0, %v5155
        %v6045 = vsel %vm6043, %v6044, %v5155
        %v6046 = vand.u32 %v6045, 65535
        %v6047 = vshrl.u32 %v6045, 16
        %v6049 = vmul.u32 %v6046, 43691
        %v6050 = vmul.u32 %v6046, 43690
        %v6051 = vmul.u32 %v6047, 43691
        %v6052 = vmul.u32 %v6047, 43690
        %v6053 = vshll.u32 %v6050, 16
        %v6054 = vshrl.u32 %v6050, 16
        %v6055 = vshll.u32 %v6051, 16
        %v6056 = vshrl.u32 %v6051, 16
        %vm6057 = vc.u32 %v6049, %v6053
        %v6058 = vsel %vm6057, 1, 0
        %v6059 = vadd.s32 %v6049, %v6053
        %v6060 = vadd.s32 %v6052, %v6058
        %vm6061 = vc.u32 %v6059, %v6055
        %v6062 = vsel %vm6061, 1, 0
        %v6063 = vadd.s32 %v6059, %v6055
        %v6064 = vadd.s32 %v6060, %v6062
        %v6065 = vadd.s32 %v6064, %v6054
        %v6066 = vadd.s32 %v6065, %v6056
        %v6067 = vshrl.u32 %v6066, 4
        %v6068 = vmul.u32 %v6067, 24
        %v6069 = vsub.s32 %v6045, %v6068
        %v6070 = vsub.s32 0, %v6069
        %v6071 = vsel %vm6043, %v6070, %v6069
        %vm6072 = vcmp.lt.s32.totalorder %v5156, 0
        %v6073 = vsub.s32 0, %v5156
        %v6074 = vsel %vm6072, %v6073, %v5156
        %v6075 = vand.u32 %v6074, 65535
        %v6076 = vshrl.u32 %v6074, 16
        %v6078 = vmul.u32 %v6075, 43691
        %v6079 = vmul.u32 %v6075, 43690
        %v6080 = vmul.u32 %v6076, 43691
        %v6081 = vmul.u32 %v6076, 43690
        %v6082 = vshll.u32 %v6079, 16
        %v6083 = vshrl.u32 %v6079, 16
        %v6084 = vshll.u32 %v6080, 16
        %v6085 = vshrl.u32 %v6080, 16
        %vm6086 = vc.u32 %v6078, %v6082
        %v6087 = vsel %vm6086, 1, 0
        %v6088 = vadd.s32 %v6078, %v6082
        %v6089 = vadd.s32 %v6081, %v6087
        %vm6090 = vc.u32 %v6088, %v6084
        %v6091 = vsel %vm6090, 1, 0
        %v6092 = vadd.s32 %v6088, %v6084
        %v6093 = vadd.s32 %v6089, %v6091
        %v6094 = vadd.s32 %v6093, %v6083
        %v6095 = vadd.s32 %v6094, %v6085
        %v6096 = vshrl.u32 %v6095, 4
        %v6097 = vmul.u32 %v6096, 24
        %v6098 = vsub.s32 %v6074, %v6097
        %v6099 = vsub.s32 0, %v6098
        %v6100 = vsel %vm6072, %v6099, %v6098
        %vm6101 = vcmp.lt.s32.totalorder %v5157, 0
        %v6102 = vsub.s32 0, %v5157
        %v6103 = vsel %vm6101, %v6102, %v5157
        %v6104 = vand.u32 %v6103, 65535
        %v6105 = vshrl.u32 %v6103, 16
        %v6107 = vmul.u32 %v6104, 43691
        %v6108 = vmul.u32 %v6104, 43690
        %v6109 = vmul.u32 %v6105, 43691
        %v6110 = vmul.u32 %v6105, 43690
        %v6111 = vshll.u32 %v6108, 16
        %v6112 = vshrl.u32 %v6108, 16
        %v6113 = vshll.u32 %v6109, 16
        %v6114 = vshrl.u32 %v6109, 16
        %vm6115 = vc.u32 %v6107, %v6111
        %v6116 = vsel %vm6115, 1, 0
        %v6117 = vadd.s32 %v6107, %v6111
        %v6118 = vadd.s32 %v6110, %v6116
        %vm6119 = vc.u32 %v6117, %v6113
        %v6120 = vsel %vm6119, 1, 0
        %v6121 = vadd.s32 %v6117, %v6113
        %v6122 = vadd.s32 %v6118, %v6120
        %v6123 = vadd.s32 %v6122, %v6112
        %v6124 = vadd.s32 %v6123, %v6114
        %v6125 = vshrl.u32 %v6124, 4
        %v6126 = vmul.u32 %v6125, 24
        %v6127 = vsub.s32 %v6103, %v6126
        %v6128 = vsub.s32 0, %v6127
        %v6129 = vsel %vm6101, %v6128, %v6127
        %vm6130 = vcmp.lt.s32.totalorder %v5158, 0
        %v6131 = vsub.s32 0, %v5158
        %v6132 = vsel %vm6130, %v6131, %v5158
        %v6133 = vand.u32 %v6132, 65535
        %v6134 = vshrl.u32 %v6132, 16
        %v6136 = vmul.u32 %v6133, 43691
        %v6137 = vmul.u32 %v6133, 43690
        %v6138 = vmul.u32 %v6134, 43691
        %v6139 = vmul.u32 %v6134, 43690
        %v6140 = vshll.u32 %v6137, 16
        %v6141 = vshrl.u32 %v6137, 16
        %v6142 = vshll.u32 %v6138, 16
        %v6143 = vshrl.u32 %v6138, 16
        %vm6144 = vc.u32 %v6136, %v6140
        %v6145 = vsel %vm6144, 1, 0
        %v6146 = vadd.s32 %v6136, %v6140
        %v6147 = vadd.s32 %v6139, %v6145
        %vm6148 = vc.u32 %v6146, %v6142
        %v6149 = vsel %vm6148, 1, 0
        %v6150 = vadd.s32 %v6146, %v6142
        %v6151 = vadd.s32 %v6147, %v6149
        %v6152 = vadd.s32 %v6151, %v6141
        %v6153 = vadd.s32 %v6152, %v6143
        %v6154 = vshrl.u32 %v6153, 4
        %v6155 = vmul.u32 %v6154, 24
        %v6156 = vsub.s32 %v6132, %v6155
        %v6157 = vsub.s32 0, %v6156
        %v6158 = vsel %vm6130, %v6157, %v6156
        %vm6159 = vcmp.lt.s32.totalorder %v5159, 0
        %v6160 = vsub.s32 0, %v5159
        %v6161 = vsel %vm6159, %v6160, %v5159
        %v6162 = vand.u32 %v6161, 65535
        %v6163 = vshrl.u32 %v6161, 16
        %v6165 = vmul.u32 %v6162, 43691
        %v6166 = vmul.u32 %v6162, 43690
        %v6167 = vmul.u32 %v6163, 43691
        %v6168 = vmul.u32 %v6163, 43690
        %v6169 = vshll.u32 %v6166, 16
        %v6170 = vshrl.u32 %v6166, 16
        %v6171 = vshll.u32 %v6167, 16
        %v6172 = vshrl.u32 %v6167, 16
        %vm6173 = vc.u32 %v6165, %v6169
        %v6174 = vsel %vm6173, 1, 0
        %v6175 = vadd.s32 %v6165, %v6169
        %v6176 = vadd.s32 %v6168, %v6174
        %vm6177 = vc.u32 %v6175, %v6171
        %v6178 = vsel %vm6177, 1, 0
        %v6179 = vadd.s32 %v6175, %v6171
        %v6180 = vadd.s32 %v6176, %v6178
        %v6181 = vadd.s32 %v6180, %v6170
        %v6182 = vadd.s32 %v6181, %v6172
        %v6183 = vshrl.u32 %v6182, 4
        %v6184 = vmul.u32 %v6183, 24
        %v6185 = vsub.s32 %v6161, %v6184
        %v6186 = vsub.s32 0, %v6185
        %v6187 = vsel %vm6159, %v6186, %v6185
        %vm6188 = vcmp.lt.s32.totalorder %v5160, 0
        %v6189 = vsub.s32 0, %v5160
        %v6190 = vsel %vm6188, %v6189, %v5160
        %v6191 = vand.u32 %v6190, 65535
        %v6192 = vshrl.u32 %v6190, 16
        %v6194 = vmul.u32 %v6191, 43691
        %v6195 = vmul.u32 %v6191, 43690
        %v6196 = vmul.u32 %v6192, 43691
        %v6197 = vmul.u32 %v6192, 43690
        %v6198 = vshll.u32 %v6195, 16
        %v6199 = vshrl.u32 %v6195, 16
        %v6200 = vshll.u32 %v6196, 16
        %v6201 = vshrl.u32 %v6196, 16
        %vm6202 = vc.u32 %v6194, %v6198
        %v6203 = vsel %vm6202, 1, 0
        %v6204 = vadd.s32 %v6194, %v6198
        %v6205 = vadd.s32 %v6197, %v6203
        %vm6206 = vc.u32 %v6204, %v6200
        %v6207 = vsel %vm6206, 1, 0
        %v6208 = vadd.s32 %v6204, %v6200
        %v6209 = vadd.s32 %v6205, %v6207
        %v6210 = vadd.s32 %v6209, %v6199
        %v6211 = vadd.s32 %v6210, %v6201
        %v6212 = vshrl.u32 %v6211, 4
        %v6213 = vmul.u32 %v6212, 24
        %v6214 = vsub.s32 %v6190, %v6213
        %v6215 = vsub.s32 0, %v6214
        %v6216 = vsel %vm6188, %v6215, %v6214
        %vm6217 = vcmp.lt.s32.totalorder %v5161, 0
        %v6218 = vsub.s32 0, %v5161
        %v6219 = vsel %vm6217, %v6218, %v5161
        %v6220 = vand.u32 %v6219, 65535
        %v6221 = vshrl.u32 %v6219, 16
        %v6223 = vmul.u32 %v6220, 43691
        %v6224 = vmul.u32 %v6220, 43690
        %v6225 = vmul.u32 %v6221, 43691
        %v6226 = vmul.u32 %v6221, 43690
        %v6227 = vshll.u32 %v6224, 16
        %v6228 = vshrl.u32 %v6224, 16
        %v6229 = vshll.u32 %v6225, 16
        %v6230 = vshrl.u32 %v6225, 16
        %vm6231 = vc.u32 %v6223, %v6227
        %v6232 = vsel %vm6231, 1, 0
        %v6233 = vadd.s32 %v6223, %v6227
        %v6234 = vadd.s32 %v6226, %v6232
        %vm6235 = vc.u32 %v6233, %v6229
        %v6236 = vsel %vm6235, 1, 0
        %v6237 = vadd.s32 %v6233, %v6229
        %v6238 = vadd.s32 %v6234, %v6236
        %v6239 = vadd.s32 %v6238, %v6228
        %v6240 = vadd.s32 %v6239, %v6230
        %v6241 = vshrl.u32 %v6240, 4
        %v6242 = vmul.u32 %v6241, 24
        %v6243 = vsub.s32 %v6219, %v6242
        %v6244 = vsub.s32 0, %v6243
        %v6245 = vsel %vm6217, %v6244, %v6243
        %vm6246 = vcmp.lt.s32.totalorder %v5162, 0
        %v6247 = vsub.s32 0, %v5162
        %v6248 = vsel %vm6246, %v6247, %v5162
        %v6249 = vand.u32 %v6248, 65535
        %v6250 = vshrl.u32 %v6248, 16
        %v6252 = vmul.u32 %v6249, 43691
        %v6253 = vmul.u32 %v6249, 43690
        %v6254 = vmul.u32 %v6250, 43691
        %v6255 = vmul.u32 %v6250, 43690
        %v6256 = vshll.u32 %v6253, 16
        %v6257 = vshrl.u32 %v6253, 16
        %v6258 = vshll.u32 %v6254, 16
        %v6259 = vshrl.u32 %v6254, 16
        %vm6260 = vc.u32 %v6252, %v6256
        %v6261 = vsel %vm6260, 1, 0
        %v6262 = vadd.s32 %v6252, %v6256
        %v6263 = vadd.s32 %v6255, %v6261
        %vm6264 = vc.u32 %v6262, %v6258
        %v6265 = vsel %vm6264, 1, 0
        %v6266 = vadd.s32 %v6262, %v6258
        %v6267 = vadd.s32 %v6263, %v6265
        %v6268 = vadd.s32 %v6267, %v6257
        %v6269 = vadd.s32 %v6268, %v6259
        %v6270 = vshrl.u32 %v6269, 4
        %v6271 = vmul.u32 %v6270, 24
        %v6272 = vsub.s32 %v6248, %v6271
        %v6273 = vsub.s32 0, %v6272
        %v6274 = vsel %vm6246, %v6273, %v6272
        %vm6275 = vcmp.lt.s32.totalorder %v5163, 0
        %v6276 = vsub.s32 0, %v5163
        %v6277 = vsel %vm6275, %v6276, %v5163
        %v6278 = vand.u32 %v6277, 65535
        %v6279 = vshrl.u32 %v6277, 16
        %v6281 = vmul.u32 %v6278, 43691
        %v6282 = vmul.u32 %v6278, 43690
        %v6283 = vmul.u32 %v6279, 43691
        %v6284 = vmul.u32 %v6279, 43690
        %v6285 = vshll.u32 %v6282, 16
        %v6286 = vshrl.u32 %v6282, 16
        %v6287 = vshll.u32 %v6283, 16
        %v6288 = vshrl.u32 %v6283, 16
        %vm6289 = vc.u32 %v6281, %v6285
        %v6290 = vsel %vm6289, 1, 0
        %v6291 = vadd.s32 %v6281, %v6285
        %v6292 = vadd.s32 %v6284, %v6290
        %vm6293 = vc.u32 %v6291, %v6287
        %v6294 = vsel %vm6293, 1, 0
        %v6295 = vadd.s32 %v6291, %v6287
        %v6296 = vadd.s32 %v6292, %v6294
        %v6297 = vadd.s32 %v6296, %v6286
        %v6298 = vadd.s32 %v6297, %v6288
        %v6299 = vshrl.u32 %v6298, 4
        %v6300 = vmul.u32 %v6299, 24
        %v6301 = vsub.s32 %v6277, %v6300
        %v6302 = vsub.s32 0, %v6301
        %v6303 = vsel %vm6275, %v6302, %v6301
        %vm6304 = vcmp.lt.s32.totalorder %v5164, 0
        %v6305 = vsub.s32 0, %v5164
        %v6306 = vsel %vm6304, %v6305, %v5164
        %v6307 = vand.u32 %v6306, 65535
        %v6308 = vshrl.u32 %v6306, 16
        %v6310 = vmul.u32 %v6307, 43691
        %v6311 = vmul.u32 %v6307, 43690
        %v6312 = vmul.u32 %v6308, 43691
        %v6313 = vmul.u32 %v6308, 43690
        %v6314 = vshll.u32 %v6311, 16
        %v6315 = vshrl.u32 %v6311, 16
        %v6316 = vshll.u32 %v6312, 16
        %v6317 = vshrl.u32 %v6312, 16
        %vm6318 = vc.u32 %v6310, %v6314
        %v6319 = vsel %vm6318, 1, 0
        %v6320 = vadd.s32 %v6310, %v6314
        %v6321 = vadd.s32 %v6313, %v6319
        %vm6322 = vc.u32 %v6320, %v6316
        %v6323 = vsel %vm6322, 1, 0
        %v6324 = vadd.s32 %v6320, %v6316
        %v6325 = vadd.s32 %v6321, %v6323
        %v6326 = vadd.s32 %v6325, %v6315
        %v6327 = vadd.s32 %v6326, %v6317
        %v6328 = vshrl.u32 %v6327, 4
        %v6329 = vmul.u32 %v6328, 24
        %v6330 = vsub.s32 %v6306, %v6329
        %v6331 = vsub.s32 0, %v6330
        %v6332 = vsel %vm6304, %v6331, %v6330
        %vm6333 = vcmp.lt.s32.totalorder %v5165, 0
        %v6334 = vsub.s32 0, %v5165
        %v6335 = vsel %vm6333, %v6334, %v5165
        %v6336 = vand.u32 %v6335, 65535
        %v6337 = vshrl.u32 %v6335, 16
        %v6339 = vmul.u32 %v6336, 43691
        %v6340 = vmul.u32 %v6336, 43690
        %v6341 = vmul.u32 %v6337, 43691
        %v6342 = vmul.u32 %v6337, 43690
        %v6343 = vshll.u32 %v6340, 16
        %v6344 = vshrl.u32 %v6340, 16
        %v6345 = vshll.u32 %v6341, 16
        %v6346 = vshrl.u32 %v6341, 16
        %vm6347 = vc.u32 %v6339, %v6343
        %v6348 = vsel %vm6347, 1, 0
        %v6349 = vadd.s32 %v6339, %v6343
        %v6350 = vadd.s32 %v6342, %v6348
        %vm6351 = vc.u32 %v6349, %v6345
        %v6352 = vsel %vm6351, 1, 0
        %v6353 = vadd.s32 %v6349, %v6345
        %v6354 = vadd.s32 %v6350, %v6352
        %v6355 = vadd.s32 %v6354, %v6344
        %v6356 = vadd.s32 %v6355, %v6346
        %v6357 = vshrl.u32 %v6356, 4
        %v6358 = vmul.u32 %v6357, 24
        %v6359 = vsub.s32 %v6335, %v6358
        %v6360 = vsub.s32 0, %v6359
        %v6361 = vsel %vm6333, %v6360, %v6359
        %vm6362 = vcmp.lt.s32.totalorder %v5166, 0
        %v6363 = vsub.s32 0, %v5166
        %v6364 = vsel %vm6362, %v6363, %v5166
        %v6365 = vand.u32 %v6364, 65535
        %v6366 = vshrl.u32 %v6364, 16
        %v6368 = vmul.u32 %v6365, 43691
        %v6369 = vmul.u32 %v6365, 43690
        %v6370 = vmul.u32 %v6366, 43691
        %v6371 = vmul.u32 %v6366, 43690
        %v6372 = vshll.u32 %v6369, 16
        %v6373 = vshrl.u32 %v6369, 16
        %v6374 = vshll.u32 %v6370, 16
        %v6375 = vshrl.u32 %v6370, 16
        %vm6376 = vc.u32 %v6368, %v6372
        %v6377 = vsel %vm6376, 1, 0
        %v6378 = vadd.s32 %v6368, %v6372
        %v6379 = vadd.s32 %v6371, %v6377
        %vm6380 = vc.u32 %v6378, %v6374
        %v6381 = vsel %vm6380, 1, 0
        %v6382 = vadd.s32 %v6378, %v6374
        %v6383 = vadd.s32 %v6379, %v6381
        %v6384 = vadd.s32 %v6383, %v6373
        %v6385 = vadd.s32 %v6384, %v6375
        %v6386 = vshrl.u32 %v6385, 4
        %v6387 = vmul.u32 %v6386, 24
        %v6388 = vsub.s32 %v6364, %v6387
        %v6389 = vsub.s32 0, %v6388
        %v6390 = vsel %vm6362, %v6389, %v6388
        %vm6391 = vcmp.lt.s32.totalorder %v5167, 0
        %v6392 = vsub.s32 0, %v5167
        %v6393 = vsel %vm6391, %v6392, %v5167
        %v6394 = vand.u32 %v6393, 65535
        %v6395 = vshrl.u32 %v6393, 16
        %v6397 = vmul.u32 %v6394, 43691
        %v6398 = vmul.u32 %v6394, 43690
        %v6399 = vmul.u32 %v6395, 43691
        %v6400 = vmul.u32 %v6395, 43690
        %v6401 = vshll.u32 %v6398, 16
        %v6402 = vshrl.u32 %v6398, 16
        %v6403 = vshll.u32 %v6399, 16
        %v6404 = vshrl.u32 %v6399, 16
        %vm6405 = vc.u32 %v6397, %v6401
        %v6406 = vsel %vm6405, 1, 0
        %v6407 = vadd.s32 %v6397, %v6401
        %v6408 = vadd.s32 %v6400, %v6406
        %vm6409 = vc.u32 %v6407, %v6403
        %v6410 = vsel %vm6409, 1, 0
        %v6411 = vadd.s32 %v6407, %v6403
        %v6412 = vadd.s32 %v6408, %v6410
        %v6413 = vadd.s32 %v6412, %v6402
        %v6414 = vadd.s32 %v6413, %v6404
        %v6415 = vshrl.u32 %v6414, 4
        %v6416 = vmul.u32 %v6415, 24
        %v6417 = vsub.s32 %v6393, %v6416
        %v6418 = vsub.s32 0, %v6417
        %v6419 = vsel %vm6391, %v6418, %v6417
        %vm6420 = vcmp.lt.s32.totalorder %v5168, 0
        %v6421 = vsub.s32 0, %v5168
        %v6422 = vsel %vm6420, %v6421, %v5168
        %v6423 = vand.u32 %v6422, 65535
        %v6424 = vshrl.u32 %v6422, 16
        %v6426 = vmul.u32 %v6423, 43691
        %v6427 = vmul.u32 %v6423, 43690
        %v6428 = vmul.u32 %v6424, 43691
        %v6429 = vmul.u32 %v6424, 43690
        %v6430 = vshll.u32 %v6427, 16
        %v6431 = vshrl.u32 %v6427, 16
        %v6432 = vshll.u32 %v6428, 16
        %v6433 = vshrl.u32 %v6428, 16
        %vm6434 = vc.u32 %v6426, %v6430
        %v6435 = vsel %vm6434, 1, 0
        %v6436 = vadd.s32 %v6426, %v6430
        %v6437 = vadd.s32 %v6429, %v6435
        %vm6438 = vc.u32 %v6436, %v6432
        %v6439 = vsel %vm6438, 1, 0
        %v6440 = vadd.s32 %v6436, %v6432
        %v6441 = vadd.s32 %v6437, %v6439
        %v6442 = vadd.s32 %v6441, %v6431
        %v6443 = vadd.s32 %v6442, %v6433
        %v6444 = vshrl.u32 %v6443, 4
        %v6445 = vmul.u32 %v6444, 24
        %v6446 = vsub.s32 %v6422, %v6445
        %v6447 = vsub.s32 0, %v6446
        %v6448 = vsel %vm6420, %v6447, %v6446
        %vm6449 = vcmp.lt.s32.totalorder %v5169, 0
        %v6450 = vsub.s32 0, %v5169
        %v6451 = vsel %vm6449, %v6450, %v5169
        %v6452 = vand.u32 %v6451, 65535
        %v6453 = vshrl.u32 %v6451, 16
        %v6455 = vmul.u32 %v6452, 43691
        %v6456 = vmul.u32 %v6452, 43690
        %v6457 = vmul.u32 %v6453, 43691
        %v6458 = vmul.u32 %v6453, 43690
        %v6459 = vshll.u32 %v6456, 16
        %v6460 = vshrl.u32 %v6456, 16
        %v6461 = vshll.u32 %v6457, 16
        %v6462 = vshrl.u32 %v6457, 16
        %vm6463 = vc.u32 %v6455, %v6459
        %v6464 = vsel %vm6463, 1, 0
        %v6465 = vadd.s32 %v6455, %v6459
        %v6466 = vadd.s32 %v6458, %v6464
        %vm6467 = vc.u32 %v6465, %v6461
        %v6468 = vsel %vm6467, 1, 0
        %v6469 = vadd.s32 %v6465, %v6461
        %v6470 = vadd.s32 %v6466, %v6468
        %v6471 = vadd.s32 %v6470, %v6460
        %v6472 = vadd.s32 %v6471, %v6462
        %v6473 = vshrl.u32 %v6472, 4
        %v6474 = vmul.u32 %v6473, 24
        %v6475 = vsub.s32 %v6451, %v6474
        %v6476 = vsub.s32 0, %v6475
        %v6477 = vsel %vm6449, %v6476, %v6475
        %vm6478 = vcmp.lt.s32.totalorder %v5170, 0
        %v6479 = vsub.s32 0, %v5170
        %v6480 = vsel %vm6478, %v6479, %v5170
        %v6481 = vand.u32 %v6480, 65535
        %v6482 = vshrl.u32 %v6480, 16
        %v6484 = vmul.u32 %v6481, 43691
        %v6485 = vmul.u32 %v6481, 43690
        %v6486 = vmul.u32 %v6482, 43691
        %v6487 = vmul.u32 %v6482, 43690
        %v6488 = vshll.u32 %v6485, 16
        %v6489 = vshrl.u32 %v6485, 16
        %v6490 = vshll.u32 %v6486, 16
        %v6491 = vshrl.u32 %v6486, 16
        %vm6492 = vc.u32 %v6484, %v6488
        %v6493 = vsel %vm6492, 1, 0
        %v6494 = vadd.s32 %v6484, %v6488
        %v6495 = vadd.s32 %v6487, %v6493
        %vm6496 = vc.u32 %v6494, %v6490
        %v6497 = vsel %vm6496, 1, 0
        %v6498 = vadd.s32 %v6494, %v6490
        %v6499 = vadd.s32 %v6495, %v6497
        %v6500 = vadd.s32 %v6499, %v6489
        %v6501 = vadd.s32 %v6500, %v6491
        %v6502 = vshrl.u32 %v6501, 4
        %v6503 = vmul.u32 %v6502, 24
        %v6504 = vsub.s32 %v6480, %v6503
        %v6505 = vsub.s32 0, %v6504
        %v6506 = vsel %vm6478, %v6505, %v6504
        %vm6507 = vcmp.lt.s32.totalorder %v5171, 0
        %v6508 = vsub.s32 0, %v5171
        %v6509 = vsel %vm6507, %v6508, %v5171
        %v6510 = vand.u32 %v6509, 65535
        %v6511 = vshrl.u32 %v6509, 16
        %v6513 = vmul.u32 %v6510, 43691
        %v6514 = vmul.u32 %v6510, 43690
        %v6515 = vmul.u32 %v6511, 43691
        %v6516 = vmul.u32 %v6511, 43690
        %v6517 = vshll.u32 %v6514, 16
        %v6518 = vshrl.u32 %v6514, 16
        %v6519 = vshll.u32 %v6515, 16
        %v6520 = vshrl.u32 %v6515, 16
        %vm6521 = vc.u32 %v6513, %v6517
        %v6522 = vsel %vm6521, 1, 0
        %v6523 = vadd.s32 %v6513, %v6517
        %v6524 = vadd.s32 %v6516, %v6522
        %vm6525 = vc.u32 %v6523, %v6519
        %v6526 = vsel %vm6525, 1, 0
        %v6527 = vadd.s32 %v6523, %v6519
        %v6528 = vadd.s32 %v6524, %v6526
        %v6529 = vadd.s32 %v6528, %v6518
        %v6530 = vadd.s32 %v6529, %v6520
        %v6531 = vshrl.u32 %v6530, 4
        %v6532 = vmul.u32 %v6531, 24
        %v6533 = vsub.s32 %v6509, %v6532
        %v6534 = vsub.s32 0, %v6533
        %v6535 = vsel %vm6507, %v6534, %v6533
        %vm6536 = vcmp.lt.s32.totalorder %v5172, 0
        %v6537 = vsub.s32 0, %v5172
        %v6538 = vsel %vm6536, %v6537, %v5172
        %v6539 = vand.u32 %v6538, 65535
        %v6540 = vshrl.u32 %v6538, 16
        %v6542 = vmul.u32 %v6539, 43691
        %v6543 = vmul.u32 %v6539, 43690
        %v6544 = vmul.u32 %v6540, 43691
        %v6545 = vmul.u32 %v6540, 43690
        %v6546 = vshll.u32 %v6543, 16
        %v6547 = vshrl.u32 %v6543, 16
        %v6548 = vshll.u32 %v6544, 16
        %v6549 = vshrl.u32 %v6544, 16
        %vm6550 = vc.u32 %v6542, %v6546
        %v6551 = vsel %vm6550, 1, 0
        %v6552 = vadd.s32 %v6542, %v6546
        %v6553 = vadd.s32 %v6545, %v6551
        %vm6554 = vc.u32 %v6552, %v6548
        %v6555 = vsel %vm6554, 1, 0
        %v6556 = vadd.s32 %v6552, %v6548
        %v6557 = vadd.s32 %v6553, %v6555
        %v6558 = vadd.s32 %v6557, %v6547
        %v6559 = vadd.s32 %v6558, %v6549
        %v6560 = vshrl.u32 %v6559, 4
        %v6561 = vmul.u32 %v6560, 24
        %v6562 = vsub.s32 %v6538, %v6561
        %v6563 = vsub.s32 0, %v6562
        %v6564 = vsel %vm6536, %v6563, %v6562
        %vm6565 = vcmp.ne.s32.totalorder %v5201, 0
        %vm6566 = vcmp.ne.s32.totalorder %v5230, 0
        %vm6567 = vcmp.ne.s32.totalorder %v5259, 0
        %vm6568 = vcmp.ne.s32.totalorder %v5288, 0
        %vm6569 = vcmp.ne.s32.totalorder %v5317, 0
        %vm6570 = vcmp.ne.s32.totalorder %v5346, 0
        %vm6571 = vcmp.ne.s32.totalorder %v5375, 0
        %vm6572 = vcmp.ne.s32.totalorder %v5404, 0
        %vm6573 = vcmp.ne.s32.totalorder %v5433, 0
        %vm6574 = vcmp.ne.s32.totalorder %v5462, 0
        %vm6575 = vcmp.ne.s32.totalorder %v5491, 0
        %vm6576 = vcmp.ne.s32.totalorder %v5520, 0
        %vm6577 = vcmp.ne.s32.totalorder %v5549, 0
        %vm6578 = vcmp.ne.s32.totalorder %v5578, 0
        %vm6579 = vcmp.ne.s32.totalorder %v5607, 0
        %vm6580 = vcmp.ne.s32.totalorder %v5636, 0
        %vm6581 = vcmp.ne.s32.totalorder %v5665, 0
        %vm6582 = vcmp.ne.s32.totalorder %v5694, 0
        %vm6583 = vcmp.ne.s32.totalorder %v5723, 0
        %vm6584 = vcmp.ne.s32.totalorder %v5752, 0
        %vm6585 = vcmp.ne.s32.totalorder %v5781, 0
        %vm6586 = vcmp.ne.s32.totalorder %v5810, 0
        %vm6587 = vcmp.ne.s32.totalorder %v5839, 0
        %vm6588 = vcmp.ne.s32.totalorder %v5868, 0
        %vm6589 = vcmp.ne.s32.totalorder %v5897, 0
        %vm6590 = vcmp.ne.s32.totalorder %v5926, 0
        %vm6591 = vcmp.ne.s32.totalorder %v5955, 0
        %vm6592 = vcmp.ne.s32.totalorder %v5984, 0
        %vm6593 = vcmp.ne.s32.totalorder %v6013, 0
        %vm6594 = vcmp.ne.s32.totalorder %v6042, 0
        %vm6595 = vcmp.ne.s32.totalorder %v6071, 0
        %vm6596 = vcmp.ne.s32.totalorder %v6100, 0
        %vm6597 = vcmp.ne.s32.totalorder %v6129, 0
        %vm6598 = vcmp.ne.s32.totalorder %v6158, 0
        %vm6599 = vcmp.ne.s32.totalorder %v6187, 0
        %vm6600 = vcmp.ne.s32.totalorder %v6216, 0
        %vm6601 = vcmp.ne.s32.totalorder %v6245, 0
        %vm6602 = vcmp.ne.s32.totalorder %v6274, 0
        %vm6603 = vcmp.ne.s32.totalorder %v6303, 0
        %vm6604 = vcmp.ne.s32.totalorder %v6332, 0
        %vm6605 = vcmp.ne.s32.totalorder %v6361, 0
        %vm6606 = vcmp.ne.s32.totalorder %v6390, 0
        %vm6607 = vcmp.ne.s32.totalorder %v6419, 0
        %vm6608 = vcmp.ne.s32.totalorder %v6448, 0
        %vm6609 = vcmp.ne.s32.totalorder %v6477, 0
        %vm6610 = vcmp.ne.s32.totalorder %v6506, 0
        %vm6611 = vcmp.ne.s32.totalorder %v6535, 0
        %vm6612 = vcmp.ne.s32.totalorder %v6564, 0
        %vm6613 = vcmp.lt.s32.totalorder %v5201, 0
        %vm6614 = vcmp.lt.s32.totalorder %v5230, 0
        %vm6615 = vcmp.lt.s32.totalorder %v5259, 0
        %vm6616 = vcmp.lt.s32.totalorder %v5288, 0
        %vm6617 = vcmp.lt.s32.totalorder %v5317, 0
        %vm6618 = vcmp.lt.s32.totalorder %v5346, 0
        %vm6619 = vcmp.lt.s32.totalorder %v5375, 0
        %vm6620 = vcmp.lt.s32.totalorder %v5404, 0
        %vm6621 = vcmp.lt.s32.totalorder %v5433, 0
        %vm6622 = vcmp.lt.s32.totalorder %v5462, 0
        %vm6623 = vcmp.lt.s32.totalorder %v5491, 0
        %vm6624 = vcmp.lt.s32.totalorder %v5520, 0
        %vm6625 = vcmp.lt.s32.totalorder %v5549, 0
        %vm6626 = vcmp.lt.s32.totalorder %v5578, 0
        %vm6627 = vcmp.lt.s32.totalorder %v5607, 0
        %vm6628 = vcmp.lt.s32.totalorder %v5636, 0
        %vm6629 = vcmp.lt.s32.totalorder %v5665, 0
        %vm6630 = vcmp.lt.s32.totalorder %v5694, 0
        %vm6631 = vcmp.lt.s32.totalorder %v5723, 0
        %vm6632 = vcmp.lt.s32.totalorder %v5752, 0
        %vm6633 = vcmp.lt.s32.totalorder %v5781, 0
        %vm6634 = vcmp.lt.s32.totalorder %v5810, 0
        %vm6635 = vcmp.lt.s32.totalorder %v5839, 0
        %vm6636 = vcmp.lt.s32.totalorder %v5868, 0
        %vm6637 = vcmp.lt.s32.totalorder %v5897, 0
        %vm6638 = vcmp.lt.s32.totalorder %v5926, 0
        %vm6639 = vcmp.lt.s32.totalorder %v5955, 0
        %vm6640 = vcmp.lt.s32.totalorder %v5984, 0
        %vm6641 = vcmp.lt.s32.totalorder %v6013, 0
        %vm6642 = vcmp.lt.s32.totalorder %v6042, 0
        %vm6643 = vcmp.lt.s32.totalorder %v6071, 0
        %vm6644 = vcmp.lt.s32.totalorder %v6100, 0
        %vm6645 = vcmp.lt.s32.totalorder %v6129, 0
        %vm6646 = vcmp.lt.s32.totalorder %v6158, 0
        %vm6647 = vcmp.lt.s32.totalorder %v6187, 0
        %vm6648 = vcmp.lt.s32.totalorder %v6216, 0
        %vm6649 = vcmp.lt.s32.totalorder %v6245, 0
        %vm6650 = vcmp.lt.s32.totalorder %v6274, 0
        %vm6651 = vcmp.lt.s32.totalorder %v6303, 0
        %vm6652 = vcmp.lt.s32.totalorder %v6332, 0
        %vm6653 = vcmp.lt.s32.totalorder %v6361, 0
        %vm6654 = vcmp.lt.s32.totalorder %v6390, 0
        %vm6655 = vcmp.lt.s32.totalorder %v6419, 0
        %vm6656 = vcmp.lt.s32.totalorder %v6448, 0
        %vm6657 = vcmp.lt.s32.totalorder %v6477, 0
        %vm6658 = vcmp.lt.s32.totalorder %v6506, 0
        %vm6659 = vcmp.lt.s32.totalorder %v6535, 0
        %vm6660 = vcmp.lt.s32.totalorder %v6564, 0
        %vm6661 = vmand %vm6613, %vm6565
        %vm6662 = vmand %vm6614, %vm6566
        %vm6663 = vmand %vm6615, %vm6567
        %vm6664 = vmand %vm6616, %vm6568
        %vm6665 = vmand %vm6617, %vm6569
        %vm6666 = vmand %vm6618, %vm6570
        %vm6667 = vmand %vm6619, %vm6571
        %vm6668 = vmand %vm6620, %vm6572
        %vm6669 = vmand %vm6621, %vm6573
        %vm6670 = vmand %vm6622, %vm6574
        %vm6671 = vmand %vm6623, %vm6575
        %vm6672 = vmand %vm6624, %vm6576
        %vm6673 = vmand %vm6625, %vm6577
        %vm6674 = vmand %vm6626, %vm6578
        %vm6675 = vmand %vm6627, %vm6579
        %vm6676 = vmand %vm6628, %vm6580
        %vm6677 = vmand %vm6629, %vm6581
        %vm6678 = vmand %vm6630, %vm6582
        %vm6679 = vmand %vm6631, %vm6583
        %vm6680 = vmand %vm6632, %vm6584
        %vm6681 = vmand %vm6633, %vm6585
        %vm6682 = vmand %vm6634, %vm6586
        %vm6683 = vmand %vm6635, %vm6587
        %vm6684 = vmand %vm6636, %vm6588
        %vm6685 = vmand %vm6637, %vm6589
        %vm6686 = vmand %vm6638, %vm6590
        %vm6687 = vmand %vm6639, %vm6591
        %vm6688 = vmand %vm6640, %vm6592
        %vm6689 = vmand %vm6641, %vm6593
        %vm6690 = vmand %vm6642, %vm6594
        %vm6691 = vmand %vm6643, %vm6595
        %vm6692 = vmand %vm6644, %vm6596
        %vm6693 = vmand %vm6645, %vm6597
        %vm6694 = vmand %vm6646, %vm6598
        %vm6695 = vmand %vm6647, %vm6599
        %vm6696 = vmand %vm6648, %vm6600
        %vm6697 = vmand %vm6649, %vm6601
        %vm6698 = vmand %vm6650, %vm6602
        %vm6699 = vmand %vm6651, %vm6603
        %vm6700 = vmand %vm6652, %vm6604
        %vm6701 = vmand %vm6653, %vm6605
        %vm6702 = vmand %vm6654, %vm6606
        %vm6703 = vmand %vm6655, %vm6607
        %vm6704 = vmand %vm6656, %vm6608
        %vm6705 = vmand %vm6657, %vm6609
        %vm6706 = vmand %vm6658, %vm6610
        %vm6707 = vmand %vm6659, %vm6611
        %vm6708 = vmand %vm6660, %vm6612
        %v6709 = vadd.s32 %v5201, 24
        %v6710 = vadd.s32 %v5230, 24
        %v6711 = vadd.s32 %v5259, 24
        %v6712 = vadd.s32 %v5288, 24
        %v6713 = vadd.s32 %v5317, 24
        %v6714 = vadd.s32 %v5346, 24
        %v6715 = vadd.s32 %v5375, 24
        %v6716 = vadd.s32 %v5404, 24
        %v6717 = vadd.s32 %v5433, 24
        %v6718 = vadd.s32 %v5462, 24
        %v6719 = vadd.s32 %v5491, 24
        %v6720 = vadd.s32 %v5520, 24
        %v6721 = vadd.s32 %v5549, 24
        %v6722 = vadd.s32 %v5578, 24
        %v6723 = vadd.s32 %v5607, 24
        %v6724 = vadd.s32 %v5636, 24
        %v6725 = vadd.s32 %v5665, 24
        %v6726 = vadd.s32 %v5694, 24
        %v6727 = vadd.s32 %v5723, 24
        %v6728 = vadd.s32 %v5752, 24
        %v6729 = vadd.s32 %v5781, 24
        %v6730 = vadd.s32 %v5810, 24
        %v6731 = vadd.s32 %v5839, 24
        %v6732 = vadd.s32 %v5868, 24
        %v6733 = vadd.s32 %v5897, 24
        %v6734 = vadd.s32 %v5926, 24
        %v6735 = vadd.s32 %v5955, 24
        %v6736 = vadd.s32 %v5984, 24
        %v6737 = vadd.s32 %v6013, 24
        %v6738 = vadd.s32 %v6042, 24
        %v6739 = vadd.s32 %v6071, 24
        %v6740 = vadd.s32 %v6100, 24
        %v6741 = vadd.s32 %v6129, 24
        %v6742 = vadd.s32 %v6158, 24
        %v6743 = vadd.s32 %v6187, 24
        %v6744 = vadd.s32 %v6216, 24
        %v6745 = vadd.s32 %v6245, 24
        %v6746 = vadd.s32 %v6274, 24
        %v6747 = vadd.s32 %v6303, 24
        %v6748 = vadd.s32 %v6332, 24
        %v6749 = vadd.s32 %v6361, 24
        %v6750 = vadd.s32 %v6390, 24
        %v6751 = vadd.s32 %v6419, 24
        %v6752 = vadd.s32 %v6448, 24
        %v6753 = vadd.s32 %v6477, 24
        %v6754 = vadd.s32 %v6506, 24
        %v6755 = vadd.s32 %v6535, 24
        %v6756 = vadd.s32 %v6564, 24
        %v6757 = vsel %vm6661, %v6709, %v5201
        %v6758 = vsel %vm6662, %v6710, %v5230
        %v6759 = vsel %vm6663, %v6711, %v5259
        %v6760 = vsel %vm6664, %v6712, %v5288
        %v6761 = vsel %vm6665, %v6713, %v5317
        %v6762 = vsel %vm6666, %v6714, %v5346
        %v6763 = vsel %vm6667, %v6715, %v5375
        %v6764 = vsel %vm6668, %v6716, %v5404
        %v6765 = vsel %vm6669, %v6717, %v5433
        %v6766 = vsel %vm6670, %v6718, %v5462
        %v6767 = vsel %vm6671, %v6719, %v5491
        %v6768 = vsel %vm6672, %v6720, %v5520
        %v6769 = vsel %vm6673, %v6721, %v5549
        %v6770 = vsel %vm6674, %v6722, %v5578
        %v6771 = vsel %vm6675, %v6723, %v5607
        %v6772 = vsel %vm6676, %v6724, %v5636
        %v6773 = vsel %vm6677, %v6725, %v5665
        %v6774 = vsel %vm6678, %v6726, %v5694
        %v6775 = vsel %vm6679, %v6727, %v5723
        %v6776 = vsel %vm6680, %v6728, %v5752
        %v6777 = vsel %vm6681, %v6729, %v5781
        %v6778 = vsel %vm6682, %v6730, %v5810
        %v6779 = vsel %vm6683, %v6731, %v5839
        %v6780 = vsel %vm6684, %v6732, %v5868
        %v6781 = vsel %vm6685, %v6733, %v5897
        %v6782 = vsel %vm6686, %v6734, %v5926
        %v6783 = vsel %vm6687, %v6735, %v5955
        %v6784 = vsel %vm6688, %v6736, %v5984
        %v6785 = vsel %vm6689, %v6737, %v6013
        %v6786 = vsel %vm6690, %v6738, %v6042
        %v6787 = vsel %vm6691, %v6739, %v6071
        %v6788 = vsel %vm6692, %v6740, %v6100
        %v6789 = vsel %vm6693, %v6741, %v6129
        %v6790 = vsel %vm6694, %v6742, %v6158
        %v6791 = vsel %vm6695, %v6743, %v6187
        %v6792 = vsel %vm6696, %v6744, %v6216
        %v6793 = vsel %vm6697, %v6745, %v6245
        %v6794 = vsel %vm6698, %v6746, %v6274
        %v6795 = vsel %vm6699, %v6747, %v6303
        %v6796 = vsel %vm6700, %v6748, %v6332
        %v6797 = vsel %vm6701, %v6749, %v6361
        %v6798 = vsel %vm6702, %v6750, %v6390
        %v6799 = vsel %vm6703, %v6751, %v6419
        %v6800 = vsel %vm6704, %v6752, %v6448
        %v6801 = vsel %vm6705, %v6753, %v6477
        %v6802 = vsel %vm6706, %v6754, %v6506
        %v6803 = vsel %vm6707, %v6755, %v6535
        %v6804 = vsel %vm6708, %v6756, %v6564
        %vm6805 = vcmp.lt.s32.totalorder %v6757, 16
        %vm6806 = vcmp.lt.s32.totalorder %v6758, 16
        %vm6807 = vcmp.lt.s32.totalorder %v6759, 16
        %vm6808 = vcmp.lt.s32.totalorder %v6760, 16
        %vm6809 = vcmp.lt.s32.totalorder %v6761, 16
        %vm6810 = vcmp.lt.s32.totalorder %v6762, 16
        %vm6811 = vcmp.lt.s32.totalorder %v6763, 16
        %vm6812 = vcmp.lt.s32.totalorder %v6764, 16
        %vm6813 = vcmp.lt.s32.totalorder %v6765, 16
        %vm6814 = vcmp.lt.s32.totalorder %v6766, 16
        %vm6815 = vcmp.lt.s32.totalorder %v6767, 16
        %vm6816 = vcmp.lt.s32.totalorder %v6768, 16
        %vm6817 = vcmp.lt.s32.totalorder %v6769, 16
        %vm6818 = vcmp.lt.s32.totalorder %v6770, 16
        %vm6819 = vcmp.lt.s32.totalorder %v6771, 16
        %vm6820 = vcmp.lt.s32.totalorder %v6772, 16
        %vm6821 = vcmp.lt.s32.totalorder %v6773, 16
        %vm6822 = vcmp.lt.s32.totalorder %v6774, 16
        %vm6823 = vcmp.lt.s32.totalorder %v6775, 16
        %vm6824 = vcmp.lt.s32.totalorder %v6776, 16
        %vm6825 = vcmp.lt.s32.totalorder %v6777, 16
        %vm6826 = vcmp.lt.s32.totalorder %v6778, 16
        %vm6827 = vcmp.lt.s32.totalorder %v6779, 16
        %vm6828 = vcmp.lt.s32.totalorder %v6780, 16
        %vm6829 = vcmp.lt.s32.totalorder %v6781, 16
        %vm6830 = vcmp.lt.s32.totalorder %v6782, 16
        %vm6831 = vcmp.lt.s32.totalorder %v6783, 16
        %vm6832 = vcmp.lt.s32.totalorder %v6784, 16
        %vm6833 = vcmp.lt.s32.totalorder %v6785, 16
        %vm6834 = vcmp.lt.s32.totalorder %v6786, 16
        %vm6835 = vcmp.lt.s32.totalorder %v6787, 16
        %vm6836 = vcmp.lt.s32.totalorder %v6788, 16
        %vm6837 = vcmp.lt.s32.totalorder %v6789, 16
        %vm6838 = vcmp.lt.s32.totalorder %v6790, 16
        %vm6839 = vcmp.lt.s32.totalorder %v6791, 16
        %vm6840 = vcmp.lt.s32.totalorder %v6792, 16
        %vm6841 = vcmp.lt.s32.totalorder %v6793, 16
        %vm6842 = vcmp.lt.s32.totalorder %v6794, 16
        %vm6843 = vcmp.lt.s32.totalorder %v6795, 16
        %vm6844 = vcmp.lt.s32.totalorder %v6796, 16
        %vm6845 = vcmp.lt.s32.totalorder %v6797, 16
        %vm6846 = vcmp.lt.s32.totalorder %v6798, 16
        %vm6847 = vcmp.lt.s32.totalorder %v6799, 16
        %vm6848 = vcmp.lt.s32.totalorder %v6800, 16
        %vm6849 = vcmp.lt.s32.totalorder %v6801, 16
        %vm6850 = vcmp.lt.s32.totalorder %v6802, 16
        %vm6851 = vcmp.lt.s32.totalorder %v6803, 16
        %vm6852 = vcmp.lt.s32.totalorder %v6804, 16
        %6901 = vrot.lane.b32.xlu0 %v4784, 96
        %v6902 = vpop.permute.xlu0 %6901
        %6903 = vrot.lane.b32.xlu0 %v4785, 96
        %v6904 = vpop.permute.xlu0 %6903
        %6905 = vrot.lane.b32.xlu0 %v4786, 96
        %v6906 = vpop.permute.xlu0 %6905
        %6907 = vrot.lane.b32.xlu0 %v4787, 96
        %v6908 = vpop.permute.xlu0 %6907
        %6909 = vrot.lane.b32.xlu0 %v4788, 96
        %v6910 = vpop.permute.xlu0 %6909
        %6911 = vrot.lane.b32.xlu0 %v4789, 96
        %v6912 = vpop.permute.xlu0 %6911
        %6913 = vrot.lane.b32.xlu0 %v4790, 96
        %v6914 = vpop.permute.xlu0 %6913
        %6915 = vrot.lane.b32.xlu0 %v4791, 96
        %v6916 = vpop.permute.xlu0 %6915
        %6917 = vrot.lane.b32.xlu0 %v4792, 96
        %v6918 = vpop.permute.xlu0 %6917
        %6919 = vrot.lane.b32.xlu0 %v4793, 96
        %v6920 = vpop.permute.xlu0 %6919
        %6921 = vrot.lane.b32.xlu0 %v4794, 96
        %v6922 = vpop.permute.xlu0 %6921
        %6923 = vrot.lane.b32.xlu0 %v4795, 96
        %v6924 = vpop.permute.xlu0 %6923
        %6925 = vrot.lane.b32.xlu0 %v4796, 96
        %v6926 = vpop.permute.xlu0 %6925
        %6927 = vrot.lane.b32.xlu0 %v4797, 96
        %v6928 = vpop.permute.xlu0 %6927
        %6929 = vrot.lane.b32.xlu0 %v4798, 96
        %v6930 = vpop.permute.xlu0 %6929
        %6931 = vrot.lane.b32.xlu0 %v4799, 96
        %v6932 = vpop.permute.xlu0 %6931
        %6933 = vrot.lane.b32.xlu0 %v4800, 96
        %v6934 = vpop.permute.xlu0 %6933
        %6935 = vrot.lane.b32.xlu0 %v4801, 96
        %v6936 = vpop.permute.xlu0 %6935
        %6937 = vrot.lane.b32.xlu0 %v4802, 96
        %v6938 = vpop.permute.xlu0 %6937
        %6939 = vrot.lane.b32.xlu0 %v4803, 96
        %v6940 = vpop.permute.xlu0 %6939
        %6941 = vrot.lane.b32.xlu0 %v4804, 96
        %v6942 = vpop.permute.xlu0 %6941
        %6943 = vrot.lane.b32.xlu0 %v4805, 96
        %v6944 = vpop.permute.xlu0 %6943
        %6945 = vrot.lane.b32.xlu0 %v4806, 96
        %v6946 = vpop.permute.xlu0 %6945
        %6947 = vrot.lane.b32.xlu0 %v4807, 96
        %v6948 = vpop.permute.xlu0 %6947
        %6949 = vrot.lane.b32.xlu0 %v4808, 96
        %v6950 = vpop.permute.xlu0 %6949
        %6951 = vrot.lane.b32.xlu0 %v4809, 96
        %v6952 = vpop.permute.xlu0 %6951
        %6953 = vrot.lane.b32.xlu0 %v4810, 96
        %v6954 = vpop.permute.xlu0 %6953
        %6955 = vrot.lane.b32.xlu0 %v4811, 96
        %v6956 = vpop.permute.xlu0 %6955
        %6957 = vrot.lane.b32.xlu0 %v4812, 96
        %v6958 = vpop.permute.xlu0 %6957
        %6959 = vrot.lane.b32.xlu0 %v4813, 96
        %v6960 = vpop.permute.xlu0 %6959
        %6961 = vrot.lane.b32.xlu0 %v4814, 96
        %v6962 = vpop.permute.xlu0 %6961
        %6963 = vrot.lane.b32.xlu0 %v4815, 96
        %v6964 = vpop.permute.xlu0 %6963
        %6965 = vrot.lane.b32.xlu0 %v4816, 96
        %v6966 = vpop.permute.xlu0 %6965
        %6967 = vrot.lane.b32.xlu0 %v4817, 96
        %v6968 = vpop.permute.xlu0 %6967
        %6969 = vrot.lane.b32.xlu0 %v4818, 96
        %v6970 = vpop.permute.xlu0 %6969
        %6971 = vrot.lane.b32.xlu0 %v4819, 96
        %v6972 = vpop.permute.xlu0 %6971
        %6973 = vrot.lane.b32.xlu0 %v4820, 96
        %v6974 = vpop.permute.xlu0 %6973
        %6975 = vrot.lane.b32.xlu0 %v4821, 96
        %v6976 = vpop.permute.xlu0 %6975
        %6977 = vrot.lane.b32.xlu0 %v4822, 96
        %v6978 = vpop.permute.xlu0 %6977
        %6979 = vrot.lane.b32.xlu0 %v4823, 96
        %v6980 = vpop.permute.xlu0 %6979
        %6981 = vrot.lane.b32.xlu0 %v4824, 96
        %v6982 = vpop.permute.xlu0 %6981
        %6983 = vrot.lane.b32.xlu0 %v4825, 96
        %v6984 = vpop.permute.xlu0 %6983
        %6985 = vrot.lane.b32.xlu0 %v4826, 96
        %v6986 = vpop.permute.xlu0 %6985
        %6987 = vrot.lane.b32.xlu0 %v4827, 96
        %v6988 = vpop.permute.xlu0 %6987
        %6989 = vrot.lane.b32.xlu0 %v4828, 96
        %v6990 = vpop.permute.xlu0 %6989
        %6991 = vrot.lane.b32.xlu0 %v4829, 96
        %v6992 = vpop.permute.xlu0 %6991
        %6993 = vrot.lane.b32.xlu0 %v4830, 96
        %v6994 = vpop.permute.xlu0 %6993
        %6995 = vrot.lane.b32.xlu0 %v4831, 96
        %v6996 = vpop.permute.xlu0 %6995
        %7045 = vst.msk [vmem:[#allocation3] sm:$0xff] %vm1465, %v6902
        %7046 = vst.msk [vmem:[#allocation3 + $0x8] sm:$0xff] %vm1465, %v6904
        %7047 = vst.msk [vmem:[#allocation3 + $0x10] sm:$0xff] %vm1465, %v6906
        %7048 = vst.msk [vmem:[#allocation3 + $0x18] sm:$0xff] %vm1465, %v6908
        %7049 = vst.msk [vmem:[#allocation3 + $0x20] sm:$0xff] %vm1465, %v6910
        %7050 = vst.msk [vmem:[#allocation3 + $0x28] sm:$0xff] %vm1465, %v6912
        %7051 = vst.msk [vmem:[#allocation3 + $0x30] sm:$0xff] %vm1465, %v6914
        %7052 = vst.msk [vmem:[#allocation3 + $0x38] sm:$0xff] %vm1465, %v6916
        %7053 = vst.msk [vmem:[#allocation3 + $0x40] sm:$0xff] %vm1465, %v6918
        %7054 = vst.msk [vmem:[#allocation3 + $0x48] sm:$0xff] %vm1465, %v6920
        %7055 = vst.msk [vmem:[#allocation3 + $0x50] sm:$0xff] %vm1465, %v6922
        %7056 = vst.msk [vmem:[#allocation3 + $0x58] sm:$0xff] %vm1465, %v6924
        %7057 = vst.msk [vmem:[#allocation3 + $0x60] sm:$0xff] %vm1465, %v6926
        %7058 = vst.msk [vmem:[#allocation3 + $0x68] sm:$0xff] %vm1465, %v6928
        %7059 = vst.msk [vmem:[#allocation3 + $0x70] sm:$0xff] %vm1465, %v6930
        %7060 = vst.msk [vmem:[#allocation3 + $0x78] sm:$0xff] %vm1465, %v6932
        %7061 = vst.msk [vmem:[#allocation3 + $0x80] sm:$0xff] %vm1465, %v6934
        %7062 = vst.msk [vmem:[#allocation3 + $0x88] sm:$0xff] %vm1465, %v6936
        %7063 = vst.msk [vmem:[#allocation3 + $0x90] sm:$0xff] %vm1465, %v6938
        %7064 = vst.msk [vmem:[#allocation3 + $0x98] sm:$0xff] %vm1465, %v6940
        %7065 = vst.msk [vmem:[#allocation3 + $0xa0] sm:$0xff] %vm1465, %v6942
        %7066 = vst.msk [vmem:[#allocation3 + $0xa8] sm:$0xff] %vm1465, %v6944
        %7067 = vst.msk [vmem:[#allocation3 + $0xb0] sm:$0xff] %vm1465, %v6946
        %7068 = vst.msk [vmem:[#allocation3 + $0xb8] sm:$0xff] %vm1465, %v6948
        %7069 = vst.msk [vmem:[#allocation3 + $0xc0] sm:$0xff] %vm1465, %v6950
        %7070 = vst.msk [vmem:[#allocation3 + $0xc8] sm:$0xff] %vm1465, %v6952
        %7071 = vst.msk [vmem:[#allocation3 + $0xd0] sm:$0xff] %vm1465, %v6954
        %7072 = vst.msk [vmem:[#allocation3 + $0xd8] sm:$0xff] %vm1465, %v6956
        %7073 = vst.msk [vmem:[#allocation3 + $0xe0] sm:$0xff] %vm1465, %v6958
        %7074 = vst.msk [vmem:[#allocation3 + $0xe8] sm:$0xff] %vm1465, %v6960
        %7075 = vst.msk [vmem:[#allocation3 + $0xf0] sm:$0xff] %vm1465, %v6962
        %7076 = vst.msk [vmem:[#allocation3 + $0xf8] sm:$0xff] %vm1465, %v6964
        %7077 = vst.msk [vmem:[#allocation3 + $0x100] sm:$0xff] %vm1465, %v6966
        %7078 = vst.msk [vmem:[#allocation3 + $0x108] sm:$0xff] %vm1465, %v6968
        %7079 = vst.msk [vmem:[#allocation3 + $0x110] sm:$0xff] %vm1465, %v6970
        %7080 = vst.msk [vmem:[#allocation3 + $0x118] sm:$0xff] %vm1465, %v6972
        %7081 = vst.msk [vmem:[#allocation3 + $0x120] sm:$0xff] %vm1465, %v6974
        %7082 = vst.msk [vmem:[#allocation3 + $0x128] sm:$0xff] %vm1465, %v6976
        %7083 = vst.msk [vmem:[#allocation3 + $0x130] sm:$0xff] %vm1465, %v6978
        %7084 = vst.msk [vmem:[#allocation3 + $0x138] sm:$0xff] %vm1465, %v6980
        %7085 = vst.msk [vmem:[#allocation3 + $0x140] sm:$0xff] %vm1465, %v6982
        %7086 = vst.msk [vmem:[#allocation3 + $0x148] sm:$0xff] %vm1465, %v6984
        %7087 = vst.msk [vmem:[#allocation3 + $0x150] sm:$0xff] %vm1465, %v6986
        %7088 = vst.msk [vmem:[#allocation3 + $0x158] sm:$0xff] %vm1465, %v6988
        %7089 = vst.msk [vmem:[#allocation3 + $0x160] sm:$0xff] %vm1465, %v6990
        %7090 = vst.msk [vmem:[#allocation3 + $0x168] sm:$0xff] %vm1465, %v6992
        %7091 = vst.msk [vmem:[#allocation3 + $0x170] sm:$0xff] %vm1465, %v6994
        %7092 = vst.msk [vmem:[#allocation3 + $0x178] sm:$0xff] %vm1465, %v6996
        %v7093 = vsel %vm6805, %v5072, 0.0
        %v7094 = vsel %vm6806, %v5073, 0.0
        %v7095 = vsel %vm6807, %v5074, 0.0
        %v7096 = vsel %vm6808, %v5075, 0.0
        %v7097 = vsel %vm6809, %v5076, 0.0
        %v7098 = vsel %vm6810, %v5077, 0.0
        %v7099 = vsel %vm6811, %v5078, 0.0
        %v7100 = vsel %vm6812, %v5079, 0.0
        %v7101 = vsel %vm6813, %v5080, 0.0
        %v7102 = vsel %vm6814, %v5081, 0.0
        %v7103 = vsel %vm6815, %v5082, 0.0
        %v7104 = vsel %vm6816, %v5083, 0.0
        %v7105 = vsel %vm6817, %v5084, 0.0
        %v7106 = vsel %vm6818, %v5085, 0.0
        %v7107 = vsel %vm6819, %v5086, 0.0
        %v7108 = vsel %vm6820, %v5087, 0.0
        %v7109 = vsel %vm6821, %v5088, 0.0
        %v7110 = vsel %vm6822, %v5089, 0.0
        %v7111 = vsel %vm6823, %v5090, 0.0
        %v7112 = vsel %vm6824, %v5091, 0.0
        %v7113 = vsel %vm6825, %v5092, 0.0
        %v7114 = vsel %vm6826, %v5093, 0.0
        %v7115 = vsel %vm6827, %v5094, 0.0
        %v7116 = vsel %vm6828, %v5095, 0.0
        %v7117 = vsel %vm6829, %v5096, 0.0
        %v7118 = vsel %vm6830, %v5097, 0.0
        %v7119 = vsel %vm6831, %v5098, 0.0
        %v7120 = vsel %vm6832, %v5099, 0.0
        %v7121 = vsel %vm6833, %v5100, 0.0
        %v7122 = vsel %vm6834, %v5101, 0.0
        %v7123 = vsel %vm6835, %v5102, 0.0
        %v7124 = vsel %vm6836, %v5103, 0.0
        %v7125 = vsel %vm6837, %v5104, 0.0
        %v7126 = vsel %vm6838, %v5105, 0.0
        %v7127 = vsel %vm6839, %v5106, 0.0
        %v7128 = vsel %vm6840, %v5107, 0.0
        %v7129 = vsel %vm6841, %v5108, 0.0
        %v7130 = vsel %vm6842, %v5109, 0.0
        %v7131 = vsel %vm6843, %v5110, 0.0
        %v7132 = vsel %vm6844, %v5111, 0.0
        %v7133 = vsel %vm6845, %v5112, 0.0
        %v7134 = vsel %vm6846, %v5113, 0.0
        %v7135 = vsel %vm6847, %v5114, 0.0
        %v7136 = vsel %vm6848, %v5115, 0.0
        %v7137 = vsel %vm6849, %v5116, 0.0
        %v7138 = vsel %vm6850, %v5117, 0.0
        %v7139 = vsel %vm6851, %v5118, 0.0
        %v7140 = vsel %vm6852, %v5119, 0.0
        %7189 = vrot.lane.b32.xlu0 %v7093, 64
        %v7190 = vpop.permute.xlu0 %7189
        %7191 = vrot.lane.b32.xlu0 %v7094, 64
        %v7192 = vpop.permute.xlu0 %7191
        %7193 = vrot.lane.b32.xlu0 %v7095, 64
        %v7194 = vpop.permute.xlu0 %7193
        %7195 = vrot.lane.b32.xlu0 %v7096, 64
        %v7196 = vpop.permute.xlu0 %7195
        %7197 = vrot.lane.b32.xlu0 %v7097, 64
        %v7198 = vpop.permute.xlu0 %7197
        %7199 = vrot.lane.b32.xlu0 %v7098, 64
        %v7200 = vpop.permute.xlu0 %7199
        %7201 = vrot.lane.b32.xlu0 %v7099, 64
        %v7202 = vpop.permute.xlu0 %7201
        %7203 = vrot.lane.b32.xlu0 %v7100, 64
        %v7204 = vpop.permute.xlu0 %7203
        %7205 = vrot.lane.b32.xlu0 %v7101, 64
        %v7206 = vpop.permute.xlu0 %7205
        %7207 = vrot.lane.b32.xlu0 %v7102, 64
        %v7208 = vpop.permute.xlu0 %7207
        %7209 = vrot.lane.b32.xlu0 %v7103, 64
        %v7210 = vpop.permute.xlu0 %7209
        %7211 = vrot.lane.b32.xlu0 %v7104, 64
        %v7212 = vpop.permute.xlu0 %7211
        %7213 = vrot.lane.b32.xlu0 %v7105, 64
        %v7214 = vpop.permute.xlu0 %7213
        %7215 = vrot.lane.b32.xlu0 %v7106, 64
        %v7216 = vpop.permute.xlu0 %7215
        %7217 = vrot.lane.b32.xlu0 %v7107, 64
        %v7218 = vpop.permute.xlu0 %7217
        %7219 = vrot.lane.b32.xlu0 %v7108, 64
        %v7220 = vpop.permute.xlu0 %7219
        %7221 = vrot.lane.b32.xlu0 %v7109, 64
        %v7222 = vpop.permute.xlu0 %7221
        %7223 = vrot.lane.b32.xlu0 %v7110, 64
        %v7224 = vpop.permute.xlu0 %7223
        %7225 = vrot.lane.b32.xlu0 %v7111, 64
        %v7226 = vpop.permute.xlu0 %7225
        %7227 = vrot.lane.b32.xlu0 %v7112, 64
        %v7228 = vpop.permute.xlu0 %7227
        %7229 = vrot.lane.b32.xlu0 %v7113, 64
        %v7230 = vpop.permute.xlu0 %7229
        %7231 = vrot.lane.b32.xlu0 %v7114, 64
        %v7232 = vpop.permute.xlu0 %7231
        %7233 = vrot.lane.b32.xlu0 %v7115, 64
        %v7234 = vpop.permute.xlu0 %7233
        %7235 = vrot.lane.b32.xlu0 %v7116, 64
        %v7236 = vpop.permute.xlu0 %7235
        %7237 = vrot.lane.b32.xlu0 %v7117, 64
        %v7238 = vpop.permute.xlu0 %7237
        %7239 = vrot.lane.b32.xlu0 %v7118, 64
        %v7240 = vpop.permute.xlu0 %7239
        %7241 = vrot.lane.b32.xlu0 %v7119, 64
        %v7242 = vpop.permute.xlu0 %7241
        %7243 = vrot.lane.b32.xlu0 %v7120, 64
        %v7244 = vpop.permute.xlu0 %7243
        %7245 = vrot.lane.b32.xlu0 %v7121, 64
        %v7246 = vpop.permute.xlu0 %7245
        %7247 = vrot.lane.b32.xlu0 %v7122, 64
        %v7248 = vpop.permute.xlu0 %7247
        %7249 = vrot.lane.b32.xlu0 %v7123, 64
        %v7250 = vpop.permute.xlu0 %7249
        %7251 = vrot.lane.b32.xlu0 %v7124, 64
        %v7252 = vpop.permute.xlu0 %7251
        %7253 = vrot.lane.b32.xlu0 %v7125, 64
        %v7254 = vpop.permute.xlu0 %7253
        %7255 = vrot.lane.b32.xlu0 %v7126, 64
        %v7256 = vpop.permute.xlu0 %7255
        %7257 = vrot.lane.b32.xlu0 %v7127, 64
        %v7258 = vpop.permute.xlu0 %7257
        %7259 = vrot.lane.b32.xlu0 %v7128, 64
        %v7260 = vpop.permute.xlu0 %7259
        %7261 = vrot.lane.b32.xlu0 %v7129, 64
        %v7262 = vpop.permute.xlu0 %7261
        %7263 = vrot.lane.b32.xlu0 %v7130, 64
        %v7264 = vpop.permute.xlu0 %7263
        %7265 = vrot.lane.b32.xlu0 %v7131, 64
        %v7266 = vpop.permute.xlu0 %7265
        %7267 = vrot.lane.b32.xlu0 %v7132, 64
        %v7268 = vpop.permute.xlu0 %7267
        %7269 = vrot.lane.b32.xlu0 %v7133, 64
        %v7270 = vpop.permute.xlu0 %7269
        %7271 = vrot.lane.b32.xlu0 %v7134, 64
        %v7272 = vpop.permute.xlu0 %7271
        %7273 = vrot.lane.b32.xlu0 %v7135, 64
        %v7274 = vpop.permute.xlu0 %7273
        %7275 = vrot.lane.b32.xlu0 %v7136, 64
        %v7276 = vpop.permute.xlu0 %7275
        %7277 = vrot.lane.b32.xlu0 %v7137, 64
        %v7278 = vpop.permute.xlu0 %7277
        %7279 = vrot.lane.b32.xlu0 %v7138, 64
        %v7280 = vpop.permute.xlu0 %7279
        %7281 = vrot.lane.b32.xlu0 %v7139, 64
        %v7282 = vpop.permute.xlu0 %7281
        %7283 = vrot.lane.b32.xlu0 %v7140, 64
        %v7284 = vpop.permute.xlu0 %7283
        %7333 = vst.msk [vmem:[#allocation2 + $0x20] sm:$0xff] %vm1465, %v7190
        %7334 = vst.msk [vmem:[#allocation2 + $0x28] sm:$0xff] %vm1465, %v7192
        %7335 = vst.msk [vmem:[#allocation2 + $0x30] sm:$0xff] %vm1465, %v7194
        %7336 = vst.msk [vmem:[#allocation2 + $0x38] sm:$0xff] %vm1465, %v7196
        %7337 = vst.msk [vmem:[#allocation2 + $0x40] sm:$0xff] %vm1465, %v7198
        %7338 = vst.msk [vmem:[#allocation2 + $0x48] sm:$0xff] %vm1465, %v7200
        %7339 = vst.msk [vmem:[#allocation2 + $0x50] sm:$0xff] %vm1465, %v7202
        %7340 = vst.msk [vmem:[#allocation2 + $0x58] sm:$0xff] %vm1465, %v7204
        %7341 = vst.msk [vmem:[#allocation2 + $0x60] sm:$0xff] %vm1465, %v7206
        %7342 = vst.msk [vmem:[#allocation2 + $0x68] sm:$0xff] %vm1465, %v7208
        %7343 = vst.msk [vmem:[#allocation2 + $0x70] sm:$0xff] %vm1465, %v7210
        %7344 = vst.msk [vmem:[#allocation2 + $0x78] sm:$0xff] %vm1465, %v7212
        %7345 = vst.msk [vmem:[#allocation2 + $0x80] sm:$0xff] %vm1465, %v7214
        %7346 = vst.msk [vmem:[#allocation2 + $0x88] sm:$0xff] %vm1465, %v7216
        %7347 = vst.msk [vmem:[#allocation2 + $0x90] sm:$0xff] %vm1465, %v7218
        %7348 = vst.msk [vmem:[#allocation2 + $0x98] sm:$0xff] %vm1465, %v7220
        %7349 = vst.msk [vmem:[#allocation2 + $0xa0] sm:$0xff] %vm1465, %v7222
        %7350 = vst.msk [vmem:[#allocation2 + $0xa8] sm:$0xff] %vm1465, %v7224
        %7351 = vst.msk [vmem:[#allocation2 + $0xb0] sm:$0xff] %vm1465, %v7226
        %7352 = vst.msk [vmem:[#allocation2 + $0xb8] sm:$0xff] %vm1465, %v7228
        %7353 = vst.msk [vmem:[#allocation2 + $0xc0] sm:$0xff] %vm1465, %v7230
        %7354 = vst.msk [vmem:[#allocation2 + $0xc8] sm:$0xff] %vm1465, %v7232
        %7355 = vst.msk [vmem:[#allocation2 + $0xd0] sm:$0xff] %vm1465, %v7234
        %7356 = vst.msk [vmem:[#allocation2 + $0xd8] sm:$0xff] %vm1465, %v7236
        %7357 = vst.msk [vmem:[#allocation2 + $0xe0] sm:$0xff] %vm1465, %v7238
        %7358 = vst.msk [vmem:[#allocation2 + $0xe8] sm:$0xff] %vm1465, %v7240
        %7359 = vst.msk [vmem:[#allocation2 + $0xf0] sm:$0xff] %vm1465, %v7242
        %7360 = vst.msk [vmem:[#allocation2 + $0xf8] sm:$0xff] %vm1465, %v7244
        %7361 = vst.msk [vmem:[#allocation2 + $0x100] sm:$0xff] %vm1465, %v7246
        %7362 = vst.msk [vmem:[#allocation2 + $0x108] sm:$0xff] %vm1465, %v7248
        %7363 = vst.msk [vmem:[#allocation2 + $0x110] sm:$0xff] %vm1465, %v7250
        %7364 = vst.msk [vmem:[#allocation2 + $0x118] sm:$0xff] %vm1465, %v7252
        %7365 = vst.msk [vmem:[#allocation2 + $0x120] sm:$0xff] %vm1465, %v7254
        %7366 = vst.msk [vmem:[#allocation2 + $0x128] sm:$0xff] %vm1465, %v7256
        %7367 = vst.msk [vmem:[#allocation2 + $0x130] sm:$0xff] %vm1465, %v7258
        %7368 = vst.msk [vmem:[#allocation2 + $0x138] sm:$0xff] %vm1465, %v7260
        %7369 = vst.msk [vmem:[#allocation2 + $0x140] sm:$0xff] %vm1465, %v7262
        %7370 = vst.msk [vmem:[#allocation2 + $0x148] sm:$0xff] %vm1465, %v7264
        %7371 = vst.msk [vmem:[#allocation2 + $0x150] sm:$0xff] %vm1465, %v7266
        %7372 = vst.msk [vmem:[#allocation2 + $0x158] sm:$0xff] %vm1465, %v7268
        %7373 = vst.msk [vmem:[#allocation2 + $0x160] sm:$0xff] %vm1465, %v7270
        %7374 = vst.msk [vmem:[#allocation2 + $0x168] sm:$0xff] %vm1465, %v7272
        %7375 = vst.msk [vmem:[#allocation2 + $0x170] sm:$0xff] %vm1465, %v7274
        %7376 = vst.msk [vmem:[#allocation2 + $0x178] sm:$0xff] %vm1465, %v7276
        %7377 = vst.msk [vmem:[#allocation2 + $0x180] sm:$0xff] %vm1465, %v7278
        %7378 = vst.msk [vmem:[#allocation2 + $0x188] sm:$0xff] %vm1465, %v7280
        %7379 = vst.msk [vmem:[#allocation2 + $0x190] sm:$0xff] %vm1465, %v7282
        %7380 = vst.msk [vmem:[#allocation2 + $0x198] sm:$0xff] %vm1465, %v7284
      $region36: #{convlstm_forward.1} parent=27 // pred_fallthru
        _
      %p7381 = scmp.eq.s32.totalorder %s18, 2
      // Predicated region
      $region37: #{convlstm_forward.1} parent=27 // pred_check
        %p7382 = pneg %p7381
      $region38: #{convlstm_forward.1} parent=27 // pred_check_branch
        %7384 = sbr.rel (%p7382) target = $region40
      $region39: #{convlstm_forward.1} parent=27 // pred_region
        %7433 = vrot.lane.b32.xlu0 %v5072, 64
        %v7434 = vpop.permute.xlu0 %7433
        %7435 = vrot.lane.b32.xlu0 %v5073, 64
        %v7436 = vpop.permute.xlu0 %7435
        %7437 = vrot.lane.b32.xlu0 %v5074, 64
        %v7438 = vpop.permute.xlu0 %7437
        %7439 = vrot.lane.b32.xlu0 %v5075, 64
        %v7440 = vpop.permute.xlu0 %7439
        %7441 = vrot.lane.b32.xlu0 %v5076, 64
        %v7442 = vpop.permute.xlu0 %7441
        %7443 = vrot.lane.b32.xlu0 %v5077, 64
        %v7444 = vpop.permute.xlu0 %7443
        %7445 = vrot.lane.b32.xlu0 %v5078, 64
        %v7446 = vpop.permute.xlu0 %7445
        %7447 = vrot.lane.b32.xlu0 %v5079, 64
        %v7448 = vpop.permute.xlu0 %7447
        %7449 = vrot.lane.b32.xlu0 %v5080, 64
        %v7450 = vpop.permute.xlu0 %7449
        %7451 = vrot.lane.b32.xlu0 %v5081, 64
        %v7452 = vpop.permute.xlu0 %7451
        %7453 = vrot.lane.b32.xlu0 %v5082, 64
        %v7454 = vpop.permute.xlu0 %7453
        %7455 = vrot.lane.b32.xlu0 %v5083, 64
        %v7456 = vpop.permute.xlu0 %7455
        %7457 = vrot.lane.b32.xlu0 %v5084, 64
        %v7458 = vpop.permute.xlu0 %7457
        %7459 = vrot.lane.b32.xlu0 %v5085, 64
        %v7460 = vpop.permute.xlu0 %7459
        %7461 = vrot.lane.b32.xlu0 %v5086, 64
        %v7462 = vpop.permute.xlu0 %7461
        %7463 = vrot.lane.b32.xlu0 %v5087, 64
        %v7464 = vpop.permute.xlu0 %7463
        %7465 = vrot.lane.b32.xlu0 %v5088, 64
        %v7466 = vpop.permute.xlu0 %7465
        %7467 = vrot.lane.b32.xlu0 %v5089, 64
        %v7468 = vpop.permute.xlu0 %7467
        %7469 = vrot.lane.b32.xlu0 %v5090, 64
        %v7470 = vpop.permute.xlu0 %7469
        %7471 = vrot.lane.b32.xlu0 %v5091, 64
        %v7472 = vpop.permute.xlu0 %7471
        %7473 = vrot.lane.b32.xlu0 %v5092, 64
        %v7474 = vpop.permute.xlu0 %7473
        %7475 = vrot.lane.b32.xlu0 %v5093, 64
        %v7476 = vpop.permute.xlu0 %7475
        %7477 = vrot.lane.b32.xlu0 %v5094, 64
        %v7478 = vpop.permute.xlu0 %7477
        %7479 = vrot.lane.b32.xlu0 %v5095, 64
        %v7480 = vpop.permute.xlu0 %7479
        %7481 = vrot.lane.b32.xlu0 %v5096, 64
        %v7482 = vpop.permute.xlu0 %7481
        %7483 = vrot.lane.b32.xlu0 %v5097, 64
        %v7484 = vpop.permute.xlu0 %7483
        %7485 = vrot.lane.b32.xlu0 %v5098, 64
        %v7486 = vpop.permute.xlu0 %7485
        %7487 = vrot.lane.b32.xlu0 %v5099, 64
        %v7488 = vpop.permute.xlu0 %7487
        %7489 = vrot.lane.b32.xlu0 %v5100, 64
        %v7490 = vpop.permute.xlu0 %7489
        %7491 = vrot.lane.b32.xlu0 %v5101, 64
        %v7492 = vpop.permute.xlu0 %7491
        %7493 = vrot.lane.b32.xlu0 %v5102, 64
        %v7494 = vpop.permute.xlu0 %7493
        %7495 = vrot.lane.b32.xlu0 %v5103, 64
        %v7496 = vpop.permute.xlu0 %7495
        %7497 = vrot.lane.b32.xlu0 %v5104, 64
        %v7498 = vpop.permute.xlu0 %7497
        %7499 = vrot.lane.b32.xlu0 %v5105, 64
        %v7500 = vpop.permute.xlu0 %7499
        %7501 = vrot.lane.b32.xlu0 %v5106, 64
        %v7502 = vpop.permute.xlu0 %7501
        %7503 = vrot.lane.b32.xlu0 %v5107, 64
        %v7504 = vpop.permute.xlu0 %7503
        %7505 = vrot.lane.b32.xlu0 %v5108, 64
        %v7506 = vpop.permute.xlu0 %7505
        %7507 = vrot.lane.b32.xlu0 %v5109, 64
        %v7508 = vpop.permute.xlu0 %7507
        %7509 = vrot.lane.b32.xlu0 %v5110, 64
        %v7510 = vpop.permute.xlu0 %7509
        %7511 = vrot.lane.b32.xlu0 %v5111, 64
        %v7512 = vpop.permute.xlu0 %7511
        %7513 = vrot.lane.b32.xlu0 %v5112, 64
        %v7514 = vpop.permute.xlu0 %7513
        %7515 = vrot.lane.b32.xlu0 %v5113, 64
        %v7516 = vpop.permute.xlu0 %7515
        %7517 = vrot.lane.b32.xlu0 %v5114, 64
        %v7518 = vpop.permute.xlu0 %7517
        %7519 = vrot.lane.b32.xlu0 %v5115, 64
        %v7520 = vpop.permute.xlu0 %7519
        %7521 = vrot.lane.b32.xlu0 %v5116, 64
        %v7522 = vpop.permute.xlu0 %7521
        %7523 = vrot.lane.b32.xlu0 %v5117, 64
        %v7524 = vpop.permute.xlu0 %7523
        %7525 = vrot.lane.b32.xlu0 %v5118, 64
        %v7526 = vpop.permute.xlu0 %7525
        %7527 = vrot.lane.b32.xlu0 %v5119, 64
        %v7528 = vpop.permute.xlu0 %7527
        %7577 = vst.msk [vmem:[%s169] sm:$0xff] %vm1465, %v7434
        %7578 = vst.msk [vmem:[%s169 + $0x8] sm:$0xff] %vm1465, %v7436
        %7579 = vst.msk [vmem:[%s169 + $0x10] sm:$0xff] %vm1465, %v7438
        %7580 = vst.msk [vmem:[%s169 + $0x18] sm:$0xff] %vm1465, %v7440
        %7581 = vst.msk [vmem:[%s169 + $0x20] sm:$0xff] %vm1465, %v7442
        %7582 = vst.msk [vmem:[%s169 + $0x28] sm:$0xff] %vm1465, %v7444
        %7583 = vst.msk [vmem:[%s169 + $0x30] sm:$0xff] %vm1465, %v7446
        %7584 = vst.msk [vmem:[%s169 + $0x38] sm:$0xff] %vm1465, %v7448
        %7585 = vst.msk [vmem:[%s169 + $0x40] sm:$0xff] %vm1465, %v7450
        %7586 = vst.msk [vmem:[%s169 + $0x48] sm:$0xff] %vm1465, %v7452
        %7587 = vst.msk [vmem:[%s169 + $0x50] sm:$0xff] %vm1465, %v7454
        %7588 = vst.msk [vmem:[%s169 + $0x58] sm:$0xff] %vm1465, %v7456
        %7589 = vst.msk [vmem:[%s169 + $0x60] sm:$0xff] %vm1465, %v7458
        %7590 = vst.msk [vmem:[%s169 + $0x68] sm:$0xff] %vm1465, %v7460
        %7591 = vst.msk [vmem:[%s169 + $0x70] sm:$0xff] %vm1465, %v7462
        %7592 = vst.msk [vmem:[%s169 + $0x78] sm:$0xff] %vm1465, %v7464
        %7593 = vst.msk [vmem:[%s169 + $0x80] sm:$0xff] %vm1465, %v7466
        %7594 = vst.msk [vmem:[%s169 + $0x88] sm:$0xff] %vm1465, %v7468
        %7595 = vst.msk [vmem:[%s169 + $0x90] sm:$0xff] %vm1465, %v7470
        %7596 = vst.msk [vmem:[%s169 + $0x98] sm:$0xff] %vm1465, %v7472
        %7597 = vst.msk [vmem:[%s169 + $0xa0] sm:$0xff] %vm1465, %v7474
        %7598 = vst.msk [vmem:[%s169 + $0xa8] sm:$0xff] %vm1465, %v7476
        %7599 = vst.msk [vmem:[%s169 + $0xb0] sm:$0xff] %vm1465, %v7478
        %7600 = vst.msk [vmem:[%s169 + $0xb8] sm:$0xff] %vm1465, %v7480
        %7601 = vst.msk [vmem:[%s169 + $0xc0] sm:$0xff] %vm1465, %v7482
        %7602 = vst.msk [vmem:[%s169 + $0xc8] sm:$0xff] %vm1465, %v7484
        %7603 = vst.msk [vmem:[%s169 + $0xd0] sm:$0xff] %vm1465, %v7486
        %7604 = vst.msk [vmem:[%s169 + $0xd8] sm:$0xff] %vm1465, %v7488
        %7605 = vst.msk [vmem:[%s169 + $0xe0] sm:$0xff] %vm1465, %v7490
        %7606 = vst.msk [vmem:[%s169 + $0xe8] sm:$0xff] %vm1465, %v7492
        %7607 = vst.msk [vmem:[%s169 + $0xf0] sm:$0xff] %vm1465, %v7494
        %7608 = vst.msk [vmem:[%s169 + $0xf8] sm:$0xff] %vm1465, %v7496
        %7609 = vst.msk [vmem:[%s169 + $0x100] sm:$0xff] %vm1465, %v7498
        %7610 = vst.msk [vmem:[%s169 + $0x108] sm:$0xff] %vm1465, %v7500
        %7611 = vst.msk [vmem:[%s169 + $0x110] sm:$0xff] %vm1465, %v7502
        %7612 = vst.msk [vmem:[%s169 + $0x118] sm:$0xff] %vm1465, %v7504
        %7613 = vst.msk [vmem:[%s169 + $0x120] sm:$0xff] %vm1465, %v7506
        %7614 = vst.msk [vmem:[%s169 + $0x128] sm:$0xff] %vm1465, %v7508
        %7615 = vst.msk [vmem:[%s169 + $0x130] sm:$0xff] %vm1465, %v7510
        %7616 = vst.msk [vmem:[%s169 + $0x138] sm:$0xff] %vm1465, %v7512
        %7617 = vst.msk [vmem:[%s169 + $0x140] sm:$0xff] %vm1465, %v7514
        %7618 = vst.msk [vmem:[%s169 + $0x148] sm:$0xff] %vm1465, %v7516
        %7619 = vst.msk [vmem:[%s169 + $0x150] sm:$0xff] %vm1465, %v7518
        %7620 = vst.msk [vmem:[%s169 + $0x158] sm:$0xff] %vm1465, %v7520
        %7621 = vst.msk [vmem:[%s169 + $0x160] sm:$0xff] %vm1465, %v7522
        %7622 = vst.msk [vmem:[%s169 + $0x168] sm:$0xff] %vm1465, %v7524
        %7623 = vst.msk [vmem:[%s169 + $0x170] sm:$0xff] %vm1465, %v7526
        %7624 = vst.msk [vmem:[%s169 + $0x178] sm:$0xff] %vm1465, %v7528
      $region40: #{convlstm_forward.1} parent=27 // pred_fallthru
        _
      %p7625 = scmp.lt.s32.totalorder %s17, 1
      %s7626 = scalar_select %p7625, %s17, 1
      %s7627 = smul.addr %s7626, 48
      %s7628 = smul.addr %s7627, 8
      %s7629 = scalar_lea.vmem %s2, %s7628
      // Predicated region
      $region41: #{convlstm_forward.1} parent=27 // pred_check
        %p7630 = pneg %p92
      $region42: #{convlstm_forward.1} parent=27 // pred_check_branch
        %7632 = sbr.rel (%p7630) target = $region44
      $region43: #{convlstm_forward.1} parent=27 // pred_region
        _
      $region44: #{convlstm_forward.1} parent=27 // pred_fallthru
        _
    $region28: #{convlstm_forward.1} parent=5 // pred_fallthru
      _
    %p7633 = scmp.le.s32.totalorder 2, %s8
    // Predicated region
    $region45: #{convlstm_forward.1} parent=5 // pred_check
      %p7634 = pneg %p7633
    $region46: #{convlstm_forward.1} parent=5 // pred_check_branch
      %7636 = sbr.rel (%p7634) target = $region48
    $region47: #{convlstm_forward.1} parent=5 // pred_region
      %s7637 = ssub.s32 %s8, 2
      // Predicated region
      $region49: #{convlstm_forward.1} parent=47 // pred_check
        %p7638 = pneg %p98
      $region50: #{convlstm_forward.1} parent=47 // pred_check_branch
        %7640 = sbr.rel (%p7638) target = $region52
      $region51: #{convlstm_forward.1} parent=47 // pred_region
        %p7641 = scmp.lt.s32.totalorder %s19, 1
        %s7642 = scalar_select %p7641, %s19, 1
        %s7643 = smul.addr %s7642, 48
        %s7644 = smul.addr %s7643, 8
        %s7645 = scalar_lea.vmem %s2, %s7644
      $region52: #{convlstm_forward.1} parent=47 // pred_fallthru
        _
    $region48: #{convlstm_forward.1} parent=5 // pred_fallthru
      _
  $region6: #{convlstm_forward.1} parent=0 // loop_footer
    %s12 = sadd.s32 1, %s8
  $region7: #{convlstm_forward.1} parent=0 // loop_footer_branch
    %7 = sbr.rel target = $region3
  $region8: #{convlstm_forward.1} parent=0 // loop_exit
    _

</llo_original>
